<compile_context>
chip_gen: v5e
topology: v5e:2x2
jax: 0.10.0
libtpu: 0.0.40
codegen_flags: <defaults>
</compile_context>

<pallas_src>
import functools

import jax
import jax.numpy as jnp
from jax.experimental import pallas as pl
from jax.experimental.pallas import tpu as pltpu


# ------------------------------ fused kernel ------------------------------- #

def _pixel_encoder_kernel(xph_ref, w1t_ref, wct_ref, bc_ref, wfc_ref,
                          bfc_ref, gamma_ref, beta_ref, o_ref,
                          *, q_sizes, pitch):
    """One batch element: 4x (conv3x3 + ReLU) -> FC -> LayerNorm.

    Layouts (channel-major, flat pixel index q = h * pitch + w):
      xph_ref : (1, 4, Cin_pad, pitch*pitch)  2x2 phase split of the input
      w1t_ref : (9, NF, Cin_pad)              conv1 taps, transposed (co, ci)
      wct_ref : (3, 9, NF, NF)                conv2..4 taps, transposed
      bc_ref  : (4, NF, 1)                    conv biases (f32)
      wfc_ref : (NF, Q4, F)                   FC weight with NCHW flatten order
                                              + pitch-pad zeros folded in
      o_ref   : (1, 1, F)
    """
    q1, q2, q3, q4 = q_sizes
    nf = w1t_ref.shape[1]
    feat = o_ref.shape[-1]

    # ---- conv1: 3x3 stride 2 (phase-split input -> every tap is unit-stride)
    acc = jnp.zeros((nf, q1), jnp.float32)
    for t in range(9):
        kh, kw = divmod(t, 3)
        p = (kh % 2) * 2 + (kw % 2)
        d = (kh // 2) * pitch + (kw // 2)
        tap = xph_ref[0, p, :, d:d + q1]                   # (Cin_pad, q1) bf16
        acc = acc + jnp.dot(w1t_ref[t], tap,
                            preferred_element_type=jnp.float32)
    a = jnp.maximum(acc + bc_ref[0], 0.0).astype(jnp.bfloat16)   # (NF, q1)

    # ---- conv2..conv4: 3x3 stride 1 in the fixed-pitch flat layout
    for layer, q_out in enumerate((q2, q3, q4)):
        acc = jnp.zeros((nf, q_out), jnp.float32)
        for t in range(9):
            kh, kw = divmod(t, 3)
            d = kh * pitch + kw
            acc = acc + jnp.dot(wct_ref[layer, t], a[:, d:d + q_out],
                                preferred_element_type=jnp.float32)
        a = jnp.maximum(acc + bc_ref[layer + 1], 0.0).astype(jnp.bfloat16)

    # ---- FC (flatten permutation folded into wfc) + LayerNorm (eps = 1e-5)
    y = bfc_ref[...].astype(jnp.float32)                   # (1, F)
    for c in range(nf):
        y = y + jnp.dot(a[c:c + 1, :], wfc_ref[c],
                        preferred_element_type=jnp.float32)
    mean = jnp.mean(y, axis=-1, keepdims=True)
    var = jnp.mean(jnp.square(y - mean), axis=-1, keepdims=True)
    y_hat = (y - mean) * jax.lax.rsqrt(var + 1e-5)
    out = y_hat * gamma_ref[...] + beta_ref[...]
    o_ref[...] = out.astype(o_ref.dtype).reshape(1, 1, feat)


# ------------------------------ forward wrapper ----------------------------- #

def pixel_encoder_forward(params, obs_nchw):
    """Equivalent of PixelEncoder.forward(obs) (detach is a no-op here)."""
    n, cin, hh, ww = obs_nchw.shape
    assert hh == ww and hh % 2 == 0
    nf = params["convs"][0][0].shape[-1]          # num_filters
    feat = params["fc_w"].shape[1]                # feature_dim

    # spatial sizes of the conv stack: 3x3 VALID, strides (2, 1, 1, 1)
    h1 = (hh - 3) // 2 + 1                        # 31 for 64x64 input
    h4 = h1 - 6                                   # 25: final spatial size
    assert params["fc_w"].shape[0] == nf * h4 * h4  # module hard-wires 25*25
    pitch = hh // 2                               # flat row pitch (>= h1)
    pp = pitch * pitch                            # columns per phase plane
    assert pitch >= h1

    # columns each layer must compute (extra "pitch" columns hold harmless
    # finite garbage; the FC weight zeros them out)
    q4 = (h4 - 1) * pitch + h4
    q3 = q4 + 2 * pitch + 2
    q2 = q3 + 2 * pitch + 2
    q1 = q2 + 2 * pitch + 2
    assert q1 + pitch + 1 <= pp

    cin_pad = ((cin + 7) // 8) * 8

    # --- input: 2x2 phase split (cheap trace-level glue on the raw obs), bf16
    phases = [obs_nchw[:, :, a::2, b::2].reshape(n, cin, pp)
              for a in (0, 1) for b in (0, 1)]
    xph = jnp.stack(phases, axis=1)                         # (N, 4, Cin, pp)
    if cin_pad > cin:
        xph = jnp.pad(xph, ((0, 0), (0, 0), (0, cin_pad - cin), (0, 0)))
    xph = xph.astype(jnp.bfloat16)

    # --- conv weights as per-tap transposed matrices (Cout, Cin), bf16
    w1 = params["convs"][0][0]
    w1t = jnp.transpose(w1, (0, 1, 3, 2)).reshape(9, nf, cin)
    if cin_pad > cin:
        w1t = jnp.pad(w1t, ((0, 0), (0, 0), (0, cin_pad - cin)))
    w1t = w1t.astype(jnp.bfloat16)
    wct = jnp.stack([jnp.transpose(w, (0, 1, 3, 2)).reshape(9, nf, nf)
                     for w, _ in params["convs"][1:]]).astype(jnp.bfloat16)
    bc = jnp.stack([b for _, b in params["convs"]]).reshape(4, nf, 1)

    # --- FC weight: fold PyTorch NCHW x.view(N, -1) order + pitch-pad zeros
    wfc = params["fc_w"].reshape(nf, h4, h4, feat)
    wfc = jnp.pad(wfc, ((0, 0), (0, 0), (0, pitch - h4), (0, 0)))
    wfc = wfc.reshape(nf, h4 * pitch, feat)[:, :q4, :].astype(jnp.bfloat16)

    bfc = params["fc_b"].reshape(1, feat)
    gamma = params["ln_gamma"].reshape(1, feat)
    beta = params["ln_beta"].reshape(1, feat)

    kernel = functools.partial(_pixel_encoder_kernel,
                               q_sizes=(q1, q2, q3, q4), pitch=pitch)
    out = pl.pallas_call(
        kernel,
        out_shape=jax.ShapeDtypeStruct((n, 1, feat), jnp.float32),
        grid=(n,),
        in_specs=[
            pl.BlockSpec((1, 4, cin_pad, pp), lambda b: (b, 0, 0, 0)),
            pl.BlockSpec((9, nf, cin_pad), lambda b: (0, 0, 0)),
            pl.BlockSpec((3, 9, nf, nf), lambda b: (0, 0, 0, 0)),
            pl.BlockSpec((4, nf, 1), lambda b: (0, 0, 0)),
            pl.BlockSpec((nf, q4, feat), lambda b: (0, 0, 0)),
            pl.BlockSpec((1, feat), lambda b: (0, 0)),
            pl.BlockSpec((1, feat), lambda b: (0, 0)),
            pl.BlockSpec((1, feat), lambda b: (0, 0)),
        ],
        out_specs=pl.BlockSpec((1, 1, feat), lambda b: (b, 0, 0)),
        compiler_params=pltpu.CompilerParams(
            dimension_semantics=("parallel",)),
    )(xph, w1t, wct, bc, wfc, bfc, gamma, beta)
    return out.reshape(n, feat)


# ----------------------------- params / reference --------------------------- #

CONV_STRIDES = (2, 1, 1, 1)


def init_params(key, obs_channels, num_filters, feature_dim, conv_out_hw=25):
    keys = jax.random.split(key, 12)
    convs = []
    cin = obs_channels
    for i in range(4):
        w = 0.05 * jax.random.normal(keys[2 * i], (3, 3, cin, num_filters),
                                     jnp.float32)
        b = 0.01 * jax.random.normal(keys[2 * i + 1], (num_filters,),
                                     jnp.float32)
        convs.append((w, b))
        cin = num_filters
    fc_in = num_filters * conv_out_hw * conv_out_hw
    fc_w = 0.01 * jax.random.normal(keys[8], (fc_in, feature_dim), jnp.float32)
    fc_b = 0.01 * jax.random.normal(keys[9], (feature_dim,), jnp.float32)
    ln_gamma = 1.0 + 0.1 * jax.random.normal(keys[10], (feature_dim,),
                                             jnp.float32)
    ln_beta = 0.1 * jax.random.normal(keys[11], (feature_dim,), jnp.float32)
    return {"convs": convs, "fc_w": fc_w, "fc_b": fc_b,
            "ln_gamma": ln_gamma, "ln_beta": ln_beta}


def reference_forward(params, obs_nchw):
    x = obs_nchw
    for (w, b), s in zip(params["convs"], CONV_STRIDES):
        x = jax.lax.conv_general_dilated(
            x, w, window_strides=(s, s), padding="VALID",
            dimension_numbers=("NCHW", "HWIO", "NCHW"))
        x = jax.nn.relu(x + b.reshape(1, -1, 1, 1))
    h = x.reshape(x.shape[0], -1)
    y = h @ params["fc_w"] + params["fc_b"]
    mean = y.mean(-1, keepdims=True)
    var = ((y - mean) ** 2).mean(-1, keepdims=True)
    return (y - mean) / jnp.sqrt(var + 1e-5) * params["ln_gamma"] + params["ln_beta"]


# --------------------------------- main ------------------------------------- #

if __name__ == "__main__":
    # fc is hard-wired to num_filters*25*25, which implies 64x64 spatial input:
    # 64 -(3,s2)-> 31 -(3,s1)-> 29 -(3,s1)-> 27 -(3,s1)-> 25.
    batch, channels, spatial = 2, 3, 64
    num_filters, feature_dim = 8, 16

    key = jax.random.PRNGKey(0)
    k_obs, k_par = jax.random.split(key)
    obs = jax.random.normal(k_obs, (batch, channels, spatial, spatial),
                            jnp.float32)
    params = init_params(k_par, channels, num_filters, feature_dim)

    fwd = jax.jit(pixel_encoder_forward)
    out = jax.block_until_ready(fwd(params, obs))

    assert out.shape == (batch, feature_dim)
    assert bool(jnp.all(jnp.isfinite(out)))
    ref = reference_forward(params, obs)
    max_err = float(jnp.max(jnp.abs(out - ref)))
    assert max_err < 5e-2, f"mismatch vs reference: {max_err}"
    print("KERNEL_OK")
</pallas_src>

<mosaic_0001>
module attributes {stable_mosaic.version = 11 : i64} {
  func.func @_pixel_encoder_kernel(%arg0: i32, %arg1: memref<1x4x8x1024xbf16, #tpu.memory_space<vmem>>, %arg2: memref<9x8x8xbf16, #tpu.memory_space<vmem>>, %arg3: memref<3x9x8x8xbf16, #tpu.memory_space<vmem>>, %arg4: memref<4x8x1xf32, #tpu.memory_space<vmem>>, %arg5: memref<8x793x16xbf16, #tpu.memory_space<vmem>>, %arg6: memref<1x16xf32, #tpu.memory_space<vmem>>, %arg7: memref<1x16xf32, #tpu.memory_space<vmem>>, %arg8: memref<1x16xf32, #tpu.memory_space<vmem>>, %arg9: memref<1x1x16xf32, #tpu.memory_space<vmem>>) attributes {dimension_semantics = [#tpu.dimension_semantics<parallel>], iteration_bounds = array<i64: 2>, scalar_prefetch = 0 : i64, scratch_operands = 0 : i64, tpu.core_type = #tpu.core_type<tc>, window_params = [{transform_indices = @transform_0, window_bounds = array<i64: 1, 4, 8, 1024>}, {pipeline_mode = #tpu.pipeline_mode<synchronous>, transform_indices = @transform_1, window_bounds = array<i64: 9, 8, 8>}, {pipeline_mode = #tpu.pipeline_mode<synchronous>, transform_indices = @transform_2, window_bounds = array<i64: 3, 9, 8, 8>}, {pipeline_mode = #tpu.pipeline_mode<synchronous>, transform_indices = @transform_3, window_bounds = array<i64: 4, 8, 1>}, {pipeline_mode = #tpu.pipeline_mode<synchronous>, transform_indices = @transform_4, window_bounds = array<i64: 8, 793, 16>}, {pipeline_mode = #tpu.pipeline_mode<synchronous>, transform_indices = @transform_5, window_bounds = array<i64: 1, 16>}, {pipeline_mode = #tpu.pipeline_mode<synchronous>, transform_indices = @transform_6, window_bounds = array<i64: 1, 16>}, {pipeline_mode = #tpu.pipeline_mode<synchronous>, transform_indices = @transform_7, window_bounds = array<i64: 1, 16>}, {transform_indices = @transform_8, window_bounds = array<i64: 1, 1, 16>}]} {
    %cst = arith.constant 0.000000e+00 : f32
    %0 = vector.broadcast %cst : f32 to vector<8x991xf32>
    %c0 = arith.constant 0 : index
    %c0_0 = arith.constant 0 : index
    %c0_1 = arith.constant 0 : index
    %c0_2 = arith.constant 0 : index
    %1 = vector.load %arg1[%c0, %c0_0, %c0_1, %c0_2] : memref<1x4x8x1024xbf16, #tpu.memory_space<vmem>>, vector<1x1x8x991xbf16>
    %2 = vector.shape_cast %1 : vector<1x1x8x991xbf16> to vector<8x991xbf16>
    %c0_3 = arith.constant 0 : index
    %c0_4 = arith.constant 0 : index
    %c0_5 = arith.constant 0 : index
    %3 = vector.load %arg2[%c0_3, %c0_4, %c0_5] : memref<9x8x8xbf16, #tpu.memory_space<vmem>>, vector<1x8x8xbf16>
    %4 = vector.shape_cast %3 : vector<1x8x8xbf16> to vector<8x8xbf16>
    %cst_6 = arith.constant dense<0.000000e+00> : vector<8x991xf32>
    %5 = tpu.matmul %4, %2, %cst_6 {dimension_numbers = #tpu.dot_dimension_numbers<[1], [0], [0], [1], [0, 0, 1, 1], [], []>} : vector<8x8xbf16>, vector<8x991xbf16>, vector<8x991xf32> -> vector<8x991xf32>
    %6 = arith.addf %0, %5 : vector<8x991xf32>
    %c0_7 = arith.constant 0 : index
    %c1 = arith.constant 1 : index
    %c0_8 = arith.constant 0 : index
    %c0_9 = arith.constant 0 : index
    %7 = vector.load %arg1[%c0_7, %c1, %c0_8, %c0_9] : memref<1x4x8x1024xbf16, #tpu.memory_space<vmem>>, vector<1x1x8x991xbf16>
    %8 = vector.shape_cast %7 : vector<1x1x8x991xbf16> to vector<8x991xbf16>
    %c1_10 = arith.constant 1 : index
    %c0_11 = arith.constant 0 : index
    %c0_12 = arith.constant 0 : index
    %9 = vector.load %arg2[%c1_10, %c0_11, %c0_12] : memref<9x8x8xbf16, #tpu.memory_space<vmem>>, vector<1x8x8xbf16>
    %10 = vector.shape_cast %9 : vector<1x8x8xbf16> to vector<8x8xbf16>
    %cst_13 = arith.constant dense<0.000000e+00> : vector<8x991xf32>
    %11 = tpu.matmul %10, %8, %cst_13 {dimension_numbers = #tpu.dot_dimension_numbers<[1], [0], [0], [1], [0, 0, 1, 1], [], []>} : vector<8x8xbf16>, vector<8x991xbf16>, vector<8x991xf32> -> vector<8x991xf32>
    %12 = arith.addf %6, %11 : vector<8x991xf32>
    %c0_14 = arith.constant 0 : index
    %c0_15 = arith.constant 0 : index
    %c0_16 = arith.constant 0 : index
    %c1_17 = arith.constant 1 : index
    %13 = vector.load %arg1[%c0_14, %c0_15, %c0_16, %c1_17] : memref<1x4x8x1024xbf16, #tpu.memory_space<vmem>>, vector<1x1x8x991xbf16>
    %14 = vector.shape_cast %13 : vector<1x1x8x991xbf16> to vector<8x991xbf16>
    %c2 = arith.constant 2 : index
    %c0_18 = arith.constant 0 : index
    %c0_19 = arith.constant 0 : index
    %15 = vector.load %arg2[%c2, %c0_18, %c0_19] : memref<9x8x8xbf16, #tpu.memory_space<vmem>>, vector<1x8x8xbf16>
    %16 = vector.shape_cast %15 : vector<1x8x8xbf16> to vector<8x8xbf16>
    %cst_20 = arith.constant dense<0.000000e+00> : vector<8x991xf32>
    %17 = tpu.matmul %16, %14, %cst_20 {dimension_numbers = #tpu.dot_dimension_numbers<[1], [0], [0], [1], [0, 0, 1, 1], [], []>} : vector<8x8xbf16>, vector<8x991xbf16>, vector<8x991xf32> -> vector<8x991xf32>
    %18 = arith.addf %12, %17 : vector<8x991xf32>
    %c0_21 = arith.constant 0 : index
    %c2_22 = arith.constant 2 : index
    %c0_23 = arith.constant 0 : index
    %c0_24 = arith.constant 0 : index
    %19 = vector.load %arg1[%c0_21, %c2_22, %c0_23, %c0_24] : memref<1x4x8x1024xbf16, #tpu.memory_space<vmem>>, vector<1x1x8x991xbf16>
    %20 = vector.shape_cast %19 : vector<1x1x8x991xbf16> to vector<8x991xbf16>
    %c3 = arith.constant 3 : index
    %c0_25 = arith.constant 0 : index
    %c0_26 = arith.constant 0 : index
    %21 = vector.load %arg2[%c3, %c0_25, %c0_26] : memref<9x8x8xbf16, #tpu.memory_space<vmem>>, vector<1x8x8xbf16>
    %22 = vector.shape_cast %21 : vector<1x8x8xbf16> to vector<8x8xbf16>
    %cst_27 = arith.constant dense<0.000000e+00> : vector<8x991xf32>
    %23 = tpu.matmul %22, %20, %cst_27 {dimension_numbers = #tpu.dot_dimension_numbers<[1], [0], [0], [1], [0, 0, 1, 1], [], []>} : vector<8x8xbf16>, vector<8x991xbf16>, vector<8x991xf32> -> vector<8x991xf32>
    %24 = arith.addf %18, %23 : vector<8x991xf32>
    %c0_28 = arith.constant 0 : index
    %c3_29 = arith.constant 3 : index
    %c0_30 = arith.constant 0 : index
    %c0_31 = arith.constant 0 : index
    %25 = vector.load %arg1[%c0_28, %c3_29, %c0_30, %c0_31] : memref<1x4x8x1024xbf16, #tpu.memory_space<vmem>>, vector<1x1x8x991xbf16>
    %26 = vector.shape_cast %25 : vector<1x1x8x991xbf16> to vector<8x991xbf16>
    %c4 = arith.constant 4 : index
    %c0_32 = arith.constant 0 : index
    %c0_33 = arith.constant 0 : index
    %27 = vector.load %arg2[%c4, %c0_32, %c0_33] : memref<9x8x8xbf16, #tpu.memory_space<vmem>>, vector<1x8x8xbf16>
    %28 = vector.shape_cast %27 : vector<1x8x8xbf16> to vector<8x8xbf16>
    %cst_34 = arith.constant dense<0.000000e+00> : vector<8x991xf32>
    %29 = tpu.matmul %28, %26, %cst_34 {dimension_numbers = #tpu.dot_dimension_numbers<[1], [0], [0], [1], [0, 0, 1, 1], [], []>} : vector<8x8xbf16>, vector<8x991xbf16>, vector<8x991xf32> -> vector<8x991xf32>
    %30 = arith.addf %24, %29 : vector<8x991xf32>
    %c0_35 = arith.constant 0 : index
    %c2_36 = arith.constant 2 : index
    %c0_37 = arith.constant 0 : index
    %c1_38 = arith.constant 1 : index
    %31 = vector.load %arg1[%c0_35, %c2_36, %c0_37, %c1_38] : memref<1x4x8x1024xbf16, #tpu.memory_space<vmem>>, vector<1x1x8x991xbf16>
    %32 = vector.shape_cast %31 : vector<1x1x8x991xbf16> to vector<8x991xbf16>
    %c5 = arith.constant 5 : index
    %c0_39 = arith.constant 0 : index
    %c0_40 = arith.constant 0 : index
    %33 = vector.load %arg2[%c5, %c0_39, %c0_40] : memref<9x8x8xbf16, #tpu.memory_space<vmem>>, vector<1x8x8xbf16>
    %34 = vector.shape_cast %33 : vector<1x8x8xbf16> to vector<8x8xbf16>
    %cst_41 = arith.constant dense<0.000000e+00> : vector<8x991xf32>
    %35 = tpu.matmul %34, %32, %cst_41 {dimension_numbers = #tpu.dot_dimension_numbers<[1], [0], [0], [1], [0, 0, 1, 1], [], []>} : vector<8x8xbf16>, vector<8x991xbf16>, vector<8x991xf32> -> vector<8x991xf32>
    %36 = arith.addf %30, %35 : vector<8x991xf32>
    %c0_42 = arith.constant 0 : index
    %c0_43 = arith.constant 0 : index
    %c0_44 = arith.constant 0 : index
    %c32 = arith.constant 32 : index
    %37 = vector.load %arg1[%c0_42, %c0_43, %c0_44, %c32] : memref<1x4x8x1024xbf16, #tpu.memory_space<vmem>>, vector<1x1x8x991xbf16>
    %38 = vector.shape_cast %37 : vector<1x1x8x991xbf16> to vector<8x991xbf16>
    %c6 = arith.constant 6 : index
    %c0_45 = arith.constant 0 : index
    %c0_46 = arith.constant 0 : index
    %39 = vector.load %arg2[%c6, %c0_45, %c0_46] : memref<9x8x8xbf16, #tpu.memory_space<vmem>>, vector<1x8x8xbf16>
    %40 = vector.shape_cast %39 : vector<1x8x8xbf16> to vector<8x8xbf16>
    %cst_47 = arith.constant dense<0.000000e+00> : vector<8x991xf32>
    %41 = tpu.matmul %40, %38, %cst_47 {dimension_numbers = #tpu.dot_dimension_numbers<[1], [0], [0], [1], [0, 0, 1, 1], [], []>} : vector<8x8xbf16>, vector<8x991xbf16>, vector<8x991xf32> -> vector<8x991xf32>
    %42 = arith.addf %36, %41 : vector<8x991xf32>
    %c0_48 = arith.constant 0 : index
    %c1_49 = arith.constant 1 : index
    %c0_50 = arith.constant 0 : index
    %c32_51 = arith.constant 32 : index
    %43 = vector.load %arg1[%c0_48, %c1_49, %c0_50, %c32_51] : memref<1x4x8x1024xbf16, #tpu.memory_space<vmem>>, vector<1x1x8x991xbf16>
    %44 = vector.shape_cast %43 : vector<1x1x8x991xbf16> to vector<8x991xbf16>
    %c7 = arith.constant 7 : index
    %c0_52 = arith.constant 0 : index
    %c0_53 = arith.constant 0 : index
    %45 = vector.load %arg2[%c7, %c0_52, %c0_53] : memref<9x8x8xbf16, #tpu.memory_space<vmem>>, vector<1x8x8xbf16>
    %46 = vector.shape_cast %45 : vector<1x8x8xbf16> to vector<8x8xbf16>
    %cst_54 = arith.constant dense<0.000000e+00> : vector<8x991xf32>
    %47 = tpu.matmul %46, %44, %cst_54 {dimension_numbers = #tpu.dot_dimension_numbers<[1], [0], [0], [1], [0, 0, 1, 1], [], []>} : vector<8x8xbf16>, vector<8x991xbf16>, vector<8x991xf32> -> vector<8x991xf32>
    %48 = arith.addf %42, %47 : vector<8x991xf32>
    %c0_55 = arith.constant 0 : index
    %c0_56 = arith.constant 0 : index
    %c0_57 = arith.constant 0 : index
    %c33 = arith.constant 33 : index
    %49 = vector.load %arg1[%c0_55, %c0_56, %c0_57, %c33] : memref<1x4x8x1024xbf16, #tpu.memory_space<vmem>>, vector<1x1x8x991xbf16>
    %50 = vector.shape_cast %49 : vector<1x1x8x991xbf16> to vector<8x991xbf16>
    %c8 = arith.constant 8 : index
    %c0_58 = arith.constant 0 : index
    %c0_59 = arith.constant 0 : index
    %51 = vector.load %arg2[%c8, %c0_58, %c0_59] : memref<9x8x8xbf16, #tpu.memory_space<vmem>>, vector<1x8x8xbf16>
    %52 = vector.shape_cast %51 : vector<1x8x8xbf16> to vector<8x8xbf16>
    %cst_60 = arith.constant dense<0.000000e+00> : vector<8x991xf32>
    %53 = tpu.matmul %52, %50, %cst_60 {dimension_numbers = #tpu.dot_dimension_numbers<[1], [0], [0], [1], [0, 0, 1, 1], [], []>} : vector<8x8xbf16>, vector<8x991xbf16>, vector<8x991xf32> -> vector<8x991xf32>
    %54 = arith.addf %48, %53 : vector<8x991xf32>
    %c0_61 = arith.constant 0 : index
    %c0_62 = arith.constant 0 : index
    %c0_63 = arith.constant 0 : index
    %55 = vector.load %arg4[%c0_61, %c0_62, %c0_63] : memref<4x8x1xf32, #tpu.memory_space<vmem>>, vector<1x8x1xf32>
    %56 = vector.shape_cast %55 : vector<1x8x1xf32> to vector<8x1xf32>
    %57 = vector.broadcast %56 : vector<8x1xf32> to vector<8x991xf32>
    %58 = arith.addf %54, %57 : vector<8x991xf32>
    %cst_64 = arith.constant 0.000000e+00 : f32
    %59 = vector.broadcast %cst_64 : f32 to vector<8x991xf32>
    %60 = arith.maximumf %58, %59 : vector<8x991xf32>
    %61 = arith.truncf %60 : vector<8x991xf32> to vector<8x991xbf16>
    %cst_65 = arith.constant 0.000000e+00 : f32
    %62 = vector.broadcast %cst_65 : f32 to vector<8x925xf32>
    %c0_66 = arith.constant 0 : index
    %c0_67 = arith.constant 0 : index
    %c0_68 = arith.constant 0 : index
    %c0_69 = arith.constant 0 : index
    %63 = vector.load %arg3[%c0_66, %c0_67, %c0_68, %c0_69] : memref<3x9x8x8xbf16, #tpu.memory_space<vmem>>, vector<1x1x8x8xbf16>
    %64 = vector.shape_cast %63 : vector<1x1x8x8xbf16> to vector<8x8xbf16>
    %65 = vector.extract_strided_slice %61 {offsets = [0, 0], sizes = [8, 925], strides = [1, 1]} : vector<8x991xbf16> to vector<8x925xbf16>
    %cst_70 = arith.constant dense<0.000000e+00> : vector<8x925xf32>
    %66 = tpu.matmul %64, %65, %cst_70 {dimension_numbers = #tpu.dot_dimension_numbers<[1], [0], [0], [1], [0, 0, 1, 1], [], []>} : vector<8x8xbf16>, vector<8x925xbf16>, vector<8x925xf32> -> vector<8x925xf32>
    %67 = arith.addf %62, %66 : vector<8x925xf32>
    %c0_71 = arith.constant 0 : index
    %c1_72 = arith.constant 1 : index
    %c0_73 = arith.constant 0 : index
    %c0_74 = arith.constant 0 : index
    %68 = vector.load %arg3[%c0_71, %c1_72, %c0_73, %c0_74] : memref<3x9x8x8xbf16, #tpu.memory_space<vmem>>, vector<1x1x8x8xbf16>
    %69 = vector.shape_cast %68 : vector<1x1x8x8xbf16> to vector<8x8xbf16>
    %70 = vector.extract_strided_slice %61 {offsets = [0, 1], sizes = [8, 925], strides = [1, 1]} : vector<8x991xbf16> to vector<8x925xbf16>
    %cst_75 = arith.constant dense<0.000000e+00> : vector<8x925xf32>
    %71 = tpu.matmul %69, %70, %cst_75 {dimension_numbers = #tpu.dot_dimension_numbers<[1], [0], [0], [1], [0, 0, 1, 1], [], []>} : vector<8x8xbf16>, vector<8x925xbf16>, vector<8x925xf32> -> vector<8x925xf32>
    %72 = arith.addf %67, %71 : vector<8x925xf32>
    %c0_76 = arith.constant 0 : index
    %c2_77 = arith.constant 2 : index
    %c0_78 = arith.constant 0 : index
    %c0_79 = arith.constant 0 : index
    %73 = vector.load %arg3[%c0_76, %c2_77, %c0_78, %c0_79] : memref<3x9x8x8xbf16, #tpu.memory_space<vmem>>, vector<1x1x8x8xbf16>
    %74 = vector.shape_cast %73 : vector<1x1x8x8xbf16> to vector<8x8xbf16>
    %75 = vector.extract_strided_slice %61 {offsets = [0, 2], sizes = [8, 925], strides = [1, 1]} : vector<8x991xbf16> to vector<8x925xbf16>
    %cst_80 = arith.constant dense<0.000000e+00> : vector<8x925xf32>
    %76 = tpu.matmul %74, %75, %cst_80 {dimension_numbers = #tpu.dot_dimension_numbers<[1], [0], [0], [1], [0, 0, 1, 1], [], []>} : vector<8x8xbf16>, vector<8x925xbf16>, vector<8x925xf32> -> vector<8x925xf32>
    %77 = arith.addf %72, %76 : vector<8x925xf32>
    %c0_81 = arith.constant 0 : index
    %c3_82 = arith.constant 3 : index
    %c0_83 = arith.constant 0 : index
    %c0_84 = arith.constant 0 : index
    %78 = vector.load %arg3[%c0_81, %c3_82, %c0_83, %c0_84] : memref<3x9x8x8xbf16, #tpu.memory_space<vmem>>, vector<1x1x8x8xbf16>
    %79 = vector.shape_cast %78 : vector<1x1x8x8xbf16> to vector<8x8xbf16>
    %80 = vector.extract_strided_slice %61 {offsets = [0, 32], sizes = [8, 925], strides = [1, 1]} : vector<8x991xbf16> to vector<8x925xbf16>
    %cst_85 = arith.constant dense<0.000000e+00> : vector<8x925xf32>
    %81 = tpu.matmul %79, %80, %cst_85 {dimension_numbers = #tpu.dot_dimension_numbers<[1], [0], [0], [1], [0, 0, 1, 1], [], []>} : vector<8x8xbf16>, vector<8x925xbf16>, vector<8x925xf32> -> vector<8x925xf32>
    %82 = arith.addf %77, %81 : vector<8x925xf32>
    %c0_86 = arith.constant 0 : index
    %c4_87 = arith.constant 4 : index
    %c0_88 = arith.constant 0 : index
    %c0_89 = arith.constant 0 : index
    %83 = vector.load %arg3[%c0_86, %c4_87, %c0_88, %c0_89] : memref<3x9x8x8xbf16, #tpu.memory_space<vmem>>, vector<1x1x8x8xbf16>
    %84 = vector.shape_cast %83 : vector<1x1x8x8xbf16> to vector<8x8xbf16>
    %85 = vector.extract_strided_slice %61 {offsets = [0, 33], sizes = [8, 925], strides = [1, 1]} : vector<8x991xbf16> to vector<8x925xbf16>
    %cst_90 = arith.constant dense<0.000000e+00> : vector<8x925xf32>
    %86 = tpu.matmul %84, %85, %cst_90 {dimension_numbers = #tpu.dot_dimension_numbers<[1], [0], [0], [1], [0, 0, 1, 1], [], []>} : vector<8x8xbf16>, vector<8x925xbf16>, vector<8x925xf32> -> vector<8x925xf32>
    %87 = arith.addf %82, %86 : vector<8x925xf32>
    %c0_91 = arith.constant 0 : index
    %c5_92 = arith.constant 5 : index
    %c0_93 = arith.constant 0 : index
    %c0_94 = arith.constant 0 : index
    %88 = vector.load %arg3[%c0_91, %c5_92, %c0_93, %c0_94] : memref<3x9x8x8xbf16, #tpu.memory_space<vmem>>, vector<1x1x8x8xbf16>
    %89 = vector.shape_cast %88 : vector<1x1x8x8xbf16> to vector<8x8xbf16>
    %90 = vector.extract_strided_slice %61 {offsets = [0, 34], sizes = [8, 925], strides = [1, 1]} : vector<8x991xbf16> to vector<8x925xbf16>
    %cst_95 = arith.constant dense<0.000000e+00> : vector<8x925xf32>
    %91 = tpu.matmul %89, %90, %cst_95 {dimension_numbers = #tpu.dot_dimension_numbers<[1], [0], [0], [1], [0, 0, 1, 1], [], []>} : vector<8x8xbf16>, vector<8x925xbf16>, vector<8x925xf32> -> vector<8x925xf32>
    %92 = arith.addf %87, %91 : vector<8x925xf32>
    %c0_96 = arith.constant 0 : index
    %c6_97 = arith.constant 6 : index
    %c0_98 = arith.constant 0 : index
    %c0_99 = arith.constant 0 : index
    %93 = vector.load %arg3[%c0_96, %c6_97, %c0_98, %c0_99] : memref<3x9x8x8xbf16, #tpu.memory_space<vmem>>, vector<1x1x8x8xbf16>
    %94 = vector.shape_cast %93 : vector<1x1x8x8xbf16> to vector<8x8xbf16>
    %95 = vector.extract_strided_slice %61 {offsets = [0, 64], sizes = [8, 925], strides = [1, 1]} : vector<8x991xbf16> to vector<8x925xbf16>
    %cst_100 = arith.constant dense<0.000000e+00> : vector<8x925xf32>
    %96 = tpu.matmul %94, %95, %cst_100 {dimension_numbers = #tpu.dot_dimension_numbers<[1], [0], [0], [1], [0, 0, 1, 1], [], []>} : vector<8x8xbf16>, vector<8x925xbf16>, vector<8x925xf32> -> vector<8x925xf32>
    %97 = arith.addf %92, %96 : vector<8x925xf32>
    %c0_101 = arith.constant 0 : index
    %c7_102 = arith.constant 7 : index
    %c0_103 = arith.constant 0 : index
    %c0_104 = arith.constant 0 : index
    %98 = vector.load %arg3[%c0_101, %c7_102, %c0_103, %c0_104] : memref<3x9x8x8xbf16, #tpu.memory_space<vmem>>, vector<1x1x8x8xbf16>
    %99 = vector.shape_cast %98 : vector<1x1x8x8xbf16> to vector<8x8xbf16>
    %100 = vector.extract_strided_slice %61 {offsets = [0, 65], sizes = [8, 925], strides = [1, 1]} : vector<8x991xbf16> to vector<8x925xbf16>
    %cst_105 = arith.constant dense<0.000000e+00> : vector<8x925xf32>
    %101 = tpu.matmul %99, %100, %cst_105 {dimension_numbers = #tpu.dot_dimension_numbers<[1], [0], [0], [1], [0, 0, 1, 1], [], []>} : vector<8x8xbf16>, vector<8x925xbf16>, vector<8x925xf32> -> vector<8x925xf32>
    %102 = arith.addf %97, %101 : vector<8x925xf32>
    %c0_106 = arith.constant 0 : index
    %c8_107 = arith.constant 8 : index
    %c0_108 = arith.constant 0 : index
    %c0_109 = arith.constant 0 : index
    %103 = vector.load %arg3[%c0_106, %c8_107, %c0_108, %c0_109] : memref<3x9x8x8xbf16, #tpu.memory_space<vmem>>, vector<1x1x8x8xbf16>
    %104 = vector.shape_cast %103 : vector<1x1x8x8xbf16> to vector<8x8xbf16>
    %105 = vector.extract_strided_slice %61 {offsets = [0, 66], sizes = [8, 925], strides = [1, 1]} : vector<8x991xbf16> to vector<8x925xbf16>
    %cst_110 = arith.constant dense<0.000000e+00> : vector<8x925xf32>
    %106 = tpu.matmul %104, %105, %cst_110 {dimension_numbers = #tpu.dot_dimension_numbers<[1], [0], [0], [1], [0, 0, 1, 1], [], []>} : vector<8x8xbf16>, vector<8x925xbf16>, vector<8x925xf32> -> vector<8x925xf32>
    %107 = arith.addf %102, %106 : vector<8x925xf32>
    %c1_111 = arith.constant 1 : index
    %c0_112 = arith.constant 0 : index
    %c0_113 = arith.constant 0 : index
    %108 = vector.load %arg4[%c1_111, %c0_112, %c0_113] : memref<4x8x1xf32, #tpu.memory_space<vmem>>, vector<1x8x1xf32>
    %109 = vector.shape_cast %108 : vector<1x8x1xf32> to vector<8x1xf32>
    %110 = vector.broadcast %109 : vector<8x1xf32> to vector<8x925xf32>
    %111 = arith.addf %107, %110 : vector<8x925xf32>
    %cst_114 = arith.constant 0.000000e+00 : f32
    %112 = vector.broadcast %cst_114 : f32 to vector<8x925xf32>
    %113 = arith.maximumf %111, %112 : vector<8x925xf32>
    %114 = arith.truncf %113 : vector<8x925xf32> to vector<8x925xbf16>
    %cst_115 = arith.constant 0.000000e+00 : f32
    %115 = vector.broadcast %cst_115 : f32 to vector<8x859xf32>
    %c1_116 = arith.constant 1 : index
    %c0_117 = arith.constant 0 : index
    %c0_118 = arith.constant 0 : index
    %c0_119 = arith.constant 0 : index
    %116 = vector.load %arg3[%c1_116, %c0_117, %c0_118, %c0_119] : memref<3x9x8x8xbf16, #tpu.memory_space<vmem>>, vector<1x1x8x8xbf16>
    %117 = vector.shape_cast %116 : vector<1x1x8x8xbf16> to vector<8x8xbf16>
    %118 = vector.extract_strided_slice %114 {offsets = [0, 0], sizes = [8, 859], strides = [1, 1]} : vector<8x925xbf16> to vector<8x859xbf16>
    %cst_120 = arith.constant dense<0.000000e+00> : vector<8x859xf32>
    %119 = tpu.matmul %117, %118, %cst_120 {dimension_numbers = #tpu.dot_dimension_numbers<[1], [0], [0], [1], [0, 0, 1, 1], [], []>} : vector<8x8xbf16>, vector<8x859xbf16>, vector<8x859xf32> -> vector<8x859xf32>
    %120 = arith.addf %115, %119 : vector<8x859xf32>
    %c1_121 = arith.constant 1 : index
    %c1_122 = arith.constant 1 : index
    %c0_123 = arith.constant 0 : index
    %c0_124 = arith.constant 0 : index
    %121 = vector.load %arg3[%c1_121, %c1_122, %c0_123, %c0_124] : memref<3x9x8x8xbf16, #tpu.memory_space<vmem>>, vector<1x1x8x8xbf16>
    %122 = vector.shape_cast %121 : vector<1x1x8x8xbf16> to vector<8x8xbf16>
    %123 = vector.extract_strided_slice %114 {offsets = [0, 1], sizes = [8, 859], strides = [1, 1]} : vector<8x925xbf16> to vector<8x859xbf16>
    %cst_125 = arith.constant dense<0.000000e+00> : vector<8x859xf32>
    %124 = tpu.matmul %122, %123, %cst_125 {dimension_numbers = #tpu.dot_dimension_numbers<[1], [0], [0], [1], [0, 0, 1, 1], [], []>} : vector<8x8xbf16>, vector<8x859xbf16>, vector<8x859xf32> -> vector<8x859xf32>
    %125 = arith.addf %120, %124 : vector<8x859xf32>
    %c1_126 = arith.constant 1 : index
    %c2_127 = arith.constant 2 : index
    %c0_128 = arith.constant 0 : index
    %c0_129 = arith.constant 0 : index
    %126 = vector.load %arg3[%c1_126, %c2_127, %c0_128, %c0_129] : memref<3x9x8x8xbf16, #tpu.memory_space<vmem>>, vector<1x1x8x8xbf16>
    %127 = vector.shape_cast %126 : vector<1x1x8x8xbf16> to vector<8x8xbf16>
    %128 = vector.extract_strided_slice %114 {offsets = [0, 2], sizes = [8, 859], strides = [1, 1]} : vector<8x925xbf16> to vector<8x859xbf16>
    %cst_130 = arith.constant dense<0.000000e+00> : vector<8x859xf32>
    %129 = tpu.matmul %127, %128, %cst_130 {dimension_numbers = #tpu.dot_dimension_numbers<[1], [0], [0], [1], [0, 0, 1, 1], [], []>} : vector<8x8xbf16>, vector<8x859xbf16>, vector<8x859xf32> -> vector<8x859xf32>
    %130 = arith.addf %125, %129 : vector<8x859xf32>
    %c1_131 = arith.constant 1 : index
    %c3_132 = arith.constant 3 : index
    %c0_133 = arith.constant 0 : index
    %c0_134 = arith.constant 0 : index
    %131 = vector.load %arg3[%c1_131, %c3_132, %c0_133, %c0_134] : memref<3x9x8x8xbf16, #tpu.memory_space<vmem>>, vector<1x1x8x8xbf16>
    %132 = vector.shape_cast %131 : vector<1x1x8x8xbf16> to vector<8x8xbf16>
    %133 = vector.extract_strided_slice %114 {offsets = [0, 32], sizes = [8, 859], strides = [1, 1]} : vector<8x925xbf16> to vector<8x859xbf16>
    %cst_135 = arith.constant dense<0.000000e+00> : vector<8x859xf32>
    %134 = tpu.matmul %132, %133, %cst_135 {dimension_numbers = #tpu.dot_dimension_numbers<[1], [0], [0], [1], [0, 0, 1, 1], [], []>} : vector<8x8xbf16>, vector<8x859xbf16>, vector<8x859xf32> -> vector<8x859xf32>
    %135 = arith.addf %130, %134 : vector<8x859xf32>
    %c1_136 = arith.constant 1 : index
    %c4_137 = arith.constant 4 : index
    %c0_138 = arith.constant 0 : index
    %c0_139 = arith.constant 0 : index
    %136 = vector.load %arg3[%c1_136, %c4_137, %c0_138, %c0_139] : memref<3x9x8x8xbf16, #tpu.memory_space<vmem>>, vector<1x1x8x8xbf16>
    %137 = vector.shape_cast %136 : vector<1x1x8x8xbf16> to vector<8x8xbf16>
    %138 = vector.extract_strided_slice %114 {offsets = [0, 33], sizes = [8, 859], strides = [1, 1]} : vector<8x925xbf16> to vector<8x859xbf16>
    %cst_140 = arith.constant dense<0.000000e+00> : vector<8x859xf32>
    %139 = tpu.matmul %137, %138, %cst_140 {dimension_numbers = #tpu.dot_dimension_numbers<[1], [0], [0], [1], [0, 0, 1, 1], [], []>} : vector<8x8xbf16>, vector<8x859xbf16>, vector<8x859xf32> -> vector<8x859xf32>
    %140 = arith.addf %135, %139 : vector<8x859xf32>
    %c1_141 = arith.constant 1 : index
    %c5_142 = arith.constant 5 : index
    %c0_143 = arith.constant 0 : index
    %c0_144 = arith.constant 0 : index
    %141 = vector.load %arg3[%c1_141, %c5_142, %c0_143, %c0_144] : memref<3x9x8x8xbf16, #tpu.memory_space<vmem>>, vector<1x1x8x8xbf16>
    %142 = vector.shape_cast %141 : vector<1x1x8x8xbf16> to vector<8x8xbf16>
    %143 = vector.extract_strided_slice %114 {offsets = [0, 34], sizes = [8, 859], strides = [1, 1]} : vector<8x925xbf16> to vector<8x859xbf16>
    %cst_145 = arith.constant dense<0.000000e+00> : vector<8x859xf32>
    %144 = tpu.matmul %142, %143, %cst_145 {dimension_numbers = #tpu.dot_dimension_numbers<[1], [0], [0], [1], [0, 0, 1, 1], [], []>} : vector<8x8xbf16>, vector<8x859xbf16>, vector<8x859xf32> -> vector<8x859xf32>
    %145 = arith.addf %140, %144 : vector<8x859xf32>
    %c1_146 = arith.constant 1 : index
    %c6_147 = arith.constant 6 : index
    %c0_148 = arith.constant 0 : index
    %c0_149 = arith.constant 0 : index
    %146 = vector.load %arg3[%c1_146, %c6_147, %c0_148, %c0_149] : memref<3x9x8x8xbf16, #tpu.memory_space<vmem>>, vector<1x1x8x8xbf16>
    %147 = vector.shape_cast %146 : vector<1x1x8x8xbf16> to vector<8x8xbf16>
    %148 = vector.extract_strided_slice %114 {offsets = [0, 64], sizes = [8, 859], strides = [1, 1]} : vector<8x925xbf16> to vector<8x859xbf16>
    %cst_150 = arith.constant dense<0.000000e+00> : vector<8x859xf32>
    %149 = tpu.matmul %147, %148, %cst_150 {dimension_numbers = #tpu.dot_dimension_numbers<[1], [0], [0], [1], [0, 0, 1, 1], [], []>} : vector<8x8xbf16>, vector<8x859xbf16>, vector<8x859xf32> -> vector<8x859xf32>
    %150 = arith.addf %145, %149 : vector<8x859xf32>
    %c1_151 = arith.constant 1 : index
    %c7_152 = arith.constant 7 : index
    %c0_153 = arith.constant 0 : index
    %c0_154 = arith.constant 0 : index
    %151 = vector.load %arg3[%c1_151, %c7_152, %c0_153, %c0_154] : memref<3x9x8x8xbf16, #tpu.memory_space<vmem>>, vector<1x1x8x8xbf16>
    %152 = vector.shape_cast %151 : vector<1x1x8x8xbf16> to vector<8x8xbf16>
    %153 = vector.extract_strided_slice %114 {offsets = [0, 65], sizes = [8, 859], strides = [1, 1]} : vector<8x925xbf16> to vector<8x859xbf16>
    %cst_155 = arith.constant dense<0.000000e+00> : vector<8x859xf32>
    %154 = tpu.matmul %152, %153, %cst_155 {dimension_numbers = #tpu.dot_dimension_numbers<[1], [0], [0], [1], [0, 0, 1, 1], [], []>} : vector<8x8xbf16>, vector<8x859xbf16>, vector<8x859xf32> -> vector<8x859xf32>
    %155 = arith.addf %150, %154 : vector<8x859xf32>
    %c1_156 = arith.constant 1 : index
    %c8_157 = arith.constant 8 : index
    %c0_158 = arith.constant 0 : index
    %c0_159 = arith.constant 0 : index
    %156 = vector.load %arg3[%c1_156, %c8_157, %c0_158, %c0_159] : memref<3x9x8x8xbf16, #tpu.memory_space<vmem>>, vector<1x1x8x8xbf16>
    %157 = vector.shape_cast %156 : vector<1x1x8x8xbf16> to vector<8x8xbf16>
    %158 = vector.extract_strided_slice %114 {offsets = [0, 66], sizes = [8, 859], strides = [1, 1]} : vector<8x925xbf16> to vector<8x859xbf16>
    %cst_160 = arith.constant dense<0.000000e+00> : vector<8x859xf32>
    %159 = tpu.matmul %157, %158, %cst_160 {dimension_numbers = #tpu.dot_dimension_numbers<[1], [0], [0], [1], [0, 0, 1, 1], [], []>} : vector<8x8xbf16>, vector<8x859xbf16>, vector<8x859xf32> -> vector<8x859xf32>
    %160 = arith.addf %155, %159 : vector<8x859xf32>
    %c2_161 = arith.constant 2 : index
    %c0_162 = arith.constant 0 : index
    %c0_163 = arith.constant 0 : index
    %161 = vector.load %arg4[%c2_161, %c0_162, %c0_163] : memref<4x8x1xf32, #tpu.memory_space<vmem>>, vector<1x8x1xf32>
    %162 = vector.shape_cast %161 : vector<1x8x1xf32> to vector<8x1xf32>
    %163 = vector.broadcast %162 : vector<8x1xf32> to vector<8x859xf32>
    %164 = arith.addf %160, %163 : vector<8x859xf32>
    %cst_164 = arith.constant 0.000000e+00 : f32
    %165 = vector.broadcast %cst_164 : f32 to vector<8x859xf32>
    %166 = arith.maximumf %164, %165 : vector<8x859xf32>
    %167 = arith.truncf %166 : vector<8x859xf32> to vector<8x859xbf16>
    %cst_165 = arith.constant 0.000000e+00 : f32
    %168 = vector.broadcast %cst_165 : f32 to vector<8x793xf32>
    %c2_166 = arith.constant 2 : index
    %c0_167 = arith.constant 0 : index
    %c0_168 = arith.constant 0 : index
    %c0_169 = arith.constant 0 : index
    %169 = vector.load %arg3[%c2_166, %c0_167, %c0_168, %c0_169] : memref<3x9x8x8xbf16, #tpu.memory_space<vmem>>, vector<1x1x8x8xbf16>
    %170 = vector.shape_cast %169 : vector<1x1x8x8xbf16> to vector<8x8xbf16>
    %171 = vector.extract_strided_slice %167 {offsets = [0, 0], sizes = [8, 793], strides = [1, 1]} : vector<8x859xbf16> to vector<8x793xbf16>
    %cst_170 = arith.constant dense<0.000000e+00> : vector<8x793xf32>
    %172 = tpu.matmul %170, %171, %cst_170 {dimension_numbers = #tpu.dot_dimension_numbers<[1], [0], [0], [1], [0, 0, 1, 1], [], []>} : vector<8x8xbf16>, vector<8x793xbf16>, vector<8x793xf32> -> vector<8x793xf32>
    %173 = arith.addf %168, %172 : vector<8x793xf32>
    %c2_171 = arith.constant 2 : index
    %c1_172 = arith.constant 1 : index
    %c0_173 = arith.constant 0 : index
    %c0_174 = arith.constant 0 : index
    %174 = vector.load %arg3[%c2_171, %c1_172, %c0_173, %c0_174] : memref<3x9x8x8xbf16, #tpu.memory_space<vmem>>, vector<1x1x8x8xbf16>
    %175 = vector.shape_cast %174 : vector<1x1x8x8xbf16> to vector<8x8xbf16>
    %176 = vector.extract_strided_slice %167 {offsets = [0, 1], sizes = [8, 793], strides = [1, 1]} : vector<8x859xbf16> to vector<8x793xbf16>
    %cst_175 = arith.constant dense<0.000000e+00> : vector<8x793xf32>
    %177 = tpu.matmul %175, %176, %cst_175 {dimension_numbers = #tpu.dot_dimension_numbers<[1], [0], [0], [1], [0, 0, 1, 1], [], []>} : vector<8x8xbf16>, vector<8x793xbf16>, vector<8x793xf32> -> vector<8x793xf32>
    %178 = arith.addf %173, %177 : vector<8x793xf32>
    %c2_176 = arith.constant 2 : index
    %c2_177 = arith.constant 2 : index
    %c0_178 = arith.constant 0 : index
    %c0_179 = arith.constant 0 : index
    %179 = vector.load %arg3[%c2_176, %c2_177, %c0_178, %c0_179] : memref<3x9x8x8xbf16, #tpu.memory_space<vmem>>, vector<1x1x8x8xbf16>
    %180 = vector.shape_cast %179 : vector<1x1x8x8xbf16> to vector<8x8xbf16>
    %181 = vector.extract_strided_slice %167 {offsets = [0, 2], sizes = [8, 793], strides = [1, 1]} : vector<8x859xbf16> to vector<8x793xbf16>
    %cst_180 = arith.constant dense<0.000000e+00> : vector<8x793xf32>
    %182 = tpu.matmul %180, %181, %cst_180 {dimension_numbers = #tpu.dot_dimension_numbers<[1], [0], [0], [1], [0, 0, 1, 1], [], []>} : vector<8x8xbf16>, vector<8x793xbf16>, vector<8x793xf32> -> vector<8x793xf32>
    %183 = arith.addf %178, %182 : vector<8x793xf32>
    %c2_181 = arith.constant 2 : index
    %c3_182 = arith.constant 3 : index
    %c0_183 = arith.constant 0 : index
    %c0_184 = arith.constant 0 : index
    %184 = vector.load %arg3[%c2_181, %c3_182, %c0_183, %c0_184] : memref<3x9x8x8xbf16, #tpu.memory_space<vmem>>, vector<1x1x8x8xbf16>
    %185 = vector.shape_cast %184 : vector<1x1x8x8xbf16> to vector<8x8xbf16>
    %186 = vector.extract_strided_slice %167 {offsets = [0, 32], sizes = [8, 793], strides = [1, 1]} : vector<8x859xbf16> to vector<8x793xbf16>
    %cst_185 = arith.constant dense<0.000000e+00> : vector<8x793xf32>
    %187 = tpu.matmul %185, %186, %cst_185 {dimension_numbers = #tpu.dot_dimension_numbers<[1], [0], [0], [1], [0, 0, 1, 1], [], []>} : vector<8x8xbf16>, vector<8x793xbf16>, vector<8x793xf32> -> vector<8x793xf32>
    %188 = arith.addf %183, %187 : vector<8x793xf32>
    %c2_186 = arith.constant 2 : index
    %c4_187 = arith.constant 4 : index
    %c0_188 = arith.constant 0 : index
    %c0_189 = arith.constant 0 : index
    %189 = vector.load %arg3[%c2_186, %c4_187, %c0_188, %c0_189] : memref<3x9x8x8xbf16, #tpu.memory_space<vmem>>, vector<1x1x8x8xbf16>
    %190 = vector.shape_cast %189 : vector<1x1x8x8xbf16> to vector<8x8xbf16>
    %191 = vector.extract_strided_slice %167 {offsets = [0, 33], sizes = [8, 793], strides = [1, 1]} : vector<8x859xbf16> to vector<8x793xbf16>
    %cst_190 = arith.constant dense<0.000000e+00> : vector<8x793xf32>
    %192 = tpu.matmul %190, %191, %cst_190 {dimension_numbers = #tpu.dot_dimension_numbers<[1], [0], [0], [1], [0, 0, 1, 1], [], []>} : vector<8x8xbf16>, vector<8x793xbf16>, vector<8x793xf32> -> vector<8x793xf32>
    %193 = arith.addf %188, %192 : vector<8x793xf32>
    %c2_191 = arith.constant 2 : index
    %c5_192 = arith.constant 5 : index
    %c0_193 = arith.constant 0 : index
    %c0_194 = arith.constant 0 : index
    %194 = vector.load %arg3[%c2_191, %c5_192, %c0_193, %c0_194] : memref<3x9x8x8xbf16, #tpu.memory_space<vmem>>, vector<1x1x8x8xbf16>
    %195 = vector.shape_cast %194 : vector<1x1x8x8xbf16> to vector<8x8xbf16>
    %196 = vector.extract_strided_slice %167 {offsets = [0, 34], sizes = [8, 793], strides = [1, 1]} : vector<8x859xbf16> to vector<8x793xbf16>
    %cst_195 = arith.constant dense<0.000000e+00> : vector<8x793xf32>
    %197 = tpu.matmul %195, %196, %cst_195 {dimension_numbers = #tpu.dot_dimension_numbers<[1], [0], [0], [1], [0, 0, 1, 1], [], []>} : vector<8x8xbf16>, vector<8x793xbf16>, vector<8x793xf32> -> vector<8x793xf32>
    %198 = arith.addf %193, %197 : vector<8x793xf32>
    %c2_196 = arith.constant 2 : index
    %c6_197 = arith.constant 6 : index
    %c0_198 = arith.constant 0 : index
    %c0_199 = arith.constant 0 : index
    %199 = vector.load %arg3[%c2_196, %c6_197, %c0_198, %c0_199] : memref<3x9x8x8xbf16, #tpu.memory_space<vmem>>, vector<1x1x8x8xbf16>
    %200 = vector.shape_cast %199 : vector<1x1x8x8xbf16> to vector<8x8xbf16>
    %201 = vector.extract_strided_slice %167 {offsets = [0, 64], sizes = [8, 793], strides = [1, 1]} : vector<8x859xbf16> to vector<8x793xbf16>
    %cst_200 = arith.constant dense<0.000000e+00> : vector<8x793xf32>
    %202 = tpu.matmul %200, %201, %cst_200 {dimension_numbers = #tpu.dot_dimension_numbers<[1], [0], [0], [1], [0, 0, 1, 1], [], []>} : vector<8x8xbf16>, vector<8x793xbf16>, vector<8x793xf32> -> vector<8x793xf32>
    %203 = arith.addf %198, %202 : vector<8x793xf32>
    %c2_201 = arith.constant 2 : index
    %c7_202 = arith.constant 7 : index
    %c0_203 = arith.constant 0 : index
    %c0_204 = arith.constant 0 : index
    %204 = vector.load %arg3[%c2_201, %c7_202, %c0_203, %c0_204] : memref<3x9x8x8xbf16, #tpu.memory_space<vmem>>, vector<1x1x8x8xbf16>
    %205 = vector.shape_cast %204 : vector<1x1x8x8xbf16> to vector<8x8xbf16>
    %206 = vector.extract_strided_slice %167 {offsets = [0, 65], sizes = [8, 793], strides = [1, 1]} : vector<8x859xbf16> to vector<8x793xbf16>
    %cst_205 = arith.constant dense<0.000000e+00> : vector<8x793xf32>
    %207 = tpu.matmul %205, %206, %cst_205 {dimension_numbers = #tpu.dot_dimension_numbers<[1], [0], [0], [1], [0, 0, 1, 1], [], []>} : vector<8x8xbf16>, vector<8x793xbf16>, vector<8x793xf32> -> vector<8x793xf32>
    %208 = arith.addf %203, %207 : vector<8x793xf32>
    %c2_206 = arith.constant 2 : index
    %c8_207 = arith.constant 8 : index
    %c0_208 = arith.constant 0 : index
    %c0_209 = arith.constant 0 : index
    %209 = vector.load %arg3[%c2_206, %c8_207, %c0_208, %c0_209] : memref<3x9x8x8xbf16, #tpu.memory_space<vmem>>, vector<1x1x8x8xbf16>
    %210 = vector.shape_cast %209 : vector<1x1x8x8xbf16> to vector<8x8xbf16>
    %211 = vector.extract_strided_slice %167 {offsets = [0, 66], sizes = [8, 793], strides = [1, 1]} : vector<8x859xbf16> to vector<8x793xbf16>
    %cst_210 = arith.constant dense<0.000000e+00> : vector<8x793xf32>
    %212 = tpu.matmul %210, %211, %cst_210 {dimension_numbers = #tpu.dot_dimension_numbers<[1], [0], [0], [1], [0, 0, 1, 1], [], []>} : vector<8x8xbf16>, vector<8x793xbf16>, vector<8x793xf32> -> vector<8x793xf32>
    %213 = arith.addf %208, %212 : vector<8x793xf32>
    %c3_211 = arith.constant 3 : index
    %c0_212 = arith.constant 0 : index
    %c0_213 = arith.constant 0 : index
    %214 = vector.load %arg4[%c3_211, %c0_212, %c0_213] : memref<4x8x1xf32, #tpu.memory_space<vmem>>, vector<1x8x1xf32>
    %215 = vector.shape_cast %214 : vector<1x8x1xf32> to vector<8x1xf32>
    %216 = vector.broadcast %215 : vector<8x1xf32> to vector<8x793xf32>
    %217 = arith.addf %213, %216 : vector<8x793xf32>
    %cst_214 = arith.constant 0.000000e+00 : f32
    %218 = vector.broadcast %cst_214 : f32 to vector<8x793xf32>
    %219 = arith.maximumf %217, %218 : vector<8x793xf32>
    %220 = arith.truncf %219 : vector<8x793xf32> to vector<8x793xbf16>
    %c0_215 = arith.constant 0 : index
    %c0_216 = arith.constant 0 : index
    %221 = vector.load %arg6[%c0_215, %c0_216] : memref<1x16xf32, #tpu.memory_space<vmem>>, vector<1x16xf32>
    %222 = vector.extract_strided_slice %220 {offsets = [0, 0], sizes = [1, 793], strides = [1, 1]} : vector<8x793xbf16> to vector<1x793xbf16>
    %c0_217 = arith.constant 0 : index
    %c0_218 = arith.constant 0 : index
    %c0_219 = arith.constant 0 : index
    %223 = vector.load %arg5[%c0_217, %c0_218, %c0_219] : memref<8x793x16xbf16, #tpu.memory_space<vmem>>, vector<1x793x16xbf16>
    %224 = vector.shape_cast %223 : vector<1x793x16xbf16> to vector<793x16xbf16>
    %cst_220 = arith.constant dense<0.000000e+00> : vector<1x16xf32>
    %225 = tpu.matmul %222, %224, %cst_220 {dimension_numbers = #tpu.dot_dimension_numbers<[1], [0], [0], [1], [0, 0, 1, 1], [], []>} : vector<1x793xbf16>, vector<793x16xbf16>, vector<1x16xf32> -> vector<1x16xf32>
    %226 = arith.addf %221, %225 : vector<1x16xf32>
    %227 = vector.extract_strided_slice %220 {offsets = [1, 0], sizes = [1, 793], strides = [1, 1]} : vector<8x793xbf16> to vector<1x793xbf16>
    %c1_221 = arith.constant 1 : index
    %c0_222 = arith.constant 0 : index
    %c0_223 = arith.constant 0 : index
    %228 = vector.load %arg5[%c1_221, %c0_222, %c0_223] : memref<8x793x16xbf16, #tpu.memory_space<vmem>>, vector<1x793x16xbf16>
    %229 = vector.shape_cast %228 : vector<1x793x16xbf16> to vector<793x16xbf16>
    %cst_224 = arith.constant dense<0.000000e+00> : vector<1x16xf32>
    %230 = tpu.matmul %227, %229, %cst_224 {dimension_numbers = #tpu.dot_dimension_numbers<[1], [0], [0], [1], [0, 0, 1, 1], [], []>} : vector<1x793xbf16>, vector<793x16xbf16>, vector<1x16xf32> -> vector<1x16xf32>
    %231 = arith.addf %226, %230 : vector<1x16xf32>
    %232 = vector.extract_strided_slice %220 {offsets = [2, 0], sizes = [1, 793], strides = [1, 1]} : vector<8x793xbf16> to vector<1x793xbf16>
    %c2_225 = arith.constant 2 : index
    %c0_226 = arith.constant 0 : index
    %c0_227 = arith.constant 0 : index
    %233 = vector.load %arg5[%c2_225, %c0_226, %c0_227] : memref<8x793x16xbf16, #tpu.memory_space<vmem>>, vector<1x793x16xbf16>
    %234 = vector.shape_cast %233 : vector<1x793x16xbf16> to vector<793x16xbf16>
    %cst_228 = arith.constant dense<0.000000e+00> : vector<1x16xf32>
    %235 = tpu.matmul %232, %234, %cst_228 {dimension_numbers = #tpu.dot_dimension_numbers<[1], [0], [0], [1], [0, 0, 1, 1], [], []>} : vector<1x793xbf16>, vector<793x16xbf16>, vector<1x16xf32> -> vector<1x16xf32>
    %236 = arith.addf %231, %235 : vector<1x16xf32>
    %237 = vector.extract_strided_slice %220 {offsets = [3, 0], sizes = [1, 793], strides = [1, 1]} : vector<8x793xbf16> to vector<1x793xbf16>
    %c3_229 = arith.constant 3 : index
    %c0_230 = arith.constant 0 : index
    %c0_231 = arith.constant 0 : index
    %238 = vector.load %arg5[%c3_229, %c0_230, %c0_231] : memref<8x793x16xbf16, #tpu.memory_space<vmem>>, vector<1x793x16xbf16>
    %239 = vector.shape_cast %238 : vector<1x793x16xbf16> to vector<793x16xbf16>
    %cst_232 = arith.constant dense<0.000000e+00> : vector<1x16xf32>
    %240 = tpu.matmul %237, %239, %cst_232 {dimension_numbers = #tpu.dot_dimension_numbers<[1], [0], [0], [1], [0, 0, 1, 1], [], []>} : vector<1x793xbf16>, vector<793x16xbf16>, vector<1x16xf32> -> vector<1x16xf32>
    %241 = arith.addf %236, %240 : vector<1x16xf32>
    %242 = vector.extract_strided_slice %220 {offsets = [4, 0], sizes = [1, 793], strides = [1, 1]} : vector<8x793xbf16> to vector<1x793xbf16>
    %c4_233 = arith.constant 4 : index
    %c0_234 = arith.constant 0 : index
    %c0_235 = arith.constant 0 : index
    %243 = vector.load %arg5[%c4_233, %c0_234, %c0_235] : memref<8x793x16xbf16, #tpu.memory_space<vmem>>, vector<1x793x16xbf16>
    %244 = vector.shape_cast %243 : vector<1x793x16xbf16> to vector<793x16xbf16>
    %cst_236 = arith.constant dense<0.000000e+00> : vector<1x16xf32>
    %245 = tpu.matmul %242, %244, %cst_236 {dimension_numbers = #tpu.dot_dimension_numbers<[1], [0], [0], [1], [0, 0, 1, 1], [], []>} : vector<1x793xbf16>, vector<793x16xbf16>, vector<1x16xf32> -> vector<1x16xf32>
    %246 = arith.addf %241, %245 : vector<1x16xf32>
    %247 = vector.extract_strided_slice %220 {offsets = [5, 0], sizes = [1, 793], strides = [1, 1]} : vector<8x793xbf16> to vector<1x793xbf16>
    %c5_237 = arith.constant 5 : index
    %c0_238 = arith.constant 0 : index
    %c0_239 = arith.constant 0 : index
    %248 = vector.load %arg5[%c5_237, %c0_238, %c0_239] : memref<8x793x16xbf16, #tpu.memory_space<vmem>>, vector<1x793x16xbf16>
    %249 = vector.shape_cast %248 : vector<1x793x16xbf16> to vector<793x16xbf16>
    %cst_240 = arith.constant dense<0.000000e+00> : vector<1x16xf32>
    %250 = tpu.matmul %247, %249, %cst_240 {dimension_numbers = #tpu.dot_dimension_numbers<[1], [0], [0], [1], [0, 0, 1, 1], [], []>} : vector<1x793xbf16>, vector<793x16xbf16>, vector<1x16xf32> -> vector<1x16xf32>
    %251 = arith.addf %246, %250 : vector<1x16xf32>
    %252 = vector.extract_strided_slice %220 {offsets = [6, 0], sizes = [1, 793], strides = [1, 1]} : vector<8x793xbf16> to vector<1x793xbf16>
    %c6_241 = arith.constant 6 : index
    %c0_242 = arith.constant 0 : index
    %c0_243 = arith.constant 0 : index
    %253 = vector.load %arg5[%c6_241, %c0_242, %c0_243] : memref<8x793x16xbf16, #tpu.memory_space<vmem>>, vector<1x793x16xbf16>
    %254 = vector.shape_cast %253 : vector<1x793x16xbf16> to vector<793x16xbf16>
    %cst_244 = arith.constant dense<0.000000e+00> : vector<1x16xf32>
    %255 = tpu.matmul %252, %254, %cst_244 {dimension_numbers = #tpu.dot_dimension_numbers<[1], [0], [0], [1], [0, 0, 1, 1], [], []>} : vector<1x793xbf16>, vector<793x16xbf16>, vector<1x16xf32> -> vector<1x16xf32>
    %256 = arith.addf %251, %255 : vector<1x16xf32>
    %257 = vector.extract_strided_slice %220 {offsets = [7, 0], sizes = [1, 793], strides = [1, 1]} : vector<8x793xbf16> to vector<1x793xbf16>
    %c7_245 = arith.constant 7 : index
    %c0_246 = arith.constant 0 : index
    %c0_247 = arith.constant 0 : index
    %258 = vector.load %arg5[%c7_245, %c0_246, %c0_247] : memref<8x793x16xbf16, #tpu.memory_space<vmem>>, vector<1x793x16xbf16>
    %259 = vector.shape_cast %258 : vector<1x793x16xbf16> to vector<793x16xbf16>
    %cst_248 = arith.constant dense<0.000000e+00> : vector<1x16xf32>
    %260 = tpu.matmul %257, %259, %cst_248 {dimension_numbers = #tpu.dot_dimension_numbers<[1], [0], [0], [1], [0, 0, 1, 1], [], []>} : vector<1x793xbf16>, vector<793x16xbf16>, vector<1x16xf32> -> vector<1x16xf32>
    %261 = arith.addf %256, %260 : vector<1x16xf32>
    %cst_249 = arith.constant dense<0.000000e+00> : vector<1xf32>
    %262 = vector.multi_reduction <add>, %261, %cst_249 [1] : vector<1x16xf32> to vector<1xf32>
    %263 = vector.shape_cast %262 : vector<1xf32> to vector<1x1xf32>
    %cst_250 = arith.constant 1.600000e+01 : f32
    %264 = vector.broadcast %cst_250 : f32 to vector<1x1xf32>
    %265 = arith.divf %263, %264 : vector<1x1xf32>
    %266 = vector.broadcast %265 : vector<1x1xf32> to vector<1x16xf32>
    %267 = arith.subf %261, %266 : vector<1x16xf32>
    %268 = arith.mulf %267, %267 : vector<1x16xf32>
    %cst_251 = arith.constant dense<0.000000e+00> : vector<1xf32>
    %269 = vector.multi_reduction <add>, %268, %cst_251 [1] : vector<1x16xf32> to vector<1xf32>
    %270 = vector.shape_cast %269 : vector<1xf32> to vector<1x1xf32>
    %cst_252 = arith.constant 1.600000e+01 : f32
    %271 = vector.broadcast %cst_252 : f32 to vector<1x1xf32>
    %272 = arith.divf %270, %271 : vector<1x1xf32>
    %273 = vector.broadcast %265 : vector<1x1xf32> to vector<1x16xf32>
    %274 = arith.subf %261, %273 : vector<1x16xf32>
    %cst_253 = arith.constant 9.99999974E-6 : f32
    %275 = vector.broadcast %cst_253 : f32 to vector<1x1xf32>
    %276 = arith.addf %272, %275 : vector<1x1xf32>
    %277 = math.rsqrt %276 : vector<1x1xf32>
    %278 = vector.broadcast %277 : vector<1x1xf32> to vector<1x16xf32>
    %279 = arith.mulf %274, %278 : vector<1x16xf32>
    %c0_254 = arith.constant 0 : index
    %c0_255 = arith.constant 0 : index
    %280 = vector.load %arg7[%c0_254, %c0_255] : memref<1x16xf32, #tpu.memory_space<vmem>>, vector<1x16xf32>
    %281 = arith.mulf %279, %280 : vector<1x16xf32>
    %c0_256 = arith.constant 0 : index
    %c0_257 = arith.constant 0 : index
    %282 = vector.load %arg8[%c0_256, %c0_257] : memref<1x16xf32, #tpu.memory_space<vmem>>, vector<1x16xf32>
    %283 = arith.addf %281, %282 : vector<1x16xf32>
    %284 = vector.shape_cast %283 : vector<1x16xf32> to vector<1x1x16xf32>
    %c0_258 = arith.constant 0 : index
    %c0_259 = arith.constant 0 : index
    %c0_260 = arith.constant 0 : index
    %285 = vector.load %arg9[%c0_258, %c0_259, %c0_260] : memref<1x1x16xf32, #tpu.memory_space<vmem>>, vector<1x1x16xf32>
    tpu.vector_store %arg9[%c0_258, %c0_259, %c0_260], %284 {strides = array<i32>} : memref<1x1x16xf32, #tpu.memory_space<vmem>>, vector<1x1x16xf32>,
    return
  }
  func.func @transform_0(%arg0: i32) -> (i32, i32, i32, i32) {
    %c0_i32 = arith.constant 0 : i32
    %c0_i32_0 = arith.constant 0 : i32
    %c0_i32_1 = arith.constant 0 : i32
    %c0_i32_2 = arith.constant 0 : i32
    return %arg0, %c0_i32, %c0_i32_0, %c0_i32_1 : i32, i32, i32, i32
  }
  func.func @transform_1(%arg0: i32) -> (i32, i32, i32) {
    %c0_i32 = arith.constant 0 : i32
    %c0_i32_0 = arith.constant 0 : i32
    %c0_i32_1 = arith.constant 0 : i32
    %c0_i32_2 = arith.constant 0 : i32
    return %c0_i32, %c0_i32_0, %c0_i32_1 : i32, i32, i32
  }
  func.func @transform_2(%arg0: i32) -> (i32, i32, i32, i32) {
    %c0_i32 = arith.constant 0 : i32
    %c0_i32_0 = arith.constant 0 : i32
    %c0_i32_1 = arith.constant 0 : i32
    %c0_i32_2 = arith.constant 0 : i32
    %c0_i32_3 = arith.constant 0 : i32
    return %c0_i32, %c0_i32_0, %c0_i32_1, %c0_i32_2 : i32, i32, i32, i32
  }
  func.func @transform_3(%arg0: i32) -> (i32, i32, i32) {
    %c0_i32 = arith.constant 0 : i32
    %c0_i32_0 = arith.constant 0 : i32
    %c0_i32_1 = arith.constant 0 : i32
    %c0_i32_2 = arith.constant 0 : i32
    return %c0_i32, %c0_i32_0, %c0_i32_1 : i32, i32, i32
  }
  func.func @transform_4(%arg0: i32) -> (i32, i32, i32) {
    %c0_i32 = arith.constant 0 : i32
    %c0_i32_0 = arith.constant 0 : i32
    %c0_i32_1 = arith.constant 0 : i32
    %c0_i32_2 = arith.constant 0 : i32
    return %c0_i32, %c0_i32_0, %c0_i32_1 : i32, i32, i32
  }
  func.func @transform_5(%arg0: i32) -> (i32, i32) {
    %c0_i32 = arith.constant 0 : i32
    %c0_i32_0 = arith.constant 0 : i32
    %c0_i32_1 = arith.constant 0 : i32
    return %c0_i32, %c0_i32_0 : i32, i32
  }
  func.func @transform_6(%arg0: i32) -> (i32, i32) {
    %c0_i32 = arith.constant 0 : i32
    %c0_i32_0 = arith.constant 0 : i32
    %c0_i32_1 = arith.constant 0 : i32
    return %c0_i32, %c0_i32_0 : i32, i32
  }
  func.func @transform_7(%arg0: i32) -> (i32, i32) {
    %c0_i32 = arith.constant 0 : i32
    %c0_i32_0 = arith.constant 0 : i32
    %c0_i32_1 = arith.constant 0 : i32
    return %c0_i32, %c0_i32_0 : i32, i32
  }
  func.func @transform_8(%arg0: i32) -> (i32, i32, i32) {
    %c0_i32 = arith.constant 0 : i32
    %c0_i32_0 = arith.constant 0 : i32
    %c0_i32_1 = arith.constant 0 : i32
    return %arg0, %c0_i32, %c0_i32_0 : i32, i32, i32
  }
}

</mosaic_0001>

<llo_original>
// kernel: pixel_encoder_forward.1
$region0: #{pixel_encoder_forward.1}
  #allocation0 [shape = 'u32[]', space=smem, size = 0x4, offset = 0x4, fixed_abs, tag = 'smem constant byte address 0x4 - core index']
  #allocation1 [shape = 'u32[72,128]{1,0:T(1,128)}', space=vmem, size = 0x9000, scoped, tag = 'internal scratch']
  %s0 = inlined_call_operand.vmem [shape: bf16[2,4,8,1024], index: 0, kind: input, shape index: {}]
  %s1 = inlined_call_operand.vmem [shape: bf16[9,8,8], index: 1, kind: input, shape index: {}]
  %s2 = inlined_call_operand.vmem [shape: bf16[3,9,8,8], index: 2, kind: input, shape index: {}]
  %s3 = inlined_call_operand.vmem [shape: f32[4,8,1], index: 3, kind: input, shape index: {}]
  %s4 = inlined_call_operand.vmem [shape: bf16[8,793,16], index: 4, kind: input, shape index: {}]
  %s5 = inlined_call_operand.vmem [shape: f32[1,16], index: 5, kind: input, shape index: {}]
  %s6 = inlined_call_operand.vmem [shape: f32[1,16], index: 6, kind: input, shape index: {}]
  %s7 = inlined_call_operand.vmem [shape: f32[1,16], index: 7, kind: input, shape index: {}]
  %s8 = inlined_call_operand.hbm [shape: f32[2,1,16], index: 8, kind: output, shape index: {}]
  %s9 = sld [smem:[#allocation0]]
  $region65: #{pixel_encoder_forward.1} parent=0
    _
  %s11 = ssub.s32 1, %s9
  %s12 = scalar_select 0, %s11, %s9
  $region1: #{pixel_encoder_forward.1} parent=0
    #allocation2 [shape = 'u8[1024]{0}', space=vmem, size = 0x400, scoped, tag = 'output window, operand 0']
    #allocation3 [shape = 's32[2]{0}', space=sflag, size = 0x8, scoped, tag = 'scoped memory for pixel_encoder_forward.1']
    %13 = vsyncpa [#allocation3], 0
    %s14 = scalar_lea.sflag [#allocation3], 1
    %15 = vsyncpa %s14, 0
    loop: start=0, step=1, limit=4
    $region2: #{pixel_encoder_forward.1} parent=1 // loop_pre_header
      _
    $region3: #{pixel_encoder_forward.1} parent=1 // loop_header
      %s17 = sphi 0, %s21
      %p18 = scmp.ge.s32.totalorder %s17, 4
      %s27 = sphi 0, %s29
      %s30 = sphi 0, %s27
      %s31 = sphi 0, %s30
      %s47 = sphi 0, %s31
      %s51 = sphi 0, %s51
      %s53 = sphi 0, %s51
      %s54 = sphi 0, %s53
      %s68 = sphi 0, %s54
      %s72 = sphi 0, %s72
      %s74 = sphi 0, %s72
      %s75 = sphi 0, %s74
      %s89 = sphi 0, %s75
      %s93 = sphi 0, %s93
      %s95 = sphi 0, %s93
      %s96 = sphi 0, %s95
      %s110 = sphi 0, %s96
      %s114 = sphi 0, %s114
      %s116 = sphi 0, %s114
      %s117 = sphi 0, %s116
      %s131 = sphi 0, %s117
      %s135 = sphi 0, %s135
      %s137 = sphi 0, %s135
      %s138 = sphi 0, %s137
      %s152 = sphi 0, %s138
      %s156 = sphi 0, %s156
      %s158 = sphi 0, %s156
      %s159 = sphi 0, %s158
      %s173 = sphi 0, %s159
      %s177 = sphi 0, %s177
      %s179 = sphi 0, %s177
      %s180 = sphi 0, %s179
      %s194 = sphi 0, %s180
      %s200 = sphi 0, %s202
      %s203 = sphi 0, %s200
      %s204 = sphi 0, %s203
      %s220 = sphi 0, %s204
    $region4: #{pixel_encoder_forward.1} parent=1 // loop_header_branch
      %20 = sbr.rel (%p18) target = $region8
    $region5: #{pixel_encoder_forward.1} parent=1 // loop_body
      %s22 = ssub.s32 %s17, 1
      %s23 = ssub.s32 %s17, 2
      %s24 = sadd.s32 %s17, 1
      %s25 = ssub.s32 %s17, %s24
      %p26 = scmp.eq.s32.totalorder %s25, 0
      %s28 = sadd.s32 %s27, 1
      %s29 = scalar_select %p26, %s27, %s28
      %p32 = pneg %p26
      %p33 = scmp.eq.s32.totalorder %s17, 1
      %p34 = por %p32, %p33
      %p35 = scmp.ne.s32.totalorder %s27, %s30
      %p36 = scmp.eq.s32.totalorder %s17, 0
      %p37 = por %p35, %p36
      %p38 = scmp.ne.s32.totalorder %s27, %s30
      %p39 = scmp.eq.s32.totalorder %s22, 1
      %p40 = por %p38, %p39
      %p41 = scmp.ne.s32.totalorder %s30, %s31
      %p42 = scmp.eq.s32.totalorder %s22, 0
      %p43 = por %p41, %p42
      %p44 = scmp.ne.s32.totalorder %s30, %s31
      %p45 = scmp.eq.s32.totalorder %s23, 1
      %p46 = por %p44, %p45
      %p48 = scmp.ne.s32.totalorder %s31, %s47
      %p49 = scmp.eq.s32.totalorder %s23, 0
      %p50 = por %p48, %p49
      %s52 = sadd.s32 %s51, 1
      %p55 = scmp.eq.s32.totalorder %s17, 1
      %p56 = scmp.ne.s32.totalorder %s51, %s53
      %p57 = scmp.eq.s32.totalorder %s17, 0
      %p58 = por %p56, %p57
      %p59 = scmp.ne.s32.totalorder %s51, %s53
      %p60 = scmp.eq.s32.totalorder %s22, 1
      %p61 = por %p59, %p60
      %p62 = scmp.ne.s32.totalorder %s53, %s54
      %p63 = scmp.eq.s32.totalorder %s22, 0
      %p64 = por %p62, %p63
      %p65 = scmp.ne.s32.totalorder %s53, %s54
      %p66 = scmp.eq.s32.totalorder %s23, 1
      %p67 = por %p65, %p66
      %p69 = scmp.ne.s32.totalorder %s54, %s68
      %p70 = scmp.eq.s32.totalorder %s23, 0
      %p71 = por %p69, %p70
      %s73 = sadd.s32 %s72, 1
      %p76 = scmp.eq.s32.totalorder %s17, 1
      %p77 = scmp.ne.s32.totalorder %s72, %s74
      %p78 = scmp.eq.s32.totalorder %s17, 0
      %p79 = por %p77, %p78
      %p80 = scmp.ne.s32.totalorder %s72, %s74
      %p81 = scmp.eq.s32.totalorder %s22, 1
      %p82 = por %p80, %p81
      %p83 = scmp.ne.s32.totalorder %s74, %s75
      %p84 = scmp.eq.s32.totalorder %s22, 0
      %p85 = por %p83, %p84
      %p86 = scmp.ne.s32.totalorder %s74, %s75
      %p87 = scmp.eq.s32.totalorder %s23, 1
      %p88 = por %p86, %p87
      %p90 = scmp.ne.s32.totalorder %s75, %s89
      %p91 = scmp.eq.s32.totalorder %s23, 0
      %p92 = por %p90, %p91
      %s94 = sadd.s32 %s93, 1
      %p97 = scmp.eq.s32.totalorder %s17, 1
      %p98 = scmp.ne.s32.totalorder %s93, %s95
      %p99 = scmp.eq.s32.totalorder %s17, 0
      %p100 = por %p98, %p99
      %p101 = scmp.ne.s32.totalorder %s93, %s95
      %p102 = scmp.eq.s32.totalorder %s22, 1
      %p103 = por %p101, %p102
      %p104 = scmp.ne.s32.totalorder %s95, %s96
      %p105 = scmp.eq.s32.totalorder %s22, 0
      %p106 = por %p104, %p105
      %p107 = scmp.ne.s32.totalorder %s95, %s96
      %p108 = scmp.eq.s32.totalorder %s23, 1
      %p109 = por %p107, %p108
      %p111 = scmp.ne.s32.totalorder %s96, %s110
      %p112 = scmp.eq.s32.totalorder %s23, 0
      %p113 = por %p111, %p112
      %s115 = sadd.s32 %s114, 1
      %p118 = scmp.eq.s32.totalorder %s17, 1
      %p119 = scmp.ne.s32.totalorder %s114, %s116
      %p120 = scmp.eq.s32.totalorder %s17, 0
      %p121 = por %p119, %p120
      %p122 = scmp.ne.s32.totalorder %s114, %s116
      %p123 = scmp.eq.s32.totalorder %s22, 1
      %p124 = por %p122, %p123
      %p125 = scmp.ne.s32.totalorder %s116, %s117
      %p126 = scmp.eq.s32.totalorder %s22, 0
      %p127 = por %p125, %p126
      %p128 = scmp.ne.s32.totalorder %s116, %s117
      %p129 = scmp.eq.s32.totalorder %s23, 1
      %p130 = por %p128, %p129
      %p132 = scmp.ne.s32.totalorder %s117, %s131
      %p133 = scmp.eq.s32.totalorder %s23, 0
      %p134 = por %p132, %p133
      %s136 = sadd.s32 %s135, 1
      %p139 = scmp.eq.s32.totalorder %s17, 1
      %p140 = scmp.ne.s32.totalorder %s135, %s137
      %p141 = scmp.eq.s32.totalorder %s17, 0
      %p142 = por %p140, %p141
      %p143 = scmp.ne.s32.totalorder %s135, %s137
      %p144 = scmp.eq.s32.totalorder %s22, 1
      %p145 = por %p143, %p144
      %p146 = scmp.ne.s32.totalorder %s137, %s138
      %p147 = scmp.eq.s32.totalorder %s22, 0
      %p148 = por %p146, %p147
      %p149 = scmp.ne.s32.totalorder %s137, %s138
      %p150 = scmp.eq.s32.totalorder %s23, 1
      %p151 = por %p149, %p150
      %p153 = scmp.ne.s32.totalorder %s138, %s152
      %p154 = scmp.eq.s32.totalorder %s23, 0
      %p155 = por %p153, %p154
      %s157 = sadd.s32 %s156, 1
      %p160 = scmp.eq.s32.totalorder %s17, 1
      %p161 = scmp.ne.s32.totalorder %s156, %s158
      %p162 = scmp.eq.s32.totalorder %s17, 0
      %p163 = por %p161, %p162
      %p164 = scmp.ne.s32.totalorder %s156, %s158
      %p165 = scmp.eq.s32.totalorder %s22, 1
      %p166 = por %p164, %p165
      %p167 = scmp.ne.s32.totalorder %s158, %s159
      %p168 = scmp.eq.s32.totalorder %s22, 0
      %p169 = por %p167, %p168
      %p170 = scmp.ne.s32.totalorder %s158, %s159
      %p171 = scmp.eq.s32.totalorder %s23, 1
      %p172 = por %p170, %p171
      %p174 = scmp.ne.s32.totalorder %s159, %s173
      %p175 = scmp.eq.s32.totalorder %s23, 0
      %p176 = por %p174, %p175
      %s178 = sadd.s32 %s177, 1
      %p181 = scmp.eq.s32.totalorder %s17, 1
      %p182 = scmp.ne.s32.totalorder %s177, %s179
      %p183 = scmp.eq.s32.totalorder %s17, 0
      %p184 = por %p182, %p183
      %p185 = scmp.ne.s32.totalorder %s177, %s179
      %p186 = scmp.eq.s32.totalorder %s22, 1
      %p187 = por %p185, %p186
      %p188 = scmp.ne.s32.totalorder %s179, %s180
      %p189 = scmp.eq.s32.totalorder %s22, 0
      %p190 = por %p188, %p189
      %p191 = scmp.ne.s32.totalorder %s179, %s180
      %p192 = scmp.eq.s32.totalorder %s23, 1
      %p193 = por %p191, %p192
      %p195 = scmp.ne.s32.totalorder %s180, %s194
      %p196 = scmp.eq.s32.totalorder %s23, 0
      %p197 = por %p195, %p196
      %s198 = ssub.s32 %s17, %s24
      %p199 = scmp.eq.s32.totalorder %s198, 0
      %s201 = sadd.s32 %s200, 1
      %s202 = scalar_select %p199, %s200, %s201
      %p205 = pneg %p199
      %p206 = scmp.eq.s32.totalorder %s17, 1
      %p207 = por %p205, %p206
      %p208 = scmp.ne.s32.totalorder %s200, %s203
      %p209 = scmp.eq.s32.totalorder %s17, 0
      %p210 = por %p208, %p209
      %p211 = scmp.ne.s32.totalorder %s200, %s203
      %p212 = scmp.eq.s32.totalorder %s22, 1
      %p213 = por %p211, %p212
      %p214 = scmp.ne.s32.totalorder %s203, %s204
      %p215 = scmp.eq.s32.totalorder %s22, 0
      %p216 = por %p214, %p215
      %p217 = scmp.ne.s32.totalorder %s203, %s204
      %p218 = scmp.eq.s32.totalorder %s23, 1
      %p219 = por %p217, %p218
      %p221 = scmp.ne.s32.totalorder %s204, %s220
      %p222 = scmp.eq.s32.totalorder %s23, 0
      %p223 = por %p221, %p222
      %p224 = scmp.le.s32.totalorder 1, %s17
      %p225 = scmp.lt.s32.totalorder %s17, 3
      %p226 = pnand %p224, %p225
      %p227 = pneg %p226
      // Predicated region
      $region9: #{pixel_encoder_forward.1} parent=5 // pred_check
        _
      $region10: #{pixel_encoder_forward.1} parent=5 // pred_check_branch
        %229 = sbr.rel (%p226) target = $region12
      $region11: #{pixel_encoder_forward.1} parent=5 // pred_region
        %s230 = ssub.s32 %s17, 1
        // Predicated region
        $region13: #{pixel_encoder_forward.1} parent=11 // pred_check
          %p231 = pneg %p64
        $region14: #{pixel_encoder_forward.1} parent=11 // pred_check_branch
          %233 = sbr.rel (%p231) target = $region16
        $region15: #{pixel_encoder_forward.1} parent=11 // pred_region
          _
        $region16: #{pixel_encoder_forward.1} parent=11 // pred_fallthru
          _
        // Predicated region
        $region17: #{pixel_encoder_forward.1} parent=11 // pred_check
          %p234 = pneg %p85
        $region18: #{pixel_encoder_forward.1} parent=11 // pred_check_branch
          %236 = sbr.rel (%p234) target = $region20
        $region19: #{pixel_encoder_forward.1} parent=11 // pred_region
          _
        $region20: #{pixel_encoder_forward.1} parent=11 // pred_fallthru
          _
        // Predicated region
        $region21: #{pixel_encoder_forward.1} parent=11 // pred_check
          %p237 = pneg %p106
        $region22: #{pixel_encoder_forward.1} parent=11 // pred_check_branch
          %239 = sbr.rel (%p237) target = $region24
        $region23: #{pixel_encoder_forward.1} parent=11 // pred_region
          _
        $region24: #{pixel_encoder_forward.1} parent=11 // pred_fallthru
          _
        // Predicated region
        $region25: #{pixel_encoder_forward.1} parent=11 // pred_check
          %p240 = pneg %p127
        $region26: #{pixel_encoder_forward.1} parent=11 // pred_check_branch
          %242 = sbr.rel (%p240) target = $region28
        $region27: #{pixel_encoder_forward.1} parent=11 // pred_region
          _
        $region28: #{pixel_encoder_forward.1} parent=11 // pred_fallthru
          _
        // Predicated region
        $region29: #{pixel_encoder_forward.1} parent=11 // pred_check
          %p243 = pneg %p148
        $region30: #{pixel_encoder_forward.1} parent=11 // pred_check_branch
          %245 = sbr.rel (%p243) target = $region32
        $region31: #{pixel_encoder_forward.1} parent=11 // pred_region
          _
        $region32: #{pixel_encoder_forward.1} parent=11 // pred_fallthru
          _
        // Predicated region
        $region33: #{pixel_encoder_forward.1} parent=11 // pred_check
          %p246 = pneg %p169
        $region34: #{pixel_encoder_forward.1} parent=11 // pred_check_branch
          %248 = sbr.rel (%p246) target = $region36
        $region35: #{pixel_encoder_forward.1} parent=11 // pred_region
          _
        $region36: #{pixel_encoder_forward.1} parent=11 // pred_fallthru
          _
        // Predicated region
        $region37: #{pixel_encoder_forward.1} parent=11 // pred_check
          %p249 = pneg %p190
        $region38: #{pixel_encoder_forward.1} parent=11 // pred_check_branch
          %251 = sbr.rel (%p249) target = $region40
        $region39: #{pixel_encoder_forward.1} parent=11 // pred_region
          _
        $region40: #{pixel_encoder_forward.1} parent=11 // pred_fallthru
          _
      $region12: #{pixel_encoder_forward.1} parent=5 // pred_fallthru
        _
      %p252 = scmp.lt.s32.totalorder %s17, 2
      // Predicated region
      $region41: #{pixel_encoder_forward.1} parent=5 // pred_check
        %p253 = pneg %p252
      $region42: #{pixel_encoder_forward.1} parent=5 // pred_check_branch
        %255 = sbr.rel (%p253) target = $region44
      $region43: #{pixel_encoder_forward.1} parent=5 // pred_region
        // Predicated region
        $region45: #{pixel_encoder_forward.1} parent=43 // pred_check
          %p256 = pneg %p37
        $region46: #{pixel_encoder_forward.1} parent=43 // pred_check_branch
          %258 = sbr.rel (%p256) target = $region48
        $region47: #{pixel_encoder_forward.1} parent=43 // pred_region
          %p259 = scmp.lt.s32.totalorder %s17, 1
          %s260 = scalar_select %p259, %s17, 1
          %s261 = smul.addr %s260, 32
          %s262 = smul.addr %s261, 4
          %s263 = scalar_lea.vmem %s0, %s262
        $region48: #{pixel_encoder_forward.1} parent=43 // pred_fallthru
          _
      $region44: #{pixel_encoder_forward.1} parent=5 // pred_fallthru
        _
      %p264 = scmp.le.s32.totalorder 1, %s17
      %p265 = scmp.lt.s32.totalorder %s17, 3
      %p266 = pnand %p264, %p265
      %p267 = pneg %p266
      // Predicated region
      $region49: #{pixel_encoder_forward.1} parent=5 // pred_check
        _
      $region50: #{pixel_encoder_forward.1} parent=5 // pred_check_branch
        %269 = sbr.rel (%p266) target = $region52
      $region51: #{pixel_encoder_forward.1} parent=5 // pred_region
        %s270 = ssub.s32 %s17, 1
        %p271 = scmp.lt.s32.totalorder %s22, 1
        %s272 = scalar_select %p271, %s22, 1
        %s273 = smul.addr %s272, 32
        %s274 = smul.addr %s273, 4
        %s275 = scalar_lea.vmem %s0, %s274
        %p276 = pneg %p43
        %p277 = pneg %p40
        %p278 = pneg %p64
        %p279 = pneg %p61
        %p280 = pneg %p85
        %p281 = pneg %p82
        %p282 = pneg %p106
        %p283 = pneg %p103
        %p284 = pneg %p127
        %p285 = pneg %p124
        %p286 = pneg %p148
        %p287 = pneg %p145
        %p288 = pneg %p169
        %p289 = pneg %p166
        %p290 = pneg %p190
        %p291 = pneg %p187
        %p292 = pneg %p216
        %p293 = pneg %p213
        %s294 = sand.u32 %s203, 1
        %s295 = scalar_lea.sflag [#allocation3], %s294
        %s296 = sand.u32 %s203, 1
        %s297 = scalar_lea.vmem [#allocation2], %s296
        %p298 = scmp.lt.s32.totalorder %s22, 1
        %s299 = scalar_select %p298, %s22, 1
        %s300 = smul.addr %s299, 32
        %s301 = smul.addr %s300, 4
        %s302 = scalar_lea.vmem %s0, %s301
        %v304 = vld [vmem:[%s302] sm:$0xff]
        %v305 = vld [vmem:[%s302 + $0x8] sm:$0xff]
        %v306 = vld [vmem:[%s302 + $0x10] sm:$0xff]
        %v307 = vld [vmem:[%s302 + $0x18] sm:$0xff]
        %v308 = vld [vmem:[%s1] sm:$0xf]
        %s309 = scalar_lea.vmem %s302, 32
        %v310 = vld [vmem:[%s309] sm:$0xff]
        %v311 = vld [vmem:[%s309 + $0x8] sm:$0xff]
        %v312 = vld [vmem:[%s309 + $0x10] sm:$0xff]
        %v313 = vld [vmem:[%s309 + $0x18] sm:$0xff]
        %s314 = scalar_lea.vmem %s1, 4
        %v315 = vld [vmem:[%s314] sm:$0xf]
        %v320 = vunpack.c.l.b16 %v310
        %v321 = vunpack.c.h.b16 %v310
        %v322 = vunpack.c.l.b16 %v311
        %v323 = vunpack.c.h.b16 %v311
        %v324 = vunpack.c.l.b16 %v312
        %v325 = vunpack.c.h.b16 %v312
        %v326 = vunpack.c.l.b16 %v313
        %v327 = vunpack.c.h.b16 %v313
        %v328 = vpack.c.b16 %v320, %v320
        %v329 = vpack.c.b16 %v321, %v321
        %v330 = vpack.c.b16 %v322, %v322
        %v331 = vpack.c.b16 %v323, %v323
        %v332 = vpack.c.b16 %v324, %v324
        %v333 = vpack.c.b16 %v325, %v325
        %v334 = vpack.c.b16 %v326, %v326
        %v335 = vpack.c.b16 %v327, %v327
        %vm336 = vcmask 64512
        %v338 = vsel %vm336, %v315, 0
        %vm340 = vcmask 1043456
        %v342 = vsel %vm340, %v328, 0
        %v345 = vsel %vm340, %v329, 0
        %v348 = vsel %vm340, %v330, 0
        %v351 = vsel %vm340, %v331, 0
        %v354 = vsel %vm340, %v332, 0
        %v357 = vsel %vm340, %v333, 0
        %v360 = vsel %vm340, %v334, 0
        %v363 = vsel %vm340, %v335, 0
        %365 = vmatpush.bf16.msra.mxu0 0
        %366 = vmatpush.bf16.msra.mxu0 0
        %367 = vmatpush.bf16.msra.mxu0 0
        %368 = vmatpush.bf16.msra.mxu0 0
        %369 = vmatpush.bf16.msra.mxu0 0
        %370 = vmatpush.bf16.msra.mxu0 0
        %371 = vmatpush.bf16.msra.mxu0 0
        %372 = vmatpush.bf16.msra.mxu0 %v342
        %373 = vmatmul.bf16.gmra.mxu0 %v338
        %v374 = vpop.f32.mrf.mxu0
        %v375 = vadd.f32 0.0, %v374
        %v376 = vpop.f32.mrf.mxu0
        %377 = vdwg.mxu0
        %378 = vmatpush.bf16.msra.mxu0 0
        %379 = vmatpush.bf16.msra.mxu0 0
        %380 = vmatpush.bf16.msra.mxu0 0
        %381 = vmatpush.bf16.msra.mxu0 0
        %382 = vmatpush.bf16.msra.mxu0 0
        %383 = vmatpush.bf16.msra.mxu0 0
        %384 = vmatpush.bf16.msra.mxu0 0
        %385 = vmatpush.bf16.msra.mxu0 %v345
        %386 = vmatmul.bf16.gmra.mxu0 %v338
        %v387 = vpop.f32.mrf.mxu0
        %v388 = vadd.f32 0.0, %v387
        %v389 = vpop.f32.mrf.mxu0
        %390 = vdwg.mxu0
        %391 = vmatpush.bf16.msra.mxu0 0
        %392 = vmatpush.bf16.msra.mxu0 0
        %393 = vmatpush.bf16.msra.mxu0 0
        %394 = vmatpush.bf16.msra.mxu0 0
        %395 = vmatpush.bf16.msra.mxu0 0
        %396 = vmatpush.bf16.msra.mxu0 0
        %397 = vmatpush.bf16.msra.mxu0 0
        %398 = vmatpush.bf16.msra.mxu0 %v348
        %399 = vmatmul.bf16.gmra.mxu0 %v338
        %v400 = vpop.f32.mrf.mxu0
        %v401 = vadd.f32 0.0, %v400
        %v402 = vpop.f32.mrf.mxu0
        %403 = vdwg.mxu0
        %404 = vmatpush.bf16.msra.mxu0 0
        %405 = vmatpush.bf16.msra.mxu0 0
        %406 = vmatpush.bf16.msra.mxu0 0
        %407 = vmatpush.bf16.msra.mxu0 0
        %408 = vmatpush.bf16.msra.mxu0 0
        %409 = vmatpush.bf16.msra.mxu0 0
        %410 = vmatpush.bf16.msra.mxu0 0
        %411 = vmatpush.bf16.msra.mxu0 %v351
        %412 = vmatmul.bf16.gmra.mxu0 %v338
        %v413 = vpop.f32.mrf.mxu0
        %v414 = vadd.f32 0.0, %v413
        %v415 = vpop.f32.mrf.mxu0
        %416 = vdwg.mxu0
        %417 = vmatpush.bf16.msra.mxu0 0
        %418 = vmatpush.bf16.msra.mxu0 0
        %419 = vmatpush.bf16.msra.mxu0 0
        %420 = vmatpush.bf16.msra.mxu0 0
        %421 = vmatpush.bf16.msra.mxu0 0
        %422 = vmatpush.bf16.msra.mxu0 0
        %423 = vmatpush.bf16.msra.mxu0 0
        %424 = vmatpush.bf16.msra.mxu0 %v354
        %425 = vmatmul.bf16.gmra.mxu0 %v338
        %v426 = vpop.f32.mrf.mxu0
        %v427 = vadd.f32 0.0, %v426
        %v428 = vpop.f32.mrf.mxu0
        %429 = vdwg.mxu0
        %430 = vmatpush.bf16.msra.mxu0 0
        %431 = vmatpush.bf16.msra.mxu0 0
        %432 = vmatpush.bf16.msra.mxu0 0
        %433 = vmatpush.bf16.msra.mxu0 0
        %434 = vmatpush.bf16.msra.mxu0 0
        %435 = vmatpush.bf16.msra.mxu0 0
        %436 = vmatpush.bf16.msra.mxu0 0
        %437 = vmatpush.bf16.msra.mxu0 %v357
        %438 = vmatmul.bf16.gmra.mxu0 %v338
        %v439 = vpop.f32.mrf.mxu0
        %v440 = vadd.f32 0.0, %v439
        %v441 = vpop.f32.mrf.mxu0
        %442 = vdwg.mxu0
        %443 = vmatpush.bf16.msra.mxu0 0
        %444 = vmatpush.bf16.msra.mxu0 0
        %445 = vmatpush.bf16.msra.mxu0 0
        %446 = vmatpush.bf16.msra.mxu0 0
        %447 = vmatpush.bf16.msra.mxu0 0
        %448 = vmatpush.bf16.msra.mxu0 0
        %449 = vmatpush.bf16.msra.mxu0 0
        %450 = vmatpush.bf16.msra.mxu0 %v360
        %451 = vmatmul.bf16.gmra.mxu0 %v338
        %v452 = vpop.f32.mrf.mxu0
        %v453 = vadd.f32 0.0, %v452
        %v454 = vpop.f32.mrf.mxu0
        %455 = vdwg.mxu0
        %456 = vmatpush.bf16.msra.mxu0 0
        %457 = vmatpush.bf16.msra.mxu0 0
        %458 = vmatpush.bf16.msra.mxu0 0
        %459 = vmatpush.bf16.msra.mxu0 0
        %460 = vmatpush.bf16.msra.mxu0 0
        %461 = vmatpush.bf16.msra.mxu0 0
        %462 = vmatpush.bf16.msra.mxu0 0
        %463 = vmatpush.bf16.msra.mxu0 %v363
        %464 = vmatmul.bf16.gmra.mxu0 %v338
        %v465 = vpop.f32.mrf.mxu0
        %v466 = vadd.f32 0.0, %v465
        %v467 = vpop.f32.mrf.mxu0
        %468 = vdwg.mxu0
        %v473 = vunpack.c.l.b16 %v304
        %v474 = vunpack.c.h.b16 %v304
        %v475 = vunpack.c.l.b16 %v305
        %v476 = vunpack.c.h.b16 %v305
        %v477 = vunpack.c.l.b16 %v306
        %v478 = vunpack.c.h.b16 %v306
        %v479 = vunpack.c.l.b16 %v307
        %v480 = vunpack.c.h.b16 %v307
        %v481 = vpack.c.b16 %v473, %v473
        %v482 = vpack.c.b16 %v474, %v474
        %v483 = vpack.c.b16 %v475, %v475
        %v484 = vpack.c.b16 %v476, %v476
        %v485 = vpack.c.b16 %v477, %v477
        %v486 = vpack.c.b16 %v478, %v478
        %v487 = vpack.c.b16 %v479, %v479
        %v488 = vpack.c.b16 %v480, %v480
        %v490 = vsel %vm336, %v308, 0
        %v493 = vsel %vm340, %v481, 0
        %v496 = vsel %vm340, %v482, 0
        %v499 = vsel %vm340, %v483, 0
        %v502 = vsel %vm340, %v484, 0
        %v505 = vsel %vm340, %v485, 0
        %v508 = vsel %vm340, %v486, 0
        %v511 = vsel %vm340, %v487, 0
        %v514 = vsel %vm340, %v488, 0
        %516 = vmatpush.bf16.msra.mxu0 0
        %517 = vmatpush.bf16.msra.mxu0 0
        %518 = vmatpush.bf16.msra.mxu0 0
        %519 = vmatpush.bf16.msra.mxu0 0
        %520 = vmatpush.bf16.msra.mxu0 0
        %521 = vmatpush.bf16.msra.mxu0 0
        %522 = vmatpush.bf16.msra.mxu0 0
        %523 = vmatpush.bf16.msra.mxu0 %v493
        %524 = vmatmul.bf16.gmra.mxu0 %v490
        %v525 = vpop.f32.mrf.mxu0
        %v526 = vadd.f32 %v375, %v525
        %v527 = vpop.f32.mrf.mxu0
        %528 = vdwg.mxu0
        %529 = vmatpush.bf16.msra.mxu0 0
        %530 = vmatpush.bf16.msra.mxu0 0
        %531 = vmatpush.bf16.msra.mxu0 0
        %532 = vmatpush.bf16.msra.mxu0 0
        %533 = vmatpush.bf16.msra.mxu0 0
        %534 = vmatpush.bf16.msra.mxu0 0
        %535 = vmatpush.bf16.msra.mxu0 0
        %536 = vmatpush.bf16.msra.mxu0 %v496
        %537 = vmatmul.bf16.gmra.mxu0 %v490
        %v538 = vpop.f32.mrf.mxu0
        %v539 = vadd.f32 %v388, %v538
        %v540 = vpop.f32.mrf.mxu0
        %541 = vdwg.mxu0
        %542 = vmatpush.bf16.msra.mxu0 0
        %543 = vmatpush.bf16.msra.mxu0 0
        %544 = vmatpush.bf16.msra.mxu0 0
        %545 = vmatpush.bf16.msra.mxu0 0
        %546 = vmatpush.bf16.msra.mxu0 0
        %547 = vmatpush.bf16.msra.mxu0 0
        %548 = vmatpush.bf16.msra.mxu0 0
        %549 = vmatpush.bf16.msra.mxu0 %v499
        %550 = vmatmul.bf16.gmra.mxu0 %v490
        %v551 = vpop.f32.mrf.mxu0
        %v552 = vadd.f32 %v401, %v551
        %v553 = vpop.f32.mrf.mxu0
        %554 = vdwg.mxu0
        %555 = vmatpush.bf16.msra.mxu0 0
        %556 = vmatpush.bf16.msra.mxu0 0
        %557 = vmatpush.bf16.msra.mxu0 0
        %558 = vmatpush.bf16.msra.mxu0 0
        %559 = vmatpush.bf16.msra.mxu0 0
        %560 = vmatpush.bf16.msra.mxu0 0
        %561 = vmatpush.bf16.msra.mxu0 0
        %562 = vmatpush.bf16.msra.mxu0 %v502
        %563 = vmatmul.bf16.gmra.mxu0 %v490
        %v564 = vpop.f32.mrf.mxu0
        %v565 = vadd.f32 %v414, %v564
        %v566 = vpop.f32.mrf.mxu0
        %567 = vdwg.mxu0
        %568 = vmatpush.bf16.msra.mxu0 0
        %569 = vmatpush.bf16.msra.mxu0 0
        %570 = vmatpush.bf16.msra.mxu0 0
        %571 = vmatpush.bf16.msra.mxu0 0
        %572 = vmatpush.bf16.msra.mxu0 0
        %573 = vmatpush.bf16.msra.mxu0 0
        %574 = vmatpush.bf16.msra.mxu0 0
        %575 = vmatpush.bf16.msra.mxu0 %v505
        %576 = vmatmul.bf16.gmra.mxu0 %v490
        %v577 = vpop.f32.mrf.mxu0
        %v578 = vadd.f32 %v427, %v577
        %v579 = vpop.f32.mrf.mxu0
        %580 = vdwg.mxu0
        %581 = vmatpush.bf16.msra.mxu0 0
        %582 = vmatpush.bf16.msra.mxu0 0
        %583 = vmatpush.bf16.msra.mxu0 0
        %584 = vmatpush.bf16.msra.mxu0 0
        %585 = vmatpush.bf16.msra.mxu0 0
        %586 = vmatpush.bf16.msra.mxu0 0
        %587 = vmatpush.bf16.msra.mxu0 0
        %588 = vmatpush.bf16.msra.mxu0 %v508
        %589 = vmatmul.bf16.gmra.mxu0 %v490
        %v590 = vpop.f32.mrf.mxu0
        %v591 = vadd.f32 %v440, %v590
        %v592 = vpop.f32.mrf.mxu0
        %593 = vdwg.mxu0
        %594 = vmatpush.bf16.msra.mxu0 0
        %595 = vmatpush.bf16.msra.mxu0 0
        %596 = vmatpush.bf16.msra.mxu0 0
        %597 = vmatpush.bf16.msra.mxu0 0
        %598 = vmatpush.bf16.msra.mxu0 0
        %599 = vmatpush.bf16.msra.mxu0 0
        %600 = vmatpush.bf16.msra.mxu0 0
        %601 = vmatpush.bf16.msra.mxu0 %v511
        %602 = vmatmul.bf16.gmra.mxu0 %v490
        %v603 = vpop.f32.mrf.mxu0
        %v604 = vadd.f32 %v453, %v603
        %v605 = vpop.f32.mrf.mxu0
        %606 = vdwg.mxu0
        %607 = vmatpush.bf16.msra.mxu0 0
        %608 = vmatpush.bf16.msra.mxu0 0
        %609 = vmatpush.bf16.msra.mxu0 0
        %610 = vmatpush.bf16.msra.mxu0 0
        %611 = vmatpush.bf16.msra.mxu0 0
        %612 = vmatpush.bf16.msra.mxu0 0
        %613 = vmatpush.bf16.msra.mxu0 0
        %614 = vmatpush.bf16.msra.mxu0 %v514
        %615 = vmatmul.bf16.gmra.mxu0 %v490
        %v616 = vpop.f32.mrf.mxu0
        %v617 = vadd.f32 %v466, %v616
        %v618 = vpop.f32.mrf.mxu0
        %619 = vdwg.mxu0
        %s620 = scalar_lea.vmem %s1, 8
        %v621 = vld [vmem:[%s620] sm:$0xf]
        %622 = vrot.lane.b32.xlu0 %v481, 127
        %v623 = vpop.permute.xlu0 %622
        %624 = vrot.lane.b32.xlu0 %v482, 127
        %v625 = vpop.permute.xlu0 %624
        %626 = vrot.lane.b32.xlu0 %v483, 127
        %v627 = vpop.permute.xlu0 %626
        %628 = vrot.lane.b32.xlu0 %v484, 127
        %v629 = vpop.permute.xlu0 %628
        %630 = vrot.lane.b32.xlu0 %v485, 127
        %v631 = vpop.permute.xlu0 %630
        %632 = vrot.lane.b32.xlu0 %v486, 127
        %v633 = vpop.permute.xlu0 %632
        %634 = vrot.lane.b32.xlu0 %v487, 127
        %v635 = vpop.permute.xlu0 %634
        %636 = vrot.lane.b32.xlu0 %v488, 127
        %v637 = vpop.permute.xlu0 %636
        %vm638 = vcmask 1039360
        %v639 = vsel %vm638, %v623, %v625
        %v640 = vsel %vm638, %v625, %v627
        %v641 = vsel %vm638, %v627, %v629
        %v642 = vsel %vm638, %v629, %v631
        %v643 = vsel %vm638, %v631, %v633
        %v644 = vsel %vm638, %v633, %v635
        %v645 = vsel %vm638, %v635, %v637
        %v647 = vsel %vm336, %v621, 0
        %v650 = vsel %vm340, %v639, 0
        %v653 = vsel %vm340, %v640, 0
        %v656 = vsel %vm340, %v641, 0
        %v659 = vsel %vm340, %v642, 0
        %v662 = vsel %vm340, %v643, 0
        %v665 = vsel %vm340, %v644, 0
        %v668 = vsel %vm340, %v645, 0
        %v671 = vsel %vm340, %v637, 0
        %673 = vmatpush.bf16.msra.mxu0 0
        %674 = vmatpush.bf16.msra.mxu0 0
        %675 = vmatpush.bf16.msra.mxu0 0
        %676 = vmatpush.bf16.msra.mxu0 0
        %677 = vmatpush.bf16.msra.mxu0 0
        %678 = vmatpush.bf16.msra.mxu0 0
        %679 = vmatpush.bf16.msra.mxu0 0
        %680 = vmatpush.bf16.msra.mxu0 %v650
        %681 = vmatmul.bf16.gmra.mxu0 %v647
        %v682 = vpop.f32.mrf.mxu0
        %v683 = vadd.f32 0.0, %v682
        %v684 = vpop.f32.mrf.mxu0
        %685 = vdwg.mxu0
        %686 = vmatpush.bf16.msra.mxu0 0
        %687 = vmatpush.bf16.msra.mxu0 0
        %688 = vmatpush.bf16.msra.mxu0 0
        %689 = vmatpush.bf16.msra.mxu0 0
        %690 = vmatpush.bf16.msra.mxu0 0
        %691 = vmatpush.bf16.msra.mxu0 0
        %692 = vmatpush.bf16.msra.mxu0 0
        %693 = vmatpush.bf16.msra.mxu0 %v653
        %694 = vmatmul.bf16.gmra.mxu0 %v647
        %v695 = vpop.f32.mrf.mxu0
        %v696 = vadd.f32 0.0, %v695
        %v697 = vpop.f32.mrf.mxu0
        %698 = vdwg.mxu0
        %699 = vmatpush.bf16.msra.mxu0 0
        %700 = vmatpush.bf16.msra.mxu0 0
        %701 = vmatpush.bf16.msra.mxu0 0
        %702 = vmatpush.bf16.msra.mxu0 0
        %703 = vmatpush.bf16.msra.mxu0 0
        %704 = vmatpush.bf16.msra.mxu0 0
        %705 = vmatpush.bf16.msra.mxu0 0
        %706 = vmatpush.bf16.msra.mxu0 %v656
        %707 = vmatmul.bf16.gmra.mxu0 %v647
        %v708 = vpop.f32.mrf.mxu0
        %v709 = vadd.f32 0.0, %v708
        %v710 = vpop.f32.mrf.mxu0
        %711 = vdwg.mxu0
        %712 = vmatpush.bf16.msra.mxu0 0
        %713 = vmatpush.bf16.msra.mxu0 0
        %714 = vmatpush.bf16.msra.mxu0 0
        %715 = vmatpush.bf16.msra.mxu0 0
        %716 = vmatpush.bf16.msra.mxu0 0
        %717 = vmatpush.bf16.msra.mxu0 0
        %718 = vmatpush.bf16.msra.mxu0 0
        %719 = vmatpush.bf16.msra.mxu0 %v659
        %720 = vmatmul.bf16.gmra.mxu0 %v647
        %v721 = vpop.f32.mrf.mxu0
        %v722 = vadd.f32 0.0, %v721
        %v723 = vpop.f32.mrf.mxu0
        %724 = vdwg.mxu0
        %725 = vmatpush.bf16.msra.mxu0 0
        %726 = vmatpush.bf16.msra.mxu0 0
        %727 = vmatpush.bf16.msra.mxu0 0
        %728 = vmatpush.bf16.msra.mxu0 0
        %729 = vmatpush.bf16.msra.mxu0 0
        %730 = vmatpush.bf16.msra.mxu0 0
        %731 = vmatpush.bf16.msra.mxu0 0
        %732 = vmatpush.bf16.msra.mxu0 %v662
        %733 = vmatmul.bf16.gmra.mxu0 %v647
        %v734 = vpop.f32.mrf.mxu0
        %v735 = vadd.f32 0.0, %v734
        %v736 = vpop.f32.mrf.mxu0
        %737 = vdwg.mxu0
        %738 = vmatpush.bf16.msra.mxu0 0
        %739 = vmatpush.bf16.msra.mxu0 0
        %740 = vmatpush.bf16.msra.mxu0 0
        %741 = vmatpush.bf16.msra.mxu0 0
        %742 = vmatpush.bf16.msra.mxu0 0
        %743 = vmatpush.bf16.msra.mxu0 0
        %744 = vmatpush.bf16.msra.mxu0 0
        %745 = vmatpush.bf16.msra.mxu0 %v665
        %746 = vmatmul.bf16.gmra.mxu0 %v647
        %v747 = vpop.f32.mrf.mxu0
        %v748 = vadd.f32 0.0, %v747
        %v749 = vpop.f32.mrf.mxu0
        %750 = vdwg.mxu0
        %751 = vmatpush.bf16.msra.mxu0 0
        %752 = vmatpush.bf16.msra.mxu0 0
        %753 = vmatpush.bf16.msra.mxu0 0
        %754 = vmatpush.bf16.msra.mxu0 0
        %755 = vmatpush.bf16.msra.mxu0 0
        %756 = vmatpush.bf16.msra.mxu0 0
        %757 = vmatpush.bf16.msra.mxu0 0
        %758 = vmatpush.bf16.msra.mxu0 %v668
        %759 = vmatmul.bf16.gmra.mxu0 %v647
        %v760 = vpop.f32.mrf.mxu0
        %v761 = vadd.f32 0.0, %v760
        %v762 = vpop.f32.mrf.mxu0
        %763 = vdwg.mxu0
        %764 = vmatpush.bf16.msra.mxu0 0
        %765 = vmatpush.bf16.msra.mxu0 0
        %766 = vmatpush.bf16.msra.mxu0 0
        %767 = vmatpush.bf16.msra.mxu0 0
        %768 = vmatpush.bf16.msra.mxu0 0
        %769 = vmatpush.bf16.msra.mxu0 0
        %770 = vmatpush.bf16.msra.mxu0 0
        %771 = vmatpush.bf16.msra.mxu0 %v671
        %772 = vmatmul.bf16.gmra.mxu0 %v647
        %v773 = vpop.f32.mrf.mxu0
        %v774 = vadd.f32 0.0, %v773
        %v775 = vpop.f32.mrf.mxu0
        %776 = vdwg.mxu0
        %v777 = vadd.f32 %v526, %v683
        %v778 = vadd.f32 %v539, %v696
        %v779 = vadd.f32 %v552, %v709
        %v780 = vadd.f32 %v565, %v722
        %v781 = vadd.f32 %v578, %v735
        %v782 = vadd.f32 %v591, %v748
        %v783 = vadd.f32 %v604, %v761
        %v784 = vadd.f32 %v617, %v774
        %s785 = scalar_lea.vmem %s302, 64
        %v786 = vld [vmem:[%s785] sm:$0xff]
        %v787 = vld [vmem:[%s785 + $0x8] sm:$0xff]
        %v788 = vld [vmem:[%s785 + $0x10] sm:$0xff]
        %v789 = vld [vmem:[%s785 + $0x18] sm:$0xff]
        %s790 = scalar_lea.vmem %s1, 12
        %v791 = vld [vmem:[%s790] sm:$0xf]
        %v796 = vunpack.c.l.b16 %v786
        %v797 = vunpack.c.h.b16 %v786
        %v798 = vunpack.c.l.b16 %v787
        %v799 = vunpack.c.h.b16 %v787
        %v800 = vunpack.c.l.b16 %v788
        %v801 = vunpack.c.h.b16 %v788
        %v802 = vunpack.c.l.b16 %v789
        %v803 = vunpack.c.h.b16 %v789
        %v804 = vpack.c.b16 %v796, %v796
        %v805 = vpack.c.b16 %v797, %v797
        %v806 = vpack.c.b16 %v798, %v798
        %v807 = vpack.c.b16 %v799, %v799
        %v808 = vpack.c.b16 %v800, %v800
        %v809 = vpack.c.b16 %v801, %v801
        %v810 = vpack.c.b16 %v802, %v802
        %v811 = vpack.c.b16 %v803, %v803
        %v813 = vsel %vm336, %v791, 0
        %v816 = vsel %vm340, %v804, 0
        %v819 = vsel %vm340, %v805, 0
        %v822 = vsel %vm340, %v806, 0
        %v825 = vsel %vm340, %v807, 0
        %v828 = vsel %vm340, %v808, 0
        %v831 = vsel %vm340, %v809, 0
        %v834 = vsel %vm340, %v810, 0
        %v837 = vsel %vm340, %v811, 0
        %839 = vmatpush.bf16.msra.mxu0 0
        %840 = vmatpush.bf16.msra.mxu0 0
        %841 = vmatpush.bf16.msra.mxu0 0
        %842 = vmatpush.bf16.msra.mxu0 0
        %843 = vmatpush.bf16.msra.mxu0 0
        %844 = vmatpush.bf16.msra.mxu0 0
        %845 = vmatpush.bf16.msra.mxu0 0
        %846 = vmatpush.bf16.msra.mxu0 %v816
        %847 = vmatmul.bf16.gmra.mxu0 %v813
        %v848 = vpop.f32.mrf.mxu0
        %v849 = vadd.f32 0.0, %v848
        %v850 = vpop.f32.mrf.mxu0
        %851 = vdwg.mxu0
        %852 = vmatpush.bf16.msra.mxu0 0
        %853 = vmatpush.bf16.msra.mxu0 0
        %854 = vmatpush.bf16.msra.mxu0 0
        %855 = vmatpush.bf16.msra.mxu0 0
        %856 = vmatpush.bf16.msra.mxu0 0
        %857 = vmatpush.bf16.msra.mxu0 0
        %858 = vmatpush.bf16.msra.mxu0 0
        %859 = vmatpush.bf16.msra.mxu0 %v819
        %860 = vmatmul.bf16.gmra.mxu0 %v813
        %v861 = vpop.f32.mrf.mxu0
        %v862 = vadd.f32 0.0, %v861
        %v863 = vpop.f32.mrf.mxu0
        %864 = vdwg.mxu0
        %865 = vmatpush.bf16.msra.mxu0 0
        %866 = vmatpush.bf16.msra.mxu0 0
        %867 = vmatpush.bf16.msra.mxu0 0
        %868 = vmatpush.bf16.msra.mxu0 0
        %869 = vmatpush.bf16.msra.mxu0 0
        %870 = vmatpush.bf16.msra.mxu0 0
        %871 = vmatpush.bf16.msra.mxu0 0
        %872 = vmatpush.bf16.msra.mxu0 %v822
        %873 = vmatmul.bf16.gmra.mxu0 %v813
        %v874 = vpop.f32.mrf.mxu0
        %v875 = vadd.f32 0.0, %v874
        %v876 = vpop.f32.mrf.mxu0
        %877 = vdwg.mxu0
        %878 = vmatpush.bf16.msra.mxu0 0
        %879 = vmatpush.bf16.msra.mxu0 0
        %880 = vmatpush.bf16.msra.mxu0 0
        %881 = vmatpush.bf16.msra.mxu0 0
        %882 = vmatpush.bf16.msra.mxu0 0
        %883 = vmatpush.bf16.msra.mxu0 0
        %884 = vmatpush.bf16.msra.mxu0 0
        %885 = vmatpush.bf16.msra.mxu0 %v825
        %886 = vmatmul.bf16.gmra.mxu0 %v813
        %v887 = vpop.f32.mrf.mxu0
        %v888 = vadd.f32 0.0, %v887
        %v889 = vpop.f32.mrf.mxu0
        %890 = vdwg.mxu0
        %891 = vmatpush.bf16.msra.mxu0 0
        %892 = vmatpush.bf16.msra.mxu0 0
        %893 = vmatpush.bf16.msra.mxu0 0
        %894 = vmatpush.bf16.msra.mxu0 0
        %895 = vmatpush.bf16.msra.mxu0 0
        %896 = vmatpush.bf16.msra.mxu0 0
        %897 = vmatpush.bf16.msra.mxu0 0
        %898 = vmatpush.bf16.msra.mxu0 %v828
        %899 = vmatmul.bf16.gmra.mxu0 %v813
        %v900 = vpop.f32.mrf.mxu0
        %v901 = vadd.f32 0.0, %v900
        %v902 = vpop.f32.mrf.mxu0
        %903 = vdwg.mxu0
        %904 = vmatpush.bf16.msra.mxu0 0
        %905 = vmatpush.bf16.msra.mxu0 0
        %906 = vmatpush.bf16.msra.mxu0 0
        %907 = vmatpush.bf16.msra.mxu0 0
        %908 = vmatpush.bf16.msra.mxu0 0
        %909 = vmatpush.bf16.msra.mxu0 0
        %910 = vmatpush.bf16.msra.mxu0 0
        %911 = vmatpush.bf16.msra.mxu0 %v831
        %912 = vmatmul.bf16.gmra.mxu0 %v813
        %v913 = vpop.f32.mrf.mxu0
        %v914 = vadd.f32 0.0, %v913
        %v915 = vpop.f32.mrf.mxu0
        %916 = vdwg.mxu0
        %917 = vmatpush.bf16.msra.mxu0 0
        %918 = vmatpush.bf16.msra.mxu0 0
        %919 = vmatpush.bf16.msra.mxu0 0
        %920 = vmatpush.bf16.msra.mxu0 0
        %921 = vmatpush.bf16.msra.mxu0 0
        %922 = vmatpush.bf16.msra.mxu0 0
        %923 = vmatpush.bf16.msra.mxu0 0
        %924 = vmatpush.bf16.msra.mxu0 %v834
        %925 = vmatmul.bf16.gmra.mxu0 %v813
        %v926 = vpop.f32.mrf.mxu0
        %v927 = vadd.f32 0.0, %v926
        %v928 = vpop.f32.mrf.mxu0
        %929 = vdwg.mxu0
        %930 = vmatpush.bf16.msra.mxu0 0
        %931 = vmatpush.bf16.msra.mxu0 0
        %932 = vmatpush.bf16.msra.mxu0 0
        %933 = vmatpush.bf16.msra.mxu0 0
        %934 = vmatpush.bf16.msra.mxu0 0
        %935 = vmatpush.bf16.msra.mxu0 0
        %936 = vmatpush.bf16.msra.mxu0 0
        %937 = vmatpush.bf16.msra.mxu0 %v837
        %938 = vmatmul.bf16.gmra.mxu0 %v813
        %v939 = vpop.f32.mrf.mxu0
        %v940 = vadd.f32 0.0, %v939
        %v941 = vpop.f32.mrf.mxu0
        %942 = vdwg.mxu0
        %v943 = vadd.f32 %v777, %v849
        %v944 = vadd.f32 %v778, %v862
        %v945 = vadd.f32 %v779, %v875
        %v946 = vadd.f32 %v780, %v888
        %v947 = vadd.f32 %v781, %v901
        %v948 = vadd.f32 %v782, %v914
        %v949 = vadd.f32 %v783, %v927
        %v950 = vadd.f32 %v784, %v940
        %s951 = scalar_lea.vmem %s302, 96
        %v952 = vld [vmem:[%s951] sm:$0xff]
        %v953 = vld [vmem:[%s951 + $0x8] sm:$0xff]
        %v954 = vld [vmem:[%s951 + $0x10] sm:$0xff]
        %v955 = vld [vmem:[%s951 + $0x18] sm:$0xff]
        %s956 = scalar_lea.vmem %s1, 16
        %v957 = vld [vmem:[%s956] sm:$0xf]
        %v962 = vunpack.c.l.b16 %v952
        %v963 = vunpack.c.h.b16 %v952
        %v964 = vunpack.c.l.b16 %v953
        %v965 = vunpack.c.h.b16 %v953
        %v966 = vunpack.c.l.b16 %v954
        %v967 = vunpack.c.h.b16 %v954
        %v968 = vunpack.c.l.b16 %v955
        %v969 = vunpack.c.h.b16 %v955
        %v970 = vpack.c.b16 %v962, %v962
        %v971 = vpack.c.b16 %v963, %v963
        %v972 = vpack.c.b16 %v964, %v964
        %v973 = vpack.c.b16 %v965, %v965
        %v974 = vpack.c.b16 %v966, %v966
        %v975 = vpack.c.b16 %v967, %v967
        %v976 = vpack.c.b16 %v968, %v968
        %v977 = vpack.c.b16 %v969, %v969
        %v979 = vsel %vm336, %v957, 0
        %v982 = vsel %vm340, %v970, 0
        %v985 = vsel %vm340, %v971, 0
        %v988 = vsel %vm340, %v972, 0
        %v991 = vsel %vm340, %v973, 0
        %v994 = vsel %vm340, %v974, 0
        %v997 = vsel %vm340, %v975, 0
        %v1000 = vsel %vm340, %v976, 0
        %v1003 = vsel %vm340, %v977, 0
        %1005 = vmatpush.bf16.msra.mxu0 0
        %1006 = vmatpush.bf16.msra.mxu0 0
        %1007 = vmatpush.bf16.msra.mxu0 0
        %1008 = vmatpush.bf16.msra.mxu0 0
        %1009 = vmatpush.bf16.msra.mxu0 0
        %1010 = vmatpush.bf16.msra.mxu0 0
        %1011 = vmatpush.bf16.msra.mxu0 0
        %1012 = vmatpush.bf16.msra.mxu0 %v982
        %1013 = vmatmul.bf16.gmra.mxu0 %v979
        %v1014 = vpop.f32.mrf.mxu0
        %v1015 = vadd.f32 0.0, %v1014
        %v1016 = vpop.f32.mrf.mxu0
        %1017 = vdwg.mxu0
        %1018 = vmatpush.bf16.msra.mxu0 0
        %1019 = vmatpush.bf16.msra.mxu0 0
        %1020 = vmatpush.bf16.msra.mxu0 0
        %1021 = vmatpush.bf16.msra.mxu0 0
        %1022 = vmatpush.bf16.msra.mxu0 0
        %1023 = vmatpush.bf16.msra.mxu0 0
        %1024 = vmatpush.bf16.msra.mxu0 0
        %1025 = vmatpush.bf16.msra.mxu0 %v985
        %1026 = vmatmul.bf16.gmra.mxu0 %v979
        %v1027 = vpop.f32.mrf.mxu0
        %v1028 = vadd.f32 0.0, %v1027
        %v1029 = vpop.f32.mrf.mxu0
        %1030 = vdwg.mxu0
        %1031 = vmatpush.bf16.msra.mxu0 0
        %1032 = vmatpush.bf16.msra.mxu0 0
        %1033 = vmatpush.bf16.msra.mxu0 0
        %1034 = vmatpush.bf16.msra.mxu0 0
        %1035 = vmatpush.bf16.msra.mxu0 0
        %1036 = vmatpush.bf16.msra.mxu0 0
        %1037 = vmatpush.bf16.msra.mxu0 0
        %1038 = vmatpush.bf16.msra.mxu0 %v988
        %1039 = vmatmul.bf16.gmra.mxu0 %v979
        %v1040 = vpop.f32.mrf.mxu0
        %v1041 = vadd.f32 0.0, %v1040
        %v1042 = vpop.f32.mrf.mxu0
        %1043 = vdwg.mxu0
        %1044 = vmatpush.bf16.msra.mxu0 0
        %1045 = vmatpush.bf16.msra.mxu0 0
        %1046 = vmatpush.bf16.msra.mxu0 0
        %1047 = vmatpush.bf16.msra.mxu0 0
        %1048 = vmatpush.bf16.msra.mxu0 0
        %1049 = vmatpush.bf16.msra.mxu0 0
        %1050 = vmatpush.bf16.msra.mxu0 0
        %1051 = vmatpush.bf16.msra.mxu0 %v991
        %1052 = vmatmul.bf16.gmra.mxu0 %v979
        %v1053 = vpop.f32.mrf.mxu0
        %v1054 = vadd.f32 0.0, %v1053
        %v1055 = vpop.f32.mrf.mxu0
        %1056 = vdwg.mxu0
        %1057 = vmatpush.bf16.msra.mxu0 0
        %1058 = vmatpush.bf16.msra.mxu0 0
        %1059 = vmatpush.bf16.msra.mxu0 0
        %1060 = vmatpush.bf16.msra.mxu0 0
        %1061 = vmatpush.bf16.msra.mxu0 0
        %1062 = vmatpush.bf16.msra.mxu0 0
        %1063 = vmatpush.bf16.msra.mxu0 0
        %1064 = vmatpush.bf16.msra.mxu0 %v994
        %1065 = vmatmul.bf16.gmra.mxu0 %v979
        %v1066 = vpop.f32.mrf.mxu0
        %v1067 = vadd.f32 0.0, %v1066
        %v1068 = vpop.f32.mrf.mxu0
        %1069 = vdwg.mxu0
        %1070 = vmatpush.bf16.msra.mxu0 0
        %1071 = vmatpush.bf16.msra.mxu0 0
        %1072 = vmatpush.bf16.msra.mxu0 0
        %1073 = vmatpush.bf16.msra.mxu0 0
        %1074 = vmatpush.bf16.msra.mxu0 0
        %1075 = vmatpush.bf16.msra.mxu0 0
        %1076 = vmatpush.bf16.msra.mxu0 0
        %1077 = vmatpush.bf16.msra.mxu0 %v997
        %1078 = vmatmul.bf16.gmra.mxu0 %v979
        %v1079 = vpop.f32.mrf.mxu0
        %v1080 = vadd.f32 0.0, %v1079
        %v1081 = vpop.f32.mrf.mxu0
        %1082 = vdwg.mxu0
        %1083 = vmatpush.bf16.msra.mxu0 0
        %1084 = vmatpush.bf16.msra.mxu0 0
        %1085 = vmatpush.bf16.msra.mxu0 0
        %1086 = vmatpush.bf16.msra.mxu0 0
        %1087 = vmatpush.bf16.msra.mxu0 0
        %1088 = vmatpush.bf16.msra.mxu0 0
        %1089 = vmatpush.bf16.msra.mxu0 0
        %1090 = vmatpush.bf16.msra.mxu0 %v1000
        %1091 = vmatmul.bf16.gmra.mxu0 %v979
        %v1092 = vpop.f32.mrf.mxu0
        %v1093 = vadd.f32 0.0, %v1092
        %v1094 = vpop.f32.mrf.mxu0
        %1095 = vdwg.mxu0
        %1096 = vmatpush.bf16.msra.mxu0 0
        %1097 = vmatpush.bf16.msra.mxu0 0
        %1098 = vmatpush.bf16.msra.mxu0 0
        %1099 = vmatpush.bf16.msra.mxu0 0
        %1100 = vmatpush.bf16.msra.mxu0 0
        %1101 = vmatpush.bf16.msra.mxu0 0
        %1102 = vmatpush.bf16.msra.mxu0 0
        %1103 = vmatpush.bf16.msra.mxu0 %v1003
        %1104 = vmatmul.bf16.gmra.mxu0 %v979
        %v1105 = vpop.f32.mrf.mxu0
        %v1106 = vadd.f32 0.0, %v1105
        %v1107 = vpop.f32.mrf.mxu0
        %1108 = vdwg.mxu0
        %v1109 = vadd.f32 %v943, %v1015
        %v1110 = vadd.f32 %v944, %v1028
        %v1111 = vadd.f32 %v945, %v1041
        %v1112 = vadd.f32 %v946, %v1054
        %v1113 = vadd.f32 %v947, %v1067
        %v1114 = vadd.f32 %v948, %v1080
        %v1115 = vadd.f32 %v949, %v1093
        %v1116 = vadd.f32 %v950, %v1106
        %s1117 = scalar_lea.vmem %s1, 20
        %v1118 = vld [vmem:[%s1117] sm:$0xf]
        %1119 = vrot.lane.b32.xlu0 %v804, 127
        %v1120 = vpop.permute.xlu0 %1119
        %1121 = vrot.lane.b32.xlu0 %v805, 127
        %v1122 = vpop.permute.xlu0 %1121
        %1123 = vrot.lane.b32.xlu0 %v806, 127
        %v1124 = vpop.permute.xlu0 %1123
        %1125 = vrot.lane.b32.xlu0 %v807, 127
        %v1126 = vpop.permute.xlu0 %1125
        %1127 = vrot.lane.b32.xlu0 %v808, 127
        %v1128 = vpop.permute.xlu0 %1127
        %1129 = vrot.lane.b32.xlu0 %v809, 127
        %v1130 = vpop.permute.xlu0 %1129
        %1131 = vrot.lane.b32.xlu0 %v810, 127
        %v1132 = vpop.permute.xlu0 %1131
        %1133 = vrot.lane.b32.xlu0 %v811, 127
        %v1134 = vpop.permute.xlu0 %1133
        %v1135 = vsel %vm638, %v1120, %v1122
        %v1136 = vsel %vm638, %v1122, %v1124
        %v1137 = vsel %vm638, %v1124, %v1126
        %v1138 = vsel %vm638, %v1126, %v1128
        %v1139 = vsel %vm638, %v1128, %v1130
        %v1140 = vsel %vm638, %v1130, %v1132
        %v1141 = vsel %vm638, %v1132, %v1134
        %v1143 = vsel %vm336, %v1118, 0
        %v1146 = vsel %vm340, %v1135, 0
        %v1149 = vsel %vm340, %v1136, 0
        %v1152 = vsel %vm340, %v1137, 0
        %v1155 = vsel %vm340, %v1138, 0
        %v1158 = vsel %vm340, %v1139, 0
        %v1161 = vsel %vm340, %v1140, 0
        %v1164 = vsel %vm340, %v1141, 0
        %v1167 = vsel %vm340, %v1134, 0
        %1169 = vmatpush.bf16.msra.mxu0 0
        %1170 = vmatpush.bf16.msra.mxu0 0
        %1171 = vmatpush.bf16.msra.mxu0 0
        %1172 = vmatpush.bf16.msra.mxu0 0
        %1173 = vmatpush.bf16.msra.mxu0 0
        %1174 = vmatpush.bf16.msra.mxu0 0
        %1175 = vmatpush.bf16.msra.mxu0 0
        %1176 = vmatpush.bf16.msra.mxu0 %v1146
        %1177 = vmatmul.bf16.gmra.mxu0 %v1143
        %v1178 = vpop.f32.mrf.mxu0
        %v1179 = vadd.f32 0.0, %v1178
        %v1180 = vpop.f32.mrf.mxu0
        %1181 = vdwg.mxu0
        %1182 = vmatpush.bf16.msra.mxu0 0
        %1183 = vmatpush.bf16.msra.mxu0 0
        %1184 = vmatpush.bf16.msra.mxu0 0
        %1185 = vmatpush.bf16.msra.mxu0 0
        %1186 = vmatpush.bf16.msra.mxu0 0
        %1187 = vmatpush.bf16.msra.mxu0 0
        %1188 = vmatpush.bf16.msra.mxu0 0
        %1189 = vmatpush.bf16.msra.mxu0 %v1149
        %1190 = vmatmul.bf16.gmra.mxu0 %v1143
        %v1191 = vpop.f32.mrf.mxu0
        %v1192 = vadd.f32 0.0, %v1191
        %v1193 = vpop.f32.mrf.mxu0
        %1194 = vdwg.mxu0
        %1195 = vmatpush.bf16.msra.mxu0 0
        %1196 = vmatpush.bf16.msra.mxu0 0
        %1197 = vmatpush.bf16.msra.mxu0 0
        %1198 = vmatpush.bf16.msra.mxu0 0
        %1199 = vmatpush.bf16.msra.mxu0 0
        %1200 = vmatpush.bf16.msra.mxu0 0
        %1201 = vmatpush.bf16.msra.mxu0 0
        %1202 = vmatpush.bf16.msra.mxu0 %v1152
        %1203 = vmatmul.bf16.gmra.mxu0 %v1143
        %v1204 = vpop.f32.mrf.mxu0
        %v1205 = vadd.f32 0.0, %v1204
        %v1206 = vpop.f32.mrf.mxu0
        %1207 = vdwg.mxu0
        %1208 = vmatpush.bf16.msra.mxu0 0
        %1209 = vmatpush.bf16.msra.mxu0 0
        %1210 = vmatpush.bf16.msra.mxu0 0
        %1211 = vmatpush.bf16.msra.mxu0 0
        %1212 = vmatpush.bf16.msra.mxu0 0
        %1213 = vmatpush.bf16.msra.mxu0 0
        %1214 = vmatpush.bf16.msra.mxu0 0
        %1215 = vmatpush.bf16.msra.mxu0 %v1155
        %1216 = vmatmul.bf16.gmra.mxu0 %v1143
        %v1217 = vpop.f32.mrf.mxu0
        %v1218 = vadd.f32 0.0, %v1217
        %v1219 = vpop.f32.mrf.mxu0
        %1220 = vdwg.mxu0
        %1221 = vmatpush.bf16.msra.mxu0 0
        %1222 = vmatpush.bf16.msra.mxu0 0
        %1223 = vmatpush.bf16.msra.mxu0 0
        %1224 = vmatpush.bf16.msra.mxu0 0
        %1225 = vmatpush.bf16.msra.mxu0 0
        %1226 = vmatpush.bf16.msra.mxu0 0
        %1227 = vmatpush.bf16.msra.mxu0 0
        %1228 = vmatpush.bf16.msra.mxu0 %v1158
        %1229 = vmatmul.bf16.gmra.mxu0 %v1143
        %v1230 = vpop.f32.mrf.mxu0
        %v1231 = vadd.f32 0.0, %v1230
        %v1232 = vpop.f32.mrf.mxu0
        %1233 = vdwg.mxu0
        %1234 = vmatpush.bf16.msra.mxu0 0
        %1235 = vmatpush.bf16.msra.mxu0 0
        %1236 = vmatpush.bf16.msra.mxu0 0
        %1237 = vmatpush.bf16.msra.mxu0 0
        %1238 = vmatpush.bf16.msra.mxu0 0
        %1239 = vmatpush.bf16.msra.mxu0 0
        %1240 = vmatpush.bf16.msra.mxu0 0
        %1241 = vmatpush.bf16.msra.mxu0 %v1161
        %1242 = vmatmul.bf16.gmra.mxu0 %v1143
        %v1243 = vpop.f32.mrf.mxu0
        %v1244 = vadd.f32 0.0, %v1243
        %v1245 = vpop.f32.mrf.mxu0
        %1246 = vdwg.mxu0
        %1247 = vmatpush.bf16.msra.mxu0 0
        %1248 = vmatpush.bf16.msra.mxu0 0
        %1249 = vmatpush.bf16.msra.mxu0 0
        %1250 = vmatpush.bf16.msra.mxu0 0
        %1251 = vmatpush.bf16.msra.mxu0 0
        %1252 = vmatpush.bf16.msra.mxu0 0
        %1253 = vmatpush.bf16.msra.mxu0 0
        %1254 = vmatpush.bf16.msra.mxu0 %v1164
        %1255 = vmatmul.bf16.gmra.mxu0 %v1143
        %v1256 = vpop.f32.mrf.mxu0
        %v1257 = vadd.f32 0.0, %v1256
        %v1258 = vpop.f32.mrf.mxu0
        %1259 = vdwg.mxu0
        %1260 = vmatpush.bf16.msra.mxu0 0
        %1261 = vmatpush.bf16.msra.mxu0 0
        %1262 = vmatpush.bf16.msra.mxu0 0
        %1263 = vmatpush.bf16.msra.mxu0 0
        %1264 = vmatpush.bf16.msra.mxu0 0
        %1265 = vmatpush.bf16.msra.mxu0 0
        %1266 = vmatpush.bf16.msra.mxu0 0
        %1267 = vmatpush.bf16.msra.mxu0 %v1167
        %1268 = vmatmul.bf16.gmra.mxu0 %v1143
        %v1269 = vpop.f32.mrf.mxu0
        %v1270 = vadd.f32 0.0, %v1269
        %v1271 = vpop.f32.mrf.mxu0
        %1272 = vdwg.mxu0
        %v1273 = vadd.f32 %v1109, %v1179
        %v1274 = vadd.f32 %v1110, %v1192
        %v1275 = vadd.f32 %v1111, %v1205
        %v1276 = vadd.f32 %v1112, %v1218
        %v1277 = vadd.f32 %v1113, %v1231
        %v1278 = vadd.f32 %v1114, %v1244
        %v1279 = vadd.f32 %v1115, %v1257
        %v1280 = vadd.f32 %v1116, %v1270
        %s1281 = scalar_lea.vmem %s1, 24
        %v1282 = vld [vmem:[%s1281] sm:$0xf]
        %1283 = vrot.lane.b32.xlu0 %v481, 96
        %v1284 = vpop.permute.xlu0 %1283
        %1285 = vrot.lane.b32.xlu0 %v482, 96
        %v1286 = vpop.permute.xlu0 %1285
        %1287 = vrot.lane.b32.xlu0 %v483, 96
        %v1288 = vpop.permute.xlu0 %1287
        %1289 = vrot.lane.b32.xlu0 %v484, 96
        %v1290 = vpop.permute.xlu0 %1289
        %1291 = vrot.lane.b32.xlu0 %v485, 96
        %v1292 = vpop.permute.xlu0 %1291
        %1293 = vrot.lane.b32.xlu0 %v486, 96
        %v1294 = vpop.permute.xlu0 %1293
        %1295 = vrot.lane.b32.xlu0 %v487, 96
        %v1296 = vpop.permute.xlu0 %1295
        %1297 = vrot.lane.b32.xlu0 %v488, 96
        %v1298 = vpop.permute.xlu0 %1297
        %vm1299 = vcmask 785408
        %v1300 = vsel %vm1299, %v1284, %v1286
        %v1301 = vsel %vm1299, %v1286, %v1288
        %v1302 = vsel %vm1299, %v1288, %v1290
        %v1303 = vsel %vm1299, %v1290, %v1292
        %v1304 = vsel %vm1299, %v1292, %v1294
        %v1305 = vsel %vm1299, %v1294, %v1296
        %v1306 = vsel %vm1299, %v1296, %v1298
        %v1308 = vsel %vm336, %v1282, 0
        %v1311 = vsel %vm340, %v1300, 0
        %v1314 = vsel %vm340, %v1301, 0
        %v1317 = vsel %vm340, %v1302, 0
        %v1320 = vsel %vm340, %v1303, 0
        %v1323 = vsel %vm340, %v1304, 0
        %v1326 = vsel %vm340, %v1305, 0
        %v1329 = vsel %vm340, %v1306, 0
        %v1332 = vsel %vm340, %v1298, 0
        %1334 = vmatpush.bf16.msra.mxu0 0
        %1335 = vmatpush.bf16.msra.mxu0 0
        %1336 = vmatpush.bf16.msra.mxu0 0
        %1337 = vmatpush.bf16.msra.mxu0 0
        %1338 = vmatpush.bf16.msra.mxu0 0
        %1339 = vmatpush.bf16.msra.mxu0 0
        %1340 = vmatpush.bf16.msra.mxu0 0
        %1341 = vmatpush.bf16.msra.mxu0 %v1311
        %1342 = vmatmul.bf16.gmra.mxu0 %v1308
        %v1343 = vpop.f32.mrf.mxu0
        %v1344 = vadd.f32 0.0, %v1343
        %v1345 = vpop.f32.mrf.mxu0
        %1346 = vdwg.mxu0
        %1347 = vmatpush.bf16.msra.mxu0 0
        %1348 = vmatpush.bf16.msra.mxu0 0
        %1349 = vmatpush.bf16.msra.mxu0 0
        %1350 = vmatpush.bf16.msra.mxu0 0
        %1351 = vmatpush.bf16.msra.mxu0 0
        %1352 = vmatpush.bf16.msra.mxu0 0
        %1353 = vmatpush.bf16.msra.mxu0 0
        %1354 = vmatpush.bf16.msra.mxu0 %v1314
        %1355 = vmatmul.bf16.gmra.mxu0 %v1308
        %v1356 = vpop.f32.mrf.mxu0
        %v1357 = vadd.f32 0.0, %v1356
        %v1358 = vpop.f32.mrf.mxu0
        %1359 = vdwg.mxu0
        %1360 = vmatpush.bf16.msra.mxu0 0
        %1361 = vmatpush.bf16.msra.mxu0 0
        %1362 = vmatpush.bf16.msra.mxu0 0
        %1363 = vmatpush.bf16.msra.mxu0 0
        %1364 = vmatpush.bf16.msra.mxu0 0
        %1365 = vmatpush.bf16.msra.mxu0 0
        %1366 = vmatpush.bf16.msra.mxu0 0
        %1367 = vmatpush.bf16.msra.mxu0 %v1317
        %1368 = vmatmul.bf16.gmra.mxu0 %v1308
        %v1369 = vpop.f32.mrf.mxu0
        %v1370 = vadd.f32 0.0, %v1369
        %v1371 = vpop.f32.mrf.mxu0
        %1372 = vdwg.mxu0
        %1373 = vmatpush.bf16.msra.mxu0 0
        %1374 = vmatpush.bf16.msra.mxu0 0
        %1375 = vmatpush.bf16.msra.mxu0 0
        %1376 = vmatpush.bf16.msra.mxu0 0
        %1377 = vmatpush.bf16.msra.mxu0 0
        %1378 = vmatpush.bf16.msra.mxu0 0
        %1379 = vmatpush.bf16.msra.mxu0 0
        %1380 = vmatpush.bf16.msra.mxu0 %v1320
        %1381 = vmatmul.bf16.gmra.mxu0 %v1308
        %v1382 = vpop.f32.mrf.mxu0
        %v1383 = vadd.f32 0.0, %v1382
        %v1384 = vpop.f32.mrf.mxu0
        %1385 = vdwg.mxu0
        %1386 = vmatpush.bf16.msra.mxu0 0
        %1387 = vmatpush.bf16.msra.mxu0 0
        %1388 = vmatpush.bf16.msra.mxu0 0
        %1389 = vmatpush.bf16.msra.mxu0 0
        %1390 = vmatpush.bf16.msra.mxu0 0
        %1391 = vmatpush.bf16.msra.mxu0 0
        %1392 = vmatpush.bf16.msra.mxu0 0
        %1393 = vmatpush.bf16.msra.mxu0 %v1323
        %1394 = vmatmul.bf16.gmra.mxu0 %v1308
        %v1395 = vpop.f32.mrf.mxu0
        %v1396 = vadd.f32 0.0, %v1395
        %v1397 = vpop.f32.mrf.mxu0
        %1398 = vdwg.mxu0
        %1399 = vmatpush.bf16.msra.mxu0 0
        %1400 = vmatpush.bf16.msra.mxu0 0
        %1401 = vmatpush.bf16.msra.mxu0 0
        %1402 = vmatpush.bf16.msra.mxu0 0
        %1403 = vmatpush.bf16.msra.mxu0 0
        %1404 = vmatpush.bf16.msra.mxu0 0
        %1405 = vmatpush.bf16.msra.mxu0 0
        %1406 = vmatpush.bf16.msra.mxu0 %v1326
        %1407 = vmatmul.bf16.gmra.mxu0 %v1308
        %v1408 = vpop.f32.mrf.mxu0
        %v1409 = vadd.f32 0.0, %v1408
        %v1410 = vpop.f32.mrf.mxu0
        %1411 = vdwg.mxu0
        %1412 = vmatpush.bf16.msra.mxu0 0
        %1413 = vmatpush.bf16.msra.mxu0 0
        %1414 = vmatpush.bf16.msra.mxu0 0
        %1415 = vmatpush.bf16.msra.mxu0 0
        %1416 = vmatpush.bf16.msra.mxu0 0
        %1417 = vmatpush.bf16.msra.mxu0 0
        %1418 = vmatpush.bf16.msra.mxu0 0
        %1419 = vmatpush.bf16.msra.mxu0 %v1329
        %1420 = vmatmul.bf16.gmra.mxu0 %v1308
        %v1421 = vpop.f32.mrf.mxu0
        %v1422 = vadd.f32 0.0, %v1421
        %v1423 = vpop.f32.mrf.mxu0
        %1424 = vdwg.mxu0
        %1425 = vmatpush.bf16.msra.mxu0 0
        %1426 = vmatpush.bf16.msra.mxu0 0
        %1427 = vmatpush.bf16.msra.mxu0 0
        %1428 = vmatpush.bf16.msra.mxu0 0
        %1429 = vmatpush.bf16.msra.mxu0 0
        %1430 = vmatpush.bf16.msra.mxu0 0
        %1431 = vmatpush.bf16.msra.mxu0 0
        %1432 = vmatpush.bf16.msra.mxu0 %v1332
        %1433 = vmatmul.bf16.gmra.mxu0 %v1308
        %v1434 = vpop.f32.mrf.mxu0
        %v1435 = vadd.f32 0.0, %v1434
        %v1436 = vpop.f32.mrf.mxu0
        %1437 = vdwg.mxu0
        %v1438 = vadd.f32 %v1273, %v1344
        %v1439 = vadd.f32 %v1274, %v1357
        %v1440 = vadd.f32 %v1275, %v1370
        %v1441 = vadd.f32 %v1276, %v1383
        %v1442 = vadd.f32 %v1277, %v1396
        %v1443 = vadd.f32 %v1278, %v1409
        %v1444 = vadd.f32 %v1279, %v1422
        %v1445 = vadd.f32 %v1280, %v1435
        %s1446 = scalar_lea.vmem %s1, 28
        %v1447 = vld [vmem:[%s1446] sm:$0xf]
        %1448 = vrot.lane.b32.xlu0 %v328, 96
        %v1449 = vpop.permute.xlu0 %1448
        %1450 = vrot.lane.b32.xlu0 %v329, 96
        %v1451 = vpop.permute.xlu0 %1450
        %1452 = vrot.lane.b32.xlu0 %v330, 96
        %v1453 = vpop.permute.xlu0 %1452
        %1454 = vrot.lane.b32.xlu0 %v331, 96
        %v1455 = vpop.permute.xlu0 %1454
        %1456 = vrot.lane.b32.xlu0 %v332, 96
        %v1457 = vpop.permute.xlu0 %1456
        %1458 = vrot.lane.b32.xlu0 %v333, 96
        %v1459 = vpop.permute.xlu0 %1458
        %1460 = vrot.lane.b32.xlu0 %v334, 96
        %v1461 = vpop.permute.xlu0 %1460
        %1462 = vrot.lane.b32.xlu0 %v335, 96
        %v1463 = vpop.permute.xlu0 %1462
        %v1464 = vsel %vm1299, %v1449, %v1451
        %v1465 = vsel %vm1299, %v1451, %v1453
        %v1466 = vsel %vm1299, %v1453, %v1455
        %v1467 = vsel %vm1299, %v1455, %v1457
        %v1468 = vsel %vm1299, %v1457, %v1459
        %v1469 = vsel %vm1299, %v1459, %v1461
        %v1470 = vsel %vm1299, %v1461, %v1463
        %v1472 = vsel %vm336, %v1447, 0
        %v1475 = vsel %vm340, %v1464, 0
        %v1478 = vsel %vm340, %v1465, 0
        %v1481 = vsel %vm340, %v1466, 0
        %v1484 = vsel %vm340, %v1467, 0
        %v1487 = vsel %vm340, %v1468, 0
        %v1490 = vsel %vm340, %v1469, 0
        %v1493 = vsel %vm340, %v1470, 0
        %v1496 = vsel %vm340, %v1463, 0
        %1498 = vmatpush.bf16.msra.mxu0 0
        %1499 = vmatpush.bf16.msra.mxu0 0
        %1500 = vmatpush.bf16.msra.mxu0 0
        %1501 = vmatpush.bf16.msra.mxu0 0
        %1502 = vmatpush.bf16.msra.mxu0 0
        %1503 = vmatpush.bf16.msra.mxu0 0
        %1504 = vmatpush.bf16.msra.mxu0 0
        %1505 = vmatpush.bf16.msra.mxu0 %v1475
        %1506 = vmatmul.bf16.gmra.mxu0 %v1472
        %v1507 = vpop.f32.mrf.mxu0
        %v1508 = vadd.f32 0.0, %v1507
        %v1509 = vpop.f32.mrf.mxu0
        %1510 = vdwg.mxu0
        %1511 = vmatpush.bf16.msra.mxu0 0
        %1512 = vmatpush.bf16.msra.mxu0 0
        %1513 = vmatpush.bf16.msra.mxu0 0
        %1514 = vmatpush.bf16.msra.mxu0 0
        %1515 = vmatpush.bf16.msra.mxu0 0
        %1516 = vmatpush.bf16.msra.mxu0 0
        %1517 = vmatpush.bf16.msra.mxu0 0
        %1518 = vmatpush.bf16.msra.mxu0 %v1478
        %1519 = vmatmul.bf16.gmra.mxu0 %v1472
        %v1520 = vpop.f32.mrf.mxu0
        %v1521 = vadd.f32 0.0, %v1520
        %v1522 = vpop.f32.mrf.mxu0
        %1523 = vdwg.mxu0
        %1524 = vmatpush.bf16.msra.mxu0 0
        %1525 = vmatpush.bf16.msra.mxu0 0
        %1526 = vmatpush.bf16.msra.mxu0 0
        %1527 = vmatpush.bf16.msra.mxu0 0
        %1528 = vmatpush.bf16.msra.mxu0 0
        %1529 = vmatpush.bf16.msra.mxu0 0
        %1530 = vmatpush.bf16.msra.mxu0 0
        %1531 = vmatpush.bf16.msra.mxu0 %v1481
        %1532 = vmatmul.bf16.gmra.mxu0 %v1472
        %v1533 = vpop.f32.mrf.mxu0
        %v1534 = vadd.f32 0.0, %v1533
        %v1535 = vpop.f32.mrf.mxu0
        %1536 = vdwg.mxu0
        %1537 = vmatpush.bf16.msra.mxu0 0
        %1538 = vmatpush.bf16.msra.mxu0 0
        %1539 = vmatpush.bf16.msra.mxu0 0
        %1540 = vmatpush.bf16.msra.mxu0 0
        %1541 = vmatpush.bf16.msra.mxu0 0
        %1542 = vmatpush.bf16.msra.mxu0 0
        %1543 = vmatpush.bf16.msra.mxu0 0
        %1544 = vmatpush.bf16.msra.mxu0 %v1484
        %1545 = vmatmul.bf16.gmra.mxu0 %v1472
        %v1546 = vpop.f32.mrf.mxu0
        %v1547 = vadd.f32 0.0, %v1546
        %v1548 = vpop.f32.mrf.mxu0
        %1549 = vdwg.mxu0
        %1550 = vmatpush.bf16.msra.mxu0 0
        %1551 = vmatpush.bf16.msra.mxu0 0
        %1552 = vmatpush.bf16.msra.mxu0 0
        %1553 = vmatpush.bf16.msra.mxu0 0
        %1554 = vmatpush.bf16.msra.mxu0 0
        %1555 = vmatpush.bf16.msra.mxu0 0
        %1556 = vmatpush.bf16.msra.mxu0 0
        %1557 = vmatpush.bf16.msra.mxu0 %v1487
        %1558 = vmatmul.bf16.gmra.mxu0 %v1472
        %v1559 = vpop.f32.mrf.mxu0
        %v1560 = vadd.f32 0.0, %v1559
        %v1561 = vpop.f32.mrf.mxu0
        %1562 = vdwg.mxu0
        %1563 = vmatpush.bf16.msra.mxu0 0
        %1564 = vmatpush.bf16.msra.mxu0 0
        %1565 = vmatpush.bf16.msra.mxu0 0
        %1566 = vmatpush.bf16.msra.mxu0 0
        %1567 = vmatpush.bf16.msra.mxu0 0
        %1568 = vmatpush.bf16.msra.mxu0 0
        %1569 = vmatpush.bf16.msra.mxu0 0
        %1570 = vmatpush.bf16.msra.mxu0 %v1490
        %1571 = vmatmul.bf16.gmra.mxu0 %v1472
        %v1572 = vpop.f32.mrf.mxu0
        %v1573 = vadd.f32 0.0, %v1572
        %v1574 = vpop.f32.mrf.mxu0
        %1575 = vdwg.mxu0
        %1576 = vmatpush.bf16.msra.mxu0 0
        %1577 = vmatpush.bf16.msra.mxu0 0
        %1578 = vmatpush.bf16.msra.mxu0 0
        %1579 = vmatpush.bf16.msra.mxu0 0
        %1580 = vmatpush.bf16.msra.mxu0 0
        %1581 = vmatpush.bf16.msra.mxu0 0
        %1582 = vmatpush.bf16.msra.mxu0 0
        %1583 = vmatpush.bf16.msra.mxu0 %v1493
        %1584 = vmatmul.bf16.gmra.mxu0 %v1472
        %v1585 = vpop.f32.mrf.mxu0
        %v1586 = vadd.f32 0.0, %v1585
        %v1587 = vpop.f32.mrf.mxu0
        %1588 = vdwg.mxu0
        %1589 = vmatpush.bf16.msra.mxu0 0
        %1590 = vmatpush.bf16.msra.mxu0 0
        %1591 = vmatpush.bf16.msra.mxu0 0
        %1592 = vmatpush.bf16.msra.mxu0 0
        %1593 = vmatpush.bf16.msra.mxu0 0
        %1594 = vmatpush.bf16.msra.mxu0 0
        %1595 = vmatpush.bf16.msra.mxu0 0
        %1596 = vmatpush.bf16.msra.mxu0 %v1496
        %1597 = vmatmul.bf16.gmra.mxu0 %v1472
        %v1598 = vpop.f32.mrf.mxu0
        %v1599 = vadd.f32 0.0, %v1598
        %v1600 = vpop.f32.mrf.mxu0
        %1601 = vdwg.mxu0
        %v1602 = vadd.f32 %v1438, %v1508
        %v1603 = vadd.f32 %v1439, %v1521
        %v1604 = vadd.f32 %v1440, %v1534
        %v1605 = vadd.f32 %v1441, %v1547
        %v1606 = vadd.f32 %v1442, %v1560
        %v1607 = vadd.f32 %v1443, %v1573
        %v1608 = vadd.f32 %v1444, %v1586
        %v1609 = vadd.f32 %v1445, %v1599
        %s1610 = scalar_lea.vmem %s1, 32
        %v1611 = vld [vmem:[%s1610] sm:$0xf]
        %1612 = vrot.lane.b32.xlu0 %v481, 95
        %v1613 = vpop.permute.xlu0 %1612
        %1614 = vrot.lane.b32.xlu0 %v482, 95
        %v1615 = vpop.permute.xlu0 %1614
        %1616 = vrot.lane.b32.xlu0 %v483, 95
        %v1617 = vpop.permute.xlu0 %1616
        %1618 = vrot.lane.b32.xlu0 %v484, 95
        %v1619 = vpop.permute.xlu0 %1618
        %1620 = vrot.lane.b32.xlu0 %v485, 95
        %v1621 = vpop.permute.xlu0 %1620
        %1622 = vrot.lane.b32.xlu0 %v486, 95
        %v1623 = vpop.permute.xlu0 %1622
        %1624 = vrot.lane.b32.xlu0 %v487, 95
        %v1625 = vpop.permute.xlu0 %1624
        %1626 = vrot.lane.b32.xlu0 %v488, 95
        %v1627 = vpop.permute.xlu0 %1626
        %vm1628 = vcmask 777216
        %v1629 = vsel %vm1628, %v1613, %v1615
        %v1630 = vsel %vm1628, %v1615, %v1617
        %v1631 = vsel %vm1628, %v1617, %v1619
        %v1632 = vsel %vm1628, %v1619, %v1621
        %v1633 = vsel %vm1628, %v1621, %v1623
        %v1634 = vsel %vm1628, %v1623, %v1625
        %v1635 = vsel %vm1628, %v1625, %v1627
        %v1637 = vsel %vm336, %v1611, 0
        %v1640 = vsel %vm340, %v1629, 0
        %v1643 = vsel %vm340, %v1630, 0
        %v1646 = vsel %vm340, %v1631, 0
        %v1649 = vsel %vm340, %v1632, 0
        %v1652 = vsel %vm340, %v1633, 0
        %v1655 = vsel %vm340, %v1634, 0
        %v1658 = vsel %vm340, %v1635, 0
        %v1661 = vsel %vm340, %v1627, 0
        %1663 = vmatpush.bf16.msra.mxu0 0
        %1664 = vmatpush.bf16.msra.mxu0 0
        %1665 = vmatpush.bf16.msra.mxu0 0
        %1666 = vmatpush.bf16.msra.mxu0 0
        %1667 = vmatpush.bf16.msra.mxu0 0
        %1668 = vmatpush.bf16.msra.mxu0 0
        %1669 = vmatpush.bf16.msra.mxu0 0
        %1670 = vmatpush.bf16.msra.mxu0 %v1640
        %1671 = vmatmul.bf16.gmra.mxu0 %v1637
        %v1672 = vpop.f32.mrf.mxu0
        %v1673 = vadd.f32 0.0, %v1672
        %v1674 = vpop.f32.mrf.mxu0
        %1675 = vdwg.mxu0
        %1676 = vmatpush.bf16.msra.mxu0 0
        %1677 = vmatpush.bf16.msra.mxu0 0
        %1678 = vmatpush.bf16.msra.mxu0 0
        %1679 = vmatpush.bf16.msra.mxu0 0
        %1680 = vmatpush.bf16.msra.mxu0 0
        %1681 = vmatpush.bf16.msra.mxu0 0
        %1682 = vmatpush.bf16.msra.mxu0 0
        %1683 = vmatpush.bf16.msra.mxu0 %v1643
        %1684 = vmatmul.bf16.gmra.mxu0 %v1637
        %v1685 = vpop.f32.mrf.mxu0
        %v1686 = vadd.f32 0.0, %v1685
        %v1687 = vpop.f32.mrf.mxu0
        %1688 = vdwg.mxu0
        %1689 = vmatpush.bf16.msra.mxu0 0
        %1690 = vmatpush.bf16.msra.mxu0 0
        %1691 = vmatpush.bf16.msra.mxu0 0
        %1692 = vmatpush.bf16.msra.mxu0 0
        %1693 = vmatpush.bf16.msra.mxu0 0
        %1694 = vmatpush.bf16.msra.mxu0 0
        %1695 = vmatpush.bf16.msra.mxu0 0
        %1696 = vmatpush.bf16.msra.mxu0 %v1646
        %1697 = vmatmul.bf16.gmra.mxu0 %v1637
        %v1698 = vpop.f32.mrf.mxu0
        %v1699 = vadd.f32 0.0, %v1698
        %v1700 = vpop.f32.mrf.mxu0
        %1701 = vdwg.mxu0
        %1702 = vmatpush.bf16.msra.mxu0 0
        %1703 = vmatpush.bf16.msra.mxu0 0
        %1704 = vmatpush.bf16.msra.mxu0 0
        %1705 = vmatpush.bf16.msra.mxu0 0
        %1706 = vmatpush.bf16.msra.mxu0 0
        %1707 = vmatpush.bf16.msra.mxu0 0
        %1708 = vmatpush.bf16.msra.mxu0 0
        %1709 = vmatpush.bf16.msra.mxu0 %v1649
        %1710 = vmatmul.bf16.gmra.mxu0 %v1637
        %v1711 = vpop.f32.mrf.mxu0
        %v1712 = vadd.f32 0.0, %v1711
        %v1713 = vpop.f32.mrf.mxu0
        %1714 = vdwg.mxu0
        %1715 = vmatpush.bf16.msra.mxu0 0
        %1716 = vmatpush.bf16.msra.mxu0 0
        %1717 = vmatpush.bf16.msra.mxu0 0
        %1718 = vmatpush.bf16.msra.mxu0 0
        %1719 = vmatpush.bf16.msra.mxu0 0
        %1720 = vmatpush.bf16.msra.mxu0 0
        %1721 = vmatpush.bf16.msra.mxu0 0
        %1722 = vmatpush.bf16.msra.mxu0 %v1652
        %1723 = vmatmul.bf16.gmra.mxu0 %v1637
        %v1724 = vpop.f32.mrf.mxu0
        %v1725 = vadd.f32 0.0, %v1724
        %v1726 = vpop.f32.mrf.mxu0
        %1727 = vdwg.mxu0
        %1728 = vmatpush.bf16.msra.mxu0 0
        %1729 = vmatpush.bf16.msra.mxu0 0
        %1730 = vmatpush.bf16.msra.mxu0 0
        %1731 = vmatpush.bf16.msra.mxu0 0
        %1732 = vmatpush.bf16.msra.mxu0 0
        %1733 = vmatpush.bf16.msra.mxu0 0
        %1734 = vmatpush.bf16.msra.mxu0 0
        %1735 = vmatpush.bf16.msra.mxu0 %v1655
        %1736 = vmatmul.bf16.gmra.mxu0 %v1637
        %v1737 = vpop.f32.mrf.mxu0
        %v1738 = vadd.f32 0.0, %v1737
        %v1739 = vpop.f32.mrf.mxu0
        %1740 = vdwg.mxu0
        %1741 = vmatpush.bf16.msra.mxu0 0
        %1742 = vmatpush.bf16.msra.mxu0 0
        %1743 = vmatpush.bf16.msra.mxu0 0
        %1744 = vmatpush.bf16.msra.mxu0 0
        %1745 = vmatpush.bf16.msra.mxu0 0
        %1746 = vmatpush.bf16.msra.mxu0 0
        %1747 = vmatpush.bf16.msra.mxu0 0
        %1748 = vmatpush.bf16.msra.mxu0 %v1658
        %1749 = vmatmul.bf16.gmra.mxu0 %v1637
        %v1750 = vpop.f32.mrf.mxu0
        %v1751 = vadd.f32 0.0, %v1750
        %v1752 = vpop.f32.mrf.mxu0
        %1753 = vdwg.mxu0
        %1754 = vmatpush.bf16.msra.mxu0 0
        %1755 = vmatpush.bf16.msra.mxu0 0
        %1756 = vmatpush.bf16.msra.mxu0 0
        %1757 = vmatpush.bf16.msra.mxu0 0
        %1758 = vmatpush.bf16.msra.mxu0 0
        %1759 = vmatpush.bf16.msra.mxu0 0
        %1760 = vmatpush.bf16.msra.mxu0 0
        %1761 = vmatpush.bf16.msra.mxu0 %v1661
        %1762 = vmatmul.bf16.gmra.mxu0 %v1637
        %v1763 = vpop.f32.mrf.mxu0
        %v1764 = vadd.f32 0.0, %v1763
        %v1765 = vpop.f32.mrf.mxu0
        %1766 = vdwg.mxu0
        %v1767 = vadd.f32 %v1602, %v1673
        %v1768 = vadd.f32 %v1603, %v1686
        %v1769 = vadd.f32 %v1604, %v1699
        %v1770 = vadd.f32 %v1605, %v1712
        %v1771 = vadd.f32 %v1606, %v1725
        %v1772 = vadd.f32 %v1607, %v1738
        %v1773 = vadd.f32 %v1608, %v1751
        %v1774 = vadd.f32 %v1609, %v1764
        %v1775 = vld [vmem:[%s3] sm:$0xff]
        %1777 = vset.pattern.permute.xlu0 0
        %1778 = vperm.xlu0 %1777, %v1775
        %v1779 = vpop.permute.xlu0 %1778
        %v1781 = vadd.f32 %v1767, %v1779
        %v1782 = vadd.f32 %v1768, %v1779
        %v1783 = vadd.f32 %v1769, %v1779
        %v1784 = vadd.f32 %v1770, %v1779
        %v1785 = vadd.f32 %v1771, %v1779
        %v1786 = vadd.f32 %v1772, %v1779
        %v1787 = vadd.f32 %v1773, %v1779
        %v1788 = vadd.f32 %v1774, %v1779
        %v1789 = vmax.f32 %v1781, 0.0
        %v1790 = vmax.f32 %v1782, 0.0
        %v1791 = vmax.f32 %v1783, 0.0
        %v1792 = vmax.f32 %v1784, 0.0
        %v1793 = vmax.f32 %v1785, 0.0
        %v1794 = vmax.f32 %v1786, 0.0
        %v1795 = vmax.f32 %v1787, 0.0
        %v1796 = vmax.f32 %v1788, 0.0
        %v1797 = vpack.c.bf16 %v1790, %v1789
        %v1798 = vpack.c.bf16 %v1792, %v1791
        %v1799 = vpack.c.bf16 %v1794, %v1793
        %v1800 = vpack.c.bf16 %v1796, %v1795
        %v1801 = vld [vmem:[%s2] sm:$0xf]
        %s1802 = scalar_lea.vmem %s2, 4
        %v1803 = vld [vmem:[%s1802] sm:$0xf]
        %v1808 = vunpack.c.l.b16 %v1797
        %v1809 = vunpack.c.h.b16 %v1797
        %v1810 = vunpack.c.l.b16 %v1798
        %v1811 = vunpack.c.h.b16 %v1798
        %v1812 = vunpack.c.l.b16 %v1799
        %v1813 = vunpack.c.h.b16 %v1799
        %v1814 = vunpack.c.l.b16 %v1800
        %v1815 = vunpack.c.h.b16 %v1800
        %v1816 = vpack.c.b16 %v1808, %v1808
        %v1817 = vpack.c.b16 %v1809, %v1809
        %v1818 = vpack.c.b16 %v1810, %v1810
        %v1819 = vpack.c.b16 %v1811, %v1811
        %v1820 = vpack.c.b16 %v1812, %v1812
        %v1821 = vpack.c.b16 %v1813, %v1813
        %v1822 = vpack.c.b16 %v1814, %v1814
        %v1823 = vpack.c.b16 %v1815, %v1815
        %1824 = vrot.lane.b32.xlu0 %v1816, 127
        %v1825 = vpop.permute.xlu0 %1824
        %1826 = vrot.lane.b32.xlu0 %v1817, 127
        %v1827 = vpop.permute.xlu0 %1826
        %1828 = vrot.lane.b32.xlu0 %v1818, 127
        %v1829 = vpop.permute.xlu0 %1828
        %1830 = vrot.lane.b32.xlu0 %v1819, 127
        %v1831 = vpop.permute.xlu0 %1830
        %1832 = vrot.lane.b32.xlu0 %v1820, 127
        %v1833 = vpop.permute.xlu0 %1832
        %1834 = vrot.lane.b32.xlu0 %v1821, 127
        %v1835 = vpop.permute.xlu0 %1834
        %1836 = vrot.lane.b32.xlu0 %v1822, 127
        %v1837 = vpop.permute.xlu0 %1836
        %1838 = vrot.lane.b32.xlu0 %v1823, 127
        %v1839 = vpop.permute.xlu0 %1838
        %v1840 = vsel %vm638, %v1825, %v1827
        %v1841 = vsel %vm638, %v1827, %v1829
        %v1842 = vsel %vm638, %v1829, %v1831
        %v1843 = vsel %vm638, %v1831, %v1833
        %v1844 = vsel %vm638, %v1833, %v1835
        %v1845 = vsel %vm638, %v1835, %v1837
        %v1846 = vsel %vm638, %v1837, %v1839
        %v1848 = vsel %vm336, %v1803, 0
        %v1851 = vsel %vm340, %v1840, 0
        %v1854 = vsel %vm340, %v1841, 0
        %v1857 = vsel %vm340, %v1842, 0
        %v1860 = vsel %vm340, %v1843, 0
        %v1863 = vsel %vm340, %v1844, 0
        %v1866 = vsel %vm340, %v1845, 0
        %v1869 = vsel %vm340, %v1846, 0
        %v1872 = vsel %vm340, %v1839, 0
        %1874 = vmatpush.bf16.msra.mxu0 0
        %1875 = vmatpush.bf16.msra.mxu0 0
        %1876 = vmatpush.bf16.msra.mxu0 0
        %1877 = vmatpush.bf16.msra.mxu0 0
        %1878 = vmatpush.bf16.msra.mxu0 0
        %1879 = vmatpush.bf16.msra.mxu0 0
        %1880 = vmatpush.bf16.msra.mxu0 0
        %1881 = vmatpush.bf16.msra.mxu0 %v1851
        %1882 = vmatmul.bf16.gmra.mxu0 %v1848
        %v1883 = vpop.f32.mrf.mxu0
        %v1884 = vadd.f32 0.0, %v1883
        %v1885 = vpop.f32.mrf.mxu0
        %1886 = vdwg.mxu0
        %1887 = vmatpush.bf16.msra.mxu0 0
        %1888 = vmatpush.bf16.msra.mxu0 0
        %1889 = vmatpush.bf16.msra.mxu0 0
        %1890 = vmatpush.bf16.msra.mxu0 0
        %1891 = vmatpush.bf16.msra.mxu0 0
        %1892 = vmatpush.bf16.msra.mxu0 0
        %1893 = vmatpush.bf16.msra.mxu0 0
        %1894 = vmatpush.bf16.msra.mxu0 %v1854
        %1895 = vmatmul.bf16.gmra.mxu0 %v1848
        %v1896 = vpop.f32.mrf.mxu0
        %v1897 = vadd.f32 0.0, %v1896
        %v1898 = vpop.f32.mrf.mxu0
        %1899 = vdwg.mxu0
        %1900 = vmatpush.bf16.msra.mxu0 0
        %1901 = vmatpush.bf16.msra.mxu0 0
        %1902 = vmatpush.bf16.msra.mxu0 0
        %1903 = vmatpush.bf16.msra.mxu0 0
        %1904 = vmatpush.bf16.msra.mxu0 0
        %1905 = vmatpush.bf16.msra.mxu0 0
        %1906 = vmatpush.bf16.msra.mxu0 0
        %1907 = vmatpush.bf16.msra.mxu0 %v1857
        %1908 = vmatmul.bf16.gmra.mxu0 %v1848
        %v1909 = vpop.f32.mrf.mxu0
        %v1910 = vadd.f32 0.0, %v1909
        %v1911 = vpop.f32.mrf.mxu0
        %1912 = vdwg.mxu0
        %1913 = vmatpush.bf16.msra.mxu0 0
        %1914 = vmatpush.bf16.msra.mxu0 0
        %1915 = vmatpush.bf16.msra.mxu0 0
        %1916 = vmatpush.bf16.msra.mxu0 0
        %1917 = vmatpush.bf16.msra.mxu0 0
        %1918 = vmatpush.bf16.msra.mxu0 0
        %1919 = vmatpush.bf16.msra.mxu0 0
        %1920 = vmatpush.bf16.msra.mxu0 %v1860
        %1921 = vmatmul.bf16.gmra.mxu0 %v1848
        %v1922 = vpop.f32.mrf.mxu0
        %v1923 = vadd.f32 0.0, %v1922
        %v1924 = vpop.f32.mrf.mxu0
        %1925 = vdwg.mxu0
        %1926 = vmatpush.bf16.msra.mxu0 0
        %1927 = vmatpush.bf16.msra.mxu0 0
        %1928 = vmatpush.bf16.msra.mxu0 0
        %1929 = vmatpush.bf16.msra.mxu0 0
        %1930 = vmatpush.bf16.msra.mxu0 0
        %1931 = vmatpush.bf16.msra.mxu0 0
        %1932 = vmatpush.bf16.msra.mxu0 0
        %1933 = vmatpush.bf16.msra.mxu0 %v1863
        %1934 = vmatmul.bf16.gmra.mxu0 %v1848
        %v1935 = vpop.f32.mrf.mxu0
        %v1936 = vadd.f32 0.0, %v1935
        %v1937 = vpop.f32.mrf.mxu0
        %1938 = vdwg.mxu0
        %1939 = vmatpush.bf16.msra.mxu0 0
        %1940 = vmatpush.bf16.msra.mxu0 0
        %1941 = vmatpush.bf16.msra.mxu0 0
        %1942 = vmatpush.bf16.msra.mxu0 0
        %1943 = vmatpush.bf16.msra.mxu0 0
        %1944 = vmatpush.bf16.msra.mxu0 0
        %1945 = vmatpush.bf16.msra.mxu0 0
        %1946 = vmatpush.bf16.msra.mxu0 %v1866
        %1947 = vmatmul.bf16.gmra.mxu0 %v1848
        %v1948 = vpop.f32.mrf.mxu0
        %v1949 = vadd.f32 0.0, %v1948
        %v1950 = vpop.f32.mrf.mxu0
        %1951 = vdwg.mxu0
        %1952 = vmatpush.bf16.msra.mxu0 0
        %1953 = vmatpush.bf16.msra.mxu0 0
        %1954 = vmatpush.bf16.msra.mxu0 0
        %1955 = vmatpush.bf16.msra.mxu0 0
        %1956 = vmatpush.bf16.msra.mxu0 0
        %1957 = vmatpush.bf16.msra.mxu0 0
        %1958 = vmatpush.bf16.msra.mxu0 0
        %1959 = vmatpush.bf16.msra.mxu0 %v1869
        %1960 = vmatmul.bf16.gmra.mxu0 %v1848
        %v1961 = vpop.f32.mrf.mxu0
        %v1962 = vadd.f32 0.0, %v1961
        %v1963 = vpop.f32.mrf.mxu0
        %1964 = vdwg.mxu0
        %1965 = vmatpush.bf16.msra.mxu0 0
        %1966 = vmatpush.bf16.msra.mxu0 0
        %1967 = vmatpush.bf16.msra.mxu0 0
        %1968 = vmatpush.bf16.msra.mxu0 0
        %1969 = vmatpush.bf16.msra.mxu0 0
        %1970 = vmatpush.bf16.msra.mxu0 0
        %1971 = vmatpush.bf16.msra.mxu0 0
        %1972 = vmatpush.bf16.msra.mxu0 %v1872
        %1973 = vmatmul.bf16.gmra.mxu0 %v1848
        %v1974 = vpop.f32.mrf.mxu0
        %v1975 = vadd.f32 0.0, %v1974
        %v1976 = vpop.f32.mrf.mxu0
        %1977 = vdwg.mxu0
        %v1979 = vsel %vm336, %v1801, 0
        %v1982 = vsel %vm340, %v1816, 0
        %v1985 = vsel %vm340, %v1817, 0
        %v1988 = vsel %vm340, %v1818, 0
        %v1991 = vsel %vm340, %v1819, 0
        %v1994 = vsel %vm340, %v1820, 0
        %v1997 = vsel %vm340, %v1821, 0
        %v2000 = vsel %vm340, %v1822, 0
        %v2003 = vsel %vm340, %v1823, 0
        %2005 = vmatpush.bf16.msra.mxu0 0
        %2006 = vmatpush.bf16.msra.mxu0 0
        %2007 = vmatpush.bf16.msra.mxu0 0
        %2008 = vmatpush.bf16.msra.mxu0 0
        %2009 = vmatpush.bf16.msra.mxu0 0
        %2010 = vmatpush.bf16.msra.mxu0 0
        %2011 = vmatpush.bf16.msra.mxu0 0
        %2012 = vmatpush.bf16.msra.mxu0 %v1982
        %2013 = vmatmul.bf16.gmra.mxu0 %v1979
        %v2014 = vpop.f32.mrf.mxu0
        %v2015 = vadd.f32 %v1884, %v2014
        %v2016 = vpop.f32.mrf.mxu0
        %2017 = vdwg.mxu0
        %2018 = vmatpush.bf16.msra.mxu0 0
        %2019 = vmatpush.bf16.msra.mxu0 0
        %2020 = vmatpush.bf16.msra.mxu0 0
        %2021 = vmatpush.bf16.msra.mxu0 0
        %2022 = vmatpush.bf16.msra.mxu0 0
        %2023 = vmatpush.bf16.msra.mxu0 0
        %2024 = vmatpush.bf16.msra.mxu0 0
        %2025 = vmatpush.bf16.msra.mxu0 %v1985
        %2026 = vmatmul.bf16.gmra.mxu0 %v1979
        %v2027 = vpop.f32.mrf.mxu0
        %v2028 = vadd.f32 %v1897, %v2027
        %v2029 = vpop.f32.mrf.mxu0
        %2030 = vdwg.mxu0
        %2031 = vmatpush.bf16.msra.mxu0 0
        %2032 = vmatpush.bf16.msra.mxu0 0
        %2033 = vmatpush.bf16.msra.mxu0 0
        %2034 = vmatpush.bf16.msra.mxu0 0
        %2035 = vmatpush.bf16.msra.mxu0 0
        %2036 = vmatpush.bf16.msra.mxu0 0
        %2037 = vmatpush.bf16.msra.mxu0 0
        %2038 = vmatpush.bf16.msra.mxu0 %v1988
        %2039 = vmatmul.bf16.gmra.mxu0 %v1979
        %v2040 = vpop.f32.mrf.mxu0
        %v2041 = vadd.f32 %v1910, %v2040
        %v2042 = vpop.f32.mrf.mxu0
        %2043 = vdwg.mxu0
        %2044 = vmatpush.bf16.msra.mxu0 0
        %2045 = vmatpush.bf16.msra.mxu0 0
        %2046 = vmatpush.bf16.msra.mxu0 0
        %2047 = vmatpush.bf16.msra.mxu0 0
        %2048 = vmatpush.bf16.msra.mxu0 0
        %2049 = vmatpush.bf16.msra.mxu0 0
        %2050 = vmatpush.bf16.msra.mxu0 0
        %2051 = vmatpush.bf16.msra.mxu0 %v1991
        %2052 = vmatmul.bf16.gmra.mxu0 %v1979
        %v2053 = vpop.f32.mrf.mxu0
        %v2054 = vadd.f32 %v1923, %v2053
        %v2055 = vpop.f32.mrf.mxu0
        %2056 = vdwg.mxu0
        %2057 = vmatpush.bf16.msra.mxu0 0
        %2058 = vmatpush.bf16.msra.mxu0 0
        %2059 = vmatpush.bf16.msra.mxu0 0
        %2060 = vmatpush.bf16.msra.mxu0 0
        %2061 = vmatpush.bf16.msra.mxu0 0
        %2062 = vmatpush.bf16.msra.mxu0 0
        %2063 = vmatpush.bf16.msra.mxu0 0
        %2064 = vmatpush.bf16.msra.mxu0 %v1994
        %2065 = vmatmul.bf16.gmra.mxu0 %v1979
        %v2066 = vpop.f32.mrf.mxu0
        %v2067 = vadd.f32 %v1936, %v2066
        %v2068 = vpop.f32.mrf.mxu0
        %2069 = vdwg.mxu0
        %2070 = vmatpush.bf16.msra.mxu0 0
        %2071 = vmatpush.bf16.msra.mxu0 0
        %2072 = vmatpush.bf16.msra.mxu0 0
        %2073 = vmatpush.bf16.msra.mxu0 0
        %2074 = vmatpush.bf16.msra.mxu0 0
        %2075 = vmatpush.bf16.msra.mxu0 0
        %2076 = vmatpush.bf16.msra.mxu0 0
        %2077 = vmatpush.bf16.msra.mxu0 %v1997
        %2078 = vmatmul.bf16.gmra.mxu0 %v1979
        %v2079 = vpop.f32.mrf.mxu0
        %v2080 = vadd.f32 %v1949, %v2079
        %v2081 = vpop.f32.mrf.mxu0
        %2082 = vdwg.mxu0
        %2083 = vmatpush.bf16.msra.mxu0 0
        %2084 = vmatpush.bf16.msra.mxu0 0
        %2085 = vmatpush.bf16.msra.mxu0 0
        %2086 = vmatpush.bf16.msra.mxu0 0
        %2087 = vmatpush.bf16.msra.mxu0 0
        %2088 = vmatpush.bf16.msra.mxu0 0
        %2089 = vmatpush.bf16.msra.mxu0 0
        %2090 = vmatpush.bf16.msra.mxu0 %v2000
        %2091 = vmatmul.bf16.gmra.mxu0 %v1979
        %v2092 = vpop.f32.mrf.mxu0
        %v2093 = vadd.f32 %v1962, %v2092
        %v2094 = vpop.f32.mrf.mxu0
        %2095 = vdwg.mxu0
        %2096 = vmatpush.bf16.msra.mxu0 0
        %2097 = vmatpush.bf16.msra.mxu0 0
        %2098 = vmatpush.bf16.msra.mxu0 0
        %2099 = vmatpush.bf16.msra.mxu0 0
        %2100 = vmatpush.bf16.msra.mxu0 0
        %2101 = vmatpush.bf16.msra.mxu0 0
        %2102 = vmatpush.bf16.msra.mxu0 0
        %2103 = vmatpush.bf16.msra.mxu0 %v2003
        %2104 = vmatmul.bf16.gmra.mxu0 %v1979
        %v2105 = vpop.f32.mrf.mxu0
        %v2106 = vadd.f32 %v1975, %v2105
        %v2107 = vpop.f32.mrf.mxu0
        %2108 = vdwg.mxu0
        %s2109 = scalar_lea.vmem %s2, 8
        %v2110 = vld [vmem:[%s2109] sm:$0xf]
        %2111 = vrot.lane.b32.xlu0 %v1816, 126
        %v2112 = vpop.permute.xlu0 %2111
        %2113 = vrot.lane.b32.xlu0 %v1817, 126
        %v2114 = vpop.permute.xlu0 %2113
        %2115 = vrot.lane.b32.xlu0 %v1818, 126
        %v2116 = vpop.permute.xlu0 %2115
        %2117 = vrot.lane.b32.xlu0 %v1819, 126
        %v2118 = vpop.permute.xlu0 %2117
        %2119 = vrot.lane.b32.xlu0 %v1820, 126
        %v2120 = vpop.permute.xlu0 %2119
        %2121 = vrot.lane.b32.xlu0 %v1821, 126
        %v2122 = vpop.permute.xlu0 %2121
        %2123 = vrot.lane.b32.xlu0 %v1822, 126
        %v2124 = vpop.permute.xlu0 %2123
        %2125 = vrot.lane.b32.xlu0 %v1823, 126
        %v2126 = vpop.permute.xlu0 %2125
        %vm2127 = vcmask 1031168
        %v2128 = vsel %vm2127, %v2112, %v2114
        %v2129 = vsel %vm2127, %v2114, %v2116
        %v2130 = vsel %vm2127, %v2116, %v2118
        %v2131 = vsel %vm2127, %v2118, %v2120
        %v2132 = vsel %vm2127, %v2120, %v2122
        %v2133 = vsel %vm2127, %v2122, %v2124
        %v2134 = vsel %vm2127, %v2124, %v2126
        %v2136 = vsel %vm336, %v2110, 0
        %v2139 = vsel %vm340, %v2128, 0
        %v2142 = vsel %vm340, %v2129, 0
        %v2145 = vsel %vm340, %v2130, 0
        %v2148 = vsel %vm340, %v2131, 0
        %v2151 = vsel %vm340, %v2132, 0
        %v2154 = vsel %vm340, %v2133, 0
        %v2157 = vsel %vm340, %v2134, 0
        %v2160 = vsel %vm340, %v2126, 0
        %2162 = vmatpush.bf16.msra.mxu0 0
        %2163 = vmatpush.bf16.msra.mxu0 0
        %2164 = vmatpush.bf16.msra.mxu0 0
        %2165 = vmatpush.bf16.msra.mxu0 0
        %2166 = vmatpush.bf16.msra.mxu0 0
        %2167 = vmatpush.bf16.msra.mxu0 0
        %2168 = vmatpush.bf16.msra.mxu0 0
        %2169 = vmatpush.bf16.msra.mxu0 %v2139
        %2170 = vmatmul.bf16.gmra.mxu0 %v2136
        %v2171 = vpop.f32.mrf.mxu0
        %v2172 = vadd.f32 0.0, %v2171
        %v2173 = vpop.f32.mrf.mxu0
        %2174 = vdwg.mxu0
        %2175 = vmatpush.bf16.msra.mxu0 0
        %2176 = vmatpush.bf16.msra.mxu0 0
        %2177 = vmatpush.bf16.msra.mxu0 0
        %2178 = vmatpush.bf16.msra.mxu0 0
        %2179 = vmatpush.bf16.msra.mxu0 0
        %2180 = vmatpush.bf16.msra.mxu0 0
        %2181 = vmatpush.bf16.msra.mxu0 0
        %2182 = vmatpush.bf16.msra.mxu0 %v2142
        %2183 = vmatmul.bf16.gmra.mxu0 %v2136
        %v2184 = vpop.f32.mrf.mxu0
        %v2185 = vadd.f32 0.0, %v2184
        %v2186 = vpop.f32.mrf.mxu0
        %2187 = vdwg.mxu0
        %2188 = vmatpush.bf16.msra.mxu0 0
        %2189 = vmatpush.bf16.msra.mxu0 0
        %2190 = vmatpush.bf16.msra.mxu0 0
        %2191 = vmatpush.bf16.msra.mxu0 0
        %2192 = vmatpush.bf16.msra.mxu0 0
        %2193 = vmatpush.bf16.msra.mxu0 0
        %2194 = vmatpush.bf16.msra.mxu0 0
        %2195 = vmatpush.bf16.msra.mxu0 %v2145
        %2196 = vmatmul.bf16.gmra.mxu0 %v2136
        %v2197 = vpop.f32.mrf.mxu0
        %v2198 = vadd.f32 0.0, %v2197
        %v2199 = vpop.f32.mrf.mxu0
        %2200 = vdwg.mxu0
        %2201 = vmatpush.bf16.msra.mxu0 0
        %2202 = vmatpush.bf16.msra.mxu0 0
        %2203 = vmatpush.bf16.msra.mxu0 0
        %2204 = vmatpush.bf16.msra.mxu0 0
        %2205 = vmatpush.bf16.msra.mxu0 0
        %2206 = vmatpush.bf16.msra.mxu0 0
        %2207 = vmatpush.bf16.msra.mxu0 0
        %2208 = vmatpush.bf16.msra.mxu0 %v2148
        %2209 = vmatmul.bf16.gmra.mxu0 %v2136
        %v2210 = vpop.f32.mrf.mxu0
        %v2211 = vadd.f32 0.0, %v2210
        %v2212 = vpop.f32.mrf.mxu0
        %2213 = vdwg.mxu0
        %2214 = vmatpush.bf16.msra.mxu0 0
        %2215 = vmatpush.bf16.msra.mxu0 0
        %2216 = vmatpush.bf16.msra.mxu0 0
        %2217 = vmatpush.bf16.msra.mxu0 0
        %2218 = vmatpush.bf16.msra.mxu0 0
        %2219 = vmatpush.bf16.msra.mxu0 0
        %2220 = vmatpush.bf16.msra.mxu0 0
        %2221 = vmatpush.bf16.msra.mxu0 %v2151
        %2222 = vmatmul.bf16.gmra.mxu0 %v2136
        %v2223 = vpop.f32.mrf.mxu0
        %v2224 = vadd.f32 0.0, %v2223
        %v2225 = vpop.f32.mrf.mxu0
        %2226 = vdwg.mxu0
        %2227 = vmatpush.bf16.msra.mxu0 0
        %2228 = vmatpush.bf16.msra.mxu0 0
        %2229 = vmatpush.bf16.msra.mxu0 0
        %2230 = vmatpush.bf16.msra.mxu0 0
        %2231 = vmatpush.bf16.msra.mxu0 0
        %2232 = vmatpush.bf16.msra.mxu0 0
        %2233 = vmatpush.bf16.msra.mxu0 0
        %2234 = vmatpush.bf16.msra.mxu0 %v2154
        %2235 = vmatmul.bf16.gmra.mxu0 %v2136
        %v2236 = vpop.f32.mrf.mxu0
        %v2237 = vadd.f32 0.0, %v2236
        %v2238 = vpop.f32.mrf.mxu0
        %2239 = vdwg.mxu0
        %2240 = vmatpush.bf16.msra.mxu0 0
        %2241 = vmatpush.bf16.msra.mxu0 0
        %2242 = vmatpush.bf16.msra.mxu0 0
        %2243 = vmatpush.bf16.msra.mxu0 0
        %2244 = vmatpush.bf16.msra.mxu0 0
        %2245 = vmatpush.bf16.msra.mxu0 0
        %2246 = vmatpush.bf16.msra.mxu0 0
        %2247 = vmatpush.bf16.msra.mxu0 %v2157
        %2248 = vmatmul.bf16.gmra.mxu0 %v2136
        %v2249 = vpop.f32.mrf.mxu0
        %v2250 = vadd.f32 0.0, %v2249
        %v2251 = vpop.f32.mrf.mxu0
        %2252 = vdwg.mxu0
        %2253 = vmatpush.bf16.msra.mxu0 0
        %2254 = vmatpush.bf16.msra.mxu0 0
        %2255 = vmatpush.bf16.msra.mxu0 0
        %2256 = vmatpush.bf16.msra.mxu0 0
        %2257 = vmatpush.bf16.msra.mxu0 0
        %2258 = vmatpush.bf16.msra.mxu0 0
        %2259 = vmatpush.bf16.msra.mxu0 0
        %2260 = vmatpush.bf16.msra.mxu0 %v2160
        %2261 = vmatmul.bf16.gmra.mxu0 %v2136
        %v2262 = vpop.f32.mrf.mxu0
        %v2263 = vadd.f32 0.0, %v2262
        %v2264 = vpop.f32.mrf.mxu0
        %2265 = vdwg.mxu0
        %v2266 = vadd.f32 %v2015, %v2172
        %v2267 = vadd.f32 %v2028, %v2185
        %v2268 = vadd.f32 %v2041, %v2198
        %v2269 = vadd.f32 %v2054, %v2211
        %v2270 = vadd.f32 %v2067, %v2224
        %v2271 = vadd.f32 %v2080, %v2237
        %v2272 = vadd.f32 %v2093, %v2250
        %v2273 = vadd.f32 %v2106, %v2263
        %s2274 = scalar_lea.vmem %s2, 12
        %v2275 = vld [vmem:[%s2274] sm:$0xf]
        %2276 = vrot.lane.b32.xlu0 %v1816, 96
        %v2277 = vpop.permute.xlu0 %2276
        %2278 = vrot.lane.b32.xlu0 %v1817, 96
        %v2279 = vpop.permute.xlu0 %2278
        %2280 = vrot.lane.b32.xlu0 %v1818, 96
        %v2281 = vpop.permute.xlu0 %2280
        %2282 = vrot.lane.b32.xlu0 %v1819, 96
        %v2283 = vpop.permute.xlu0 %2282
        %2284 = vrot.lane.b32.xlu0 %v1820, 96
        %v2285 = vpop.permute.xlu0 %2284
        %2286 = vrot.lane.b32.xlu0 %v1821, 96
        %v2287 = vpop.permute.xlu0 %2286
        %2288 = vrot.lane.b32.xlu0 %v1822, 96
        %v2289 = vpop.permute.xlu0 %2288
        %2290 = vrot.lane.b32.xlu0 %v1823, 96
        %v2291 = vpop.permute.xlu0 %2290
        %v2292 = vsel %vm1299, %v2277, %v2279
        %v2293 = vsel %vm1299, %v2279, %v2281
        %v2294 = vsel %vm1299, %v2281, %v2283
        %v2295 = vsel %vm1299, %v2283, %v2285
        %v2296 = vsel %vm1299, %v2285, %v2287
        %v2297 = vsel %vm1299, %v2287, %v2289
        %v2298 = vsel %vm1299, %v2289, %v2291
        %v2300 = vsel %vm336, %v2275, 0
        %v2303 = vsel %vm340, %v2292, 0
        %v2306 = vsel %vm340, %v2293, 0
        %v2309 = vsel %vm340, %v2294, 0
        %v2312 = vsel %vm340, %v2295, 0
        %v2315 = vsel %vm340, %v2296, 0
        %v2318 = vsel %vm340, %v2297, 0
        %v2321 = vsel %vm340, %v2298, 0
        %v2324 = vsel %vm340, %v2291, 0
        %2326 = vmatpush.bf16.msra.mxu0 0
        %2327 = vmatpush.bf16.msra.mxu0 0
        %2328 = vmatpush.bf16.msra.mxu0 0
        %2329 = vmatpush.bf16.msra.mxu0 0
        %2330 = vmatpush.bf16.msra.mxu0 0
        %2331 = vmatpush.bf16.msra.mxu0 0
        %2332 = vmatpush.bf16.msra.mxu0 0
        %2333 = vmatpush.bf16.msra.mxu0 %v2303
        %2334 = vmatmul.bf16.gmra.mxu0 %v2300
        %v2335 = vpop.f32.mrf.mxu0
        %v2336 = vadd.f32 0.0, %v2335
        %v2337 = vpop.f32.mrf.mxu0
        %2338 = vdwg.mxu0
        %2339 = vmatpush.bf16.msra.mxu0 0
        %2340 = vmatpush.bf16.msra.mxu0 0
        %2341 = vmatpush.bf16.msra.mxu0 0
        %2342 = vmatpush.bf16.msra.mxu0 0
        %2343 = vmatpush.bf16.msra.mxu0 0
        %2344 = vmatpush.bf16.msra.mxu0 0
        %2345 = vmatpush.bf16.msra.mxu0 0
        %2346 = vmatpush.bf16.msra.mxu0 %v2306
        %2347 = vmatmul.bf16.gmra.mxu0 %v2300
        %v2348 = vpop.f32.mrf.mxu0
        %v2349 = vadd.f32 0.0, %v2348
        %v2350 = vpop.f32.mrf.mxu0
        %2351 = vdwg.mxu0
        %2352 = vmatpush.bf16.msra.mxu0 0
        %2353 = vmatpush.bf16.msra.mxu0 0
        %2354 = vmatpush.bf16.msra.mxu0 0
        %2355 = vmatpush.bf16.msra.mxu0 0
        %2356 = vmatpush.bf16.msra.mxu0 0
        %2357 = vmatpush.bf16.msra.mxu0 0
        %2358 = vmatpush.bf16.msra.mxu0 0
        %2359 = vmatpush.bf16.msra.mxu0 %v2309
        %2360 = vmatmul.bf16.gmra.mxu0 %v2300
        %v2361 = vpop.f32.mrf.mxu0
        %v2362 = vadd.f32 0.0, %v2361
        %v2363 = vpop.f32.mrf.mxu0
        %2364 = vdwg.mxu0
        %2365 = vmatpush.bf16.msra.mxu0 0
        %2366 = vmatpush.bf16.msra.mxu0 0
        %2367 = vmatpush.bf16.msra.mxu0 0
        %2368 = vmatpush.bf16.msra.mxu0 0
        %2369 = vmatpush.bf16.msra.mxu0 0
        %2370 = vmatpush.bf16.msra.mxu0 0
        %2371 = vmatpush.bf16.msra.mxu0 0
        %2372 = vmatpush.bf16.msra.mxu0 %v2312
        %2373 = vmatmul.bf16.gmra.mxu0 %v2300
        %v2374 = vpop.f32.mrf.mxu0
        %v2375 = vadd.f32 0.0, %v2374
        %v2376 = vpop.f32.mrf.mxu0
        %2377 = vdwg.mxu0
        %2378 = vmatpush.bf16.msra.mxu0 0
        %2379 = vmatpush.bf16.msra.mxu0 0
        %2380 = vmatpush.bf16.msra.mxu0 0
        %2381 = vmatpush.bf16.msra.mxu0 0
        %2382 = vmatpush.bf16.msra.mxu0 0
        %2383 = vmatpush.bf16.msra.mxu0 0
        %2384 = vmatpush.bf16.msra.mxu0 0
        %2385 = vmatpush.bf16.msra.mxu0 %v2315
        %2386 = vmatmul.bf16.gmra.mxu0 %v2300
        %v2387 = vpop.f32.mrf.mxu0
        %v2388 = vadd.f32 0.0, %v2387
        %v2389 = vpop.f32.mrf.mxu0
        %2390 = vdwg.mxu0
        %2391 = vmatpush.bf16.msra.mxu0 0
        %2392 = vmatpush.bf16.msra.mxu0 0
        %2393 = vmatpush.bf16.msra.mxu0 0
        %2394 = vmatpush.bf16.msra.mxu0 0
        %2395 = vmatpush.bf16.msra.mxu0 0
        %2396 = vmatpush.bf16.msra.mxu0 0
        %2397 = vmatpush.bf16.msra.mxu0 0
        %2398 = vmatpush.bf16.msra.mxu0 %v2318
        %2399 = vmatmul.bf16.gmra.mxu0 %v2300
        %v2400 = vpop.f32.mrf.mxu0
        %v2401 = vadd.f32 0.0, %v2400
        %v2402 = vpop.f32.mrf.mxu0
        %2403 = vdwg.mxu0
        %2404 = vmatpush.bf16.msra.mxu0 0
        %2405 = vmatpush.bf16.msra.mxu0 0
        %2406 = vmatpush.bf16.msra.mxu0 0
        %2407 = vmatpush.bf16.msra.mxu0 0
        %2408 = vmatpush.bf16.msra.mxu0 0
        %2409 = vmatpush.bf16.msra.mxu0 0
        %2410 = vmatpush.bf16.msra.mxu0 0
        %2411 = vmatpush.bf16.msra.mxu0 %v2321
        %2412 = vmatmul.bf16.gmra.mxu0 %v2300
        %v2413 = vpop.f32.mrf.mxu0
        %v2414 = vadd.f32 0.0, %v2413
        %v2415 = vpop.f32.mrf.mxu0
        %2416 = vdwg.mxu0
        %2417 = vmatpush.bf16.msra.mxu0 0
        %2418 = vmatpush.bf16.msra.mxu0 0
        %2419 = vmatpush.bf16.msra.mxu0 0
        %2420 = vmatpush.bf16.msra.mxu0 0
        %2421 = vmatpush.bf16.msra.mxu0 0
        %2422 = vmatpush.bf16.msra.mxu0 0
        %2423 = vmatpush.bf16.msra.mxu0 0
        %2424 = vmatpush.bf16.msra.mxu0 %v2324
        %2425 = vmatmul.bf16.gmra.mxu0 %v2300
        %v2426 = vpop.f32.mrf.mxu0
        %v2427 = vadd.f32 0.0, %v2426
        %v2428 = vpop.f32.mrf.mxu0
        %2429 = vdwg.mxu0
        %v2430 = vadd.f32 %v2266, %v2336
        %v2431 = vadd.f32 %v2267, %v2349
        %v2432 = vadd.f32 %v2268, %v2362
        %v2433 = vadd.f32 %v2269, %v2375
        %v2434 = vadd.f32 %v2270, %v2388
        %v2435 = vadd.f32 %v2271, %v2401
        %v2436 = vadd.f32 %v2272, %v2414
        %v2437 = vadd.f32 %v2273, %v2427
        %s2438 = scalar_lea.vmem %s2, 16
        %v2439 = vld [vmem:[%s2438] sm:$0xf]
        %2440 = vrot.lane.b32.xlu0 %v1816, 95
        %v2441 = vpop.permute.xlu0 %2440
        %2442 = vrot.lane.b32.xlu0 %v1817, 95
        %v2443 = vpop.permute.xlu0 %2442
        %2444 = vrot.lane.b32.xlu0 %v1818, 95
        %v2445 = vpop.permute.xlu0 %2444
        %2446 = vrot.lane.b32.xlu0 %v1819, 95
        %v2447 = vpop.permute.xlu0 %2446
        %2448 = vrot.lane.b32.xlu0 %v1820, 95
        %v2449 = vpop.permute.xlu0 %2448
        %2450 = vrot.lane.b32.xlu0 %v1821, 95
        %v2451 = vpop.permute.xlu0 %2450
        %2452 = vrot.lane.b32.xlu0 %v1822, 95
        %v2453 = vpop.permute.xlu0 %2452
        %2454 = vrot.lane.b32.xlu0 %v1823, 95
        %v2455 = vpop.permute.xlu0 %2454
        %v2456 = vsel %vm1628, %v2441, %v2443
        %v2457 = vsel %vm1628, %v2443, %v2445
        %v2458 = vsel %vm1628, %v2445, %v2447
        %v2459 = vsel %vm1628, %v2447, %v2449
        %v2460 = vsel %vm1628, %v2449, %v2451
        %v2461 = vsel %vm1628, %v2451, %v2453
        %v2462 = vsel %vm1628, %v2453, %v2455
        %v2464 = vsel %vm336, %v2439, 0
        %v2467 = vsel %vm340, %v2456, 0
        %v2470 = vsel %vm340, %v2457, 0
        %v2473 = vsel %vm340, %v2458, 0
        %v2476 = vsel %vm340, %v2459, 0
        %v2479 = vsel %vm340, %v2460, 0
        %v2482 = vsel %vm340, %v2461, 0
        %v2485 = vsel %vm340, %v2462, 0
        %v2488 = vsel %vm340, %v2455, 0
        %2490 = vmatpush.bf16.msra.mxu0 0
        %2491 = vmatpush.bf16.msra.mxu0 0
        %2492 = vmatpush.bf16.msra.mxu0 0
        %2493 = vmatpush.bf16.msra.mxu0 0
        %2494 = vmatpush.bf16.msra.mxu0 0
        %2495 = vmatpush.bf16.msra.mxu0 0
        %2496 = vmatpush.bf16.msra.mxu0 0
        %2497 = vmatpush.bf16.msra.mxu0 %v2467
        %2498 = vmatmul.bf16.gmra.mxu0 %v2464
        %v2499 = vpop.f32.mrf.mxu0
        %v2500 = vadd.f32 0.0, %v2499
        %v2501 = vpop.f32.mrf.mxu0
        %2502 = vdwg.mxu0
        %2503 = vmatpush.bf16.msra.mxu0 0
        %2504 = vmatpush.bf16.msra.mxu0 0
        %2505 = vmatpush.bf16.msra.mxu0 0
        %2506 = vmatpush.bf16.msra.mxu0 0
        %2507 = vmatpush.bf16.msra.mxu0 0
        %2508 = vmatpush.bf16.msra.mxu0 0
        %2509 = vmatpush.bf16.msra.mxu0 0
        %2510 = vmatpush.bf16.msra.mxu0 %v2470
        %2511 = vmatmul.bf16.gmra.mxu0 %v2464
        %v2512 = vpop.f32.mrf.mxu0
        %v2513 = vadd.f32 0.0, %v2512
        %v2514 = vpop.f32.mrf.mxu0
        %2515 = vdwg.mxu0
        %2516 = vmatpush.bf16.msra.mxu0 0
        %2517 = vmatpush.bf16.msra.mxu0 0
        %2518 = vmatpush.bf16.msra.mxu0 0
        %2519 = vmatpush.bf16.msra.mxu0 0
        %2520 = vmatpush.bf16.msra.mxu0 0
        %2521 = vmatpush.bf16.msra.mxu0 0
        %2522 = vmatpush.bf16.msra.mxu0 0
        %2523 = vmatpush.bf16.msra.mxu0 %v2473
        %2524 = vmatmul.bf16.gmra.mxu0 %v2464
        %v2525 = vpop.f32.mrf.mxu0
        %v2526 = vadd.f32 0.0, %v2525
        %v2527 = vpop.f32.mrf.mxu0
        %2528 = vdwg.mxu0
        %2529 = vmatpush.bf16.msra.mxu0 0
        %2530 = vmatpush.bf16.msra.mxu0 0
        %2531 = vmatpush.bf16.msra.mxu0 0
        %2532 = vmatpush.bf16.msra.mxu0 0
        %2533 = vmatpush.bf16.msra.mxu0 0
        %2534 = vmatpush.bf16.msra.mxu0 0
        %2535 = vmatpush.bf16.msra.mxu0 0
        %2536 = vmatpush.bf16.msra.mxu0 %v2476
        %2537 = vmatmul.bf16.gmra.mxu0 %v2464
        %v2538 = vpop.f32.mrf.mxu0
        %v2539 = vadd.f32 0.0, %v2538
        %v2540 = vpop.f32.mrf.mxu0
        %2541 = vdwg.mxu0
        %2542 = vmatpush.bf16.msra.mxu0 0
        %2543 = vmatpush.bf16.msra.mxu0 0
        %2544 = vmatpush.bf16.msra.mxu0 0
        %2545 = vmatpush.bf16.msra.mxu0 0
        %2546 = vmatpush.bf16.msra.mxu0 0
        %2547 = vmatpush.bf16.msra.mxu0 0
        %2548 = vmatpush.bf16.msra.mxu0 0
        %2549 = vmatpush.bf16.msra.mxu0 %v2479
        %2550 = vmatmul.bf16.gmra.mxu0 %v2464
        %v2551 = vpop.f32.mrf.mxu0
        %v2552 = vadd.f32 0.0, %v2551
        %v2553 = vpop.f32.mrf.mxu0
        %2554 = vdwg.mxu0
        %2555 = vmatpush.bf16.msra.mxu0 0
        %2556 = vmatpush.bf16.msra.mxu0 0
        %2557 = vmatpush.bf16.msra.mxu0 0
        %2558 = vmatpush.bf16.msra.mxu0 0
        %2559 = vmatpush.bf16.msra.mxu0 0
        %2560 = vmatpush.bf16.msra.mxu0 0
        %2561 = vmatpush.bf16.msra.mxu0 0
        %2562 = vmatpush.bf16.msra.mxu0 %v2482
        %2563 = vmatmul.bf16.gmra.mxu0 %v2464
        %v2564 = vpop.f32.mrf.mxu0
        %v2565 = vadd.f32 0.0, %v2564
        %v2566 = vpop.f32.mrf.mxu0
        %2567 = vdwg.mxu0
        %2568 = vmatpush.bf16.msra.mxu0 0
        %2569 = vmatpush.bf16.msra.mxu0 0
        %2570 = vmatpush.bf16.msra.mxu0 0
        %2571 = vmatpush.bf16.msra.mxu0 0
        %2572 = vmatpush.bf16.msra.mxu0 0
        %2573 = vmatpush.bf16.msra.mxu0 0
        %2574 = vmatpush.bf16.msra.mxu0 0
        %2575 = vmatpush.bf16.msra.mxu0 %v2485
        %2576 = vmatmul.bf16.gmra.mxu0 %v2464
        %v2577 = vpop.f32.mrf.mxu0
        %v2578 = vadd.f32 0.0, %v2577
        %v2579 = vpop.f32.mrf.mxu0
        %2580 = vdwg.mxu0
        %2581 = vmatpush.bf16.msra.mxu0 0
        %2582 = vmatpush.bf16.msra.mxu0 0
        %2583 = vmatpush.bf16.msra.mxu0 0
        %2584 = vmatpush.bf16.msra.mxu0 0
        %2585 = vmatpush.bf16.msra.mxu0 0
        %2586 = vmatpush.bf16.msra.mxu0 0
        %2587 = vmatpush.bf16.msra.mxu0 0
        %2588 = vmatpush.bf16.msra.mxu0 %v2488
        %2589 = vmatmul.bf16.gmra.mxu0 %v2464
        %v2590 = vpop.f32.mrf.mxu0
        %v2591 = vadd.f32 0.0, %v2590
        %v2592 = vpop.f32.mrf.mxu0
        %2593 = vdwg.mxu0
        %v2594 = vadd.f32 %v2430, %v2500
        %v2595 = vadd.f32 %v2431, %v2513
        %v2596 = vadd.f32 %v2432, %v2526
        %v2597 = vadd.f32 %v2433, %v2539
        %v2598 = vadd.f32 %v2434, %v2552
        %v2599 = vadd.f32 %v2435, %v2565
        %v2600 = vadd.f32 %v2436, %v2578
        %v2601 = vadd.f32 %v2437, %v2591
        %s2602 = scalar_lea.vmem %s2, 20
        %v2603 = vld [vmem:[%s2602] sm:$0xf]
        %2604 = vrot.lane.b32.xlu0 %v1816, 94
        %v2605 = vpop.permute.xlu0 %2604
        %2606 = vrot.lane.b32.xlu0 %v1817, 94
        %v2607 = vpop.permute.xlu0 %2606
        %2608 = vrot.lane.b32.xlu0 %v1818, 94
        %v2609 = vpop.permute.xlu0 %2608
        %2610 = vrot.lane.b32.xlu0 %v1819, 94
        %v2611 = vpop.permute.xlu0 %2610
        %2612 = vrot.lane.b32.xlu0 %v1820, 94
        %v2613 = vpop.permute.xlu0 %2612
        %2614 = vrot.lane.b32.xlu0 %v1821, 94
        %v2615 = vpop.permute.xlu0 %2614
        %2616 = vrot.lane.b32.xlu0 %v1822, 94
        %v2617 = vpop.permute.xlu0 %2616
        %2618 = vrot.lane.b32.xlu0 %v1823, 94
        %v2619 = vpop.permute.xlu0 %2618
        %vm2620 = vcmask 769024
        %v2621 = vsel %vm2620, %v2605, %v2607
        %v2622 = vsel %vm2620, %v2607, %v2609
        %v2623 = vsel %vm2620, %v2609, %v2611
        %v2624 = vsel %vm2620, %v2611, %v2613
        %v2625 = vsel %vm2620, %v2613, %v2615
        %v2626 = vsel %vm2620, %v2615, %v2617
        %v2627 = vsel %vm2620, %v2617, %v2619
        %v2629 = vsel %vm336, %v2603, 0
        %v2632 = vsel %vm340, %v2621, 0
        %v2635 = vsel %vm340, %v2622, 0
        %v2638 = vsel %vm340, %v2623, 0
        %v2641 = vsel %vm340, %v2624, 0
        %v2644 = vsel %vm340, %v2625, 0
        %v2647 = vsel %vm340, %v2626, 0
        %v2650 = vsel %vm340, %v2627, 0
        %v2653 = vsel %vm340, %v2619, 0
        %2655 = vmatpush.bf16.msra.mxu0 0
        %2656 = vmatpush.bf16.msra.mxu0 0
        %2657 = vmatpush.bf16.msra.mxu0 0
        %2658 = vmatpush.bf16.msra.mxu0 0
        %2659 = vmatpush.bf16.msra.mxu0 0
        %2660 = vmatpush.bf16.msra.mxu0 0
        %2661 = vmatpush.bf16.msra.mxu0 0
        %2662 = vmatpush.bf16.msra.mxu0 %v2632
        %2663 = vmatmul.bf16.gmra.mxu0 %v2629
        %v2664 = vpop.f32.mrf.mxu0
        %v2665 = vadd.f32 0.0, %v2664
        %v2666 = vpop.f32.mrf.mxu0
        %2667 = vdwg.mxu0
        %2668 = vmatpush.bf16.msra.mxu0 0
        %2669 = vmatpush.bf16.msra.mxu0 0
        %2670 = vmatpush.bf16.msra.mxu0 0
        %2671 = vmatpush.bf16.msra.mxu0 0
        %2672 = vmatpush.bf16.msra.mxu0 0
        %2673 = vmatpush.bf16.msra.mxu0 0
        %2674 = vmatpush.bf16.msra.mxu0 0
        %2675 = vmatpush.bf16.msra.mxu0 %v2635
        %2676 = vmatmul.bf16.gmra.mxu0 %v2629
        %v2677 = vpop.f32.mrf.mxu0
        %v2678 = vadd.f32 0.0, %v2677
        %v2679 = vpop.f32.mrf.mxu0
        %2680 = vdwg.mxu0
        %2681 = vmatpush.bf16.msra.mxu0 0
        %2682 = vmatpush.bf16.msra.mxu0 0
        %2683 = vmatpush.bf16.msra.mxu0 0
        %2684 = vmatpush.bf16.msra.mxu0 0
        %2685 = vmatpush.bf16.msra.mxu0 0
        %2686 = vmatpush.bf16.msra.mxu0 0
        %2687 = vmatpush.bf16.msra.mxu0 0
        %2688 = vmatpush.bf16.msra.mxu0 %v2638
        %2689 = vmatmul.bf16.gmra.mxu0 %v2629
        %v2690 = vpop.f32.mrf.mxu0
        %v2691 = vadd.f32 0.0, %v2690
        %v2692 = vpop.f32.mrf.mxu0
        %2693 = vdwg.mxu0
        %2694 = vmatpush.bf16.msra.mxu0 0
        %2695 = vmatpush.bf16.msra.mxu0 0
        %2696 = vmatpush.bf16.msra.mxu0 0
        %2697 = vmatpush.bf16.msra.mxu0 0
        %2698 = vmatpush.bf16.msra.mxu0 0
        %2699 = vmatpush.bf16.msra.mxu0 0
        %2700 = vmatpush.bf16.msra.mxu0 0
        %2701 = vmatpush.bf16.msra.mxu0 %v2641
        %2702 = vmatmul.bf16.gmra.mxu0 %v2629
        %v2703 = vpop.f32.mrf.mxu0
        %v2704 = vadd.f32 0.0, %v2703
        %v2705 = vpop.f32.mrf.mxu0
        %2706 = vdwg.mxu0
        %2707 = vmatpush.bf16.msra.mxu0 0
        %2708 = vmatpush.bf16.msra.mxu0 0
        %2709 = vmatpush.bf16.msra.mxu0 0
        %2710 = vmatpush.bf16.msra.mxu0 0
        %2711 = vmatpush.bf16.msra.mxu0 0
        %2712 = vmatpush.bf16.msra.mxu0 0
        %2713 = vmatpush.bf16.msra.mxu0 0
        %2714 = vmatpush.bf16.msra.mxu0 %v2644
        %2715 = vmatmul.bf16.gmra.mxu0 %v2629
        %v2716 = vpop.f32.mrf.mxu0
        %v2717 = vadd.f32 0.0, %v2716
        %v2718 = vpop.f32.mrf.mxu0
        %2719 = vdwg.mxu0
        %2720 = vmatpush.bf16.msra.mxu0 0
        %2721 = vmatpush.bf16.msra.mxu0 0
        %2722 = vmatpush.bf16.msra.mxu0 0
        %2723 = vmatpush.bf16.msra.mxu0 0
        %2724 = vmatpush.bf16.msra.mxu0 0
        %2725 = vmatpush.bf16.msra.mxu0 0
        %2726 = vmatpush.bf16.msra.mxu0 0
        %2727 = vmatpush.bf16.msra.mxu0 %v2647
        %2728 = vmatmul.bf16.gmra.mxu0 %v2629
        %v2729 = vpop.f32.mrf.mxu0
        %v2730 = vadd.f32 0.0, %v2729
        %v2731 = vpop.f32.mrf.mxu0
        %2732 = vdwg.mxu0
        %2733 = vmatpush.bf16.msra.mxu0 0
        %2734 = vmatpush.bf16.msra.mxu0 0
        %2735 = vmatpush.bf16.msra.mxu0 0
        %2736 = vmatpush.bf16.msra.mxu0 0
        %2737 = vmatpush.bf16.msra.mxu0 0
        %2738 = vmatpush.bf16.msra.mxu0 0
        %2739 = vmatpush.bf16.msra.mxu0 0
        %2740 = vmatpush.bf16.msra.mxu0 %v2650
        %2741 = vmatmul.bf16.gmra.mxu0 %v2629
        %v2742 = vpop.f32.mrf.mxu0
        %v2743 = vadd.f32 0.0, %v2742
        %v2744 = vpop.f32.mrf.mxu0
        %2745 = vdwg.mxu0
        %2746 = vmatpush.bf16.msra.mxu0 0
        %2747 = vmatpush.bf16.msra.mxu0 0
        %2748 = vmatpush.bf16.msra.mxu0 0
        %2749 = vmatpush.bf16.msra.mxu0 0
        %2750 = vmatpush.bf16.msra.mxu0 0
        %2751 = vmatpush.bf16.msra.mxu0 0
        %2752 = vmatpush.bf16.msra.mxu0 0
        %2753 = vmatpush.bf16.msra.mxu0 %v2653
        %2754 = vmatmul.bf16.gmra.mxu0 %v2629
        %v2755 = vpop.f32.mrf.mxu0
        %v2756 = vadd.f32 0.0, %v2755
        %v2757 = vpop.f32.mrf.mxu0
        %2758 = vdwg.mxu0
        %v2759 = vadd.f32 %v2594, %v2665
        %v2760 = vadd.f32 %v2595, %v2678
        %v2761 = vadd.f32 %v2596, %v2691
        %v2762 = vadd.f32 %v2597, %v2704
        %v2763 = vadd.f32 %v2598, %v2717
        %v2764 = vadd.f32 %v2599, %v2730
        %v2765 = vadd.f32 %v2600, %v2743
        %v2766 = vadd.f32 %v2601, %v2756
        %s2767 = scalar_lea.vmem %s2, 24
        %v2768 = vld [vmem:[%s2767] sm:$0xf]
        %2769 = vrot.lane.b32.xlu0 %v1816, 64
        %v2770 = vpop.permute.xlu0 %2769
        %2771 = vrot.lane.b32.xlu0 %v1817, 64
        %v2772 = vpop.permute.xlu0 %2771
        %2773 = vrot.lane.b32.xlu0 %v1818, 64
        %v2774 = vpop.permute.xlu0 %2773
        %2775 = vrot.lane.b32.xlu0 %v1819, 64
        %v2776 = vpop.permute.xlu0 %2775
        %2777 = vrot.lane.b32.xlu0 %v1820, 64
        %v2778 = vpop.permute.xlu0 %2777
        %2779 = vrot.lane.b32.xlu0 %v1821, 64
        %v2780 = vpop.permute.xlu0 %2779
        %2781 = vrot.lane.b32.xlu0 %v1822, 64
        %v2782 = vpop.permute.xlu0 %2781
        %2783 = vrot.lane.b32.xlu0 %v1823, 64
        %v2784 = vpop.permute.xlu0 %2783
        %vm2785 = vcmask 523264
        %v2786 = vsel %vm2785, %v2770, %v2772
        %v2787 = vsel %vm2785, %v2772, %v2774
        %v2788 = vsel %vm2785, %v2774, %v2776
        %v2789 = vsel %vm2785, %v2776, %v2778
        %v2790 = vsel %vm2785, %v2778, %v2780
        %v2791 = vsel %vm2785, %v2780, %v2782
        %v2792 = vsel %vm2785, %v2782, %v2784
        %v2794 = vsel %vm336, %v2768, 0
        %v2797 = vsel %vm340, %v2786, 0
        %v2800 = vsel %vm340, %v2787, 0
        %v2803 = vsel %vm340, %v2788, 0
        %v2806 = vsel %vm340, %v2789, 0
        %v2809 = vsel %vm340, %v2790, 0
        %v2812 = vsel %vm340, %v2791, 0
        %v2815 = vsel %vm340, %v2792, 0
        %v2818 = vsel %vm340, %v2784, 0
        %2820 = vmatpush.bf16.msra.mxu0 0
        %2821 = vmatpush.bf16.msra.mxu0 0
        %2822 = vmatpush.bf16.msra.mxu0 0
        %2823 = vmatpush.bf16.msra.mxu0 0
        %2824 = vmatpush.bf16.msra.mxu0 0
        %2825 = vmatpush.bf16.msra.mxu0 0
        %2826 = vmatpush.bf16.msra.mxu0 0
        %2827 = vmatpush.bf16.msra.mxu0 %v2797
        %2828 = vmatmul.bf16.gmra.mxu0 %v2794
        %v2829 = vpop.f32.mrf.mxu0
        %v2830 = vadd.f32 0.0, %v2829
        %v2831 = vpop.f32.mrf.mxu0
        %2832 = vdwg.mxu0
        %2833 = vmatpush.bf16.msra.mxu0 0
        %2834 = vmatpush.bf16.msra.mxu0 0
        %2835 = vmatpush.bf16.msra.mxu0 0
        %2836 = vmatpush.bf16.msra.mxu0 0
        %2837 = vmatpush.bf16.msra.mxu0 0
        %2838 = vmatpush.bf16.msra.mxu0 0
        %2839 = vmatpush.bf16.msra.mxu0 0
        %2840 = vmatpush.bf16.msra.mxu0 %v2800
        %2841 = vmatmul.bf16.gmra.mxu0 %v2794
        %v2842 = vpop.f32.mrf.mxu0
        %v2843 = vadd.f32 0.0, %v2842
        %v2844 = vpop.f32.mrf.mxu0
        %2845 = vdwg.mxu0
        %2846 = vmatpush.bf16.msra.mxu0 0
        %2847 = vmatpush.bf16.msra.mxu0 0
        %2848 = vmatpush.bf16.msra.mxu0 0
        %2849 = vmatpush.bf16.msra.mxu0 0
        %2850 = vmatpush.bf16.msra.mxu0 0
        %2851 = vmatpush.bf16.msra.mxu0 0
        %2852 = vmatpush.bf16.msra.mxu0 0
        %2853 = vmatpush.bf16.msra.mxu0 %v2803
        %2854 = vmatmul.bf16.gmra.mxu0 %v2794
        %v2855 = vpop.f32.mrf.mxu0
        %v2856 = vadd.f32 0.0, %v2855
        %v2857 = vpop.f32.mrf.mxu0
        %2858 = vdwg.mxu0
        %2859 = vmatpush.bf16.msra.mxu0 0
        %2860 = vmatpush.bf16.msra.mxu0 0
        %2861 = vmatpush.bf16.msra.mxu0 0
        %2862 = vmatpush.bf16.msra.mxu0 0
        %2863 = vmatpush.bf16.msra.mxu0 0
        %2864 = vmatpush.bf16.msra.mxu0 0
        %2865 = vmatpush.bf16.msra.mxu0 0
        %2866 = vmatpush.bf16.msra.mxu0 %v2806
        %2867 = vmatmul.bf16.gmra.mxu0 %v2794
        %v2868 = vpop.f32.mrf.mxu0
        %v2869 = vadd.f32 0.0, %v2868
        %v2870 = vpop.f32.mrf.mxu0
        %2871 = vdwg.mxu0
        %2872 = vmatpush.bf16.msra.mxu0 0
        %2873 = vmatpush.bf16.msra.mxu0 0
        %2874 = vmatpush.bf16.msra.mxu0 0
        %2875 = vmatpush.bf16.msra.mxu0 0
        %2876 = vmatpush.bf16.msra.mxu0 0
        %2877 = vmatpush.bf16.msra.mxu0 0
        %2878 = vmatpush.bf16.msra.mxu0 0
        %2879 = vmatpush.bf16.msra.mxu0 %v2809
        %2880 = vmatmul.bf16.gmra.mxu0 %v2794
        %v2881 = vpop.f32.mrf.mxu0
        %v2882 = vadd.f32 0.0, %v2881
        %v2883 = vpop.f32.mrf.mxu0
        %2884 = vdwg.mxu0
        %2885 = vmatpush.bf16.msra.mxu0 0
        %2886 = vmatpush.bf16.msra.mxu0 0
        %2887 = vmatpush.bf16.msra.mxu0 0
        %2888 = vmatpush.bf16.msra.mxu0 0
        %2889 = vmatpush.bf16.msra.mxu0 0
        %2890 = vmatpush.bf16.msra.mxu0 0
        %2891 = vmatpush.bf16.msra.mxu0 0
        %2892 = vmatpush.bf16.msra.mxu0 %v2812
        %2893 = vmatmul.bf16.gmra.mxu0 %v2794
        %v2894 = vpop.f32.mrf.mxu0
        %v2895 = vadd.f32 0.0, %v2894
        %v2896 = vpop.f32.mrf.mxu0
        %2897 = vdwg.mxu0
        %2898 = vmatpush.bf16.msra.mxu0 0
        %2899 = vmatpush.bf16.msra.mxu0 0
        %2900 = vmatpush.bf16.msra.mxu0 0
        %2901 = vmatpush.bf16.msra.mxu0 0
        %2902 = vmatpush.bf16.msra.mxu0 0
        %2903 = vmatpush.bf16.msra.mxu0 0
        %2904 = vmatpush.bf16.msra.mxu0 0
        %2905 = vmatpush.bf16.msra.mxu0 %v2815
        %2906 = vmatmul.bf16.gmra.mxu0 %v2794
        %v2907 = vpop.f32.mrf.mxu0
        %v2908 = vadd.f32 0.0, %v2907
        %v2909 = vpop.f32.mrf.mxu0
        %2910 = vdwg.mxu0
        %2911 = vmatpush.bf16.msra.mxu0 0
        %2912 = vmatpush.bf16.msra.mxu0 0
        %2913 = vmatpush.bf16.msra.mxu0 0
        %2914 = vmatpush.bf16.msra.mxu0 0
        %2915 = vmatpush.bf16.msra.mxu0 0
        %2916 = vmatpush.bf16.msra.mxu0 0
        %2917 = vmatpush.bf16.msra.mxu0 0
        %2918 = vmatpush.bf16.msra.mxu0 %v2818
        %2919 = vmatmul.bf16.gmra.mxu0 %v2794
        %v2920 = vpop.f32.mrf.mxu0
        %v2921 = vadd.f32 0.0, %v2920
        %v2922 = vpop.f32.mrf.mxu0
        %2923 = vdwg.mxu0
        %v2924 = vadd.f32 %v2759, %v2830
        %v2925 = vadd.f32 %v2760, %v2843
        %v2926 = vadd.f32 %v2761, %v2856
        %v2927 = vadd.f32 %v2762, %v2869
        %v2928 = vadd.f32 %v2763, %v2882
        %v2929 = vadd.f32 %v2764, %v2895
        %v2930 = vadd.f32 %v2765, %v2908
        %v2931 = vadd.f32 %v2766, %v2921
        %s2932 = scalar_lea.vmem %s2, 28
        %v2933 = vld [vmem:[%s2932] sm:$0xf]
        %2934 = vrot.lane.b32.xlu0 %v1816, 63
        %v2935 = vpop.permute.xlu0 %2934
        %2936 = vrot.lane.b32.xlu0 %v1817, 63
        %v2937 = vpop.permute.xlu0 %2936
        %2938 = vrot.lane.b32.xlu0 %v1818, 63
        %v2939 = vpop.permute.xlu0 %2938
        %2940 = vrot.lane.b32.xlu0 %v1819, 63
        %v2941 = vpop.permute.xlu0 %2940
        %2942 = vrot.lane.b32.xlu0 %v1820, 63
        %v2943 = vpop.permute.xlu0 %2942
        %2944 = vrot.lane.b32.xlu0 %v1821, 63
        %v2945 = vpop.permute.xlu0 %2944
        %2946 = vrot.lane.b32.xlu0 %v1822, 63
        %v2947 = vpop.permute.xlu0 %2946
        %2948 = vrot.lane.b32.xlu0 %v1823, 63
        %v2949 = vpop.permute.xlu0 %2948
        %vm2950 = vcmask 515072
        %v2951 = vsel %vm2950, %v2935, %v2937
        %v2952 = vsel %vm2950, %v2937, %v2939
        %v2953 = vsel %vm2950, %v2939, %v2941
        %v2954 = vsel %vm2950, %v2941, %v2943
        %v2955 = vsel %vm2950, %v2943, %v2945
        %v2956 = vsel %vm2950, %v2945, %v2947
        %v2957 = vsel %vm2950, %v2947, %v2949
        %v2959 = vsel %vm336, %v2933, 0
        %v2962 = vsel %vm340, %v2951, 0
        %v2965 = vsel %vm340, %v2952, 0
        %v2968 = vsel %vm340, %v2953, 0
        %v2971 = vsel %vm340, %v2954, 0
        %v2974 = vsel %vm340, %v2955, 0
        %v2977 = vsel %vm340, %v2956, 0
        %v2980 = vsel %vm340, %v2957, 0
        %v2983 = vsel %vm340, %v2949, 0
        %2985 = vmatpush.bf16.msra.mxu0 0
        %2986 = vmatpush.bf16.msra.mxu0 0
        %2987 = vmatpush.bf16.msra.mxu0 0
        %2988 = vmatpush.bf16.msra.mxu0 0
        %2989 = vmatpush.bf16.msra.mxu0 0
        %2990 = vmatpush.bf16.msra.mxu0 0
        %2991 = vmatpush.bf16.msra.mxu0 0
        %2992 = vmatpush.bf16.msra.mxu0 %v2962
        %2993 = vmatmul.bf16.gmra.mxu0 %v2959
        %v2994 = vpop.f32.mrf.mxu0
        %v2995 = vadd.f32 0.0, %v2994
        %v2996 = vpop.f32.mrf.mxu0
        %2997 = vdwg.mxu0
        %2998 = vmatpush.bf16.msra.mxu0 0
        %2999 = vmatpush.bf16.msra.mxu0 0
        %3000 = vmatpush.bf16.msra.mxu0 0
        %3001 = vmatpush.bf16.msra.mxu0 0
        %3002 = vmatpush.bf16.msra.mxu0 0
        %3003 = vmatpush.bf16.msra.mxu0 0
        %3004 = vmatpush.bf16.msra.mxu0 0
        %3005 = vmatpush.bf16.msra.mxu0 %v2965
        %3006 = vmatmul.bf16.gmra.mxu0 %v2959
        %v3007 = vpop.f32.mrf.mxu0
        %v3008 = vadd.f32 0.0, %v3007
        %v3009 = vpop.f32.mrf.mxu0
        %3010 = vdwg.mxu0
        %3011 = vmatpush.bf16.msra.mxu0 0
        %3012 = vmatpush.bf16.msra.mxu0 0
        %3013 = vmatpush.bf16.msra.mxu0 0
        %3014 = vmatpush.bf16.msra.mxu0 0
        %3015 = vmatpush.bf16.msra.mxu0 0
        %3016 = vmatpush.bf16.msra.mxu0 0
        %3017 = vmatpush.bf16.msra.mxu0 0
        %3018 = vmatpush.bf16.msra.mxu0 %v2968
        %3019 = vmatmul.bf16.gmra.mxu0 %v2959
        %v3020 = vpop.f32.mrf.mxu0
        %v3021 = vadd.f32 0.0, %v3020
        %v3022 = vpop.f32.mrf.mxu0
        %3023 = vdwg.mxu0
        %3024 = vmatpush.bf16.msra.mxu0 0
        %3025 = vmatpush.bf16.msra.mxu0 0
        %3026 = vmatpush.bf16.msra.mxu0 0
        %3027 = vmatpush.bf16.msra.mxu0 0
        %3028 = vmatpush.bf16.msra.mxu0 0
        %3029 = vmatpush.bf16.msra.mxu0 0
        %3030 = vmatpush.bf16.msra.mxu0 0
        %3031 = vmatpush.bf16.msra.mxu0 %v2971
        %3032 = vmatmul.bf16.gmra.mxu0 %v2959
        %v3033 = vpop.f32.mrf.mxu0
        %v3034 = vadd.f32 0.0, %v3033
        %v3035 = vpop.f32.mrf.mxu0
        %3036 = vdwg.mxu0
        %3037 = vmatpush.bf16.msra.mxu0 0
        %3038 = vmatpush.bf16.msra.mxu0 0
        %3039 = vmatpush.bf16.msra.mxu0 0
        %3040 = vmatpush.bf16.msra.mxu0 0
        %3041 = vmatpush.bf16.msra.mxu0 0
        %3042 = vmatpush.bf16.msra.mxu0 0
        %3043 = vmatpush.bf16.msra.mxu0 0
        %3044 = vmatpush.bf16.msra.mxu0 %v2974
        %3045 = vmatmul.bf16.gmra.mxu0 %v2959
        %v3046 = vpop.f32.mrf.mxu0
        %v3047 = vadd.f32 0.0, %v3046
        %v3048 = vpop.f32.mrf.mxu0
        %3049 = vdwg.mxu0
        %3050 = vmatpush.bf16.msra.mxu0 0
        %3051 = vmatpush.bf16.msra.mxu0 0
        %3052 = vmatpush.bf16.msra.mxu0 0
        %3053 = vmatpush.bf16.msra.mxu0 0
        %3054 = vmatpush.bf16.msra.mxu0 0
        %3055 = vmatpush.bf16.msra.mxu0 0
        %3056 = vmatpush.bf16.msra.mxu0 0
        %3057 = vmatpush.bf16.msra.mxu0 %v2977
        %3058 = vmatmul.bf16.gmra.mxu0 %v2959
        %v3059 = vpop.f32.mrf.mxu0
        %v3060 = vadd.f32 0.0, %v3059
        %v3061 = vpop.f32.mrf.mxu0
        %3062 = vdwg.mxu0
        %3063 = vmatpush.bf16.msra.mxu0 0
        %3064 = vmatpush.bf16.msra.mxu0 0
        %3065 = vmatpush.bf16.msra.mxu0 0
        %3066 = vmatpush.bf16.msra.mxu0 0
        %3067 = vmatpush.bf16.msra.mxu0 0
        %3068 = vmatpush.bf16.msra.mxu0 0
        %3069 = vmatpush.bf16.msra.mxu0 0
        %3070 = vmatpush.bf16.msra.mxu0 %v2980
        %3071 = vmatmul.bf16.gmra.mxu0 %v2959
        %v3072 = vpop.f32.mrf.mxu0
        %v3073 = vadd.f32 0.0, %v3072
        %v3074 = vpop.f32.mrf.mxu0
        %3075 = vdwg.mxu0
        %3076 = vmatpush.bf16.msra.mxu0 0
        %3077 = vmatpush.bf16.msra.mxu0 0
        %3078 = vmatpush.bf16.msra.mxu0 0
        %3079 = vmatpush.bf16.msra.mxu0 0
        %3080 = vmatpush.bf16.msra.mxu0 0
        %3081 = vmatpush.bf16.msra.mxu0 0
        %3082 = vmatpush.bf16.msra.mxu0 0
        %3083 = vmatpush.bf16.msra.mxu0 %v2983
        %3084 = vmatmul.bf16.gmra.mxu0 %v2959
        %v3085 = vpop.f32.mrf.mxu0
        %v3086 = vadd.f32 0.0, %v3085
        %v3087 = vpop.f32.mrf.mxu0
        %3088 = vdwg.mxu0
        %v3089 = vadd.f32 %v2924, %v2995
        %v3090 = vadd.f32 %v2925, %v3008
        %v3091 = vadd.f32 %v2926, %v3021
        %v3092 = vadd.f32 %v2927, %v3034
        %v3093 = vadd.f32 %v2928, %v3047
        %v3094 = vadd.f32 %v2929, %v3060
        %v3095 = vadd.f32 %v2930, %v3073
        %v3096 = vadd.f32 %v2931, %v3086
        %s3097 = scalar_lea.vmem %s2, 32
        %v3098 = vld [vmem:[%s3097] sm:$0xf]
        %3099 = vrot.lane.b32.xlu0 %v1816, 62
        %v3100 = vpop.permute.xlu0 %3099
        %3101 = vrot.lane.b32.xlu0 %v1817, 62
        %v3102 = vpop.permute.xlu0 %3101
        %3103 = vrot.lane.b32.xlu0 %v1818, 62
        %v3104 = vpop.permute.xlu0 %3103
        %3105 = vrot.lane.b32.xlu0 %v1819, 62
        %v3106 = vpop.permute.xlu0 %3105
        %3107 = vrot.lane.b32.xlu0 %v1820, 62
        %v3108 = vpop.permute.xlu0 %3107
        %3109 = vrot.lane.b32.xlu0 %v1821, 62
        %v3110 = vpop.permute.xlu0 %3109
        %3111 = vrot.lane.b32.xlu0 %v1822, 62
        %v3112 = vpop.permute.xlu0 %3111
        %3113 = vrot.lane.b32.xlu0 %v1823, 62
        %v3114 = vpop.permute.xlu0 %3113
        %vm3115 = vcmask 506880
        %v3116 = vsel %vm3115, %v3100, %v3102
        %v3117 = vsel %vm3115, %v3102, %v3104
        %v3118 = vsel %vm3115, %v3104, %v3106
        %v3119 = vsel %vm3115, %v3106, %v3108
        %v3120 = vsel %vm3115, %v3108, %v3110
        %v3121 = vsel %vm3115, %v3110, %v3112
        %v3122 = vsel %vm3115, %v3112, %v3114
        %v3124 = vsel %vm336, %v3098, 0
        %v3127 = vsel %vm340, %v3116, 0
        %v3130 = vsel %vm340, %v3117, 0
        %v3133 = vsel %vm340, %v3118, 0
        %v3136 = vsel %vm340, %v3119, 0
        %v3139 = vsel %vm340, %v3120, 0
        %v3142 = vsel %vm340, %v3121, 0
        %v3145 = vsel %vm340, %v3122, 0
        %v3148 = vsel %vm340, %v3114, 0
        %3150 = vmatpush.bf16.msra.mxu0 0
        %3151 = vmatpush.bf16.msra.mxu0 0
        %3152 = vmatpush.bf16.msra.mxu0 0
        %3153 = vmatpush.bf16.msra.mxu0 0
        %3154 = vmatpush.bf16.msra.mxu0 0
        %3155 = vmatpush.bf16.msra.mxu0 0
        %3156 = vmatpush.bf16.msra.mxu0 0
        %3157 = vmatpush.bf16.msra.mxu0 %v3127
        %3158 = vmatmul.bf16.gmra.mxu0 %v3124
        %v3159 = vpop.f32.mrf.mxu0
        %v3160 = vadd.f32 0.0, %v3159
        %v3161 = vpop.f32.mrf.mxu0
        %3162 = vdwg.mxu0
        %3163 = vmatpush.bf16.msra.mxu0 0
        %3164 = vmatpush.bf16.msra.mxu0 0
        %3165 = vmatpush.bf16.msra.mxu0 0
        %3166 = vmatpush.bf16.msra.mxu0 0
        %3167 = vmatpush.bf16.msra.mxu0 0
        %3168 = vmatpush.bf16.msra.mxu0 0
        %3169 = vmatpush.bf16.msra.mxu0 0
        %3170 = vmatpush.bf16.msra.mxu0 %v3130
        %3171 = vmatmul.bf16.gmra.mxu0 %v3124
        %v3172 = vpop.f32.mrf.mxu0
        %v3173 = vadd.f32 0.0, %v3172
        %v3174 = vpop.f32.mrf.mxu0
        %3175 = vdwg.mxu0
        %3176 = vmatpush.bf16.msra.mxu0 0
        %3177 = vmatpush.bf16.msra.mxu0 0
        %3178 = vmatpush.bf16.msra.mxu0 0
        %3179 = vmatpush.bf16.msra.mxu0 0
        %3180 = vmatpush.bf16.msra.mxu0 0
        %3181 = vmatpush.bf16.msra.mxu0 0
        %3182 = vmatpush.bf16.msra.mxu0 0
        %3183 = vmatpush.bf16.msra.mxu0 %v3133
        %3184 = vmatmul.bf16.gmra.mxu0 %v3124
        %v3185 = vpop.f32.mrf.mxu0
        %v3186 = vadd.f32 0.0, %v3185
        %v3187 = vpop.f32.mrf.mxu0
        %3188 = vdwg.mxu0
        %3189 = vmatpush.bf16.msra.mxu0 0
        %3190 = vmatpush.bf16.msra.mxu0 0
        %3191 = vmatpush.bf16.msra.mxu0 0
        %3192 = vmatpush.bf16.msra.mxu0 0
        %3193 = vmatpush.bf16.msra.mxu0 0
        %3194 = vmatpush.bf16.msra.mxu0 0
        %3195 = vmatpush.bf16.msra.mxu0 0
        %3196 = vmatpush.bf16.msra.mxu0 %v3136
        %3197 = vmatmul.bf16.gmra.mxu0 %v3124
        %v3198 = vpop.f32.mrf.mxu0
        %v3199 = vadd.f32 0.0, %v3198
        %v3200 = vpop.f32.mrf.mxu0
        %3201 = vdwg.mxu0
        %3202 = vmatpush.bf16.msra.mxu0 0
        %3203 = vmatpush.bf16.msra.mxu0 0
        %3204 = vmatpush.bf16.msra.mxu0 0
        %3205 = vmatpush.bf16.msra.mxu0 0
        %3206 = vmatpush.bf16.msra.mxu0 0
        %3207 = vmatpush.bf16.msra.mxu0 0
        %3208 = vmatpush.bf16.msra.mxu0 0
        %3209 = vmatpush.bf16.msra.mxu0 %v3139
        %3210 = vmatmul.bf16.gmra.mxu0 %v3124
        %v3211 = vpop.f32.mrf.mxu0
        %v3212 = vadd.f32 0.0, %v3211
        %v3213 = vpop.f32.mrf.mxu0
        %3214 = vdwg.mxu0
        %3215 = vmatpush.bf16.msra.mxu0 0
        %3216 = vmatpush.bf16.msra.mxu0 0
        %3217 = vmatpush.bf16.msra.mxu0 0
        %3218 = vmatpush.bf16.msra.mxu0 0
        %3219 = vmatpush.bf16.msra.mxu0 0
        %3220 = vmatpush.bf16.msra.mxu0 0
        %3221 = vmatpush.bf16.msra.mxu0 0
        %3222 = vmatpush.bf16.msra.mxu0 %v3142
        %3223 = vmatmul.bf16.gmra.mxu0 %v3124
        %v3224 = vpop.f32.mrf.mxu0
        %v3225 = vadd.f32 0.0, %v3224
        %v3226 = vpop.f32.mrf.mxu0
        %3227 = vdwg.mxu0
        %3228 = vmatpush.bf16.msra.mxu0 0
        %3229 = vmatpush.bf16.msra.mxu0 0
        %3230 = vmatpush.bf16.msra.mxu0 0
        %3231 = vmatpush.bf16.msra.mxu0 0
        %3232 = vmatpush.bf16.msra.mxu0 0
        %3233 = vmatpush.bf16.msra.mxu0 0
        %3234 = vmatpush.bf16.msra.mxu0 0
        %3235 = vmatpush.bf16.msra.mxu0 %v3145
        %3236 = vmatmul.bf16.gmra.mxu0 %v3124
        %v3237 = vpop.f32.mrf.mxu0
        %v3238 = vadd.f32 0.0, %v3237
        %v3239 = vpop.f32.mrf.mxu0
        %3240 = vdwg.mxu0
        %3241 = vmatpush.bf16.msra.mxu0 0
        %3242 = vmatpush.bf16.msra.mxu0 0
        %3243 = vmatpush.bf16.msra.mxu0 0
        %3244 = vmatpush.bf16.msra.mxu0 0
        %3245 = vmatpush.bf16.msra.mxu0 0
        %3246 = vmatpush.bf16.msra.mxu0 0
        %3247 = vmatpush.bf16.msra.mxu0 0
        %3248 = vmatpush.bf16.msra.mxu0 %v3148
        %3249 = vmatmul.bf16.gmra.mxu0 %v3124
        %v3250 = vpop.f32.mrf.mxu0
        %v3251 = vadd.f32 0.0, %v3250
        %v3252 = vpop.f32.mrf.mxu0
        %3253 = vdwg.mxu0
        %v3254 = vadd.f32 %v3089, %v3160
        %v3255 = vadd.f32 %v3090, %v3173
        %v3256 = vadd.f32 %v3091, %v3186
        %v3257 = vadd.f32 %v3092, %v3199
        %v3258 = vadd.f32 %v3093, %v3212
        %v3259 = vadd.f32 %v3094, %v3225
        %v3260 = vadd.f32 %v3095, %v3238
        %v3261 = vadd.f32 %v3096, %v3251
        %s3262 = scalar_lea.vmem %s3, 8
        %v3263 = vld [vmem:[%s3262] sm:$0xff]
        %3265 = vset.pattern.permute.xlu0 0
        %3266 = vperm.xlu0 %3265, %v3263
        %v3267 = vpop.permute.xlu0 %3266
        %v3269 = vadd.f32 %v3254, %v3267
        %v3270 = vadd.f32 %v3255, %v3267
        %v3271 = vadd.f32 %v3256, %v3267
        %v3272 = vadd.f32 %v3257, %v3267
        %v3273 = vadd.f32 %v3258, %v3267
        %v3274 = vadd.f32 %v3259, %v3267
        %v3275 = vadd.f32 %v3260, %v3267
        %v3276 = vadd.f32 %v3261, %v3267
        %v3277 = vmax.f32 %v3269, 0.0
        %v3278 = vmax.f32 %v3270, 0.0
        %v3279 = vmax.f32 %v3271, 0.0
        %v3280 = vmax.f32 %v3272, 0.0
        %v3281 = vmax.f32 %v3273, 0.0
        %v3282 = vmax.f32 %v3274, 0.0
        %v3283 = vmax.f32 %v3275, 0.0
        %v3284 = vmax.f32 %v3276, 0.0
        %v3285 = vpack.c.bf16 %v3278, %v3277
        %v3286 = vpack.c.bf16 %v3280, %v3279
        %v3287 = vpack.c.bf16 %v3282, %v3281
        %v3288 = vpack.c.bf16 %v3284, %v3283
        %s3289 = scalar_lea.vmem %s2, 36
        %v3290 = vld [vmem:[%s3289] sm:$0xf]
        %s3291 = scalar_lea.vmem %s2, 40
        %v3292 = vld [vmem:[%s3291] sm:$0xf]
        %v3297 = vunpack.c.l.b16 %v3285
        %v3298 = vunpack.c.h.b16 %v3285
        %v3299 = vunpack.c.l.b16 %v3286
        %v3300 = vunpack.c.h.b16 %v3286
        %v3301 = vunpack.c.l.b16 %v3287
        %v3302 = vunpack.c.h.b16 %v3287
        %v3303 = vunpack.c.l.b16 %v3288
        %v3304 = vpack.c.b16 %v3297, %v3297
        %v3305 = vpack.c.b16 %v3298, %v3298
        %v3306 = vpack.c.b16 %v3299, %v3299
        %v3307 = vpack.c.b16 %v3300, %v3300
        %v3308 = vpack.c.b16 %v3301, %v3301
        %v3309 = vpack.c.b16 %v3302, %v3302
        %v3310 = vpack.c.b16 %v3303, %v3303
        %3311 = vrot.lane.b32.xlu0 %v3304, 127
        %v3312 = vpop.permute.xlu0 %3311
        %3313 = vrot.lane.b32.xlu0 %v3305, 127
        %v3314 = vpop.permute.xlu0 %3313
        %3315 = vrot.lane.b32.xlu0 %v3306, 127
        %v3316 = vpop.permute.xlu0 %3315
        %3317 = vrot.lane.b32.xlu0 %v3307, 127
        %v3318 = vpop.permute.xlu0 %3317
        %3319 = vrot.lane.b32.xlu0 %v3308, 127
        %v3320 = vpop.permute.xlu0 %3319
        %3321 = vrot.lane.b32.xlu0 %v3309, 127
        %v3322 = vpop.permute.xlu0 %3321
        %3323 = vrot.lane.b32.xlu0 %v3310, 127
        %v3324 = vpop.permute.xlu0 %3323
        %v3325 = vsel %vm638, %v3312, %v3314
        %v3326 = vsel %vm638, %v3314, %v3316
        %v3327 = vsel %vm638, %v3316, %v3318
        %v3328 = vsel %vm638, %v3318, %v3320
        %v3329 = vsel %vm638, %v3320, %v3322
        %v3330 = vsel %vm638, %v3322, %v3324
        %v3332 = vsel %vm336, %v3292, 0
        %v3335 = vsel %vm340, %v3325, 0
        %v3338 = vsel %vm340, %v3326, 0
        %v3341 = vsel %vm340, %v3327, 0
        %v3344 = vsel %vm340, %v3328, 0
        %v3347 = vsel %vm340, %v3329, 0
        %v3350 = vsel %vm340, %v3330, 0
        %v3353 = vsel %vm340, %v3324, 0
        %3355 = vmatpush.bf16.msra.mxu0 0
        %3356 = vmatpush.bf16.msra.mxu0 0
        %3357 = vmatpush.bf16.msra.mxu0 0
        %3358 = vmatpush.bf16.msra.mxu0 0
        %3359 = vmatpush.bf16.msra.mxu0 0
        %3360 = vmatpush.bf16.msra.mxu0 0
        %3361 = vmatpush.bf16.msra.mxu0 0
        %3362 = vmatpush.bf16.msra.mxu0 %v3335
        %3363 = vmatmul.bf16.gmra.mxu0 %v3332
        %v3364 = vpop.f32.mrf.mxu0
        %v3365 = vadd.f32 0.0, %v3364
        %v3366 = vpop.f32.mrf.mxu0
        %3367 = vdwg.mxu0
        %3368 = vmatpush.bf16.msra.mxu0 0
        %3369 = vmatpush.bf16.msra.mxu0 0
        %3370 = vmatpush.bf16.msra.mxu0 0
        %3371 = vmatpush.bf16.msra.mxu0 0
        %3372 = vmatpush.bf16.msra.mxu0 0
        %3373 = vmatpush.bf16.msra.mxu0 0
        %3374 = vmatpush.bf16.msra.mxu0 0
        %3375 = vmatpush.bf16.msra.mxu0 %v3338
        %3376 = vmatmul.bf16.gmra.mxu0 %v3332
        %v3377 = vpop.f32.mrf.mxu0
        %v3378 = vadd.f32 0.0, %v3377
        %v3379 = vpop.f32.mrf.mxu0
        %3380 = vdwg.mxu0
        %3381 = vmatpush.bf16.msra.mxu0 0
        %3382 = vmatpush.bf16.msra.mxu0 0
        %3383 = vmatpush.bf16.msra.mxu0 0
        %3384 = vmatpush.bf16.msra.mxu0 0
        %3385 = vmatpush.bf16.msra.mxu0 0
        %3386 = vmatpush.bf16.msra.mxu0 0
        %3387 = vmatpush.bf16.msra.mxu0 0
        %3388 = vmatpush.bf16.msra.mxu0 %v3341
        %3389 = vmatmul.bf16.gmra.mxu0 %v3332
        %v3390 = vpop.f32.mrf.mxu0
        %v3391 = vadd.f32 0.0, %v3390
        %v3392 = vpop.f32.mrf.mxu0
        %3393 = vdwg.mxu0
        %3394 = vmatpush.bf16.msra.mxu0 0
        %3395 = vmatpush.bf16.msra.mxu0 0
        %3396 = vmatpush.bf16.msra.mxu0 0
        %3397 = vmatpush.bf16.msra.mxu0 0
        %3398 = vmatpush.bf16.msra.mxu0 0
        %3399 = vmatpush.bf16.msra.mxu0 0
        %3400 = vmatpush.bf16.msra.mxu0 0
        %3401 = vmatpush.bf16.msra.mxu0 %v3344
        %3402 = vmatmul.bf16.gmra.mxu0 %v3332
        %v3403 = vpop.f32.mrf.mxu0
        %v3404 = vadd.f32 0.0, %v3403
        %v3405 = vpop.f32.mrf.mxu0
        %3406 = vdwg.mxu0
        %3407 = vmatpush.bf16.msra.mxu0 0
        %3408 = vmatpush.bf16.msra.mxu0 0
        %3409 = vmatpush.bf16.msra.mxu0 0
        %3410 = vmatpush.bf16.msra.mxu0 0
        %3411 = vmatpush.bf16.msra.mxu0 0
        %3412 = vmatpush.bf16.msra.mxu0 0
        %3413 = vmatpush.bf16.msra.mxu0 0
        %3414 = vmatpush.bf16.msra.mxu0 %v3347
        %3415 = vmatmul.bf16.gmra.mxu0 %v3332
        %v3416 = vpop.f32.mrf.mxu0
        %v3417 = vadd.f32 0.0, %v3416
        %v3418 = vpop.f32.mrf.mxu0
        %3419 = vdwg.mxu0
        %3420 = vmatpush.bf16.msra.mxu0 0
        %3421 = vmatpush.bf16.msra.mxu0 0
        %3422 = vmatpush.bf16.msra.mxu0 0
        %3423 = vmatpush.bf16.msra.mxu0 0
        %3424 = vmatpush.bf16.msra.mxu0 0
        %3425 = vmatpush.bf16.msra.mxu0 0
        %3426 = vmatpush.bf16.msra.mxu0 0
        %3427 = vmatpush.bf16.msra.mxu0 %v3350
        %3428 = vmatmul.bf16.gmra.mxu0 %v3332
        %v3429 = vpop.f32.mrf.mxu0
        %v3430 = vadd.f32 0.0, %v3429
        %v3431 = vpop.f32.mrf.mxu0
        %3432 = vdwg.mxu0
        %3433 = vmatpush.bf16.msra.mxu0 0
        %3434 = vmatpush.bf16.msra.mxu0 0
        %3435 = vmatpush.bf16.msra.mxu0 0
        %3436 = vmatpush.bf16.msra.mxu0 0
        %3437 = vmatpush.bf16.msra.mxu0 0
        %3438 = vmatpush.bf16.msra.mxu0 0
        %3439 = vmatpush.bf16.msra.mxu0 0
        %3440 = vmatpush.bf16.msra.mxu0 %v3353
        %3441 = vmatmul.bf16.gmra.mxu0 %v3332
        %v3442 = vpop.f32.mrf.mxu0
        %v3443 = vadd.f32 0.0, %v3442
        %v3444 = vpop.f32.mrf.mxu0
        %3445 = vdwg.mxu0
        %v3447 = vsel %vm336, %v3290, 0
        %v3450 = vsel %vm340, %v3304, 0
        %v3453 = vsel %vm340, %v3305, 0
        %v3456 = vsel %vm340, %v3306, 0
        %v3459 = vsel %vm340, %v3307, 0
        %v3462 = vsel %vm340, %v3308, 0
        %v3465 = vsel %vm340, %v3309, 0
        %v3468 = vsel %vm340, %v3310, 0
        %3470 = vmatpush.bf16.msra.mxu0 0
        %3471 = vmatpush.bf16.msra.mxu0 0
        %3472 = vmatpush.bf16.msra.mxu0 0
        %3473 = vmatpush.bf16.msra.mxu0 0
        %3474 = vmatpush.bf16.msra.mxu0 0
        %3475 = vmatpush.bf16.msra.mxu0 0
        %3476 = vmatpush.bf16.msra.mxu0 0
        %3477 = vmatpush.bf16.msra.mxu0 %v3450
        %3478 = vmatmul.bf16.gmra.mxu0 %v3447
        %v3479 = vpop.f32.mrf.mxu0
        %v3480 = vadd.f32 %v3365, %v3479
        %v3481 = vpop.f32.mrf.mxu0
        %3482 = vdwg.mxu0
        %3483 = vmatpush.bf16.msra.mxu0 0
        %3484 = vmatpush.bf16.msra.mxu0 0
        %3485 = vmatpush.bf16.msra.mxu0 0
        %3486 = vmatpush.bf16.msra.mxu0 0
        %3487 = vmatpush.bf16.msra.mxu0 0
        %3488 = vmatpush.bf16.msra.mxu0 0
        %3489 = vmatpush.bf16.msra.mxu0 0
        %3490 = vmatpush.bf16.msra.mxu0 %v3453
        %3491 = vmatmul.bf16.gmra.mxu0 %v3447
        %v3492 = vpop.f32.mrf.mxu0
        %v3493 = vadd.f32 %v3378, %v3492
        %v3494 = vpop.f32.mrf.mxu0
        %3495 = vdwg.mxu0
        %3496 = vmatpush.bf16.msra.mxu0 0
        %3497 = vmatpush.bf16.msra.mxu0 0
        %3498 = vmatpush.bf16.msra.mxu0 0
        %3499 = vmatpush.bf16.msra.mxu0 0
        %3500 = vmatpush.bf16.msra.mxu0 0
        %3501 = vmatpush.bf16.msra.mxu0 0
        %3502 = vmatpush.bf16.msra.mxu0 0
        %3503 = vmatpush.bf16.msra.mxu0 %v3456
        %3504 = vmatmul.bf16.gmra.mxu0 %v3447
        %v3505 = vpop.f32.mrf.mxu0
        %v3506 = vadd.f32 %v3391, %v3505
        %v3507 = vpop.f32.mrf.mxu0
        %3508 = vdwg.mxu0
        %3509 = vmatpush.bf16.msra.mxu0 0
        %3510 = vmatpush.bf16.msra.mxu0 0
        %3511 = vmatpush.bf16.msra.mxu0 0
        %3512 = vmatpush.bf16.msra.mxu0 0
        %3513 = vmatpush.bf16.msra.mxu0 0
        %3514 = vmatpush.bf16.msra.mxu0 0
        %3515 = vmatpush.bf16.msra.mxu0 0
        %3516 = vmatpush.bf16.msra.mxu0 %v3459
        %3517 = vmatmul.bf16.gmra.mxu0 %v3447
        %v3518 = vpop.f32.mrf.mxu0
        %v3519 = vadd.f32 %v3404, %v3518
        %v3520 = vpop.f32.mrf.mxu0
        %3521 = vdwg.mxu0
        %3522 = vmatpush.bf16.msra.mxu0 0
        %3523 = vmatpush.bf16.msra.mxu0 0
        %3524 = vmatpush.bf16.msra.mxu0 0
        %3525 = vmatpush.bf16.msra.mxu0 0
        %3526 = vmatpush.bf16.msra.mxu0 0
        %3527 = vmatpush.bf16.msra.mxu0 0
        %3528 = vmatpush.bf16.msra.mxu0 0
        %3529 = vmatpush.bf16.msra.mxu0 %v3462
        %3530 = vmatmul.bf16.gmra.mxu0 %v3447
        %v3531 = vpop.f32.mrf.mxu0
        %v3532 = vadd.f32 %v3417, %v3531
        %v3533 = vpop.f32.mrf.mxu0
        %3534 = vdwg.mxu0
        %3535 = vmatpush.bf16.msra.mxu0 0
        %3536 = vmatpush.bf16.msra.mxu0 0
        %3537 = vmatpush.bf16.msra.mxu0 0
        %3538 = vmatpush.bf16.msra.mxu0 0
        %3539 = vmatpush.bf16.msra.mxu0 0
        %3540 = vmatpush.bf16.msra.mxu0 0
        %3541 = vmatpush.bf16.msra.mxu0 0
        %3542 = vmatpush.bf16.msra.mxu0 %v3465
        %3543 = vmatmul.bf16.gmra.mxu0 %v3447
        %v3544 = vpop.f32.mrf.mxu0
        %v3545 = vadd.f32 %v3430, %v3544
        %v3546 = vpop.f32.mrf.mxu0
        %3547 = vdwg.mxu0
        %3548 = vmatpush.bf16.msra.mxu0 0
        %3549 = vmatpush.bf16.msra.mxu0 0
        %3550 = vmatpush.bf16.msra.mxu0 0
        %3551 = vmatpush.bf16.msra.mxu0 0
        %3552 = vmatpush.bf16.msra.mxu0 0
        %3553 = vmatpush.bf16.msra.mxu0 0
        %3554 = vmatpush.bf16.msra.mxu0 0
        %3555 = vmatpush.bf16.msra.mxu0 %v3468
        %3556 = vmatmul.bf16.gmra.mxu0 %v3447
        %v3557 = vpop.f32.mrf.mxu0
        %v3558 = vadd.f32 %v3443, %v3557
        %v3559 = vpop.f32.mrf.mxu0
        %3560 = vdwg.mxu0
        %s3561 = scalar_lea.vmem %s2, 44
        %v3562 = vld [vmem:[%s3561] sm:$0xf]
        %3563 = vrot.lane.b32.xlu0 %v3304, 126
        %v3564 = vpop.permute.xlu0 %3563
        %3565 = vrot.lane.b32.xlu0 %v3305, 126
        %v3566 = vpop.permute.xlu0 %3565
        %3567 = vrot.lane.b32.xlu0 %v3306, 126
        %v3568 = vpop.permute.xlu0 %3567
        %3569 = vrot.lane.b32.xlu0 %v3307, 126
        %v3570 = vpop.permute.xlu0 %3569
        %3571 = vrot.lane.b32.xlu0 %v3308, 126
        %v3572 = vpop.permute.xlu0 %3571
        %3573 = vrot.lane.b32.xlu0 %v3309, 126
        %v3574 = vpop.permute.xlu0 %3573
        %3575 = vrot.lane.b32.xlu0 %v3310, 126
        %v3576 = vpop.permute.xlu0 %3575
        %v3577 = vsel %vm2127, %v3564, %v3566
        %v3578 = vsel %vm2127, %v3566, %v3568
        %v3579 = vsel %vm2127, %v3568, %v3570
        %v3580 = vsel %vm2127, %v3570, %v3572
        %v3581 = vsel %vm2127, %v3572, %v3574
        %v3582 = vsel %vm2127, %v3574, %v3576
        %v3584 = vsel %vm336, %v3562, 0
        %v3587 = vsel %vm340, %v3577, 0
        %v3590 = vsel %vm340, %v3578, 0
        %v3593 = vsel %vm340, %v3579, 0
        %v3596 = vsel %vm340, %v3580, 0
        %v3599 = vsel %vm340, %v3581, 0
        %v3602 = vsel %vm340, %v3582, 0
        %v3605 = vsel %vm340, %v3576, 0
        %3607 = vmatpush.bf16.msra.mxu0 0
        %3608 = vmatpush.bf16.msra.mxu0 0
        %3609 = vmatpush.bf16.msra.mxu0 0
        %3610 = vmatpush.bf16.msra.mxu0 0
        %3611 = vmatpush.bf16.msra.mxu0 0
        %3612 = vmatpush.bf16.msra.mxu0 0
        %3613 = vmatpush.bf16.msra.mxu0 0
        %3614 = vmatpush.bf16.msra.mxu0 %v3587
        %3615 = vmatmul.bf16.gmra.mxu0 %v3584
        %v3616 = vpop.f32.mrf.mxu0
        %v3617 = vadd.f32 0.0, %v3616
        %v3618 = vpop.f32.mrf.mxu0
        %3619 = vdwg.mxu0
        %3620 = vmatpush.bf16.msra.mxu0 0
        %3621 = vmatpush.bf16.msra.mxu0 0
        %3622 = vmatpush.bf16.msra.mxu0 0
        %3623 = vmatpush.bf16.msra.mxu0 0
        %3624 = vmatpush.bf16.msra.mxu0 0
        %3625 = vmatpush.bf16.msra.mxu0 0
        %3626 = vmatpush.bf16.msra.mxu0 0
        %3627 = vmatpush.bf16.msra.mxu0 %v3590
        %3628 = vmatmul.bf16.gmra.mxu0 %v3584
        %v3629 = vpop.f32.mrf.mxu0
        %v3630 = vadd.f32 0.0, %v3629
        %v3631 = vpop.f32.mrf.mxu0
        %3632 = vdwg.mxu0
        %3633 = vmatpush.bf16.msra.mxu0 0
        %3634 = vmatpush.bf16.msra.mxu0 0
        %3635 = vmatpush.bf16.msra.mxu0 0
        %3636 = vmatpush.bf16.msra.mxu0 0
        %3637 = vmatpush.bf16.msra.mxu0 0
        %3638 = vmatpush.bf16.msra.mxu0 0
        %3639 = vmatpush.bf16.msra.mxu0 0
        %3640 = vmatpush.bf16.msra.mxu0 %v3593
        %3641 = vmatmul.bf16.gmra.mxu0 %v3584
        %v3642 = vpop.f32.mrf.mxu0
        %v3643 = vadd.f32 0.0, %v3642
        %v3644 = vpop.f32.mrf.mxu0
        %3645 = vdwg.mxu0
        %3646 = vmatpush.bf16.msra.mxu0 0
        %3647 = vmatpush.bf16.msra.mxu0 0
        %3648 = vmatpush.bf16.msra.mxu0 0
        %3649 = vmatpush.bf16.msra.mxu0 0
        %3650 = vmatpush.bf16.msra.mxu0 0
        %3651 = vmatpush.bf16.msra.mxu0 0
        %3652 = vmatpush.bf16.msra.mxu0 0
        %3653 = vmatpush.bf16.msra.mxu0 %v3596
        %3654 = vmatmul.bf16.gmra.mxu0 %v3584
        %v3655 = vpop.f32.mrf.mxu0
        %v3656 = vadd.f32 0.0, %v3655
        %v3657 = vpop.f32.mrf.mxu0
        %3658 = vdwg.mxu0
        %3659 = vmatpush.bf16.msra.mxu0 0
        %3660 = vmatpush.bf16.msra.mxu0 0
        %3661 = vmatpush.bf16.msra.mxu0 0
        %3662 = vmatpush.bf16.msra.mxu0 0
        %3663 = vmatpush.bf16.msra.mxu0 0
        %3664 = vmatpush.bf16.msra.mxu0 0
        %3665 = vmatpush.bf16.msra.mxu0 0
        %3666 = vmatpush.bf16.msra.mxu0 %v3599
        %3667 = vmatmul.bf16.gmra.mxu0 %v3584
        %v3668 = vpop.f32.mrf.mxu0
        %v3669 = vadd.f32 0.0, %v3668
        %v3670 = vpop.f32.mrf.mxu0
        %3671 = vdwg.mxu0
        %3672 = vmatpush.bf16.msra.mxu0 0
        %3673 = vmatpush.bf16.msra.mxu0 0
        %3674 = vmatpush.bf16.msra.mxu0 0
        %3675 = vmatpush.bf16.msra.mxu0 0
        %3676 = vmatpush.bf16.msra.mxu0 0
        %3677 = vmatpush.bf16.msra.mxu0 0
        %3678 = vmatpush.bf16.msra.mxu0 0
        %3679 = vmatpush.bf16.msra.mxu0 %v3602
        %3680 = vmatmul.bf16.gmra.mxu0 %v3584
        %v3681 = vpop.f32.mrf.mxu0
        %v3682 = vadd.f32 0.0, %v3681
        %v3683 = vpop.f32.mrf.mxu0
        %3684 = vdwg.mxu0
        %3685 = vmatpush.bf16.msra.mxu0 0
        %3686 = vmatpush.bf16.msra.mxu0 0
        %3687 = vmatpush.bf16.msra.mxu0 0
        %3688 = vmatpush.bf16.msra.mxu0 0
        %3689 = vmatpush.bf16.msra.mxu0 0
        %3690 = vmatpush.bf16.msra.mxu0 0
        %3691 = vmatpush.bf16.msra.mxu0 0
        %3692 = vmatpush.bf16.msra.mxu0 %v3605
        %3693 = vmatmul.bf16.gmra.mxu0 %v3584
        %v3694 = vpop.f32.mrf.mxu0
        %v3695 = vadd.f32 0.0, %v3694
        %v3696 = vpop.f32.mrf.mxu0
        %3697 = vdwg.mxu0
        %v3698 = vadd.f32 %v3480, %v3617
        %v3699 = vadd.f32 %v3493, %v3630
        %v3700 = vadd.f32 %v3506, %v3643
        %v3701 = vadd.f32 %v3519, %v3656
        %v3702 = vadd.f32 %v3532, %v3669
        %v3703 = vadd.f32 %v3545, %v3682
        %v3704 = vadd.f32 %v3558, %v3695
        %s3705 = scalar_lea.vmem %s2, 48
        %v3706 = vld [vmem:[%s3705] sm:$0xf]
        %3707 = vrot.lane.b32.xlu0 %v3304, 96
        %v3708 = vpop.permute.xlu0 %3707
        %3709 = vrot.lane.b32.xlu0 %v3305, 96
        %v3710 = vpop.permute.xlu0 %3709
        %3711 = vrot.lane.b32.xlu0 %v3306, 96
        %v3712 = vpop.permute.xlu0 %3711
        %3713 = vrot.lane.b32.xlu0 %v3307, 96
        %v3714 = vpop.permute.xlu0 %3713
        %3715 = vrot.lane.b32.xlu0 %v3308, 96
        %v3716 = vpop.permute.xlu0 %3715
        %3717 = vrot.lane.b32.xlu0 %v3309, 96
        %v3718 = vpop.permute.xlu0 %3717
        %3719 = vrot.lane.b32.xlu0 %v3310, 96
        %v3720 = vpop.permute.xlu0 %3719
        %v3721 = vsel %vm1299, %v3708, %v3710
        %v3722 = vsel %vm1299, %v3710, %v3712
        %v3723 = vsel %vm1299, %v3712, %v3714
        %v3724 = vsel %vm1299, %v3714, %v3716
        %v3725 = vsel %vm1299, %v3716, %v3718
        %v3726 = vsel %vm1299, %v3718, %v3720
        %v3728 = vsel %vm336, %v3706, 0
        %v3731 = vsel %vm340, %v3721, 0
        %v3734 = vsel %vm340, %v3722, 0
        %v3737 = vsel %vm340, %v3723, 0
        %v3740 = vsel %vm340, %v3724, 0
        %v3743 = vsel %vm340, %v3725, 0
        %v3746 = vsel %vm340, %v3726, 0
        %v3749 = vsel %vm340, %v3720, 0
        %3751 = vmatpush.bf16.msra.mxu0 0
        %3752 = vmatpush.bf16.msra.mxu0 0
        %3753 = vmatpush.bf16.msra.mxu0 0
        %3754 = vmatpush.bf16.msra.mxu0 0
        %3755 = vmatpush.bf16.msra.mxu0 0
        %3756 = vmatpush.bf16.msra.mxu0 0
        %3757 = vmatpush.bf16.msra.mxu0 0
        %3758 = vmatpush.bf16.msra.mxu0 %v3731
        %3759 = vmatmul.bf16.gmra.mxu0 %v3728
        %v3760 = vpop.f32.mrf.mxu0
        %v3761 = vadd.f32 0.0, %v3760
        %v3762 = vpop.f32.mrf.mxu0
        %3763 = vdwg.mxu0
        %3764 = vmatpush.bf16.msra.mxu0 0
        %3765 = vmatpush.bf16.msra.mxu0 0
        %3766 = vmatpush.bf16.msra.mxu0 0
        %3767 = vmatpush.bf16.msra.mxu0 0
        %3768 = vmatpush.bf16.msra.mxu0 0
        %3769 = vmatpush.bf16.msra.mxu0 0
        %3770 = vmatpush.bf16.msra.mxu0 0
        %3771 = vmatpush.bf16.msra.mxu0 %v3734
        %3772 = vmatmul.bf16.gmra.mxu0 %v3728
        %v3773 = vpop.f32.mrf.mxu0
        %v3774 = vadd.f32 0.0, %v3773
        %v3775 = vpop.f32.mrf.mxu0
        %3776 = vdwg.mxu0
        %3777 = vmatpush.bf16.msra.mxu0 0
        %3778 = vmatpush.bf16.msra.mxu0 0
        %3779 = vmatpush.bf16.msra.mxu0 0
        %3780 = vmatpush.bf16.msra.mxu0 0
        %3781 = vmatpush.bf16.msra.mxu0 0
        %3782 = vmatpush.bf16.msra.mxu0 0
        %3783 = vmatpush.bf16.msra.mxu0 0
        %3784 = vmatpush.bf16.msra.mxu0 %v3737
        %3785 = vmatmul.bf16.gmra.mxu0 %v3728
        %v3786 = vpop.f32.mrf.mxu0
        %v3787 = vadd.f32 0.0, %v3786
        %v3788 = vpop.f32.mrf.mxu0
        %3789 = vdwg.mxu0
        %3790 = vmatpush.bf16.msra.mxu0 0
        %3791 = vmatpush.bf16.msra.mxu0 0
        %3792 = vmatpush.bf16.msra.mxu0 0
        %3793 = vmatpush.bf16.msra.mxu0 0
        %3794 = vmatpush.bf16.msra.mxu0 0
        %3795 = vmatpush.bf16.msra.mxu0 0
        %3796 = vmatpush.bf16.msra.mxu0 0
        %3797 = vmatpush.bf16.msra.mxu0 %v3740
        %3798 = vmatmul.bf16.gmra.mxu0 %v3728
        %v3799 = vpop.f32.mrf.mxu0
        %v3800 = vadd.f32 0.0, %v3799
        %v3801 = vpop.f32.mrf.mxu0
        %3802 = vdwg.mxu0
        %3803 = vmatpush.bf16.msra.mxu0 0
        %3804 = vmatpush.bf16.msra.mxu0 0
        %3805 = vmatpush.bf16.msra.mxu0 0
        %3806 = vmatpush.bf16.msra.mxu0 0
        %3807 = vmatpush.bf16.msra.mxu0 0
        %3808 = vmatpush.bf16.msra.mxu0 0
        %3809 = vmatpush.bf16.msra.mxu0 0
        %3810 = vmatpush.bf16.msra.mxu0 %v3743
        %3811 = vmatmul.bf16.gmra.mxu0 %v3728
        %v3812 = vpop.f32.mrf.mxu0
        %v3813 = vadd.f32 0.0, %v3812
        %v3814 = vpop.f32.mrf.mxu0
        %3815 = vdwg.mxu0
        %3816 = vmatpush.bf16.msra.mxu0 0
        %3817 = vmatpush.bf16.msra.mxu0 0
        %3818 = vmatpush.bf16.msra.mxu0 0
        %3819 = vmatpush.bf16.msra.mxu0 0
        %3820 = vmatpush.bf16.msra.mxu0 0
        %3821 = vmatpush.bf16.msra.mxu0 0
        %3822 = vmatpush.bf16.msra.mxu0 0
        %3823 = vmatpush.bf16.msra.mxu0 %v3746
        %3824 = vmatmul.bf16.gmra.mxu0 %v3728
        %v3825 = vpop.f32.mrf.mxu0
        %v3826 = vadd.f32 0.0, %v3825
        %v3827 = vpop.f32.mrf.mxu0
        %3828 = vdwg.mxu0
        %3829 = vmatpush.bf16.msra.mxu0 0
        %3830 = vmatpush.bf16.msra.mxu0 0
        %3831 = vmatpush.bf16.msra.mxu0 0
        %3832 = vmatpush.bf16.msra.mxu0 0
        %3833 = vmatpush.bf16.msra.mxu0 0
        %3834 = vmatpush.bf16.msra.mxu0 0
        %3835 = vmatpush.bf16.msra.mxu0 0
        %3836 = vmatpush.bf16.msra.mxu0 %v3749
        %3837 = vmatmul.bf16.gmra.mxu0 %v3728
        %v3838 = vpop.f32.mrf.mxu0
        %v3839 = vadd.f32 0.0, %v3838
        %v3840 = vpop.f32.mrf.mxu0
        %3841 = vdwg.mxu0
        %v3842 = vadd.f32 %v3698, %v3761
        %v3843 = vadd.f32 %v3699, %v3774
        %v3844 = vadd.f32 %v3700, %v3787
        %v3845 = vadd.f32 %v3701, %v3800
        %v3846 = vadd.f32 %v3702, %v3813
        %v3847 = vadd.f32 %v3703, %v3826
        %v3848 = vadd.f32 %v3704, %v3839
        %s3849 = scalar_lea.vmem %s2, 52
        %v3850 = vld [vmem:[%s3849] sm:$0xf]
        %3851 = vrot.lane.b32.xlu0 %v3304, 95
        %v3852 = vpop.permute.xlu0 %3851
        %3853 = vrot.lane.b32.xlu0 %v3305, 95
        %v3854 = vpop.permute.xlu0 %3853
        %3855 = vrot.lane.b32.xlu0 %v3306, 95
        %v3856 = vpop.permute.xlu0 %3855
        %3857 = vrot.lane.b32.xlu0 %v3307, 95
        %v3858 = vpop.permute.xlu0 %3857
        %3859 = vrot.lane.b32.xlu0 %v3308, 95
        %v3860 = vpop.permute.xlu0 %3859
        %3861 = vrot.lane.b32.xlu0 %v3309, 95
        %v3862 = vpop.permute.xlu0 %3861
        %3863 = vrot.lane.b32.xlu0 %v3310, 95
        %v3864 = vpop.permute.xlu0 %3863
        %v3865 = vsel %vm1628, %v3852, %v3854
        %v3866 = vsel %vm1628, %v3854, %v3856
        %v3867 = vsel %vm1628, %v3856, %v3858
        %v3868 = vsel %vm1628, %v3858, %v3860
        %v3869 = vsel %vm1628, %v3860, %v3862
        %v3870 = vsel %vm1628, %v3862, %v3864
        %v3872 = vsel %vm336, %v3850, 0
        %v3875 = vsel %vm340, %v3865, 0
        %v3878 = vsel %vm340, %v3866, 0
        %v3881 = vsel %vm340, %v3867, 0
        %v3884 = vsel %vm340, %v3868, 0
        %v3887 = vsel %vm340, %v3869, 0
        %v3890 = vsel %vm340, %v3870, 0
        %v3893 = vsel %vm340, %v3864, 0
        %3895 = vmatpush.bf16.msra.mxu0 0
        %3896 = vmatpush.bf16.msra.mxu0 0
        %3897 = vmatpush.bf16.msra.mxu0 0
        %3898 = vmatpush.bf16.msra.mxu0 0
        %3899 = vmatpush.bf16.msra.mxu0 0
        %3900 = vmatpush.bf16.msra.mxu0 0
        %3901 = vmatpush.bf16.msra.mxu0 0
        %3902 = vmatpush.bf16.msra.mxu0 %v3875
        %3903 = vmatmul.bf16.gmra.mxu0 %v3872
        %v3904 = vpop.f32.mrf.mxu0
        %v3905 = vadd.f32 0.0, %v3904
        %v3906 = vpop.f32.mrf.mxu0
        %3907 = vdwg.mxu0
        %3908 = vmatpush.bf16.msra.mxu0 0
        %3909 = vmatpush.bf16.msra.mxu0 0
        %3910 = vmatpush.bf16.msra.mxu0 0
        %3911 = vmatpush.bf16.msra.mxu0 0
        %3912 = vmatpush.bf16.msra.mxu0 0
        %3913 = vmatpush.bf16.msra.mxu0 0
        %3914 = vmatpush.bf16.msra.mxu0 0
        %3915 = vmatpush.bf16.msra.mxu0 %v3878
        %3916 = vmatmul.bf16.gmra.mxu0 %v3872
        %v3917 = vpop.f32.mrf.mxu0
        %v3918 = vadd.f32 0.0, %v3917
        %v3919 = vpop.f32.mrf.mxu0
        %3920 = vdwg.mxu0
        %3921 = vmatpush.bf16.msra.mxu0 0
        %3922 = vmatpush.bf16.msra.mxu0 0
        %3923 = vmatpush.bf16.msra.mxu0 0
        %3924 = vmatpush.bf16.msra.mxu0 0
        %3925 = vmatpush.bf16.msra.mxu0 0
        %3926 = vmatpush.bf16.msra.mxu0 0
        %3927 = vmatpush.bf16.msra.mxu0 0
        %3928 = vmatpush.bf16.msra.mxu0 %v3881
        %3929 = vmatmul.bf16.gmra.mxu0 %v3872
        %v3930 = vpop.f32.mrf.mxu0
        %v3931 = vadd.f32 0.0, %v3930
        %v3932 = vpop.f32.mrf.mxu0
        %3933 = vdwg.mxu0
        %3934 = vmatpush.bf16.msra.mxu0 0
        %3935 = vmatpush.bf16.msra.mxu0 0
        %3936 = vmatpush.bf16.msra.mxu0 0
        %3937 = vmatpush.bf16.msra.mxu0 0
        %3938 = vmatpush.bf16.msra.mxu0 0
        %3939 = vmatpush.bf16.msra.mxu0 0
        %3940 = vmatpush.bf16.msra.mxu0 0
        %3941 = vmatpush.bf16.msra.mxu0 %v3884
        %3942 = vmatmul.bf16.gmra.mxu0 %v3872
        %v3943 = vpop.f32.mrf.mxu0
        %v3944 = vadd.f32 0.0, %v3943
        %v3945 = vpop.f32.mrf.mxu0
        %3946 = vdwg.mxu0
        %3947 = vmatpush.bf16.msra.mxu0 0
        %3948 = vmatpush.bf16.msra.mxu0 0
        %3949 = vmatpush.bf16.msra.mxu0 0
        %3950 = vmatpush.bf16.msra.mxu0 0
        %3951 = vmatpush.bf16.msra.mxu0 0
        %3952 = vmatpush.bf16.msra.mxu0 0
        %3953 = vmatpush.bf16.msra.mxu0 0
        %3954 = vmatpush.bf16.msra.mxu0 %v3887
        %3955 = vmatmul.bf16.gmra.mxu0 %v3872
        %v3956 = vpop.f32.mrf.mxu0
        %v3957 = vadd.f32 0.0, %v3956
        %v3958 = vpop.f32.mrf.mxu0
        %3959 = vdwg.mxu0
        %3960 = vmatpush.bf16.msra.mxu0 0
        %3961 = vmatpush.bf16.msra.mxu0 0
        %3962 = vmatpush.bf16.msra.mxu0 0
        %3963 = vmatpush.bf16.msra.mxu0 0
        %3964 = vmatpush.bf16.msra.mxu0 0
        %3965 = vmatpush.bf16.msra.mxu0 0
        %3966 = vmatpush.bf16.msra.mxu0 0
        %3967 = vmatpush.bf16.msra.mxu0 %v3890
        %3968 = vmatmul.bf16.gmra.mxu0 %v3872
        %v3969 = vpop.f32.mrf.mxu0
        %v3970 = vadd.f32 0.0, %v3969
        %v3971 = vpop.f32.mrf.mxu0
        %3972 = vdwg.mxu0
        %3973 = vmatpush.bf16.msra.mxu0 0
        %3974 = vmatpush.bf16.msra.mxu0 0
        %3975 = vmatpush.bf16.msra.mxu0 0
        %3976 = vmatpush.bf16.msra.mxu0 0
        %3977 = vmatpush.bf16.msra.mxu0 0
        %3978 = vmatpush.bf16.msra.mxu0 0
        %3979 = vmatpush.bf16.msra.mxu0 0
        %3980 = vmatpush.bf16.msra.mxu0 %v3893
        %3981 = vmatmul.bf16.gmra.mxu0 %v3872
        %v3982 = vpop.f32.mrf.mxu0
        %v3983 = vadd.f32 0.0, %v3982
        %v3984 = vpop.f32.mrf.mxu0
        %3985 = vdwg.mxu0
        %v3986 = vadd.f32 %v3842, %v3905
        %v3987 = vadd.f32 %v3843, %v3918
        %v3988 = vadd.f32 %v3844, %v3931
        %v3989 = vadd.f32 %v3845, %v3944
        %v3990 = vadd.f32 %v3846, %v3957
        %v3991 = vadd.f32 %v3847, %v3970
        %v3992 = vadd.f32 %v3848, %v3983
        %s3993 = scalar_lea.vmem %s2, 56
        %v3994 = vld [vmem:[%s3993] sm:$0xf]
        %3995 = vrot.lane.b32.xlu0 %v3304, 94
        %v3996 = vpop.permute.xlu0 %3995
        %3997 = vrot.lane.b32.xlu0 %v3305, 94
        %v3998 = vpop.permute.xlu0 %3997
        %3999 = vrot.lane.b32.xlu0 %v3306, 94
        %v4000 = vpop.permute.xlu0 %3999
        %4001 = vrot.lane.b32.xlu0 %v3307, 94
        %v4002 = vpop.permute.xlu0 %4001
        %4003 = vrot.lane.b32.xlu0 %v3308, 94
        %v4004 = vpop.permute.xlu0 %4003
        %4005 = vrot.lane.b32.xlu0 %v3309, 94
        %v4006 = vpop.permute.xlu0 %4005
        %4007 = vrot.lane.b32.xlu0 %v3310, 94
        %v4008 = vpop.permute.xlu0 %4007
        %v4009 = vsel %vm2620, %v3996, %v3998
        %v4010 = vsel %vm2620, %v3998, %v4000
        %v4011 = vsel %vm2620, %v4000, %v4002
        %v4012 = vsel %vm2620, %v4002, %v4004
        %v4013 = vsel %vm2620, %v4004, %v4006
        %v4014 = vsel %vm2620, %v4006, %v4008
        %v4016 = vsel %vm336, %v3994, 0
        %v4019 = vsel %vm340, %v4009, 0
        %v4022 = vsel %vm340, %v4010, 0
        %v4025 = vsel %vm340, %v4011, 0
        %v4028 = vsel %vm340, %v4012, 0
        %v4031 = vsel %vm340, %v4013, 0
        %v4034 = vsel %vm340, %v4014, 0
        %v4037 = vsel %vm340, %v4008, 0
        %4039 = vmatpush.bf16.msra.mxu0 0
        %4040 = vmatpush.bf16.msra.mxu0 0
        %4041 = vmatpush.bf16.msra.mxu0 0
        %4042 = vmatpush.bf16.msra.mxu0 0
        %4043 = vmatpush.bf16.msra.mxu0 0
        %4044 = vmatpush.bf16.msra.mxu0 0
        %4045 = vmatpush.bf16.msra.mxu0 0
        %4046 = vmatpush.bf16.msra.mxu0 %v4019
        %4047 = vmatmul.bf16.gmra.mxu0 %v4016
        %v4048 = vpop.f32.mrf.mxu0
        %v4049 = vadd.f32 0.0, %v4048
        %v4050 = vpop.f32.mrf.mxu0
        %4051 = vdwg.mxu0
        %4052 = vmatpush.bf16.msra.mxu0 0
        %4053 = vmatpush.bf16.msra.mxu0 0
        %4054 = vmatpush.bf16.msra.mxu0 0
        %4055 = vmatpush.bf16.msra.mxu0 0
        %4056 = vmatpush.bf16.msra.mxu0 0
        %4057 = vmatpush.bf16.msra.mxu0 0
        %4058 = vmatpush.bf16.msra.mxu0 0
        %4059 = vmatpush.bf16.msra.mxu0 %v4022
        %4060 = vmatmul.bf16.gmra.mxu0 %v4016
        %v4061 = vpop.f32.mrf.mxu0
        %v4062 = vadd.f32 0.0, %v4061
        %v4063 = vpop.f32.mrf.mxu0
        %4064 = vdwg.mxu0
        %4065 = vmatpush.bf16.msra.mxu0 0
        %4066 = vmatpush.bf16.msra.mxu0 0
        %4067 = vmatpush.bf16.msra.mxu0 0
        %4068 = vmatpush.bf16.msra.mxu0 0
        %4069 = vmatpush.bf16.msra.mxu0 0
        %4070 = vmatpush.bf16.msra.mxu0 0
        %4071 = vmatpush.bf16.msra.mxu0 0
        %4072 = vmatpush.bf16.msra.mxu0 %v4025
        %4073 = vmatmul.bf16.gmra.mxu0 %v4016
        %v4074 = vpop.f32.mrf.mxu0
        %v4075 = vadd.f32 0.0, %v4074
        %v4076 = vpop.f32.mrf.mxu0
        %4077 = vdwg.mxu0
        %4078 = vmatpush.bf16.msra.mxu0 0
        %4079 = vmatpush.bf16.msra.mxu0 0
        %4080 = vmatpush.bf16.msra.mxu0 0
        %4081 = vmatpush.bf16.msra.mxu0 0
        %4082 = vmatpush.bf16.msra.mxu0 0
        %4083 = vmatpush.bf16.msra.mxu0 0
        %4084 = vmatpush.bf16.msra.mxu0 0
        %4085 = vmatpush.bf16.msra.mxu0 %v4028
        %4086 = vmatmul.bf16.gmra.mxu0 %v4016
        %v4087 = vpop.f32.mrf.mxu0
        %v4088 = vadd.f32 0.0, %v4087
        %v4089 = vpop.f32.mrf.mxu0
        %4090 = vdwg.mxu0
        %4091 = vmatpush.bf16.msra.mxu0 0
        %4092 = vmatpush.bf16.msra.mxu0 0
        %4093 = vmatpush.bf16.msra.mxu0 0
        %4094 = vmatpush.bf16.msra.mxu0 0
        %4095 = vmatpush.bf16.msra.mxu0 0
        %4096 = vmatpush.bf16.msra.mxu0 0
        %4097 = vmatpush.bf16.msra.mxu0 0
        %4098 = vmatpush.bf16.msra.mxu0 %v4031
        %4099 = vmatmul.bf16.gmra.mxu0 %v4016
        %v4100 = vpop.f32.mrf.mxu0
        %v4101 = vadd.f32 0.0, %v4100
        %v4102 = vpop.f32.mrf.mxu0
        %4103 = vdwg.mxu0
        %4104 = vmatpush.bf16.msra.mxu0 0
        %4105 = vmatpush.bf16.msra.mxu0 0
        %4106 = vmatpush.bf16.msra.mxu0 0
        %4107 = vmatpush.bf16.msra.mxu0 0
        %4108 = vmatpush.bf16.msra.mxu0 0
        %4109 = vmatpush.bf16.msra.mxu0 0
        %4110 = vmatpush.bf16.msra.mxu0 0
        %4111 = vmatpush.bf16.msra.mxu0 %v4034
        %4112 = vmatmul.bf16.gmra.mxu0 %v4016
        %v4113 = vpop.f32.mrf.mxu0
        %v4114 = vadd.f32 0.0, %v4113
        %v4115 = vpop.f32.mrf.mxu0
        %4116 = vdwg.mxu0
        %4117 = vmatpush.bf16.msra.mxu0 0
        %4118 = vmatpush.bf16.msra.mxu0 0
        %4119 = vmatpush.bf16.msra.mxu0 0
        %4120 = vmatpush.bf16.msra.mxu0 0
        %4121 = vmatpush.bf16.msra.mxu0 0
        %4122 = vmatpush.bf16.msra.mxu0 0
        %4123 = vmatpush.bf16.msra.mxu0 0
        %4124 = vmatpush.bf16.msra.mxu0 %v4037
        %4125 = vmatmul.bf16.gmra.mxu0 %v4016
        %v4126 = vpop.f32.mrf.mxu0
        %v4127 = vadd.f32 0.0, %v4126
        %v4128 = vpop.f32.mrf.mxu0
        %4129 = vdwg.mxu0
        %v4130 = vadd.f32 %v3986, %v4049
        %v4131 = vadd.f32 %v3987, %v4062
        %v4132 = vadd.f32 %v3988, %v4075
        %v4133 = vadd.f32 %v3989, %v4088
        %v4134 = vadd.f32 %v3990, %v4101
        %v4135 = vadd.f32 %v3991, %v4114
        %v4136 = vadd.f32 %v3992, %v4127
        %s4137 = scalar_lea.vmem %s2, 60
        %v4138 = vld [vmem:[%s4137] sm:$0xf]
        %v4139 = vunpack.c.h.b16 %v3288
        %v4140 = vpack.c.b16 %v4139, %v4139
        %4141 = vrot.lane.b32.xlu0 %v3304, 64
        %v4142 = vpop.permute.xlu0 %4141
        %4143 = vrot.lane.b32.xlu0 %v3305, 64
        %v4144 = vpop.permute.xlu0 %4143
        %4145 = vrot.lane.b32.xlu0 %v3306, 64
        %v4146 = vpop.permute.xlu0 %4145
        %4147 = vrot.lane.b32.xlu0 %v3307, 64
        %v4148 = vpop.permute.xlu0 %4147
        %4149 = vrot.lane.b32.xlu0 %v3308, 64
        %v4150 = vpop.permute.xlu0 %4149
        %4151 = vrot.lane.b32.xlu0 %v3309, 64
        %v4152 = vpop.permute.xlu0 %4151
        %4153 = vrot.lane.b32.xlu0 %v3310, 64
        %v4154 = vpop.permute.xlu0 %4153
        %4155 = vrot.lane.b32.xlu0 %v4140, 64
        %v4156 = vpop.permute.xlu0 %4155
        %v4157 = vsel %vm2785, %v4142, %v4144
        %v4158 = vsel %vm2785, %v4144, %v4146
        %v4159 = vsel %vm2785, %v4146, %v4148
        %v4160 = vsel %vm2785, %v4148, %v4150
        %v4161 = vsel %vm2785, %v4150, %v4152
        %v4162 = vsel %vm2785, %v4152, %v4154
        %v4163 = vsel %vm2785, %v4154, %v4156
        %v4165 = vsel %vm336, %v4138, 0
        %v4168 = vsel %vm340, %v4157, 0
        %v4171 = vsel %vm340, %v4158, 0
        %v4174 = vsel %vm340, %v4159, 0
        %v4177 = vsel %vm340, %v4160, 0
        %v4180 = vsel %vm340, %v4161, 0
        %v4183 = vsel %vm340, %v4162, 0
        %v4186 = vsel %vm340, %v4163, 0
        %4188 = vmatpush.bf16.msra.mxu0 0
        %4189 = vmatpush.bf16.msra.mxu0 0
        %4190 = vmatpush.bf16.msra.mxu0 0
        %4191 = vmatpush.bf16.msra.mxu0 0
        %4192 = vmatpush.bf16.msra.mxu0 0
        %4193 = vmatpush.bf16.msra.mxu0 0
        %4194 = vmatpush.bf16.msra.mxu0 0
        %4195 = vmatpush.bf16.msra.mxu0 %v4168
        %4196 = vmatmul.bf16.gmra.mxu0 %v4165
        %v4197 = vpop.f32.mrf.mxu0
        %v4198 = vadd.f32 0.0, %v4197
        %v4199 = vpop.f32.mrf.mxu0
        %4200 = vdwg.mxu0
        %4201 = vmatpush.bf16.msra.mxu0 0
        %4202 = vmatpush.bf16.msra.mxu0 0
        %4203 = vmatpush.bf16.msra.mxu0 0
        %4204 = vmatpush.bf16.msra.mxu0 0
        %4205 = vmatpush.bf16.msra.mxu0 0
        %4206 = vmatpush.bf16.msra.mxu0 0
        %4207 = vmatpush.bf16.msra.mxu0 0
        %4208 = vmatpush.bf16.msra.mxu0 %v4171
        %4209 = vmatmul.bf16.gmra.mxu0 %v4165
        %v4210 = vpop.f32.mrf.mxu0
        %v4211 = vadd.f32 0.0, %v4210
        %v4212 = vpop.f32.mrf.mxu0
        %4213 = vdwg.mxu0
        %4214 = vmatpush.bf16.msra.mxu0 0
        %4215 = vmatpush.bf16.msra.mxu0 0
        %4216 = vmatpush.bf16.msra.mxu0 0
        %4217 = vmatpush.bf16.msra.mxu0 0
        %4218 = vmatpush.bf16.msra.mxu0 0
        %4219 = vmatpush.bf16.msra.mxu0 0
        %4220 = vmatpush.bf16.msra.mxu0 0
        %4221 = vmatpush.bf16.msra.mxu0 %v4174
        %4222 = vmatmul.bf16.gmra.mxu0 %v4165
        %v4223 = vpop.f32.mrf.mxu0
        %v4224 = vadd.f32 0.0, %v4223
        %v4225 = vpop.f32.mrf.mxu0
        %4226 = vdwg.mxu0
        %4227 = vmatpush.bf16.msra.mxu0 0
        %4228 = vmatpush.bf16.msra.mxu0 0
        %4229 = vmatpush.bf16.msra.mxu0 0
        %4230 = vmatpush.bf16.msra.mxu0 0
        %4231 = vmatpush.bf16.msra.mxu0 0
        %4232 = vmatpush.bf16.msra.mxu0 0
        %4233 = vmatpush.bf16.msra.mxu0 0
        %4234 = vmatpush.bf16.msra.mxu0 %v4177
        %4235 = vmatmul.bf16.gmra.mxu0 %v4165
        %v4236 = vpop.f32.mrf.mxu0
        %v4237 = vadd.f32 0.0, %v4236
        %v4238 = vpop.f32.mrf.mxu0
        %4239 = vdwg.mxu0
        %4240 = vmatpush.bf16.msra.mxu0 0
        %4241 = vmatpush.bf16.msra.mxu0 0
        %4242 = vmatpush.bf16.msra.mxu0 0
        %4243 = vmatpush.bf16.msra.mxu0 0
        %4244 = vmatpush.bf16.msra.mxu0 0
        %4245 = vmatpush.bf16.msra.mxu0 0
        %4246 = vmatpush.bf16.msra.mxu0 0
        %4247 = vmatpush.bf16.msra.mxu0 %v4180
        %4248 = vmatmul.bf16.gmra.mxu0 %v4165
        %v4249 = vpop.f32.mrf.mxu0
        %v4250 = vadd.f32 0.0, %v4249
        %v4251 = vpop.f32.mrf.mxu0
        %4252 = vdwg.mxu0
        %4253 = vmatpush.bf16.msra.mxu0 0
        %4254 = vmatpush.bf16.msra.mxu0 0
        %4255 = vmatpush.bf16.msra.mxu0 0
        %4256 = vmatpush.bf16.msra.mxu0 0
        %4257 = vmatpush.bf16.msra.mxu0 0
        %4258 = vmatpush.bf16.msra.mxu0 0
        %4259 = vmatpush.bf16.msra.mxu0 0
        %4260 = vmatpush.bf16.msra.mxu0 %v4183
        %4261 = vmatmul.bf16.gmra.mxu0 %v4165
        %v4262 = vpop.f32.mrf.mxu0
        %v4263 = vadd.f32 0.0, %v4262
        %v4264 = vpop.f32.mrf.mxu0
        %4265 = vdwg.mxu0
        %4266 = vmatpush.bf16.msra.mxu0 0
        %4267 = vmatpush.bf16.msra.mxu0 0
        %4268 = vmatpush.bf16.msra.mxu0 0
        %4269 = vmatpush.bf16.msra.mxu0 0
        %4270 = vmatpush.bf16.msra.mxu0 0
        %4271 = vmatpush.bf16.msra.mxu0 0
        %4272 = vmatpush.bf16.msra.mxu0 0
        %4273 = vmatpush.bf16.msra.mxu0 %v4186
        %4274 = vmatmul.bf16.gmra.mxu0 %v4165
        %v4275 = vpop.f32.mrf.mxu0
        %v4276 = vadd.f32 0.0, %v4275
        %v4277 = vpop.f32.mrf.mxu0
        %4278 = vdwg.mxu0
        %v4279 = vadd.f32 %v4130, %v4198
        %v4280 = vadd.f32 %v4131, %v4211
        %v4281 = vadd.f32 %v4132, %v4224
        %v4282 = vadd.f32 %v4133, %v4237
        %v4283 = vadd.f32 %v4134, %v4250
        %v4284 = vadd.f32 %v4135, %v4263
        %v4285 = vadd.f32 %v4136, %v4276
        %s4286 = scalar_lea.vmem %s2, 64
        %v4287 = vld [vmem:[%s4286] sm:$0xf]
        %4288 = vrot.lane.b32.xlu0 %v3304, 63
        %v4289 = vpop.permute.xlu0 %4288
        %4290 = vrot.lane.b32.xlu0 %v3305, 63
        %v4291 = vpop.permute.xlu0 %4290
        %4292 = vrot.lane.b32.xlu0 %v3306, 63
        %v4293 = vpop.permute.xlu0 %4292
        %4294 = vrot.lane.b32.xlu0 %v3307, 63
        %v4295 = vpop.permute.xlu0 %4294
        %4296 = vrot.lane.b32.xlu0 %v3308, 63
        %v4297 = vpop.permute.xlu0 %4296
        %4298 = vrot.lane.b32.xlu0 %v3309, 63
        %v4299 = vpop.permute.xlu0 %4298
        %4300 = vrot.lane.b32.xlu0 %v3310, 63
        %v4301 = vpop.permute.xlu0 %4300
        %4302 = vrot.lane.b32.xlu0 %v4140, 63
        %v4303 = vpop.permute.xlu0 %4302
        %v4304 = vsel %vm2950, %v4289, %v4291
        %v4305 = vsel %vm2950, %v4291, %v4293
        %v4306 = vsel %vm2950, %v4293, %v4295
        %v4307 = vsel %vm2950, %v4295, %v4297
        %v4308 = vsel %vm2950, %v4297, %v4299
        %v4309 = vsel %vm2950, %v4299, %v4301
        %v4310 = vsel %vm2950, %v4301, %v4303
        %v4312 = vsel %vm336, %v4287, 0
        %v4315 = vsel %vm340, %v4304, 0
        %v4318 = vsel %vm340, %v4305, 0
        %v4321 = vsel %vm340, %v4306, 0
        %v4324 = vsel %vm340, %v4307, 0
        %v4327 = vsel %vm340, %v4308, 0
        %v4330 = vsel %vm340, %v4309, 0
        %v4333 = vsel %vm340, %v4310, 0
        %4335 = vmatpush.bf16.msra.mxu0 0
        %4336 = vmatpush.bf16.msra.mxu0 0
        %4337 = vmatpush.bf16.msra.mxu0 0
        %4338 = vmatpush.bf16.msra.mxu0 0
        %4339 = vmatpush.bf16.msra.mxu0 0
        %4340 = vmatpush.bf16.msra.mxu0 0
        %4341 = vmatpush.bf16.msra.mxu0 0
        %4342 = vmatpush.bf16.msra.mxu0 %v4315
        %4343 = vmatmul.bf16.gmra.mxu0 %v4312
        %v4344 = vpop.f32.mrf.mxu0
        %v4345 = vadd.f32 0.0, %v4344
        %v4346 = vpop.f32.mrf.mxu0
        %4347 = vdwg.mxu0
        %4348 = vmatpush.bf16.msra.mxu0 0
        %4349 = vmatpush.bf16.msra.mxu0 0
        %4350 = vmatpush.bf16.msra.mxu0 0
        %4351 = vmatpush.bf16.msra.mxu0 0
        %4352 = vmatpush.bf16.msra.mxu0 0
        %4353 = vmatpush.bf16.msra.mxu0 0
        %4354 = vmatpush.bf16.msra.mxu0 0
        %4355 = vmatpush.bf16.msra.mxu0 %v4318
        %4356 = vmatmul.bf16.gmra.mxu0 %v4312
        %v4357 = vpop.f32.mrf.mxu0
        %v4358 = vadd.f32 0.0, %v4357
        %v4359 = vpop.f32.mrf.mxu0
        %4360 = vdwg.mxu0
        %4361 = vmatpush.bf16.msra.mxu0 0
        %4362 = vmatpush.bf16.msra.mxu0 0
        %4363 = vmatpush.bf16.msra.mxu0 0
        %4364 = vmatpush.bf16.msra.mxu0 0
        %4365 = vmatpush.bf16.msra.mxu0 0
        %4366 = vmatpush.bf16.msra.mxu0 0
        %4367 = vmatpush.bf16.msra.mxu0 0
        %4368 = vmatpush.bf16.msra.mxu0 %v4321
        %4369 = vmatmul.bf16.gmra.mxu0 %v4312
        %v4370 = vpop.f32.mrf.mxu0
        %v4371 = vadd.f32 0.0, %v4370
        %v4372 = vpop.f32.mrf.mxu0
        %4373 = vdwg.mxu0
        %4374 = vmatpush.bf16.msra.mxu0 0
        %4375 = vmatpush.bf16.msra.mxu0 0
        %4376 = vmatpush.bf16.msra.mxu0 0
        %4377 = vmatpush.bf16.msra.mxu0 0
        %4378 = vmatpush.bf16.msra.mxu0 0
        %4379 = vmatpush.bf16.msra.mxu0 0
        %4380 = vmatpush.bf16.msra.mxu0 0
        %4381 = vmatpush.bf16.msra.mxu0 %v4324
        %4382 = vmatmul.bf16.gmra.mxu0 %v4312
        %v4383 = vpop.f32.mrf.mxu0
        %v4384 = vadd.f32 0.0, %v4383
        %v4385 = vpop.f32.mrf.mxu0
        %4386 = vdwg.mxu0
        %4387 = vmatpush.bf16.msra.mxu0 0
        %4388 = vmatpush.bf16.msra.mxu0 0
        %4389 = vmatpush.bf16.msra.mxu0 0
        %4390 = vmatpush.bf16.msra.mxu0 0
        %4391 = vmatpush.bf16.msra.mxu0 0
        %4392 = vmatpush.bf16.msra.mxu0 0
        %4393 = vmatpush.bf16.msra.mxu0 0
        %4394 = vmatpush.bf16.msra.mxu0 %v4327
        %4395 = vmatmul.bf16.gmra.mxu0 %v4312
        %v4396 = vpop.f32.mrf.mxu0
        %v4397 = vadd.f32 0.0, %v4396
        %v4398 = vpop.f32.mrf.mxu0
        %4399 = vdwg.mxu0
        %4400 = vmatpush.bf16.msra.mxu0 0
        %4401 = vmatpush.bf16.msra.mxu0 0
        %4402 = vmatpush.bf16.msra.mxu0 0
        %4403 = vmatpush.bf16.msra.mxu0 0
        %4404 = vmatpush.bf16.msra.mxu0 0
        %4405 = vmatpush.bf16.msra.mxu0 0
        %4406 = vmatpush.bf16.msra.mxu0 0
        %4407 = vmatpush.bf16.msra.mxu0 %v4330
        %4408 = vmatmul.bf16.gmra.mxu0 %v4312
        %v4409 = vpop.f32.mrf.mxu0
        %v4410 = vadd.f32 0.0, %v4409
        %v4411 = vpop.f32.mrf.mxu0
        %4412 = vdwg.mxu0
        %4413 = vmatpush.bf16.msra.mxu0 0
        %4414 = vmatpush.bf16.msra.mxu0 0
        %4415 = vmatpush.bf16.msra.mxu0 0
        %4416 = vmatpush.bf16.msra.mxu0 0
        %4417 = vmatpush.bf16.msra.mxu0 0
        %4418 = vmatpush.bf16.msra.mxu0 0
        %4419 = vmatpush.bf16.msra.mxu0 0
        %4420 = vmatpush.bf16.msra.mxu0 %v4333
        %4421 = vmatmul.bf16.gmra.mxu0 %v4312
        %v4422 = vpop.f32.mrf.mxu0
        %v4423 = vadd.f32 0.0, %v4422
        %v4424 = vpop.f32.mrf.mxu0
        %4425 = vdwg.mxu0
        %v4426 = vadd.f32 %v4279, %v4345
        %v4427 = vadd.f32 %v4280, %v4358
        %v4428 = vadd.f32 %v4281, %v4371
        %v4429 = vadd.f32 %v4282, %v4384
        %v4430 = vadd.f32 %v4283, %v4397
        %v4431 = vadd.f32 %v4284, %v4410
        %v4432 = vadd.f32 %v4285, %v4423
        %s4433 = scalar_lea.vmem %s2, 68
        %v4434 = vld [vmem:[%s4433] sm:$0xf]
        %4435 = vrot.lane.b32.xlu0 %v3304, 62
        %v4436 = vpop.permute.xlu0 %4435
        %4437 = vrot.lane.b32.xlu0 %v3305, 62
        %v4438 = vpop.permute.xlu0 %4437
        %4439 = vrot.lane.b32.xlu0 %v3306, 62
        %v4440 = vpop.permute.xlu0 %4439
        %4441 = vrot.lane.b32.xlu0 %v3307, 62
        %v4442 = vpop.permute.xlu0 %4441
        %4443 = vrot.lane.b32.xlu0 %v3308, 62
        %v4444 = vpop.permute.xlu0 %4443
        %4445 = vrot.lane.b32.xlu0 %v3309, 62
        %v4446 = vpop.permute.xlu0 %4445
        %4447 = vrot.lane.b32.xlu0 %v3310, 62
        %v4448 = vpop.permute.xlu0 %4447
        %4449 = vrot.lane.b32.xlu0 %v4140, 62
        %v4450 = vpop.permute.xlu0 %4449
        %v4451 = vsel %vm3115, %v4436, %v4438
        %v4452 = vsel %vm3115, %v4438, %v4440
        %v4453 = vsel %vm3115, %v4440, %v4442
        %v4454 = vsel %vm3115, %v4442, %v4444
        %v4455 = vsel %vm3115, %v4444, %v4446
        %v4456 = vsel %vm3115, %v4446, %v4448
        %v4457 = vsel %vm3115, %v4448, %v4450
        %v4459 = vsel %vm336, %v4434, 0
        %v4462 = vsel %vm340, %v4451, 0
        %v4465 = vsel %vm340, %v4452, 0
        %v4468 = vsel %vm340, %v4453, 0
        %v4471 = vsel %vm340, %v4454, 0
        %v4474 = vsel %vm340, %v4455, 0
        %v4477 = vsel %vm340, %v4456, 0
        %v4480 = vsel %vm340, %v4457, 0
        %4482 = vmatpush.bf16.msra.mxu0 0
        %4483 = vmatpush.bf16.msra.mxu0 0
        %4484 = vmatpush.bf16.msra.mxu0 0
        %4485 = vmatpush.bf16.msra.mxu0 0
        %4486 = vmatpush.bf16.msra.mxu0 0
        %4487 = vmatpush.bf16.msra.mxu0 0
        %4488 = vmatpush.bf16.msra.mxu0 0
        %4489 = vmatpush.bf16.msra.mxu0 %v4462
        %4490 = vmatmul.bf16.gmra.mxu0 %v4459
        %v4491 = vpop.f32.mrf.mxu0
        %v4492 = vadd.f32 0.0, %v4491
        %v4493 = vpop.f32.mrf.mxu0
        %4494 = vdwg.mxu0
        %4495 = vmatpush.bf16.msra.mxu0 0
        %4496 = vmatpush.bf16.msra.mxu0 0
        %4497 = vmatpush.bf16.msra.mxu0 0
        %4498 = vmatpush.bf16.msra.mxu0 0
        %4499 = vmatpush.bf16.msra.mxu0 0
        %4500 = vmatpush.bf16.msra.mxu0 0
        %4501 = vmatpush.bf16.msra.mxu0 0
        %4502 = vmatpush.bf16.msra.mxu0 %v4465
        %4503 = vmatmul.bf16.gmra.mxu0 %v4459
        %v4504 = vpop.f32.mrf.mxu0
        %v4505 = vadd.f32 0.0, %v4504
        %v4506 = vpop.f32.mrf.mxu0
        %4507 = vdwg.mxu0
        %4508 = vmatpush.bf16.msra.mxu0 0
        %4509 = vmatpush.bf16.msra.mxu0 0
        %4510 = vmatpush.bf16.msra.mxu0 0
        %4511 = vmatpush.bf16.msra.mxu0 0
        %4512 = vmatpush.bf16.msra.mxu0 0
        %4513 = vmatpush.bf16.msra.mxu0 0
        %4514 = vmatpush.bf16.msra.mxu0 0
        %4515 = vmatpush.bf16.msra.mxu0 %v4468
        %4516 = vmatmul.bf16.gmra.mxu0 %v4459
        %v4517 = vpop.f32.mrf.mxu0
        %v4518 = vadd.f32 0.0, %v4517
        %v4519 = vpop.f32.mrf.mxu0
        %4520 = vdwg.mxu0
        %4521 = vmatpush.bf16.msra.mxu0 0
        %4522 = vmatpush.bf16.msra.mxu0 0
        %4523 = vmatpush.bf16.msra.mxu0 0
        %4524 = vmatpush.bf16.msra.mxu0 0
        %4525 = vmatpush.bf16.msra.mxu0 0
        %4526 = vmatpush.bf16.msra.mxu0 0
        %4527 = vmatpush.bf16.msra.mxu0 0
        %4528 = vmatpush.bf16.msra.mxu0 %v4471
        %4529 = vmatmul.bf16.gmra.mxu0 %v4459
        %v4530 = vpop.f32.mrf.mxu0
        %v4531 = vadd.f32 0.0, %v4530
        %v4532 = vpop.f32.mrf.mxu0
        %4533 = vdwg.mxu0
        %4534 = vmatpush.bf16.msra.mxu0 0
        %4535 = vmatpush.bf16.msra.mxu0 0
        %4536 = vmatpush.bf16.msra.mxu0 0
        %4537 = vmatpush.bf16.msra.mxu0 0
        %4538 = vmatpush.bf16.msra.mxu0 0
        %4539 = vmatpush.bf16.msra.mxu0 0
        %4540 = vmatpush.bf16.msra.mxu0 0
        %4541 = vmatpush.bf16.msra.mxu0 %v4474
        %4542 = vmatmul.bf16.gmra.mxu0 %v4459
        %v4543 = vpop.f32.mrf.mxu0
        %v4544 = vadd.f32 0.0, %v4543
        %v4545 = vpop.f32.mrf.mxu0
        %4546 = vdwg.mxu0
        %4547 = vmatpush.bf16.msra.mxu0 0
        %4548 = vmatpush.bf16.msra.mxu0 0
        %4549 = vmatpush.bf16.msra.mxu0 0
        %4550 = vmatpush.bf16.msra.mxu0 0
        %4551 = vmatpush.bf16.msra.mxu0 0
        %4552 = vmatpush.bf16.msra.mxu0 0
        %4553 = vmatpush.bf16.msra.mxu0 0
        %4554 = vmatpush.bf16.msra.mxu0 %v4477
        %4555 = vmatmul.bf16.gmra.mxu0 %v4459
        %v4556 = vpop.f32.mrf.mxu0
        %v4557 = vadd.f32 0.0, %v4556
        %v4558 = vpop.f32.mrf.mxu0
        %4559 = vdwg.mxu0
        %4560 = vmatpush.bf16.msra.mxu0 0
        %4561 = vmatpush.bf16.msra.mxu0 0
        %4562 = vmatpush.bf16.msra.mxu0 0
        %4563 = vmatpush.bf16.msra.mxu0 0
        %4564 = vmatpush.bf16.msra.mxu0 0
        %4565 = vmatpush.bf16.msra.mxu0 0
        %4566 = vmatpush.bf16.msra.mxu0 0
        %4567 = vmatpush.bf16.msra.mxu0 %v4480
        %4568 = vmatmul.bf16.gmra.mxu0 %v4459
        %v4569 = vpop.f32.mrf.mxu0
        %v4570 = vadd.f32 0.0, %v4569
        %v4571 = vpop.f32.mrf.mxu0
        %4572 = vdwg.mxu0
        %v4573 = vadd.f32 %v4426, %v4492
        %v4574 = vadd.f32 %v4427, %v4505
        %v4575 = vadd.f32 %v4428, %v4518
        %v4576 = vadd.f32 %v4429, %v4531
        %v4577 = vadd.f32 %v4430, %v4544
        %v4578 = vadd.f32 %v4431, %v4557
        %v4579 = vadd.f32 %v4432, %v4570
        %s4580 = scalar_lea.vmem %s3, 16
        %v4581 = vld [vmem:[%s4580] sm:$0xff]
        %4583 = vset.pattern.permute.xlu0 0
        %4584 = vperm.xlu0 %4583, %v4581
        %v4585 = vpop.permute.xlu0 %4584
        %v4587 = vadd.f32 %v4573, %v4585
        %v4588 = vadd.f32 %v4574, %v4585
        %v4589 = vadd.f32 %v4575, %v4585
        %v4590 = vadd.f32 %v4576, %v4585
        %v4591 = vadd.f32 %v4577, %v4585
        %v4592 = vadd.f32 %v4578, %v4585
        %v4593 = vadd.f32 %v4579, %v4585
        %v4594 = vmax.f32 %v4587, 0.0
        %v4595 = vmax.f32 %v4588, 0.0
        %v4596 = vmax.f32 %v4589, 0.0
        %v4597 = vmax.f32 %v4590, 0.0
        %v4598 = vmax.f32 %v4591, 0.0
        %v4599 = vmax.f32 %v4592, 0.0
        %v4600 = vmax.f32 %v4593, 0.0
        %v4601 = vpack.c.bf16 %v4595, %v4594
        %v4602 = vpack.c.bf16 %v4597, %v4596
        %v4603 = vpack.c.bf16 %v4599, %v4598
        %v4604 = vpack.c.bf16 %v4600, %v4600
        %s4605 = scalar_lea.vmem %s2, 72
        %v4606 = vld [vmem:[%s4605] sm:$0xf]
        %s4607 = scalar_lea.vmem %s2, 76
        %v4608 = vld [vmem:[%s4607] sm:$0xf]
        %v4613 = vunpack.c.l.b16 %v4601
        %v4614 = vunpack.c.h.b16 %v4601
        %v4615 = vunpack.c.l.b16 %v4602
        %v4616 = vunpack.c.h.b16 %v4602
        %v4617 = vunpack.c.l.b16 %v4603
        %v4618 = vunpack.c.h.b16 %v4603
        %v4619 = vunpack.c.l.b16 %v4604
        %v4620 = vpack.c.b16 %v4613, %v4613
        %v4621 = vpack.c.b16 %v4614, %v4614
        %v4622 = vpack.c.b16 %v4615, %v4615
        %v4623 = vpack.c.b16 %v4616, %v4616
        %v4624 = vpack.c.b16 %v4617, %v4617
        %v4625 = vpack.c.b16 %v4618, %v4618
        %v4626 = vpack.c.b16 %v4619, %v4619
        %4627 = vrot.lane.b32.xlu0 %v4620, 127
        %v4628 = vpop.permute.xlu0 %4627
        %4629 = vrot.lane.b32.xlu0 %v4621, 127
        %v4630 = vpop.permute.xlu0 %4629
        %4631 = vrot.lane.b32.xlu0 %v4622, 127
        %v4632 = vpop.permute.xlu0 %4631
        %4633 = vrot.lane.b32.xlu0 %v4623, 127
        %v4634 = vpop.permute.xlu0 %4633
        %4635 = vrot.lane.b32.xlu0 %v4624, 127
        %v4636 = vpop.permute.xlu0 %4635
        %4637 = vrot.lane.b32.xlu0 %v4625, 127
        %v4638 = vpop.permute.xlu0 %4637
        %4639 = vrot.lane.b32.xlu0 %v4626, 127
        %v4640 = vpop.permute.xlu0 %4639
        %v4641 = vsel %vm638, %v4628, %v4630
        %v4642 = vsel %vm638, %v4630, %v4632
        %v4643 = vsel %vm638, %v4632, %v4634
        %v4644 = vsel %vm638, %v4634, %v4636
        %v4645 = vsel %vm638, %v4636, %v4638
        %v4646 = vsel %vm638, %v4638, %v4640
        %v4648 = vsel %vm336, %v4608, 0
        %v4651 = vsel %vm340, %v4641, 0
        %v4654 = vsel %vm340, %v4642, 0
        %v4657 = vsel %vm340, %v4643, 0
        %v4660 = vsel %vm340, %v4644, 0
        %v4663 = vsel %vm340, %v4645, 0
        %v4666 = vsel %vm340, %v4646, 0
        %v4669 = vsel %vm340, %v4640, 0
        %4671 = vmatpush.bf16.msra.mxu0 0
        %4672 = vmatpush.bf16.msra.mxu0 0
        %4673 = vmatpush.bf16.msra.mxu0 0
        %4674 = vmatpush.bf16.msra.mxu0 0
        %4675 = vmatpush.bf16.msra.mxu0 0
        %4676 = vmatpush.bf16.msra.mxu0 0
        %4677 = vmatpush.bf16.msra.mxu0 0
        %4678 = vmatpush.bf16.msra.mxu0 %v4651
        %4679 = vmatmul.bf16.gmra.mxu0 %v4648
        %v4680 = vpop.f32.mrf.mxu0
        %v4681 = vadd.f32 0.0, %v4680
        %v4682 = vpop.f32.mrf.mxu0
        %4683 = vdwg.mxu0
        %4684 = vmatpush.bf16.msra.mxu0 0
        %4685 = vmatpush.bf16.msra.mxu0 0
        %4686 = vmatpush.bf16.msra.mxu0 0
        %4687 = vmatpush.bf16.msra.mxu0 0
        %4688 = vmatpush.bf16.msra.mxu0 0
        %4689 = vmatpush.bf16.msra.mxu0 0
        %4690 = vmatpush.bf16.msra.mxu0 0
        %4691 = vmatpush.bf16.msra.mxu0 %v4654
        %4692 = vmatmul.bf16.gmra.mxu0 %v4648
        %v4693 = vpop.f32.mrf.mxu0
        %v4694 = vadd.f32 0.0, %v4693
        %v4695 = vpop.f32.mrf.mxu0
        %4696 = vdwg.mxu0
        %4697 = vmatpush.bf16.msra.mxu0 0
        %4698 = vmatpush.bf16.msra.mxu0 0
        %4699 = vmatpush.bf16.msra.mxu0 0
        %4700 = vmatpush.bf16.msra.mxu0 0
        %4701 = vmatpush.bf16.msra.mxu0 0
        %4702 = vmatpush.bf16.msra.mxu0 0
        %4703 = vmatpush.bf16.msra.mxu0 0
        %4704 = vmatpush.bf16.msra.mxu0 %v4657
        %4705 = vmatmul.bf16.gmra.mxu0 %v4648
        %v4706 = vpop.f32.mrf.mxu0
        %v4707 = vadd.f32 0.0, %v4706
        %v4708 = vpop.f32.mrf.mxu0
        %4709 = vdwg.mxu0
        %4710 = vmatpush.bf16.msra.mxu0 0
        %4711 = vmatpush.bf16.msra.mxu0 0
        %4712 = vmatpush.bf16.msra.mxu0 0
        %4713 = vmatpush.bf16.msra.mxu0 0
        %4714 = vmatpush.bf16.msra.mxu0 0
        %4715 = vmatpush.bf16.msra.mxu0 0
        %4716 = vmatpush.bf16.msra.mxu0 0
        %4717 = vmatpush.bf16.msra.mxu0 %v4660
        %4718 = vmatmul.bf16.gmra.mxu0 %v4648
        %v4719 = vpop.f32.mrf.mxu0
        %v4720 = vadd.f32 0.0, %v4719
        %v4721 = vpop.f32.mrf.mxu0
        %4722 = vdwg.mxu0
        %4723 = vmatpush.bf16.msra.mxu0 0
        %4724 = vmatpush.bf16.msra.mxu0 0
        %4725 = vmatpush.bf16.msra.mxu0 0
        %4726 = vmatpush.bf16.msra.mxu0 0
        %4727 = vmatpush.bf16.msra.mxu0 0
        %4728 = vmatpush.bf16.msra.mxu0 0
        %4729 = vmatpush.bf16.msra.mxu0 0
        %4730 = vmatpush.bf16.msra.mxu0 %v4663
        %4731 = vmatmul.bf16.gmra.mxu0 %v4648
        %v4732 = vpop.f32.mrf.mxu0
        %v4733 = vadd.f32 0.0, %v4732
        %v4734 = vpop.f32.mrf.mxu0
        %4735 = vdwg.mxu0
        %4736 = vmatpush.bf16.msra.mxu0 0
        %4737 = vmatpush.bf16.msra.mxu0 0
        %4738 = vmatpush.bf16.msra.mxu0 0
        %4739 = vmatpush.bf16.msra.mxu0 0
        %4740 = vmatpush.bf16.msra.mxu0 0
        %4741 = vmatpush.bf16.msra.mxu0 0
        %4742 = vmatpush.bf16.msra.mxu0 0
        %4743 = vmatpush.bf16.msra.mxu0 %v4666
        %4744 = vmatmul.bf16.gmra.mxu0 %v4648
        %v4745 = vpop.f32.mrf.mxu0
        %v4746 = vadd.f32 0.0, %v4745
        %v4747 = vpop.f32.mrf.mxu0
        %4748 = vdwg.mxu0
        %4749 = vmatpush.bf16.msra.mxu0 0
        %4750 = vmatpush.bf16.msra.mxu0 0
        %4751 = vmatpush.bf16.msra.mxu0 0
        %4752 = vmatpush.bf16.msra.mxu0 0
        %4753 = vmatpush.bf16.msra.mxu0 0
        %4754 = vmatpush.bf16.msra.mxu0 0
        %4755 = vmatpush.bf16.msra.mxu0 0
        %4756 = vmatpush.bf16.msra.mxu0 %v4669
        %4757 = vmatmul.bf16.gmra.mxu0 %v4648
        %v4758 = vpop.f32.mrf.mxu0
        %v4759 = vadd.f32 0.0, %v4758
        %v4760 = vpop.f32.mrf.mxu0
        %4761 = vdwg.mxu0
        %v4763 = vsel %vm336, %v4606, 0
        %v4766 = vsel %vm340, %v4620, 0
        %v4769 = vsel %vm340, %v4621, 0
        %v4772 = vsel %vm340, %v4622, 0
        %v4775 = vsel %vm340, %v4623, 0
        %v4778 = vsel %vm340, %v4624, 0
        %v4781 = vsel %vm340, %v4625, 0
        %v4784 = vsel %vm340, %v4626, 0
        %4786 = vmatpush.bf16.msra.mxu0 0
        %4787 = vmatpush.bf16.msra.mxu0 0
        %4788 = vmatpush.bf16.msra.mxu0 0
        %4789 = vmatpush.bf16.msra.mxu0 0
        %4790 = vmatpush.bf16.msra.mxu0 0
        %4791 = vmatpush.bf16.msra.mxu0 0
        %4792 = vmatpush.bf16.msra.mxu0 0
        %4793 = vmatpush.bf16.msra.mxu0 %v4766
        %4794 = vmatmul.bf16.gmra.mxu0 %v4763
        %v4795 = vpop.f32.mrf.mxu0
        %v4796 = vadd.f32 %v4681, %v4795
        %v4797 = vpop.f32.mrf.mxu0
        %4798 = vdwg.mxu0
        %4799 = vmatpush.bf16.msra.mxu0 0
        %4800 = vmatpush.bf16.msra.mxu0 0
        %4801 = vmatpush.bf16.msra.mxu0 0
        %4802 = vmatpush.bf16.msra.mxu0 0
        %4803 = vmatpush.bf16.msra.mxu0 0
        %4804 = vmatpush.bf16.msra.mxu0 0
        %4805 = vmatpush.bf16.msra.mxu0 0
        %4806 = vmatpush.bf16.msra.mxu0 %v4769
        %4807 = vmatmul.bf16.gmra.mxu0 %v4763
        %v4808 = vpop.f32.mrf.mxu0
        %v4809 = vadd.f32 %v4694, %v4808
        %v4810 = vpop.f32.mrf.mxu0
        %4811 = vdwg.mxu0
        %4812 = vmatpush.bf16.msra.mxu0 0
        %4813 = vmatpush.bf16.msra.mxu0 0
        %4814 = vmatpush.bf16.msra.mxu0 0
        %4815 = vmatpush.bf16.msra.mxu0 0
        %4816 = vmatpush.bf16.msra.mxu0 0
        %4817 = vmatpush.bf16.msra.mxu0 0
        %4818 = vmatpush.bf16.msra.mxu0 0
        %4819 = vmatpush.bf16.msra.mxu0 %v4772
        %4820 = vmatmul.bf16.gmra.mxu0 %v4763
        %v4821 = vpop.f32.mrf.mxu0
        %v4822 = vadd.f32 %v4707, %v4821
        %v4823 = vpop.f32.mrf.mxu0
        %4824 = vdwg.mxu0
        %4825 = vmatpush.bf16.msra.mxu0 0
        %4826 = vmatpush.bf16.msra.mxu0 0
        %4827 = vmatpush.bf16.msra.mxu0 0
        %4828 = vmatpush.bf16.msra.mxu0 0
        %4829 = vmatpush.bf16.msra.mxu0 0
        %4830 = vmatpush.bf16.msra.mxu0 0
        %4831 = vmatpush.bf16.msra.mxu0 0
        %4832 = vmatpush.bf16.msra.mxu0 %v4775
        %4833 = vmatmul.bf16.gmra.mxu0 %v4763
        %v4834 = vpop.f32.mrf.mxu0
        %v4835 = vadd.f32 %v4720, %v4834
        %v4836 = vpop.f32.mrf.mxu0
        %4837 = vdwg.mxu0
        %4838 = vmatpush.bf16.msra.mxu0 0
        %4839 = vmatpush.bf16.msra.mxu0 0
        %4840 = vmatpush.bf16.msra.mxu0 0
        %4841 = vmatpush.bf16.msra.mxu0 0
        %4842 = vmatpush.bf16.msra.mxu0 0
        %4843 = vmatpush.bf16.msra.mxu0 0
        %4844 = vmatpush.bf16.msra.mxu0 0
        %4845 = vmatpush.bf16.msra.mxu0 %v4778
        %4846 = vmatmul.bf16.gmra.mxu0 %v4763
        %v4847 = vpop.f32.mrf.mxu0
        %v4848 = vadd.f32 %v4733, %v4847
        %v4849 = vpop.f32.mrf.mxu0
        %4850 = vdwg.mxu0
        %4851 = vmatpush.bf16.msra.mxu0 0
        %4852 = vmatpush.bf16.msra.mxu0 0
        %4853 = vmatpush.bf16.msra.mxu0 0
        %4854 = vmatpush.bf16.msra.mxu0 0
        %4855 = vmatpush.bf16.msra.mxu0 0
        %4856 = vmatpush.bf16.msra.mxu0 0
        %4857 = vmatpush.bf16.msra.mxu0 0
        %4858 = vmatpush.bf16.msra.mxu0 %v4781
        %4859 = vmatmul.bf16.gmra.mxu0 %v4763
        %v4860 = vpop.f32.mrf.mxu0
        %v4861 = vadd.f32 %v4746, %v4860
        %v4862 = vpop.f32.mrf.mxu0
        %4863 = vdwg.mxu0
        %4864 = vmatpush.bf16.msra.mxu0 0
        %4865 = vmatpush.bf16.msra.mxu0 0
        %4866 = vmatpush.bf16.msra.mxu0 0
        %4867 = vmatpush.bf16.msra.mxu0 0
        %4868 = vmatpush.bf16.msra.mxu0 0
        %4869 = vmatpush.bf16.msra.mxu0 0
        %4870 = vmatpush.bf16.msra.mxu0 0
        %4871 = vmatpush.bf16.msra.mxu0 %v4784
        %4872 = vmatmul.bf16.gmra.mxu0 %v4763
        %v4873 = vpop.f32.mrf.mxu0
        %v4874 = vadd.f32 %v4759, %v4873
        %v4875 = vpop.f32.mrf.mxu0
        %4876 = vdwg.mxu0
        %s4877 = scalar_lea.vmem %s2, 80
        %v4878 = vld [vmem:[%s4877] sm:$0xf]
        %4879 = vrot.lane.b32.xlu0 %v4620, 126
        %v4880 = vpop.permute.xlu0 %4879
        %4881 = vrot.lane.b32.xlu0 %v4621, 126
        %v4882 = vpop.permute.xlu0 %4881
        %4883 = vrot.lane.b32.xlu0 %v4622, 126
        %v4884 = vpop.permute.xlu0 %4883
        %4885 = vrot.lane.b32.xlu0 %v4623, 126
        %v4886 = vpop.permute.xlu0 %4885
        %4887 = vrot.lane.b32.xlu0 %v4624, 126
        %v4888 = vpop.permute.xlu0 %4887
        %4889 = vrot.lane.b32.xlu0 %v4625, 126
        %v4890 = vpop.permute.xlu0 %4889
        %4891 = vrot.lane.b32.xlu0 %v4626, 126
        %v4892 = vpop.permute.xlu0 %4891
        %v4893 = vsel %vm2127, %v4880, %v4882
        %v4894 = vsel %vm2127, %v4882, %v4884
        %v4895 = vsel %vm2127, %v4884, %v4886
        %v4896 = vsel %vm2127, %v4886, %v4888
        %v4897 = vsel %vm2127, %v4888, %v4890
        %v4898 = vsel %vm2127, %v4890, %v4892
        %v4900 = vsel %vm336, %v4878, 0
        %v4903 = vsel %vm340, %v4893, 0
        %v4906 = vsel %vm340, %v4894, 0
        %v4909 = vsel %vm340, %v4895, 0
        %v4912 = vsel %vm340, %v4896, 0
        %v4915 = vsel %vm340, %v4897, 0
        %v4918 = vsel %vm340, %v4898, 0
        %v4921 = vsel %vm340, %v4892, 0
        %4923 = vmatpush.bf16.msra.mxu0 0
        %4924 = vmatpush.bf16.msra.mxu0 0
        %4925 = vmatpush.bf16.msra.mxu0 0
        %4926 = vmatpush.bf16.msra.mxu0 0
        %4927 = vmatpush.bf16.msra.mxu0 0
        %4928 = vmatpush.bf16.msra.mxu0 0
        %4929 = vmatpush.bf16.msra.mxu0 0
        %4930 = vmatpush.bf16.msra.mxu0 %v4903
        %4931 = vmatmul.bf16.gmra.mxu0 %v4900
        %v4932 = vpop.f32.mrf.mxu0
        %v4933 = vadd.f32 0.0, %v4932
        %v4934 = vpop.f32.mrf.mxu0
        %4935 = vdwg.mxu0
        %4936 = vmatpush.bf16.msra.mxu0 0
        %4937 = vmatpush.bf16.msra.mxu0 0
        %4938 = vmatpush.bf16.msra.mxu0 0
        %4939 = vmatpush.bf16.msra.mxu0 0
        %4940 = vmatpush.bf16.msra.mxu0 0
        %4941 = vmatpush.bf16.msra.mxu0 0
        %4942 = vmatpush.bf16.msra.mxu0 0
        %4943 = vmatpush.bf16.msra.mxu0 %v4906
        %4944 = vmatmul.bf16.gmra.mxu0 %v4900
        %v4945 = vpop.f32.mrf.mxu0
        %v4946 = vadd.f32 0.0, %v4945
        %v4947 = vpop.f32.mrf.mxu0
        %4948 = vdwg.mxu0
        %4949 = vmatpush.bf16.msra.mxu0 0
        %4950 = vmatpush.bf16.msra.mxu0 0
        %4951 = vmatpush.bf16.msra.mxu0 0
        %4952 = vmatpush.bf16.msra.mxu0 0
        %4953 = vmatpush.bf16.msra.mxu0 0
        %4954 = vmatpush.bf16.msra.mxu0 0
        %4955 = vmatpush.bf16.msra.mxu0 0
        %4956 = vmatpush.bf16.msra.mxu0 %v4909
        %4957 = vmatmul.bf16.gmra.mxu0 %v4900
        %v4958 = vpop.f32.mrf.mxu0
        %v4959 = vadd.f32 0.0, %v4958
        %v4960 = vpop.f32.mrf.mxu0
        %4961 = vdwg.mxu0
        %4962 = vmatpush.bf16.msra.mxu0 0
        %4963 = vmatpush.bf16.msra.mxu0 0
        %4964 = vmatpush.bf16.msra.mxu0 0
        %4965 = vmatpush.bf16.msra.mxu0 0
        %4966 = vmatpush.bf16.msra.mxu0 0
        %4967 = vmatpush.bf16.msra.mxu0 0
        %4968 = vmatpush.bf16.msra.mxu0 0
        %4969 = vmatpush.bf16.msra.mxu0 %v4912
        %4970 = vmatmul.bf16.gmra.mxu0 %v4900
        %v4971 = vpop.f32.mrf.mxu0
        %v4972 = vadd.f32 0.0, %v4971
        %v4973 = vpop.f32.mrf.mxu0
        %4974 = vdwg.mxu0
        %4975 = vmatpush.bf16.msra.mxu0 0
        %4976 = vmatpush.bf16.msra.mxu0 0
        %4977 = vmatpush.bf16.msra.mxu0 0
        %4978 = vmatpush.bf16.msra.mxu0 0
        %4979 = vmatpush.bf16.msra.mxu0 0
        %4980 = vmatpush.bf16.msra.mxu0 0
        %4981 = vmatpush.bf16.msra.mxu0 0
        %4982 = vmatpush.bf16.msra.mxu0 %v4915
        %4983 = vmatmul.bf16.gmra.mxu0 %v4900
        %v4984 = vpop.f32.mrf.mxu0
        %v4985 = vadd.f32 0.0, %v4984
        %v4986 = vpop.f32.mrf.mxu0
        %4987 = vdwg.mxu0
        %4988 = vmatpush.bf16.msra.mxu0 0
        %4989 = vmatpush.bf16.msra.mxu0 0
        %4990 = vmatpush.bf16.msra.mxu0 0
        %4991 = vmatpush.bf16.msra.mxu0 0
        %4992 = vmatpush.bf16.msra.mxu0 0
        %4993 = vmatpush.bf16.msra.mxu0 0
        %4994 = vmatpush.bf16.msra.mxu0 0
        %4995 = vmatpush.bf16.msra.mxu0 %v4918
        %4996 = vmatmul.bf16.gmra.mxu0 %v4900
        %v4997 = vpop.f32.mrf.mxu0
        %v4998 = vadd.f32 0.0, %v4997
        %v4999 = vpop.f32.mrf.mxu0
        %5000 = vdwg.mxu0
        %5001 = vmatpush.bf16.msra.mxu0 0
        %5002 = vmatpush.bf16.msra.mxu0 0
        %5003 = vmatpush.bf16.msra.mxu0 0
        %5004 = vmatpush.bf16.msra.mxu0 0
        %5005 = vmatpush.bf16.msra.mxu0 0
        %5006 = vmatpush.bf16.msra.mxu0 0
        %5007 = vmatpush.bf16.msra.mxu0 0
        %5008 = vmatpush.bf16.msra.mxu0 %v4921
        %5009 = vmatmul.bf16.gmra.mxu0 %v4900
        %v5010 = vpop.f32.mrf.mxu0
        %v5011 = vadd.f32 0.0, %v5010
        %v5012 = vpop.f32.mrf.mxu0
        %5013 = vdwg.mxu0
        %v5014 = vadd.f32 %v4796, %v4933
        %v5015 = vadd.f32 %v4809, %v4946
        %v5016 = vadd.f32 %v4822, %v4959
        %v5017 = vadd.f32 %v4835, %v4972
        %v5018 = vadd.f32 %v4848, %v4985
        %v5019 = vadd.f32 %v4861, %v4998
        %v5020 = vadd.f32 %v4874, %v5011
        %s5021 = scalar_lea.vmem %s2, 84
        %v5022 = vld [vmem:[%s5021] sm:$0xf]
        %5023 = vrot.lane.b32.xlu0 %v4620, 96
        %v5024 = vpop.permute.xlu0 %5023
        %5025 = vrot.lane.b32.xlu0 %v4621, 96
        %v5026 = vpop.permute.xlu0 %5025
        %5027 = vrot.lane.b32.xlu0 %v4622, 96
        %v5028 = vpop.permute.xlu0 %5027
        %5029 = vrot.lane.b32.xlu0 %v4623, 96
        %v5030 = vpop.permute.xlu0 %5029
        %5031 = vrot.lane.b32.xlu0 %v4624, 96
        %v5032 = vpop.permute.xlu0 %5031
        %5033 = vrot.lane.b32.xlu0 %v4625, 96
        %v5034 = vpop.permute.xlu0 %5033
        %5035 = vrot.lane.b32.xlu0 %v4626, 96
        %v5036 = vpop.permute.xlu0 %5035
        %v5037 = vsel %vm1299, %v5024, %v5026
        %v5038 = vsel %vm1299, %v5026, %v5028
        %v5039 = vsel %vm1299, %v5028, %v5030
        %v5040 = vsel %vm1299, %v5030, %v5032
        %v5041 = vsel %vm1299, %v5032, %v5034
        %v5042 = vsel %vm1299, %v5034, %v5036
        %v5044 = vsel %vm336, %v5022, 0
        %v5047 = vsel %vm340, %v5037, 0
        %v5050 = vsel %vm340, %v5038, 0
        %v5053 = vsel %vm340, %v5039, 0
        %v5056 = vsel %vm340, %v5040, 0
        %v5059 = vsel %vm340, %v5041, 0
        %v5062 = vsel %vm340, %v5042, 0
        %v5065 = vsel %vm340, %v5036, 0
        %5067 = vmatpush.bf16.msra.mxu0 0
        %5068 = vmatpush.bf16.msra.mxu0 0
        %5069 = vmatpush.bf16.msra.mxu0 0
        %5070 = vmatpush.bf16.msra.mxu0 0
        %5071 = vmatpush.bf16.msra.mxu0 0
        %5072 = vmatpush.bf16.msra.mxu0 0
        %5073 = vmatpush.bf16.msra.mxu0 0
        %5074 = vmatpush.bf16.msra.mxu0 %v5047
        %5075 = vmatmul.bf16.gmra.mxu0 %v5044
        %v5076 = vpop.f32.mrf.mxu0
        %v5077 = vadd.f32 0.0, %v5076
        %v5078 = vpop.f32.mrf.mxu0
        %5079 = vdwg.mxu0
        %5080 = vmatpush.bf16.msra.mxu0 0
        %5081 = vmatpush.bf16.msra.mxu0 0
        %5082 = vmatpush.bf16.msra.mxu0 0
        %5083 = vmatpush.bf16.msra.mxu0 0
        %5084 = vmatpush.bf16.msra.mxu0 0
        %5085 = vmatpush.bf16.msra.mxu0 0
        %5086 = vmatpush.bf16.msra.mxu0 0
        %5087 = vmatpush.bf16.msra.mxu0 %v5050
        %5088 = vmatmul.bf16.gmra.mxu0 %v5044
        %v5089 = vpop.f32.mrf.mxu0
        %v5090 = vadd.f32 0.0, %v5089
        %v5091 = vpop.f32.mrf.mxu0
        %5092 = vdwg.mxu0
        %5093 = vmatpush.bf16.msra.mxu0 0
        %5094 = vmatpush.bf16.msra.mxu0 0
        %5095 = vmatpush.bf16.msra.mxu0 0
        %5096 = vmatpush.bf16.msra.mxu0 0
        %5097 = vmatpush.bf16.msra.mxu0 0
        %5098 = vmatpush.bf16.msra.mxu0 0
        %5099 = vmatpush.bf16.msra.mxu0 0
        %5100 = vmatpush.bf16.msra.mxu0 %v5053
        %5101 = vmatmul.bf16.gmra.mxu0 %v5044
        %v5102 = vpop.f32.mrf.mxu0
        %v5103 = vadd.f32 0.0, %v5102
        %v5104 = vpop.f32.mrf.mxu0
        %5105 = vdwg.mxu0
        %5106 = vmatpush.bf16.msra.mxu0 0
        %5107 = vmatpush.bf16.msra.mxu0 0
        %5108 = vmatpush.bf16.msra.mxu0 0
        %5109 = vmatpush.bf16.msra.mxu0 0
        %5110 = vmatpush.bf16.msra.mxu0 0
        %5111 = vmatpush.bf16.msra.mxu0 0
        %5112 = vmatpush.bf16.msra.mxu0 0
        %5113 = vmatpush.bf16.msra.mxu0 %v5056
        %5114 = vmatmul.bf16.gmra.mxu0 %v5044
        %v5115 = vpop.f32.mrf.mxu0
        %v5116 = vadd.f32 0.0, %v5115
        %v5117 = vpop.f32.mrf.mxu0
        %5118 = vdwg.mxu0
        %5119 = vmatpush.bf16.msra.mxu0 0
        %5120 = vmatpush.bf16.msra.mxu0 0
        %5121 = vmatpush.bf16.msra.mxu0 0
        %5122 = vmatpush.bf16.msra.mxu0 0
        %5123 = vmatpush.bf16.msra.mxu0 0
        %5124 = vmatpush.bf16.msra.mxu0 0
        %5125 = vmatpush.bf16.msra.mxu0 0
        %5126 = vmatpush.bf16.msra.mxu0 %v5059
        %5127 = vmatmul.bf16.gmra.mxu0 %v5044
        %v5128 = vpop.f32.mrf.mxu0
        %v5129 = vadd.f32 0.0, %v5128
        %v5130 = vpop.f32.mrf.mxu0
        %5131 = vdwg.mxu0
        %5132 = vmatpush.bf16.msra.mxu0 0
        %5133 = vmatpush.bf16.msra.mxu0 0
        %5134 = vmatpush.bf16.msra.mxu0 0
        %5135 = vmatpush.bf16.msra.mxu0 0
        %5136 = vmatpush.bf16.msra.mxu0 0
        %5137 = vmatpush.bf16.msra.mxu0 0
        %5138 = vmatpush.bf16.msra.mxu0 0
        %5139 = vmatpush.bf16.msra.mxu0 %v5062
        %5140 = vmatmul.bf16.gmra.mxu0 %v5044
        %v5141 = vpop.f32.mrf.mxu0
        %v5142 = vadd.f32 0.0, %v5141
        %v5143 = vpop.f32.mrf.mxu0
        %5144 = vdwg.mxu0
        %5145 = vmatpush.bf16.msra.mxu0 0
        %5146 = vmatpush.bf16.msra.mxu0 0
        %5147 = vmatpush.bf16.msra.mxu0 0
        %5148 = vmatpush.bf16.msra.mxu0 0
        %5149 = vmatpush.bf16.msra.mxu0 0
        %5150 = vmatpush.bf16.msra.mxu0 0
        %5151 = vmatpush.bf16.msra.mxu0 0
        %5152 = vmatpush.bf16.msra.mxu0 %v5065
        %5153 = vmatmul.bf16.gmra.mxu0 %v5044
        %v5154 = vpop.f32.mrf.mxu0
        %v5155 = vadd.f32 0.0, %v5154
        %v5156 = vpop.f32.mrf.mxu0
        %5157 = vdwg.mxu0
        %v5158 = vadd.f32 %v5014, %v5077
        %v5159 = vadd.f32 %v5015, %v5090
        %v5160 = vadd.f32 %v5016, %v5103
        %v5161 = vadd.f32 %v5017, %v5116
        %v5162 = vadd.f32 %v5018, %v5129
        %v5163 = vadd.f32 %v5019, %v5142
        %v5164 = vadd.f32 %v5020, %v5155
        %s5165 = scalar_lea.vmem %s2, 88
        %v5166 = vld [vmem:[%s5165] sm:$0xf]
        %5167 = vrot.lane.b32.xlu0 %v4620, 95
        %v5168 = vpop.permute.xlu0 %5167
        %5169 = vrot.lane.b32.xlu0 %v4621, 95
        %v5170 = vpop.permute.xlu0 %5169
        %5171 = vrot.lane.b32.xlu0 %v4622, 95
        %v5172 = vpop.permute.xlu0 %5171
        %5173 = vrot.lane.b32.xlu0 %v4623, 95
        %v5174 = vpop.permute.xlu0 %5173
        %5175 = vrot.lane.b32.xlu0 %v4624, 95
        %v5176 = vpop.permute.xlu0 %5175
        %5177 = vrot.lane.b32.xlu0 %v4625, 95
        %v5178 = vpop.permute.xlu0 %5177
        %5179 = vrot.lane.b32.xlu0 %v4626, 95
        %v5180 = vpop.permute.xlu0 %5179
        %v5181 = vsel %vm1628, %v5168, %v5170
        %v5182 = vsel %vm1628, %v5170, %v5172
        %v5183 = vsel %vm1628, %v5172, %v5174
        %v5184 = vsel %vm1628, %v5174, %v5176
        %v5185 = vsel %vm1628, %v5176, %v5178
        %v5186 = vsel %vm1628, %v5178, %v5180
        %v5188 = vsel %vm336, %v5166, 0
        %v5191 = vsel %vm340, %v5181, 0
        %v5194 = vsel %vm340, %v5182, 0
        %v5197 = vsel %vm340, %v5183, 0
        %v5200 = vsel %vm340, %v5184, 0
        %v5203 = vsel %vm340, %v5185, 0
        %v5206 = vsel %vm340, %v5186, 0
        %v5209 = vsel %vm340, %v5180, 0
        %5211 = vmatpush.bf16.msra.mxu0 0
        %5212 = vmatpush.bf16.msra.mxu0 0
        %5213 = vmatpush.bf16.msra.mxu0 0
        %5214 = vmatpush.bf16.msra.mxu0 0
        %5215 = vmatpush.bf16.msra.mxu0 0
        %5216 = vmatpush.bf16.msra.mxu0 0
        %5217 = vmatpush.bf16.msra.mxu0 0
        %5218 = vmatpush.bf16.msra.mxu0 %v5191
        %5219 = vmatmul.bf16.gmra.mxu0 %v5188
        %v5220 = vpop.f32.mrf.mxu0
        %v5221 = vadd.f32 0.0, %v5220
        %v5222 = vpop.f32.mrf.mxu0
        %5223 = vdwg.mxu0
        %5224 = vmatpush.bf16.msra.mxu0 0
        %5225 = vmatpush.bf16.msra.mxu0 0
        %5226 = vmatpush.bf16.msra.mxu0 0
        %5227 = vmatpush.bf16.msra.mxu0 0
        %5228 = vmatpush.bf16.msra.mxu0 0
        %5229 = vmatpush.bf16.msra.mxu0 0
        %5230 = vmatpush.bf16.msra.mxu0 0
        %5231 = vmatpush.bf16.msra.mxu0 %v5194
        %5232 = vmatmul.bf16.gmra.mxu0 %v5188
        %v5233 = vpop.f32.mrf.mxu0
        %v5234 = vadd.f32 0.0, %v5233
        %v5235 = vpop.f32.mrf.mxu0
        %5236 = vdwg.mxu0
        %5237 = vmatpush.bf16.msra.mxu0 0
        %5238 = vmatpush.bf16.msra.mxu0 0
        %5239 = vmatpush.bf16.msra.mxu0 0
        %5240 = vmatpush.bf16.msra.mxu0 0
        %5241 = vmatpush.bf16.msra.mxu0 0
        %5242 = vmatpush.bf16.msra.mxu0 0
        %5243 = vmatpush.bf16.msra.mxu0 0
        %5244 = vmatpush.bf16.msra.mxu0 %v5197
        %5245 = vmatmul.bf16.gmra.mxu0 %v5188
        %v5246 = vpop.f32.mrf.mxu0
        %v5247 = vadd.f32 0.0, %v5246
        %v5248 = vpop.f32.mrf.mxu0
        %5249 = vdwg.mxu0
        %5250 = vmatpush.bf16.msra.mxu0 0
        %5251 = vmatpush.bf16.msra.mxu0 0
        %5252 = vmatpush.bf16.msra.mxu0 0
        %5253 = vmatpush.bf16.msra.mxu0 0
        %5254 = vmatpush.bf16.msra.mxu0 0
        %5255 = vmatpush.bf16.msra.mxu0 0
        %5256 = vmatpush.bf16.msra.mxu0 0
        %5257 = vmatpush.bf16.msra.mxu0 %v5200
        %5258 = vmatmul.bf16.gmra.mxu0 %v5188
        %v5259 = vpop.f32.mrf.mxu0
        %v5260 = vadd.f32 0.0, %v5259
        %v5261 = vpop.f32.mrf.mxu0
        %5262 = vdwg.mxu0
        %5263 = vmatpush.bf16.msra.mxu0 0
        %5264 = vmatpush.bf16.msra.mxu0 0
        %5265 = vmatpush.bf16.msra.mxu0 0
        %5266 = vmatpush.bf16.msra.mxu0 0
        %5267 = vmatpush.bf16.msra.mxu0 0
        %5268 = vmatpush.bf16.msra.mxu0 0
        %5269 = vmatpush.bf16.msra.mxu0 0
        %5270 = vmatpush.bf16.msra.mxu0 %v5203
        %5271 = vmatmul.bf16.gmra.mxu0 %v5188
        %v5272 = vpop.f32.mrf.mxu0
        %v5273 = vadd.f32 0.0, %v5272
        %v5274 = vpop.f32.mrf.mxu0
        %5275 = vdwg.mxu0
        %5276 = vmatpush.bf16.msra.mxu0 0
        %5277 = vmatpush.bf16.msra.mxu0 0
        %5278 = vmatpush.bf16.msra.mxu0 0
        %5279 = vmatpush.bf16.msra.mxu0 0
        %5280 = vmatpush.bf16.msra.mxu0 0
        %5281 = vmatpush.bf16.msra.mxu0 0
        %5282 = vmatpush.bf16.msra.mxu0 0
        %5283 = vmatpush.bf16.msra.mxu0 %v5206
        %5284 = vmatmul.bf16.gmra.mxu0 %v5188
        %v5285 = vpop.f32.mrf.mxu0
        %v5286 = vadd.f32 0.0, %v5285
        %v5287 = vpop.f32.mrf.mxu0
        %5288 = vdwg.mxu0
        %5289 = vmatpush.bf16.msra.mxu0 0
        %5290 = vmatpush.bf16.msra.mxu0 0
        %5291 = vmatpush.bf16.msra.mxu0 0
        %5292 = vmatpush.bf16.msra.mxu0 0
        %5293 = vmatpush.bf16.msra.mxu0 0
        %5294 = vmatpush.bf16.msra.mxu0 0
        %5295 = vmatpush.bf16.msra.mxu0 0
        %5296 = vmatpush.bf16.msra.mxu0 %v5209
        %5297 = vmatmul.bf16.gmra.mxu0 %v5188
        %v5298 = vpop.f32.mrf.mxu0
        %v5299 = vadd.f32 0.0, %v5298
        %v5300 = vpop.f32.mrf.mxu0
        %5301 = vdwg.mxu0
        %v5302 = vadd.f32 %v5158, %v5221
        %v5303 = vadd.f32 %v5159, %v5234
        %v5304 = vadd.f32 %v5160, %v5247
        %v5305 = vadd.f32 %v5161, %v5260
        %v5306 = vadd.f32 %v5162, %v5273
        %v5307 = vadd.f32 %v5163, %v5286
        %v5308 = vadd.f32 %v5164, %v5299
        %s5309 = scalar_lea.vmem %s2, 92
        %v5310 = vld [vmem:[%s5309] sm:$0xf]
        %5311 = vrot.lane.b32.xlu0 %v4620, 94
        %v5312 = vpop.permute.xlu0 %5311
        %5313 = vrot.lane.b32.xlu0 %v4621, 94
        %v5314 = vpop.permute.xlu0 %5313
        %5315 = vrot.lane.b32.xlu0 %v4622, 94
        %v5316 = vpop.permute.xlu0 %5315
        %5317 = vrot.lane.b32.xlu0 %v4623, 94
        %v5318 = vpop.permute.xlu0 %5317
        %5319 = vrot.lane.b32.xlu0 %v4624, 94
        %v5320 = vpop.permute.xlu0 %5319
        %5321 = vrot.lane.b32.xlu0 %v4625, 94
        %v5322 = vpop.permute.xlu0 %5321
        %5323 = vrot.lane.b32.xlu0 %v4626, 94
        %v5324 = vpop.permute.xlu0 %5323
        %v5325 = vsel %vm2620, %v5312, %v5314
        %v5326 = vsel %vm2620, %v5314, %v5316
        %v5327 = vsel %vm2620, %v5316, %v5318
        %v5328 = vsel %vm2620, %v5318, %v5320
        %v5329 = vsel %vm2620, %v5320, %v5322
        %v5330 = vsel %vm2620, %v5322, %v5324
        %v5332 = vsel %vm336, %v5310, 0
        %v5335 = vsel %vm340, %v5325, 0
        %v5338 = vsel %vm340, %v5326, 0
        %v5341 = vsel %vm340, %v5327, 0
        %v5344 = vsel %vm340, %v5328, 0
        %v5347 = vsel %vm340, %v5329, 0
        %v5350 = vsel %vm340, %v5330, 0
        %v5353 = vsel %vm340, %v5324, 0
        %5355 = vmatpush.bf16.msra.mxu0 0
        %5356 = vmatpush.bf16.msra.mxu0 0
        %5357 = vmatpush.bf16.msra.mxu0 0
        %5358 = vmatpush.bf16.msra.mxu0 0
        %5359 = vmatpush.bf16.msra.mxu0 0
        %5360 = vmatpush.bf16.msra.mxu0 0
        %5361 = vmatpush.bf16.msra.mxu0 0
        %5362 = vmatpush.bf16.msra.mxu0 %v5335
        %5363 = vmatmul.bf16.gmra.mxu0 %v5332
        %v5364 = vpop.f32.mrf.mxu0
        %v5365 = vadd.f32 0.0, %v5364
        %v5366 = vpop.f32.mrf.mxu0
        %5367 = vdwg.mxu0
        %5368 = vmatpush.bf16.msra.mxu0 0
        %5369 = vmatpush.bf16.msra.mxu0 0
        %5370 = vmatpush.bf16.msra.mxu0 0
        %5371 = vmatpush.bf16.msra.mxu0 0
        %5372 = vmatpush.bf16.msra.mxu0 0
        %5373 = vmatpush.bf16.msra.mxu0 0
        %5374 = vmatpush.bf16.msra.mxu0 0
        %5375 = vmatpush.bf16.msra.mxu0 %v5338
        %5376 = vmatmul.bf16.gmra.mxu0 %v5332
        %v5377 = vpop.f32.mrf.mxu0
        %v5378 = vadd.f32 0.0, %v5377
        %v5379 = vpop.f32.mrf.mxu0
        %5380 = vdwg.mxu0
        %5381 = vmatpush.bf16.msra.mxu0 0
        %5382 = vmatpush.bf16.msra.mxu0 0
        %5383 = vmatpush.bf16.msra.mxu0 0
        %5384 = vmatpush.bf16.msra.mxu0 0
        %5385 = vmatpush.bf16.msra.mxu0 0
        %5386 = vmatpush.bf16.msra.mxu0 0
        %5387 = vmatpush.bf16.msra.mxu0 0
        %5388 = vmatpush.bf16.msra.mxu0 %v5341
        %5389 = vmatmul.bf16.gmra.mxu0 %v5332
        %v5390 = vpop.f32.mrf.mxu0
        %v5391 = vadd.f32 0.0, %v5390
        %v5392 = vpop.f32.mrf.mxu0
        %5393 = vdwg.mxu0
        %5394 = vmatpush.bf16.msra.mxu0 0
        %5395 = vmatpush.bf16.msra.mxu0 0
        %5396 = vmatpush.bf16.msra.mxu0 0
        %5397 = vmatpush.bf16.msra.mxu0 0
        %5398 = vmatpush.bf16.msra.mxu0 0
        %5399 = vmatpush.bf16.msra.mxu0 0
        %5400 = vmatpush.bf16.msra.mxu0 0
        %5401 = vmatpush.bf16.msra.mxu0 %v5344
        %5402 = vmatmul.bf16.gmra.mxu0 %v5332
        %v5403 = vpop.f32.mrf.mxu0
        %v5404 = vadd.f32 0.0, %v5403
        %v5405 = vpop.f32.mrf.mxu0
        %5406 = vdwg.mxu0
        %5407 = vmatpush.bf16.msra.mxu0 0
        %5408 = vmatpush.bf16.msra.mxu0 0
        %5409 = vmatpush.bf16.msra.mxu0 0
        %5410 = vmatpush.bf16.msra.mxu0 0
        %5411 = vmatpush.bf16.msra.mxu0 0
        %5412 = vmatpush.bf16.msra.mxu0 0
        %5413 = vmatpush.bf16.msra.mxu0 0
        %5414 = vmatpush.bf16.msra.mxu0 %v5347
        %5415 = vmatmul.bf16.gmra.mxu0 %v5332
        %v5416 = vpop.f32.mrf.mxu0
        %v5417 = vadd.f32 0.0, %v5416
        %v5418 = vpop.f32.mrf.mxu0
        %5419 = vdwg.mxu0
        %5420 = vmatpush.bf16.msra.mxu0 0
        %5421 = vmatpush.bf16.msra.mxu0 0
        %5422 = vmatpush.bf16.msra.mxu0 0
        %5423 = vmatpush.bf16.msra.mxu0 0
        %5424 = vmatpush.bf16.msra.mxu0 0
        %5425 = vmatpush.bf16.msra.mxu0 0
        %5426 = vmatpush.bf16.msra.mxu0 0
        %5427 = vmatpush.bf16.msra.mxu0 %v5350
        %5428 = vmatmul.bf16.gmra.mxu0 %v5332
        %v5429 = vpop.f32.mrf.mxu0
        %v5430 = vadd.f32 0.0, %v5429
        %v5431 = vpop.f32.mrf.mxu0
        %5432 = vdwg.mxu0
        %5433 = vmatpush.bf16.msra.mxu0 0
        %5434 = vmatpush.bf16.msra.mxu0 0
        %5435 = vmatpush.bf16.msra.mxu0 0
        %5436 = vmatpush.bf16.msra.mxu0 0
        %5437 = vmatpush.bf16.msra.mxu0 0
        %5438 = vmatpush.bf16.msra.mxu0 0
        %5439 = vmatpush.bf16.msra.mxu0 0
        %5440 = vmatpush.bf16.msra.mxu0 %v5353
        %5441 = vmatmul.bf16.gmra.mxu0 %v5332
        %v5442 = vpop.f32.mrf.mxu0
        %v5443 = vadd.f32 0.0, %v5442
        %v5444 = vpop.f32.mrf.mxu0
        %5445 = vdwg.mxu0
        %v5446 = vadd.f32 %v5302, %v5365
        %v5447 = vadd.f32 %v5303, %v5378
        %v5448 = vadd.f32 %v5304, %v5391
        %v5449 = vadd.f32 %v5305, %v5404
        %v5450 = vadd.f32 %v5306, %v5417
        %v5451 = vadd.f32 %v5307, %v5430
        %v5452 = vadd.f32 %v5308, %v5443
        %s5453 = scalar_lea.vmem %s2, 96
        %v5454 = vld [vmem:[%s5453] sm:$0xf]
        %5455 = vrot.lane.b32.xlu0 %v4620, 64
        %v5456 = vpop.permute.xlu0 %5455
        %5457 = vrot.lane.b32.xlu0 %v4621, 64
        %v5458 = vpop.permute.xlu0 %5457
        %5459 = vrot.lane.b32.xlu0 %v4622, 64
        %v5460 = vpop.permute.xlu0 %5459
        %5461 = vrot.lane.b32.xlu0 %v4623, 64
        %v5462 = vpop.permute.xlu0 %5461
        %5463 = vrot.lane.b32.xlu0 %v4624, 64
        %v5464 = vpop.permute.xlu0 %5463
        %5465 = vrot.lane.b32.xlu0 %v4625, 64
        %v5466 = vpop.permute.xlu0 %5465
        %5467 = vrot.lane.b32.xlu0 %v4626, 64
        %v5468 = vpop.permute.xlu0 %5467
        %v5469 = vsel %vm2785, %v5456, %v5458
        %v5470 = vsel %vm2785, %v5458, %v5460
        %v5471 = vsel %vm2785, %v5460, %v5462
        %v5472 = vsel %vm2785, %v5462, %v5464
        %v5473 = vsel %vm2785, %v5464, %v5466
        %v5474 = vsel %vm2785, %v5466, %v5468
        %v5476 = vsel %vm336, %v5454, 0
        %v5479 = vsel %vm340, %v5469, 0
        %v5482 = vsel %vm340, %v5470, 0
        %v5485 = vsel %vm340, %v5471, 0
        %v5488 = vsel %vm340, %v5472, 0
        %v5491 = vsel %vm340, %v5473, 0
        %v5494 = vsel %vm340, %v5474, 0
        %v5497 = vsel %vm340, %v5468, 0
        %5499 = vmatpush.bf16.msra.mxu0 0
        %5500 = vmatpush.bf16.msra.mxu0 0
        %5501 = vmatpush.bf16.msra.mxu0 0
        %5502 = vmatpush.bf16.msra.mxu0 0
        %5503 = vmatpush.bf16.msra.mxu0 0
        %5504 = vmatpush.bf16.msra.mxu0 0
        %5505 = vmatpush.bf16.msra.mxu0 0
        %5506 = vmatpush.bf16.msra.mxu0 %v5479
        %5507 = vmatmul.bf16.gmra.mxu0 %v5476
        %v5508 = vpop.f32.mrf.mxu0
        %v5509 = vadd.f32 0.0, %v5508
        %v5510 = vpop.f32.mrf.mxu0
        %5511 = vdwg.mxu0
        %5512 = vmatpush.bf16.msra.mxu0 0
        %5513 = vmatpush.bf16.msra.mxu0 0
        %5514 = vmatpush.bf16.msra.mxu0 0
        %5515 = vmatpush.bf16.msra.mxu0 0
        %5516 = vmatpush.bf16.msra.mxu0 0
        %5517 = vmatpush.bf16.msra.mxu0 0
        %5518 = vmatpush.bf16.msra.mxu0 0
        %5519 = vmatpush.bf16.msra.mxu0 %v5482
        %5520 = vmatmul.bf16.gmra.mxu0 %v5476
        %v5521 = vpop.f32.mrf.mxu0
        %v5522 = vadd.f32 0.0, %v5521
        %v5523 = vpop.f32.mrf.mxu0
        %5524 = vdwg.mxu0
        %5525 = vmatpush.bf16.msra.mxu0 0
        %5526 = vmatpush.bf16.msra.mxu0 0
        %5527 = vmatpush.bf16.msra.mxu0 0
        %5528 = vmatpush.bf16.msra.mxu0 0
        %5529 = vmatpush.bf16.msra.mxu0 0
        %5530 = vmatpush.bf16.msra.mxu0 0
        %5531 = vmatpush.bf16.msra.mxu0 0
        %5532 = vmatpush.bf16.msra.mxu0 %v5485
        %5533 = vmatmul.bf16.gmra.mxu0 %v5476
        %v5534 = vpop.f32.mrf.mxu0
        %v5535 = vadd.f32 0.0, %v5534
        %v5536 = vpop.f32.mrf.mxu0
        %5537 = vdwg.mxu0
        %5538 = vmatpush.bf16.msra.mxu0 0
        %5539 = vmatpush.bf16.msra.mxu0 0
        %5540 = vmatpush.bf16.msra.mxu0 0
        %5541 = vmatpush.bf16.msra.mxu0 0
        %5542 = vmatpush.bf16.msra.mxu0 0
        %5543 = vmatpush.bf16.msra.mxu0 0
        %5544 = vmatpush.bf16.msra.mxu0 0
        %5545 = vmatpush.bf16.msra.mxu0 %v5488
        %5546 = vmatmul.bf16.gmra.mxu0 %v5476
        %v5547 = vpop.f32.mrf.mxu0
        %v5548 = vadd.f32 0.0, %v5547
        %v5549 = vpop.f32.mrf.mxu0
        %5550 = vdwg.mxu0
        %5551 = vmatpush.bf16.msra.mxu0 0
        %5552 = vmatpush.bf16.msra.mxu0 0
        %5553 = vmatpush.bf16.msra.mxu0 0
        %5554 = vmatpush.bf16.msra.mxu0 0
        %5555 = vmatpush.bf16.msra.mxu0 0
        %5556 = vmatpush.bf16.msra.mxu0 0
        %5557 = vmatpush.bf16.msra.mxu0 0
        %5558 = vmatpush.bf16.msra.mxu0 %v5491
        %5559 = vmatmul.bf16.gmra.mxu0 %v5476
        %v5560 = vpop.f32.mrf.mxu0
        %v5561 = vadd.f32 0.0, %v5560
        %v5562 = vpop.f32.mrf.mxu0
        %5563 = vdwg.mxu0
        %5564 = vmatpush.bf16.msra.mxu0 0
        %5565 = vmatpush.bf16.msra.mxu0 0
        %5566 = vmatpush.bf16.msra.mxu0 0
        %5567 = vmatpush.bf16.msra.mxu0 0
        %5568 = vmatpush.bf16.msra.mxu0 0
        %5569 = vmatpush.bf16.msra.mxu0 0
        %5570 = vmatpush.bf16.msra.mxu0 0
        %5571 = vmatpush.bf16.msra.mxu0 %v5494
        %5572 = vmatmul.bf16.gmra.mxu0 %v5476
        %v5573 = vpop.f32.mrf.mxu0
        %v5574 = vadd.f32 0.0, %v5573
        %v5575 = vpop.f32.mrf.mxu0
        %5576 = vdwg.mxu0
        %5577 = vmatpush.bf16.msra.mxu0 0
        %5578 = vmatpush.bf16.msra.mxu0 0
        %5579 = vmatpush.bf16.msra.mxu0 0
        %5580 = vmatpush.bf16.msra.mxu0 0
        %5581 = vmatpush.bf16.msra.mxu0 0
        %5582 = vmatpush.bf16.msra.mxu0 0
        %5583 = vmatpush.bf16.msra.mxu0 0
        %5584 = vmatpush.bf16.msra.mxu0 %v5497
        %5585 = vmatmul.bf16.gmra.mxu0 %v5476
        %v5586 = vpop.f32.mrf.mxu0
        %v5587 = vadd.f32 0.0, %v5586
        %v5588 = vpop.f32.mrf.mxu0
        %5589 = vdwg.mxu0
        %v5590 = vadd.f32 %v5446, %v5509
        %v5591 = vadd.f32 %v5447, %v5522
        %v5592 = vadd.f32 %v5448, %v5535
        %v5593 = vadd.f32 %v5449, %v5548
        %v5594 = vadd.f32 %v5450, %v5561
        %v5595 = vadd.f32 %v5451, %v5574
        %v5596 = vadd.f32 %v5452, %v5587
        %s5597 = scalar_lea.vmem %s2, 100
        %v5598 = vld [vmem:[%s5597] sm:$0xf]
        %5599 = vrot.lane.b32.xlu0 %v4620, 63
        %v5600 = vpop.permute.xlu0 %5599
        %5601 = vrot.lane.b32.xlu0 %v4621, 63
        %v5602 = vpop.permute.xlu0 %5601
        %5603 = vrot.lane.b32.xlu0 %v4622, 63
        %v5604 = vpop.permute.xlu0 %5603
        %5605 = vrot.lane.b32.xlu0 %v4623, 63
        %v5606 = vpop.permute.xlu0 %5605
        %5607 = vrot.lane.b32.xlu0 %v4624, 63
        %v5608 = vpop.permute.xlu0 %5607
        %5609 = vrot.lane.b32.xlu0 %v4625, 63
        %v5610 = vpop.permute.xlu0 %5609
        %5611 = vrot.lane.b32.xlu0 %v4626, 63
        %v5612 = vpop.permute.xlu0 %5611
        %v5613 = vsel %vm2950, %v5600, %v5602
        %v5614 = vsel %vm2950, %v5602, %v5604
        %v5615 = vsel %vm2950, %v5604, %v5606
        %v5616 = vsel %vm2950, %v5606, %v5608
        %v5617 = vsel %vm2950, %v5608, %v5610
        %v5618 = vsel %vm2950, %v5610, %v5612
        %v5620 = vsel %vm336, %v5598, 0
        %v5623 = vsel %vm340, %v5613, 0
        %v5626 = vsel %vm340, %v5614, 0
        %v5629 = vsel %vm340, %v5615, 0
        %v5632 = vsel %vm340, %v5616, 0
        %v5635 = vsel %vm340, %v5617, 0
        %v5638 = vsel %vm340, %v5618, 0
        %v5641 = vsel %vm340, %v5612, 0
        %5643 = vmatpush.bf16.msra.mxu0 0
        %5644 = vmatpush.bf16.msra.mxu0 0
        %5645 = vmatpush.bf16.msra.mxu0 0
        %5646 = vmatpush.bf16.msra.mxu0 0
        %5647 = vmatpush.bf16.msra.mxu0 0
        %5648 = vmatpush.bf16.msra.mxu0 0
        %5649 = vmatpush.bf16.msra.mxu0 0
        %5650 = vmatpush.bf16.msra.mxu0 %v5623
        %5651 = vmatmul.bf16.gmra.mxu0 %v5620
        %v5652 = vpop.f32.mrf.mxu0
        %v5653 = vadd.f32 0.0, %v5652
        %v5654 = vpop.f32.mrf.mxu0
        %5655 = vdwg.mxu0
        %5656 = vmatpush.bf16.msra.mxu0 0
        %5657 = vmatpush.bf16.msra.mxu0 0
        %5658 = vmatpush.bf16.msra.mxu0 0
        %5659 = vmatpush.bf16.msra.mxu0 0
        %5660 = vmatpush.bf16.msra.mxu0 0
        %5661 = vmatpush.bf16.msra.mxu0 0
        %5662 = vmatpush.bf16.msra.mxu0 0
        %5663 = vmatpush.bf16.msra.mxu0 %v5626
        %5664 = vmatmul.bf16.gmra.mxu0 %v5620
        %v5665 = vpop.f32.mrf.mxu0
        %v5666 = vadd.f32 0.0, %v5665
        %v5667 = vpop.f32.mrf.mxu0
        %5668 = vdwg.mxu0
        %5669 = vmatpush.bf16.msra.mxu0 0
        %5670 = vmatpush.bf16.msra.mxu0 0
        %5671 = vmatpush.bf16.msra.mxu0 0
        %5672 = vmatpush.bf16.msra.mxu0 0
        %5673 = vmatpush.bf16.msra.mxu0 0
        %5674 = vmatpush.bf16.msra.mxu0 0
        %5675 = vmatpush.bf16.msra.mxu0 0
        %5676 = vmatpush.bf16.msra.mxu0 %v5629
        %5677 = vmatmul.bf16.gmra.mxu0 %v5620
        %v5678 = vpop.f32.mrf.mxu0
        %v5679 = vadd.f32 0.0, %v5678
        %v5680 = vpop.f32.mrf.mxu0
        %5681 = vdwg.mxu0
        %5682 = vmatpush.bf16.msra.mxu0 0
        %5683 = vmatpush.bf16.msra.mxu0 0
        %5684 = vmatpush.bf16.msra.mxu0 0
        %5685 = vmatpush.bf16.msra.mxu0 0
        %5686 = vmatpush.bf16.msra.mxu0 0
        %5687 = vmatpush.bf16.msra.mxu0 0
        %5688 = vmatpush.bf16.msra.mxu0 0
        %5689 = vmatpush.bf16.msra.mxu0 %v5632
        %5690 = vmatmul.bf16.gmra.mxu0 %v5620
        %v5691 = vpop.f32.mrf.mxu0
        %v5692 = vadd.f32 0.0, %v5691
        %v5693 = vpop.f32.mrf.mxu0
        %5694 = vdwg.mxu0
        %5695 = vmatpush.bf16.msra.mxu0 0
        %5696 = vmatpush.bf16.msra.mxu0 0
        %5697 = vmatpush.bf16.msra.mxu0 0
        %5698 = vmatpush.bf16.msra.mxu0 0
        %5699 = vmatpush.bf16.msra.mxu0 0
        %5700 = vmatpush.bf16.msra.mxu0 0
        %5701 = vmatpush.bf16.msra.mxu0 0
        %5702 = vmatpush.bf16.msra.mxu0 %v5635
        %5703 = vmatmul.bf16.gmra.mxu0 %v5620
        %v5704 = vpop.f32.mrf.mxu0
        %v5705 = vadd.f32 0.0, %v5704
        %v5706 = vpop.f32.mrf.mxu0
        %5707 = vdwg.mxu0
        %5708 = vmatpush.bf16.msra.mxu0 0
        %5709 = vmatpush.bf16.msra.mxu0 0
        %5710 = vmatpush.bf16.msra.mxu0 0
        %5711 = vmatpush.bf16.msra.mxu0 0
        %5712 = vmatpush.bf16.msra.mxu0 0
        %5713 = vmatpush.bf16.msra.mxu0 0
        %5714 = vmatpush.bf16.msra.mxu0 0
        %5715 = vmatpush.bf16.msra.mxu0 %v5638
        %5716 = vmatmul.bf16.gmra.mxu0 %v5620
        %v5717 = vpop.f32.mrf.mxu0
        %v5718 = vadd.f32 0.0, %v5717
        %v5719 = vpop.f32.mrf.mxu0
        %5720 = vdwg.mxu0
        %5721 = vmatpush.bf16.msra.mxu0 0
        %5722 = vmatpush.bf16.msra.mxu0 0
        %5723 = vmatpush.bf16.msra.mxu0 0
        %5724 = vmatpush.bf16.msra.mxu0 0
        %5725 = vmatpush.bf16.msra.mxu0 0
        %5726 = vmatpush.bf16.msra.mxu0 0
        %5727 = vmatpush.bf16.msra.mxu0 0
        %5728 = vmatpush.bf16.msra.mxu0 %v5641
        %5729 = vmatmul.bf16.gmra.mxu0 %v5620
        %v5730 = vpop.f32.mrf.mxu0
        %v5731 = vadd.f32 0.0, %v5730
        %v5732 = vpop.f32.mrf.mxu0
        %5733 = vdwg.mxu0
        %v5734 = vadd.f32 %v5590, %v5653
        %v5735 = vadd.f32 %v5591, %v5666
        %v5736 = vadd.f32 %v5592, %v5679
        %v5737 = vadd.f32 %v5593, %v5692
        %v5738 = vadd.f32 %v5594, %v5705
        %v5739 = vadd.f32 %v5595, %v5718
        %v5740 = vadd.f32 %v5596, %v5731
        %s5741 = scalar_lea.vmem %s2, 104
        %v5742 = vld [vmem:[%s5741] sm:$0xf]
        %5743 = vrot.lane.b32.xlu0 %v4620, 62
        %v5744 = vpop.permute.xlu0 %5743
        %5745 = vrot.lane.b32.xlu0 %v4621, 62
        %v5746 = vpop.permute.xlu0 %5745
        %5747 = vrot.lane.b32.xlu0 %v4622, 62
        %v5748 = vpop.permute.xlu0 %5747
        %5749 = vrot.lane.b32.xlu0 %v4623, 62
        %v5750 = vpop.permute.xlu0 %5749
        %5751 = vrot.lane.b32.xlu0 %v4624, 62
        %v5752 = vpop.permute.xlu0 %5751
        %5753 = vrot.lane.b32.xlu0 %v4625, 62
        %v5754 = vpop.permute.xlu0 %5753
        %5755 = vrot.lane.b32.xlu0 %v4626, 62
        %v5756 = vpop.permute.xlu0 %5755
        %v5757 = vsel %vm3115, %v5744, %v5746
        %v5758 = vsel %vm3115, %v5746, %v5748
        %v5759 = vsel %vm3115, %v5748, %v5750
        %v5760 = vsel %vm3115, %v5750, %v5752
        %v5761 = vsel %vm3115, %v5752, %v5754
        %v5762 = vsel %vm3115, %v5754, %v5756
        %v5764 = vsel %vm336, %v5742, 0
        %v5767 = vsel %vm340, %v5757, 0
        %v5770 = vsel %vm340, %v5758, 0
        %v5773 = vsel %vm340, %v5759, 0
        %v5776 = vsel %vm340, %v5760, 0
        %v5779 = vsel %vm340, %v5761, 0
        %v5782 = vsel %vm340, %v5762, 0
        %v5785 = vsel %vm340, %v5756, 0
        %5787 = vmatpush.bf16.msra.mxu0 0
        %5788 = vmatpush.bf16.msra.mxu0 0
        %5789 = vmatpush.bf16.msra.mxu0 0
        %5790 = vmatpush.bf16.msra.mxu0 0
        %5791 = vmatpush.bf16.msra.mxu0 0
        %5792 = vmatpush.bf16.msra.mxu0 0
        %5793 = vmatpush.bf16.msra.mxu0 0
        %5794 = vmatpush.bf16.msra.mxu0 %v5767
        %5795 = vmatmul.bf16.gmra.mxu0 %v5764
        %v5796 = vpop.f32.mrf.mxu0
        %v5797 = vadd.f32 0.0, %v5796
        %v5798 = vpop.f32.mrf.mxu0
        %5799 = vdwg.mxu0
        %5800 = vmatpush.bf16.msra.mxu0 0
        %5801 = vmatpush.bf16.msra.mxu0 0
        %5802 = vmatpush.bf16.msra.mxu0 0
        %5803 = vmatpush.bf16.msra.mxu0 0
        %5804 = vmatpush.bf16.msra.mxu0 0
        %5805 = vmatpush.bf16.msra.mxu0 0
        %5806 = vmatpush.bf16.msra.mxu0 0
        %5807 = vmatpush.bf16.msra.mxu0 %v5770
        %5808 = vmatmul.bf16.gmra.mxu0 %v5764
        %v5809 = vpop.f32.mrf.mxu0
        %v5810 = vadd.f32 0.0, %v5809
        %v5811 = vpop.f32.mrf.mxu0
        %5812 = vdwg.mxu0
        %5813 = vmatpush.bf16.msra.mxu0 0
        %5814 = vmatpush.bf16.msra.mxu0 0
        %5815 = vmatpush.bf16.msra.mxu0 0
        %5816 = vmatpush.bf16.msra.mxu0 0
        %5817 = vmatpush.bf16.msra.mxu0 0
        %5818 = vmatpush.bf16.msra.mxu0 0
        %5819 = vmatpush.bf16.msra.mxu0 0
        %5820 = vmatpush.bf16.msra.mxu0 %v5773
        %5821 = vmatmul.bf16.gmra.mxu0 %v5764
        %v5822 = vpop.f32.mrf.mxu0
        %v5823 = vadd.f32 0.0, %v5822
        %v5824 = vpop.f32.mrf.mxu0
        %5825 = vdwg.mxu0
        %5826 = vmatpush.bf16.msra.mxu0 0
        %5827 = vmatpush.bf16.msra.mxu0 0
        %5828 = vmatpush.bf16.msra.mxu0 0
        %5829 = vmatpush.bf16.msra.mxu0 0
        %5830 = vmatpush.bf16.msra.mxu0 0
        %5831 = vmatpush.bf16.msra.mxu0 0
        %5832 = vmatpush.bf16.msra.mxu0 0
        %5833 = vmatpush.bf16.msra.mxu0 %v5776
        %5834 = vmatmul.bf16.gmra.mxu0 %v5764
        %v5835 = vpop.f32.mrf.mxu0
        %v5836 = vadd.f32 0.0, %v5835
        %v5837 = vpop.f32.mrf.mxu0
        %5838 = vdwg.mxu0
        %5839 = vmatpush.bf16.msra.mxu0 0
        %5840 = vmatpush.bf16.msra.mxu0 0
        %5841 = vmatpush.bf16.msra.mxu0 0
        %5842 = vmatpush.bf16.msra.mxu0 0
        %5843 = vmatpush.bf16.msra.mxu0 0
        %5844 = vmatpush.bf16.msra.mxu0 0
        %5845 = vmatpush.bf16.msra.mxu0 0
        %5846 = vmatpush.bf16.msra.mxu0 %v5779
        %5847 = vmatmul.bf16.gmra.mxu0 %v5764
        %v5848 = vpop.f32.mrf.mxu0
        %v5849 = vadd.f32 0.0, %v5848
        %v5850 = vpop.f32.mrf.mxu0
        %5851 = vdwg.mxu0
        %5852 = vmatpush.bf16.msra.mxu0 0
        %5853 = vmatpush.bf16.msra.mxu0 0
        %5854 = vmatpush.bf16.msra.mxu0 0
        %5855 = vmatpush.bf16.msra.mxu0 0
        %5856 = vmatpush.bf16.msra.mxu0 0
        %5857 = vmatpush.bf16.msra.mxu0 0
        %5858 = vmatpush.bf16.msra.mxu0 0
        %5859 = vmatpush.bf16.msra.mxu0 %v5782
        %5860 = vmatmul.bf16.gmra.mxu0 %v5764
        %v5861 = vpop.f32.mrf.mxu0
        %v5862 = vadd.f32 0.0, %v5861
        %v5863 = vpop.f32.mrf.mxu0
        %5864 = vdwg.mxu0
        %5865 = vmatpush.bf16.msra.mxu0 0
        %5866 = vmatpush.bf16.msra.mxu0 0
        %5867 = vmatpush.bf16.msra.mxu0 0
        %5868 = vmatpush.bf16.msra.mxu0 0
        %5869 = vmatpush.bf16.msra.mxu0 0
        %5870 = vmatpush.bf16.msra.mxu0 0
        %5871 = vmatpush.bf16.msra.mxu0 0
        %5872 = vmatpush.bf16.msra.mxu0 %v5785
        %5873 = vmatmul.bf16.gmra.mxu0 %v5764
        %v5874 = vpop.f32.mrf.mxu0
        %v5875 = vadd.f32 0.0, %v5874
        %v5876 = vpop.f32.mrf.mxu0
        %5877 = vdwg.mxu0
        %v5878 = vadd.f32 %v5734, %v5797
        %v5879 = vadd.f32 %v5735, %v5810
        %v5880 = vadd.f32 %v5736, %v5823
        %v5881 = vadd.f32 %v5737, %v5836
        %v5882 = vadd.f32 %v5738, %v5849
        %v5883 = vadd.f32 %v5739, %v5862
        %v5884 = vadd.f32 %v5740, %v5875
        %s5885 = scalar_lea.vmem %s3, 24
        %v5886 = vld [vmem:[%s5885] sm:$0xff]
        %5888 = vset.pattern.permute.xlu0 0
        %5889 = vperm.xlu0 %5888, %v5886
        %v5890 = vpop.permute.xlu0 %5889
        %v5892 = vadd.f32 %v5878, %v5890
        %v5893 = vadd.f32 %v5879, %v5890
        %v5894 = vadd.f32 %v5880, %v5890
        %v5895 = vadd.f32 %v5881, %v5890
        %v5896 = vadd.f32 %v5882, %v5890
        %v5897 = vadd.f32 %v5883, %v5890
        %v5898 = vadd.f32 %v5884, %v5890
        %v5899 = vmax.f32 %v5892, 0.0
        %v5900 = vmax.f32 %v5893, 0.0
        %v5901 = vmax.f32 %v5894, 0.0
        %v5902 = vmax.f32 %v5895, 0.0
        %v5903 = vmax.f32 %v5896, 0.0
        %v5904 = vmax.f32 %v5897, 0.0
        %v5905 = vmax.f32 %v5898, 0.0
        %v5906 = vpack.c.bf16 %v5900, %v5899
        %v5907 = vpack.c.bf16 %v5902, %v5901
        %v5908 = vpack.c.bf16 %v5904, %v5903
        %v5909 = vpack.c.bf16 %v5905, %v5905
        %v5910 = vld [vmem:[%s5] sm:$0x1]
        %v5911 = vld [vmem:[%s4] sm:$0xf]
        %v5912 = vld [vmem:[%s4 + $0x4] sm:$0xf]
        %v5913 = vld [vmem:[%s4 + $0x8] sm:$0xf]
        %v5914 = vld [vmem:[%s4 + $0xc] sm:$0xf]
        %v5915 = vld [vmem:[%s4 + $0x10] sm:$0xf]
        %v5916 = vld [vmem:[%s4 + $0x14] sm:$0xf]
        %v5917 = vld [vmem:[%s4 + $0x18] sm:$0xf]
        %v5918 = vld [vmem:[%s4 + $0x1c] sm:$0xf]
        %v5919 = vld [vmem:[%s4 + $0x20] sm:$0xf]
        %v5920 = vld [vmem:[%s4 + $0x24] sm:$0xf]
        %v5921 = vld [vmem:[%s4 + $0x28] sm:$0xf]
        %v5922 = vld [vmem:[%s4 + $0x2c] sm:$0xf]
        %v5923 = vld [vmem:[%s4 + $0x30] sm:$0xf]
        %v5924 = vld [vmem:[%s4 + $0x34] sm:$0xf]
        %v5925 = vld [vmem:[%s4 + $0x38] sm:$0xf]
        %v5926 = vld [vmem:[%s4 + $0x3c] sm:$0xf]
        %v5927 = vld [vmem:[%s4 + $0x40] sm:$0xf]
        %v5928 = vld [vmem:[%s4 + $0x44] sm:$0xf]
        %v5929 = vld [vmem:[%s4 + $0x48] sm:$0xf]
        %v5930 = vld [vmem:[%s4 + $0x4c] sm:$0xf]
        %v5931 = vld [vmem:[%s4 + $0x50] sm:$0xf]
        %v5932 = vld [vmem:[%s4 + $0x54] sm:$0xf]
        %v5933 = vld [vmem:[%s4 + $0x58] sm:$0xf]
        %v5934 = vld [vmem:[%s4 + $0x5c] sm:$0xf]
        %v5935 = vld [vmem:[%s4 + $0x60] sm:$0xf]
        %v5936 = vld [vmem:[%s4 + $0x64] sm:$0xf]
        %v5937 = vld [vmem:[%s4 + $0x68] sm:$0xf]
        %v5938 = vld [vmem:[%s4 + $0x6c] sm:$0xf]
        %v5939 = vld [vmem:[%s4 + $0x70] sm:$0xf]
        %v5940 = vld [vmem:[%s4 + $0x74] sm:$0xf]
        %v5941 = vld [vmem:[%s4 + $0x78] sm:$0xf]
        %v5942 = vld [vmem:[%s4 + $0x7c] sm:$0xf]
        %v5943 = vld [vmem:[%s4 + $0x80] sm:$0xf]
        %v5944 = vld [vmem:[%s4 + $0x84] sm:$0xf]
        %v5945 = vld [vmem:[%s4 + $0x88] sm:$0xf]
        %v5946 = vld [vmem:[%s4 + $0x8c] sm:$0xf]
        %v5947 = vld [vmem:[%s4 + $0x90] sm:$0xf]
        %v5948 = vld [vmem:[%s4 + $0x94] sm:$0xf]
        %v5949 = vld [vmem:[%s4 + $0x98] sm:$0xf]
        %v5950 = vld [vmem:[%s4 + $0x9c] sm:$0xf]
        %v5951 = vld [vmem:[%s4 + $0xa0] sm:$0xf]
        %v5952 = vld [vmem:[%s4 + $0xa4] sm:$0xf]
        %v5953 = vld [vmem:[%s4 + $0xa8] sm:$0xf]
        %v5954 = vld [vmem:[%s4 + $0xac] sm:$0xf]
        %v5955 = vld [vmem:[%s4 + $0xb0] sm:$0xf]
        %v5956 = vld [vmem:[%s4 + $0xb4] sm:$0xf]
        %v5957 = vld [vmem:[%s4 + $0xb8] sm:$0xf]
        %v5958 = vld [vmem:[%s4 + $0xbc] sm:$0xf]
        %v5959 = vld [vmem:[%s4 + $0xc0] sm:$0xf]
        %v5960 = vld [vmem:[%s4 + $0xc4] sm:$0xf]
        %v5961 = vld [vmem:[%s4 + $0xc8] sm:$0xf]
        %v5962 = vld [vmem:[%s4 + $0xcc] sm:$0xf]
        %v5963 = vld [vmem:[%s4 + $0xd0] sm:$0xf]
        %v5964 = vld [vmem:[%s4 + $0xd4] sm:$0xf]
        %v5965 = vld [vmem:[%s4 + $0xd8] sm:$0xf]
        %v5966 = vld [vmem:[%s4 + $0xdc] sm:$0xf]
        %v5967 = vld [vmem:[%s4 + $0xe0] sm:$0xf]
        %v5968 = vld [vmem:[%s4 + $0xe4] sm:$0xf]
        %v5969 = vld [vmem:[%s4 + $0xe8] sm:$0xf]
        %v5970 = vld [vmem:[%s4 + $0xec] sm:$0xf]
        %v5971 = vld [vmem:[%s4 + $0xf0] sm:$0xf]
        %v5972 = vld [vmem:[%s4 + $0xf4] sm:$0xf]
        %v5973 = vld [vmem:[%s4 + $0xf8] sm:$0xf]
        %v5974 = vld [vmem:[%s4 + $0xfc] sm:$0xf]
        %v5975 = vld [vmem:[%s4 + $0x100] sm:$0xf]
        %v5976 = vld [vmem:[%s4 + $0x104] sm:$0xf]
        %v5977 = vld [vmem:[%s4 + $0x108] sm:$0xf]
        %v5978 = vld [vmem:[%s4 + $0x10c] sm:$0xf]
        %v5979 = vld [vmem:[%s4 + $0x110] sm:$0xf]
        %v5980 = vld [vmem:[%s4 + $0x114] sm:$0xf]
        %v5981 = vld [vmem:[%s4 + $0x118] sm:$0xf]
        %v5982 = vld [vmem:[%s4 + $0x11c] sm:$0xf]
        %v5983 = vld [vmem:[%s4 + $0x120] sm:$0xf]
        %v5984 = vld [vmem:[%s4 + $0x124] sm:$0xf]
        %v5985 = vld [vmem:[%s4 + $0x128] sm:$0xf]
        %v5986 = vld [vmem:[%s4 + $0x12c] sm:$0xf]
        %v5987 = vld [vmem:[%s4 + $0x130] sm:$0xf]
        %v5988 = vld [vmem:[%s4 + $0x134] sm:$0xf]
        %v5989 = vld [vmem:[%s4 + $0x138] sm:$0xf]
        %v5990 = vld [vmem:[%s4 + $0x13c] sm:$0xf]
        %v5991 = vld [vmem:[%s4 + $0x140] sm:$0xf]
        %v5992 = vld [vmem:[%s4 + $0x144] sm:$0xf]
        %v5993 = vld [vmem:[%s4 + $0x148] sm:$0xf]
        %v5994 = vld [vmem:[%s4 + $0x14c] sm:$0xf]
        %v5995 = vld [vmem:[%s4 + $0x150] sm:$0xf]
        %v5996 = vld [vmem:[%s4 + $0x154] sm:$0xf]
        %v5997 = vld [vmem:[%s4 + $0x158] sm:$0xf]
        %v5998 = vld [vmem:[%s4 + $0x15c] sm:$0xf]
        %v5999 = vld [vmem:[%s4 + $0x160] sm:$0xf]
        %v6000 = vld [vmem:[%s4 + $0x164] sm:$0xf]
        %v6001 = vld [vmem:[%s4 + $0x168] sm:$0xf]
        %v6002 = vld [vmem:[%s4 + $0x16c] sm:$0xf]
        %v6003 = vld [vmem:[%s4 + $0x170] sm:$0xf]
        %v6004 = vld [vmem:[%s4 + $0x174] sm:$0xf]
        %v6005 = vld [vmem:[%s4 + $0x178] sm:$0xf]
        %v6006 = vld [vmem:[%s4 + $0x17c] sm:$0xf]
        %v6007 = vld [vmem:[%s4 + $0x180] sm:$0xf]
        %v6008 = vld [vmem:[%s4 + $0x184] sm:$0xf]
        %v6009 = vld [vmem:[%s4 + $0x188] sm:$0xf]
        %v6010 = vld [vmem:[%s4 + $0x18c] sm:$0x1]
        %v6015 = vunpack.c.l.b16 %v5906
        %v6016 = vunpack.c.h.b16 %v5906
        %v6017 = vunpack.c.l.b16 %v5907
        %v6018 = vunpack.c.h.b16 %v5907
        %v6019 = vunpack.c.l.b16 %v5908
        %v6020 = vunpack.c.h.b16 %v5908
        %v6021 = vunpack.c.l.b16 %v5909
        %v6022 = vpack.c.b16 %v6015, %v6015
        %v6023 = vpack.c.b16 %v6016, %v6016
        %v6024 = vpack.c.b16 %v6017, %v6017
        %v6025 = vpack.c.b16 %v6018, %v6018
        %v6026 = vpack.c.b16 %v6019, %v6019
        %v6027 = vpack.c.b16 %v6020, %v6020
        %v6028 = vpack.c.b16 %v6021, %v6021
        %v6135 = vunpack.c.l.b16 %v5911
        %v6136 = vunpack.c.l.b16 %v5912
        %v6137 = vunpack.c.l.b16 %v5913
        %v6138 = vunpack.c.l.b16 %v5914
        %v6139 = vunpack.c.l.b16 %v5915
        %v6140 = vunpack.c.l.b16 %v5916
        %v6141 = vunpack.c.l.b16 %v5917
        %v6142 = vunpack.c.l.b16 %v5918
        %v6143 = vunpack.c.l.b16 %v5919
        %v6144 = vunpack.c.l.b16 %v5920
        %v6145 = vunpack.c.l.b16 %v5921
        %v6146 = vunpack.c.l.b16 %v5922
        %v6147 = vunpack.c.l.b16 %v5923
        %v6148 = vunpack.c.l.b16 %v5924
        %v6149 = vunpack.c.l.b16 %v5925
        %v6150 = vunpack.c.l.b16 %v5926
        %v6151 = vunpack.c.l.b16 %v5927
        %v6152 = vunpack.c.l.b16 %v5928
        %v6153 = vunpack.c.l.b16 %v5929
        %v6154 = vunpack.c.l.b16 %v5930
        %v6155 = vunpack.c.l.b16 %v5931
        %v6156 = vunpack.c.l.b16 %v5932
        %v6157 = vunpack.c.l.b16 %v5933
        %v6158 = vunpack.c.l.b16 %v5934
        %v6159 = vunpack.c.l.b16 %v5935
        %v6160 = vunpack.c.l.b16 %v5936
        %v6161 = vunpack.c.l.b16 %v5937
        %v6162 = vunpack.c.l.b16 %v5938
        %v6163 = vunpack.c.l.b16 %v5939
        %v6164 = vunpack.c.l.b16 %v5940
        %v6165 = vunpack.c.l.b16 %v5941
        %v6166 = vunpack.c.l.b16 %v5942
        %v6167 = vunpack.c.l.b16 %v5943
        %v6168 = vunpack.c.l.b16 %v5944
        %v6169 = vunpack.c.l.b16 %v5945
        %v6170 = vunpack.c.l.b16 %v5946
        %v6171 = vunpack.c.l.b16 %v5947
        %v6172 = vunpack.c.l.b16 %v5948
        %v6173 = vunpack.c.l.b16 %v5949
        %v6174 = vunpack.c.l.b16 %v5950
        %v6175 = vunpack.c.l.b16 %v5951
        %v6176 = vunpack.c.l.b16 %v5952
        %v6177 = vunpack.c.l.b16 %v5953
        %v6178 = vunpack.c.l.b16 %v5954
        %v6179 = vunpack.c.l.b16 %v5955
        %v6180 = vunpack.c.l.b16 %v5956
        %v6181 = vunpack.c.l.b16 %v5957
        %v6182 = vunpack.c.l.b16 %v5958
        %v6183 = vunpack.c.l.b16 %v5959
        %v6184 = vunpack.c.l.b16 %v5960
        %v6185 = vunpack.c.l.b16 %v5961
        %v6186 = vunpack.c.l.b16 %v5962
        %v6187 = vunpack.c.l.b16 %v5963
        %v6188 = vunpack.c.l.b16 %v5964
        %v6189 = vunpack.c.l.b16 %v5965
        %v6190 = vunpack.c.l.b16 %v5966
        %v6191 = vunpack.c.l.b16 %v5967
        %v6192 = vunpack.c.l.b16 %v5968
        %v6193 = vunpack.c.l.b16 %v5969
        %v6194 = vunpack.c.l.b16 %v5970
        %v6195 = vunpack.c.l.b16 %v5971
        %v6196 = vunpack.c.l.b16 %v5972
        %v6197 = vunpack.c.l.b16 %v5973
        %v6198 = vunpack.c.l.b16 %v5974
        %v6199 = vunpack.c.l.b16 %v5975
        %v6200 = vunpack.c.l.b16 %v5976
        %v6201 = vunpack.c.l.b16 %v5977
        %v6202 = vunpack.c.l.b16 %v5978
        %v6203 = vunpack.c.l.b16 %v5979
        %v6204 = vunpack.c.l.b16 %v5980
        %v6205 = vunpack.c.l.b16 %v5981
        %v6206 = vunpack.c.l.b16 %v5982
        %v6207 = vunpack.c.l.b16 %v5983
        %v6208 = vunpack.c.l.b16 %v5984
        %v6209 = vunpack.c.l.b16 %v5985
        %v6210 = vunpack.c.l.b16 %v5986
        %v6211 = vunpack.c.l.b16 %v5987
        %v6212 = vunpack.c.l.b16 %v5988
        %v6213 = vunpack.c.l.b16 %v5989
        %v6214 = vunpack.c.l.b16 %v5990
        %v6215 = vunpack.c.l.b16 %v5991
        %v6216 = vunpack.c.l.b16 %v5992
        %v6217 = vunpack.c.l.b16 %v5993
        %v6218 = vunpack.c.l.b16 %v5994
        %v6219 = vunpack.c.l.b16 %v5995
        %v6220 = vunpack.c.l.b16 %v5996
        %v6221 = vunpack.c.l.b16 %v5997
        %v6222 = vunpack.c.l.b16 %v5998
        %v6223 = vunpack.c.l.b16 %v5999
        %v6224 = vunpack.c.l.b16 %v6000
        %v6225 = vunpack.c.l.b16 %v6001
        %v6226 = vunpack.c.l.b16 %v6002
        %v6227 = vunpack.c.l.b16 %v6003
        %v6228 = vunpack.c.l.b16 %v6004
        %v6229 = vunpack.c.l.b16 %v6005
        %v6230 = vunpack.c.l.b16 %v6006
        %v6231 = vunpack.c.l.b16 %v6007
        %v6232 = vunpack.c.l.b16 %v6008
        %v6233 = vunpack.c.l.b16 %v6009
        %v6234 = vunpack.c.l.b16 %v6010
        %v6235 = vpack.c.b16 %v6136, %v6135
        %v6236 = vpack.c.b16 %v6138, %v6137
        %v6237 = vpack.c.b16 %v6140, %v6139
        %v6238 = vpack.c.b16 %v6142, %v6141
        %v6239 = vpack.c.b16 %v6144, %v6143
        %v6240 = vpack.c.b16 %v6146, %v6145
        %v6241 = vpack.c.b16 %v6148, %v6147
        %v6242 = vpack.c.b16 %v6150, %v6149
        %v6243 = vpack.c.b16 %v6152, %v6151
        %v6244 = vpack.c.b16 %v6154, %v6153
        %v6245 = vpack.c.b16 %v6156, %v6155
        %v6246 = vpack.c.b16 %v6158, %v6157
        %v6247 = vpack.c.b16 %v6160, %v6159
        %v6248 = vpack.c.b16 %v6162, %v6161
        %v6249 = vpack.c.b16 %v6164, %v6163
        %v6250 = vpack.c.b16 %v6166, %v6165
        %v6251 = vpack.c.b16 %v6168, %v6167
        %v6252 = vpack.c.b16 %v6170, %v6169
        %v6253 = vpack.c.b16 %v6172, %v6171
        %v6254 = vpack.c.b16 %v6174, %v6173
        %v6255 = vpack.c.b16 %v6176, %v6175
        %v6256 = vpack.c.b16 %v6178, %v6177
        %v6257 = vpack.c.b16 %v6180, %v6179
        %v6258 = vpack.c.b16 %v6182, %v6181
        %v6259 = vpack.c.b16 %v6184, %v6183
        %v6260 = vpack.c.b16 %v6186, %v6185
        %v6261 = vpack.c.b16 %v6188, %v6187
        %v6262 = vpack.c.b16 %v6190, %v6189
        %v6263 = vpack.c.b16 %v6192, %v6191
        %v6264 = vpack.c.b16 %v6194, %v6193
        %v6265 = vpack.c.b16 %v6196, %v6195
        %v6266 = vpack.c.b16 %v6198, %v6197
        %v6267 = vpack.c.b16 %v6200, %v6199
        %v6268 = vpack.c.b16 %v6202, %v6201
        %v6269 = vpack.c.b16 %v6204, %v6203
        %v6270 = vpack.c.b16 %v6206, %v6205
        %v6271 = vpack.c.b16 %v6208, %v6207
        %v6272 = vpack.c.b16 %v6210, %v6209
        %v6273 = vpack.c.b16 %v6212, %v6211
        %v6274 = vpack.c.b16 %v6214, %v6213
        %v6275 = vpack.c.b16 %v6216, %v6215
        %v6276 = vpack.c.b16 %v6218, %v6217
        %v6277 = vpack.c.b16 %v6220, %v6219
        %v6278 = vpack.c.b16 %v6222, %v6221
        %v6279 = vpack.c.b16 %v6224, %v6223
        %v6280 = vpack.c.b16 %v6226, %v6225
        %v6281 = vpack.c.b16 %v6228, %v6227
        %v6282 = vpack.c.b16 %v6230, %v6229
        %v6283 = vpack.c.b16 %v6232, %v6231
        %v6284 = vpack.c.b16 %v6234, %v6233
        %vm6334 = vcmask 203776
        %v6336 = vsel %vm6334, %v6028, 0
        %vm6338 = vcmask 1044480
        %v6339 = vsel %vm340, 4294967295, 65535
        %v6340 = vsel %vm6338, %v6339, 0
        %v6342 = vand.u32 %v6284, %v6340
        %6344 = vmatpush.bf16.msra.mxu0 %v6242
        %6345 = vmatpush.bf16.msra.mxu0 %v6241
        %6346 = vmatpush.bf16.msra.mxu0 %v6240
        %6347 = vmatpush.bf16.msra.mxu0 %v6239
        %6348 = vmatpush.bf16.msra.mxu0 %v6238
        %6349 = vmatpush.bf16.msra.mxu0 %v6237
        %6350 = vmatpush.bf16.msra.mxu0 %v6236
        %6351 = vmatpush.bf16.msra.mxu0 %v6235
        %6352 = vmatmul.bf16.gmra.mxu0 %v6022
        %v6353 = vpop.f32.mrf.mxu0
        %v6354 = vadd.f32 0.0, %v6353
        %v6355 = vpop.f32.mrf.mxu0
        %6356 = vdwg.mxu0
        %6357 = vmatpush.bf16.msra.mxu0 %v6250
        %6358 = vmatpush.bf16.msra.mxu0 %v6249
        %6359 = vmatpush.bf16.msra.mxu0 %v6248
        %6360 = vmatpush.bf16.msra.mxu0 %v6247
        %6361 = vmatpush.bf16.msra.mxu0 %v6246
        %6362 = vmatpush.bf16.msra.mxu0 %v6245
        %6363 = vmatpush.bf16.msra.mxu0 %v6244
        %6364 = vmatpush.bf16.msra.mxu0 %v6243
        %6365 = vmatmul.bf16.gmra.mxu0 %v6023
        %v6366 = vpop.f32.mrf.mxu0
        %v6367 = vadd.f32 %v6354, %v6366
        %v6368 = vpop.f32.mrf.mxu0
        %6369 = vdwg.mxu0
        %6370 = vmatpush.bf16.msra.mxu0 %v6258
        %6371 = vmatpush.bf16.msra.mxu0 %v6257
        %6372 = vmatpush.bf16.msra.mxu0 %v6256
        %6373 = vmatpush.bf16.msra.mxu0 %v6255
        %6374 = vmatpush.bf16.msra.mxu0 %v6254
        %6375 = vmatpush.bf16.msra.mxu0 %v6253
        %6376 = vmatpush.bf16.msra.mxu0 %v6252
        %6377 = vmatpush.bf16.msra.mxu0 %v6251
        %6378 = vmatmul.bf16.gmra.mxu0 %v6024
        %v6379 = vpop.f32.mrf.mxu0
        %v6380 = vadd.f32 %v6367, %v6379
        %v6381 = vpop.f32.mrf.mxu0
        %6382 = vdwg.mxu0
        %6383 = vmatpush.bf16.msra.mxu0 %v6266
        %6384 = vmatpush.bf16.msra.mxu0 %v6265
        %6385 = vmatpush.bf16.msra.mxu0 %v6264
        %6386 = vmatpush.bf16.msra.mxu0 %v6263
        %6387 = vmatpush.bf16.msra.mxu0 %v6262
        %6388 = vmatpush.bf16.msra.mxu0 %v6261
        %6389 = vmatpush.bf16.msra.mxu0 %v6260
        %6390 = vmatpush.bf16.msra.mxu0 %v6259
        %6391 = vmatmul.bf16.gmra.mxu0 %v6025
        %v6392 = vpop.f32.mrf.mxu0
        %v6393 = vadd.f32 %v6380, %v6392
        %v6394 = vpop.f32.mrf.mxu0
        %6395 = vdwg.mxu0
        %6396 = vmatpush.bf16.msra.mxu0 %v6274
        %6397 = vmatpush.bf16.msra.mxu0 %v6273
        %6398 = vmatpush.bf16.msra.mxu0 %v6272
        %6399 = vmatpush.bf16.msra.mxu0 %v6271
        %6400 = vmatpush.bf16.msra.mxu0 %v6270
        %6401 = vmatpush.bf16.msra.mxu0 %v6269
        %6402 = vmatpush.bf16.msra.mxu0 %v6268
        %6403 = vmatpush.bf16.msra.mxu0 %v6267
        %6404 = vmatmul.bf16.gmra.mxu0 %v6026
        %v6405 = vpop.f32.mrf.mxu0
        %v6406 = vadd.f32 %v6393, %v6405
        %v6407 = vpop.f32.mrf.mxu0
        %6408 = vdwg.mxu0
        %6409 = vmatpush.bf16.msra.mxu0 %v6282
        %6410 = vmatpush.bf16.msra.mxu0 %v6281
        %6411 = vmatpush.bf16.msra.mxu0 %v6280
        %6412 = vmatpush.bf16.msra.mxu0 %v6279
        %6413 = vmatpush.bf16.msra.mxu0 %v6278
        %6414 = vmatpush.bf16.msra.mxu0 %v6277
        %6415 = vmatpush.bf16.msra.mxu0 %v6276
        %6416 = vmatpush.bf16.msra.mxu0 %v6275
        %6417 = vmatmul.bf16.gmra.mxu0 %v6027
        %v6418 = vpop.f32.mrf.mxu0
        %v6419 = vadd.f32 %v6406, %v6418
        %v6420 = vpop.f32.mrf.mxu0
        %6421 = vdwg.mxu0
        %6422 = vmatpush.bf16.msra.mxu0 0
        %6423 = vmatpush.bf16.msra.mxu0 0
        %6424 = vmatpush.bf16.msra.mxu0 0
        %6425 = vmatpush.bf16.msra.mxu0 0
        %6426 = vmatpush.bf16.msra.mxu0 0
        %6427 = vmatpush.bf16.msra.mxu0 0
        %6428 = vmatpush.bf16.msra.mxu0 %v6342
        %6429 = vmatpush.bf16.msra.mxu0 %v6283
        %6430 = vmatmul.bf16.gmra.mxu0 %v6336
        %v6431 = vpop.f32.mrf.mxu0
        %v6432 = vadd.f32 %v6419, %v6431
        %v6433 = vpop.f32.mrf.mxu0
        %6434 = vdwg.mxu0
        %v6435 = vadd.f32 %v5910, %v6432
        %s6436 = scalar_lea.vmem %s4, 400
        %v6437 = vld [vmem:[%s6436] sm:$0xf]
        %v6438 = vld [vmem:[%s6436 + $0x4] sm:$0xf]
        %v6439 = vld [vmem:[%s6436 + $0x8] sm:$0xf]
        %v6440 = vld [vmem:[%s6436 + $0xc] sm:$0xf]
        %v6441 = vld [vmem:[%s6436 + $0x10] sm:$0xf]
        %v6442 = vld [vmem:[%s6436 + $0x14] sm:$0xf]
        %v6443 = vld [vmem:[%s6436 + $0x18] sm:$0xf]
        %v6444 = vld [vmem:[%s6436 + $0x1c] sm:$0xf]
        %v6445 = vld [vmem:[%s6436 + $0x20] sm:$0xf]
        %v6446 = vld [vmem:[%s6436 + $0x24] sm:$0xf]
        %v6447 = vld [vmem:[%s6436 + $0x28] sm:$0xf]
        %v6448 = vld [vmem:[%s6436 + $0x2c] sm:$0xf]
        %v6449 = vld [vmem:[%s6436 + $0x30] sm:$0xf]
        %v6450 = vld [vmem:[%s6436 + $0x34] sm:$0xf]
        %v6451 = vld [vmem:[%s6436 + $0x38] sm:$0xf]
        %v6452 = vld [vmem:[%s6436 + $0x3c] sm:$0xf]
        %v6453 = vld [vmem:[%s6436 + $0x40] sm:$0xf]
        %v6454 = vld [vmem:[%s6436 + $0x44] sm:$0xf]
        %v6455 = vld [vmem:[%s6436 + $0x48] sm:$0xf]
        %v6456 = vld [vmem:[%s6436 + $0x4c] sm:$0xf]
        %v6457 = vld [vmem:[%s6436 + $0x50] sm:$0xf]
        %v6458 = vld [vmem:[%s6436 + $0x54] sm:$0xf]
        %v6459 = vld [vmem:[%s6436 + $0x58] sm:$0xf]
        %v6460 = vld [vmem:[%s6436 + $0x5c] sm:$0xf]
        %v6461 = vld [vmem:[%s6436 + $0x60] sm:$0xf]
        %v6462 = vld [vmem:[%s6436 + $0x64] sm:$0xf]
        %v6463 = vld [vmem:[%s6436 + $0x68] sm:$0xf]
        %v6464 = vld [vmem:[%s6436 + $0x6c] sm:$0xf]
        %v6465 = vld [vmem:[%s6436 + $0x70] sm:$0xf]
        %v6466 = vld [vmem:[%s6436 + $0x74] sm:$0xf]
        %v6467 = vld [vmem:[%s6436 + $0x78] sm:$0xf]
        %v6468 = vld [vmem:[%s6436 + $0x7c] sm:$0xf]
        %v6469 = vld [vmem:[%s6436 + $0x80] sm:$0xf]
        %v6470 = vld [vmem:[%s6436 + $0x84] sm:$0xf]
        %v6471 = vld [vmem:[%s6436 + $0x88] sm:$0xf]
        %v6472 = vld [vmem:[%s6436 + $0x8c] sm:$0xf]
        %v6473 = vld [vmem:[%s6436 + $0x90] sm:$0xf]
        %v6474 = vld [vmem:[%s6436 + $0x94] sm:$0xf]
        %v6475 = vld [vmem:[%s6436 + $0x98] sm:$0xf]
        %v6476 = vld [vmem:[%s6436 + $0x9c] sm:$0xf]
        %v6477 = vld [vmem:[%s6436 + $0xa0] sm:$0xf]
        %v6478 = vld [vmem:[%s6436 + $0xa4] sm:$0xf]
        %v6479 = vld [vmem:[%s6436 + $0xa8] sm:$0xf]
        %v6480 = vld [vmem:[%s6436 + $0xac] sm:$0xf]
        %v6481 = vld [vmem:[%s6436 + $0xb0] sm:$0xf]
        %v6482 = vld [vmem:[%s6436 + $0xb4] sm:$0xf]
        %v6483 = vld [vmem:[%s6436 + $0xb8] sm:$0xf]
        %v6484 = vld [vmem:[%s6436 + $0xbc] sm:$0xf]
        %v6485 = vld [vmem:[%s6436 + $0xc0] sm:$0xf]
        %v6486 = vld [vmem:[%s6436 + $0xc4] sm:$0xf]
        %v6487 = vld [vmem:[%s6436 + $0xc8] sm:$0xf]
        %v6488 = vld [vmem:[%s6436 + $0xcc] sm:$0xf]
        %v6489 = vld [vmem:[%s6436 + $0xd0] sm:$0xf]
        %v6490 = vld [vmem:[%s6436 + $0xd4] sm:$0xf]
        %v6491 = vld [vmem:[%s6436 + $0xd8] sm:$0xf]
        %v6492 = vld [vmem:[%s6436 + $0xdc] sm:$0xf]
        %v6493 = vld [vmem:[%s6436 + $0xe0] sm:$0xf]
        %v6494 = vld [vmem:[%s6436 + $0xe4] sm:$0xf]
        %v6495 = vld [vmem:[%s6436 + $0xe8] sm:$0xf]
        %v6496 = vld [vmem:[%s6436 + $0xec] sm:$0xf]
        %v6497 = vld [vmem:[%s6436 + $0xf0] sm:$0xf]
        %v6498 = vld [vmem:[%s6436 + $0xf4] sm:$0xf]
        %v6499 = vld [vmem:[%s6436 + $0xf8] sm:$0xf]
        %v6500 = vld [vmem:[%s6436 + $0xfc] sm:$0xf]
        %v6501 = vld [vmem:[%s6436 + $0x100] sm:$0xf]
        %v6502 = vld [vmem:[%s6436 + $0x104] sm:$0xf]
        %v6503 = vld [vmem:[%s6436 + $0x108] sm:$0xf]
        %v6504 = vld [vmem:[%s6436 + $0x10c] sm:$0xf]
        %v6505 = vld [vmem:[%s6436 + $0x110] sm:$0xf]
        %v6506 = vld [vmem:[%s6436 + $0x114] sm:$0xf]
        %v6507 = vld [vmem:[%s6436 + $0x118] sm:$0xf]
        %v6508 = vld [vmem:[%s6436 + $0x11c] sm:$0xf]
        %v6509 = vld [vmem:[%s6436 + $0x120] sm:$0xf]
        %v6510 = vld [vmem:[%s6436 + $0x124] sm:$0xf]
        %v6511 = vld [vmem:[%s6436 + $0x128] sm:$0xf]
        %v6512 = vld [vmem:[%s6436 + $0x12c] sm:$0xf]
        %v6513 = vld [vmem:[%s6436 + $0x130] sm:$0xf]
        %v6514 = vld [vmem:[%s6436 + $0x134] sm:$0xf]
        %v6515 = vld [vmem:[%s6436 + $0x138] sm:$0xf]
        %v6516 = vld [vmem:[%s6436 + $0x13c] sm:$0xf]
        %v6517 = vld [vmem:[%s6436 + $0x140] sm:$0xf]
        %v6518 = vld [vmem:[%s6436 + $0x144] sm:$0xf]
        %v6519 = vld [vmem:[%s6436 + $0x148] sm:$0xf]
        %v6520 = vld [vmem:[%s6436 + $0x14c] sm:$0xf]
        %v6521 = vld [vmem:[%s6436 + $0x150] sm:$0xf]
        %v6522 = vld [vmem:[%s6436 + $0x154] sm:$0xf]
        %v6523 = vld [vmem:[%s6436 + $0x158] sm:$0xf]
        %v6524 = vld [vmem:[%s6436 + $0x15c] sm:$0xf]
        %v6525 = vld [vmem:[%s6436 + $0x160] sm:$0xf]
        %v6526 = vld [vmem:[%s6436 + $0x164] sm:$0xf]
        %v6527 = vld [vmem:[%s6436 + $0x168] sm:$0xf]
        %v6528 = vld [vmem:[%s6436 + $0x16c] sm:$0xf]
        %v6529 = vld [vmem:[%s6436 + $0x170] sm:$0xf]
        %v6530 = vld [vmem:[%s6436 + $0x174] sm:$0xf]
        %v6531 = vld [vmem:[%s6436 + $0x178] sm:$0xf]
        %v6532 = vld [vmem:[%s6436 + $0x17c] sm:$0xf]
        %v6533 = vld [vmem:[%s6436 + $0x180] sm:$0xf]
        %v6534 = vld [vmem:[%s6436 + $0x184] sm:$0xf]
        %v6535 = vld [vmem:[%s6436 + $0x188] sm:$0xf]
        %v6536 = vld [vmem:[%s6436 + $0x18c] sm:$0x1]
        %v6538 = vshrl.u32 %v6022, 16
        %v6541 = vshrl.u32 %v6023, 16
        %v6544 = vshrl.u32 %v6024, 16
        %v6547 = vshrl.u32 %v6025, 16
        %v6550 = vshrl.u32 %v6026, 16
        %v6553 = vshrl.u32 %v6027, 16
        %v6555 = vshrl.u32 %v6028, 16
        %v6663 = vunpack.c.l.b16 %v6437
        %v6664 = vunpack.c.l.b16 %v6438
        %v6665 = vunpack.c.l.b16 %v6439
        %v6666 = vunpack.c.l.b16 %v6440
        %v6667 = vunpack.c.l.b16 %v6441
        %v6668 = vunpack.c.l.b16 %v6442
        %v6669 = vunpack.c.l.b16 %v6443
        %v6670 = vunpack.c.l.b16 %v6444
        %v6671 = vunpack.c.l.b16 %v6445
        %v6672 = vunpack.c.l.b16 %v6446
        %v6673 = vunpack.c.l.b16 %v6447
        %v6674 = vunpack.c.l.b16 %v6448
        %v6675 = vunpack.c.l.b16 %v6449
        %v6676 = vunpack.c.l.b16 %v6450
        %v6677 = vunpack.c.l.b16 %v6451
        %v6678 = vunpack.c.l.b16 %v6452
        %v6679 = vunpack.c.l.b16 %v6453
        %v6680 = vunpack.c.l.b16 %v6454
        %v6681 = vunpack.c.l.b16 %v6455
        %v6682 = vunpack.c.l.b16 %v6456
        %v6683 = vunpack.c.l.b16 %v6457
        %v6684 = vunpack.c.l.b16 %v6458
        %v6685 = vunpack.c.l.b16 %v6459
        %v6686 = vunpack.c.l.b16 %v6460
        %v6687 = vunpack.c.l.b16 %v6461
        %v6688 = vunpack.c.l.b16 %v6462
        %v6689 = vunpack.c.l.b16 %v6463
        %v6690 = vunpack.c.l.b16 %v6464
        %v6691 = vunpack.c.l.b16 %v6465
        %v6692 = vunpack.c.l.b16 %v6466
        %v6693 = vunpack.c.l.b16 %v6467
        %v6694 = vunpack.c.l.b16 %v6468
        %v6695 = vunpack.c.l.b16 %v6469
        %v6696 = vunpack.c.l.b16 %v6470
        %v6697 = vunpack.c.l.b16 %v6471
        %v6698 = vunpack.c.l.b16 %v6472
        %v6699 = vunpack.c.l.b16 %v6473
        %v6700 = vunpack.c.l.b16 %v6474
        %v6701 = vunpack.c.l.b16 %v6475
        %v6702 = vunpack.c.l.b16 %v6476
        %v6703 = vunpack.c.l.b16 %v6477
        %v6704 = vunpack.c.l.b16 %v6478
        %v6705 = vunpack.c.l.b16 %v6479
        %v6706 = vunpack.c.l.b16 %v6480
        %v6707 = vunpack.c.l.b16 %v6481
        %v6708 = vunpack.c.l.b16 %v6482
        %v6709 = vunpack.c.l.b16 %v6483
        %v6710 = vunpack.c.l.b16 %v6484
        %v6711 = vunpack.c.l.b16 %v6485
        %v6712 = vunpack.c.l.b16 %v6486
        %v6713 = vunpack.c.l.b16 %v6487
        %v6714 = vunpack.c.l.b16 %v6488
        %v6715 = vunpack.c.l.b16 %v6489
        %v6716 = vunpack.c.l.b16 %v6490
        %v6717 = vunpack.c.l.b16 %v6491
        %v6718 = vunpack.c.l.b16 %v6492
        %v6719 = vunpack.c.l.b16 %v6493
        %v6720 = vunpack.c.l.b16 %v6494
        %v6721 = vunpack.c.l.b16 %v6495
        %v6722 = vunpack.c.l.b16 %v6496
        %v6723 = vunpack.c.l.b16 %v6497
        %v6724 = vunpack.c.l.b16 %v6498
        %v6725 = vunpack.c.l.b16 %v6499
        %v6726 = vunpack.c.l.b16 %v6500
        %v6727 = vunpack.c.l.b16 %v6501
        %v6728 = vunpack.c.l.b16 %v6502
        %v6729 = vunpack.c.l.b16 %v6503
        %v6730 = vunpack.c.l.b16 %v6504
        %v6731 = vunpack.c.l.b16 %v6505
        %v6732 = vunpack.c.l.b16 %v6506
        %v6733 = vunpack.c.l.b16 %v6507
        %v6734 = vunpack.c.l.b16 %v6508
        %v6735 = vunpack.c.l.b16 %v6509
        %v6736 = vunpack.c.l.b16 %v6510
        %v6737 = vunpack.c.l.b16 %v6511
        %v6738 = vunpack.c.l.b16 %v6512
        %v6739 = vunpack.c.l.b16 %v6513
        %v6740 = vunpack.c.l.b16 %v6514
        %v6741 = vunpack.c.l.b16 %v6515
        %v6742 = vunpack.c.l.b16 %v6516
        %v6743 = vunpack.c.l.b16 %v6517
        %v6744 = vunpack.c.l.b16 %v6518
        %v6745 = vunpack.c.l.b16 %v6519
        %v6746 = vunpack.c.l.b16 %v6520
        %v6747 = vunpack.c.l.b16 %v6521
        %v6748 = vunpack.c.l.b16 %v6522
        %v6749 = vunpack.c.l.b16 %v6523
        %v6750 = vunpack.c.l.b16 %v6524
        %v6751 = vunpack.c.l.b16 %v6525
        %v6752 = vunpack.c.l.b16 %v6526
        %v6753 = vunpack.c.l.b16 %v6527
        %v6754 = vunpack.c.l.b16 %v6528
        %v6755 = vunpack.c.l.b16 %v6529
        %v6756 = vunpack.c.l.b16 %v6530
        %v6757 = vunpack.c.l.b16 %v6531
        %v6758 = vunpack.c.l.b16 %v6532
        %v6759 = vunpack.c.l.b16 %v6533
        %v6760 = vunpack.c.l.b16 %v6534
        %v6761 = vunpack.c.l.b16 %v6535
        %v6762 = vunpack.c.l.b16 %v6536
        %v6763 = vpack.c.b16 %v6664, %v6663
        %v6764 = vpack.c.b16 %v6666, %v6665
        %v6765 = vpack.c.b16 %v6668, %v6667
        %v6766 = vpack.c.b16 %v6670, %v6669
        %v6767 = vpack.c.b16 %v6672, %v6671
        %v6768 = vpack.c.b16 %v6674, %v6673
        %v6769 = vpack.c.b16 %v6676, %v6675
        %v6770 = vpack.c.b16 %v6678, %v6677
        %v6771 = vpack.c.b16 %v6680, %v6679
        %v6772 = vpack.c.b16 %v6682, %v6681
        %v6773 = vpack.c.b16 %v6684, %v6683
        %v6774 = vpack.c.b16 %v6686, %v6685
        %v6775 = vpack.c.b16 %v6688, %v6687
        %v6776 = vpack.c.b16 %v6690, %v6689
        %v6777 = vpack.c.b16 %v6692, %v6691
        %v6778 = vpack.c.b16 %v6694, %v6693
        %v6779 = vpack.c.b16 %v6696, %v6695
        %v6780 = vpack.c.b16 %v6698, %v6697
        %v6781 = vpack.c.b16 %v6700, %v6699
        %v6782 = vpack.c.b16 %v6702, %v6701
        %v6783 = vpack.c.b16 %v6704, %v6703
        %v6784 = vpack.c.b16 %v6706, %v6705
        %v6785 = vpack.c.b16 %v6708, %v6707
        %v6786 = vpack.c.b16 %v6710, %v6709
        %v6787 = vpack.c.b16 %v6712, %v6711
        %v6788 = vpack.c.b16 %v6714, %v6713
        %v6789 = vpack.c.b16 %v6716, %v6715
        %v6790 = vpack.c.b16 %v6718, %v6717
        %v6791 = vpack.c.b16 %v6720, %v6719
        %v6792 = vpack.c.b16 %v6722, %v6721
        %v6793 = vpack.c.b16 %v6724, %v6723
        %v6794 = vpack.c.b16 %v6726, %v6725
        %v6795 = vpack.c.b16 %v6728, %v6727
        %v6796 = vpack.c.b16 %v6730, %v6729
        %v6797 = vpack.c.b16 %v6732, %v6731
        %v6798 = vpack.c.b16 %v6734, %v6733
        %v6799 = vpack.c.b16 %v6736, %v6735
        %v6800 = vpack.c.b16 %v6738, %v6737
        %v6801 = vpack.c.b16 %v6740, %v6739
        %v6802 = vpack.c.b16 %v6742, %v6741
        %v6803 = vpack.c.b16 %v6744, %v6743
        %v6804 = vpack.c.b16 %v6746, %v6745
        %v6805 = vpack.c.b16 %v6748, %v6747
        %v6806 = vpack.c.b16 %v6750, %v6749
        %v6807 = vpack.c.b16 %v6752, %v6751
        %v6808 = vpack.c.b16 %v6754, %v6753
        %v6809 = vpack.c.b16 %v6756, %v6755
        %v6810 = vpack.c.b16 %v6758, %v6757
        %v6811 = vpack.c.b16 %v6760, %v6759
        %v6812 = vpack.c.b16 %v6762, %v6761
        %v6863 = vsel %vm6334, %v6555, 0
        %v6866 = vand.u32 %v6812, %v6340
        %6868 = vmatpush.bf16.msra.mxu0 %v6770
        %6869 = vmatpush.bf16.msra.mxu0 %v6769
        %6870 = vmatpush.bf16.msra.mxu0 %v6768
        %6871 = vmatpush.bf16.msra.mxu0 %v6767
        %6872 = vmatpush.bf16.msra.mxu0 %v6766
        %6873 = vmatpush.bf16.msra.mxu0 %v6765
        %6874 = vmatpush.bf16.msra.mxu0 %v6764
        %6875 = vmatpush.bf16.msra.mxu0 %v6763
        %6876 = vmatmul.bf16.gmra.mxu0 %v6538
        %v6877 = vpop.f32.mrf.mxu0
        %v6878 = vadd.f32 0.0, %v6877
        %v6879 = vpop.f32.mrf.mxu0
        %6880 = vdwg.mxu0
        %6881 = vmatpush.bf16.msra.mxu0 %v6778
        %6882 = vmatpush.bf16.msra.mxu0 %v6777
        %6883 = vmatpush.bf16.msra.mxu0 %v6776
        %6884 = vmatpush.bf16.msra.mxu0 %v6775
        %6885 = vmatpush.bf16.msra.mxu0 %v6774
        %6886 = vmatpush.bf16.msra.mxu0 %v6773
        %6887 = vmatpush.bf16.msra.mxu0 %v6772
        %6888 = vmatpush.bf16.msra.mxu0 %v6771
        %6889 = vmatmul.bf16.gmra.mxu0 %v6541
        %v6890 = vpop.f32.mrf.mxu0
        %v6891 = vadd.f32 %v6878, %v6890
        %v6892 = vpop.f32.mrf.mxu0
        %6893 = vdwg.mxu0
        %6894 = vmatpush.bf16.msra.mxu0 %v6786
        %6895 = vmatpush.bf16.msra.mxu0 %v6785
        %6896 = vmatpush.bf16.msra.mxu0 %v6784
        %6897 = vmatpush.bf16.msra.mxu0 %v6783
        %6898 = vmatpush.bf16.msra.mxu0 %v6782
        %6899 = vmatpush.bf16.msra.mxu0 %v6781
        %6900 = vmatpush.bf16.msra.mxu0 %v6780
        %6901 = vmatpush.bf16.msra.mxu0 %v6779
        %6902 = vmatmul.bf16.gmra.mxu0 %v6544
        %v6903 = vpop.f32.mrf.mxu0
        %v6904 = vadd.f32 %v6891, %v6903
        %v6905 = vpop.f32.mrf.mxu0
        %6906 = vdwg.mxu0
        %6907 = vmatpush.bf16.msra.mxu0 %v6794
        %6908 = vmatpush.bf16.msra.mxu0 %v6793
        %6909 = vmatpush.bf16.msra.mxu0 %v6792
        %6910 = vmatpush.bf16.msra.mxu0 %v6791
        %6911 = vmatpush.bf16.msra.mxu0 %v6790
        %6912 = vmatpush.bf16.msra.mxu0 %v6789
        %6913 = vmatpush.bf16.msra.mxu0 %v6788
        %6914 = vmatpush.bf16.msra.mxu0 %v6787
        %6915 = vmatmul.bf16.gmra.mxu0 %v6547
        %v6916 = vpop.f32.mrf.mxu0
        %v6917 = vadd.f32 %v6904, %v6916
        %v6918 = vpop.f32.mrf.mxu0
        %6919 = vdwg.mxu0
        %6920 = vmatpush.bf16.msra.mxu0 %v6802
        %6921 = vmatpush.bf16.msra.mxu0 %v6801
        %6922 = vmatpush.bf16.msra.mxu0 %v6800
        %6923 = vmatpush.bf16.msra.mxu0 %v6799
        %6924 = vmatpush.bf16.msra.mxu0 %v6798
        %6925 = vmatpush.bf16.msra.mxu0 %v6797
        %6926 = vmatpush.bf16.msra.mxu0 %v6796
        %6927 = vmatpush.bf16.msra.mxu0 %v6795
        %6928 = vmatmul.bf16.gmra.mxu0 %v6550
        %v6929 = vpop.f32.mrf.mxu0
        %v6930 = vadd.f32 %v6917, %v6929
        %v6931 = vpop.f32.mrf.mxu0
        %6932 = vdwg.mxu0
        %6933 = vmatpush.bf16.msra.mxu0 %v6810
        %6934 = vmatpush.bf16.msra.mxu0 %v6809
        %6935 = vmatpush.bf16.msra.mxu0 %v6808
        %6936 = vmatpush.bf16.msra.mxu0 %v6807
        %6937 = vmatpush.bf16.msra.mxu0 %v6806
        %6938 = vmatpush.bf16.msra.mxu0 %v6805
        %6939 = vmatpush.bf16.msra.mxu0 %v6804
        %6940 = vmatpush.bf16.msra.mxu0 %v6803
        %6941 = vmatmul.bf16.gmra.mxu0 %v6553
        %v6942 = vpop.f32.mrf.mxu0
        %v6943 = vadd.f32 %v6930, %v6942
        %v6944 = vpop.f32.mrf.mxu0
        %6945 = vdwg.mxu0
        %6946 = vmatpush.bf16.msra.mxu0 0
        %6947 = vmatpush.bf16.msra.mxu0 0
        %6948 = vmatpush.bf16.msra.mxu0 0
        %6949 = vmatpush.bf16.msra.mxu0 0
        %6950 = vmatpush.bf16.msra.mxu0 0
        %6951 = vmatpush.bf16.msra.mxu0 0
        %6952 = vmatpush.bf16.msra.mxu0 %v6866
        %6953 = vmatpush.bf16.msra.mxu0 %v6811
        %6954 = vmatmul.bf16.gmra.mxu0 %v6863
        %v6955 = vpop.f32.mrf.mxu0
        %v6956 = vadd.f32 %v6943, %v6955
        %v6957 = vpop.f32.mrf.mxu0
        %6958 = vdwg.mxu0
        %v6959 = vadd.f32 %v6435, %v6956
        %s6960 = scalar_lea.vmem %s4, 800
        %v6961 = vld [vmem:[%s6960] sm:$0xf]
        %v6962 = vld [vmem:[%s6960 + $0x4] sm:$0xf]
        %v6963 = vld [vmem:[%s6960 + $0x8] sm:$0xf]
        %v6964 = vld [vmem:[%s6960 + $0xc] sm:$0xf]
        %v6965 = vld [vmem:[%s6960 + $0x10] sm:$0xf]
        %v6966 = vld [vmem:[%s6960 + $0x14] sm:$0xf]
        %v6967 = vld [vmem:[%s6960 + $0x18] sm:$0xf]
        %v6968 = vld [vmem:[%s6960 + $0x1c] sm:$0xf]
        %v6969 = vld [vmem:[%s6960 + $0x20] sm:$0xf]
        %v6970 = vld [vmem:[%s6960 + $0x24] sm:$0xf]
        %v6971 = vld [vmem:[%s6960 + $0x28] sm:$0xf]
        %v6972 = vld [vmem:[%s6960 + $0x2c] sm:$0xf]
        %v6973 = vld [vmem:[%s6960 + $0x30] sm:$0xf]
        %v6974 = vld [vmem:[%s6960 + $0x34] sm:$0xf]
        %v6975 = vld [vmem:[%s6960 + $0x38] sm:$0xf]
        %v6976 = vld [vmem:[%s6960 + $0x3c] sm:$0xf]
        %v6977 = vld [vmem:[%s6960 + $0x40] sm:$0xf]
        %v6978 = vld [vmem:[%s6960 + $0x44] sm:$0xf]
        %v6979 = vld [vmem:[%s6960 + $0x48] sm:$0xf]
        %v6980 = vld [vmem:[%s6960 + $0x4c] sm:$0xf]
        %v6981 = vld [vmem:[%s6960 + $0x50] sm:$0xf]
        %v6982 = vld [vmem:[%s6960 + $0x54] sm:$0xf]
        %v6983 = vld [vmem:[%s6960 + $0x58] sm:$0xf]
        %v6984 = vld [vmem:[%s6960 + $0x5c] sm:$0xf]
        %v6985 = vld [vmem:[%s6960 + $0x60] sm:$0xf]
        %v6986 = vld [vmem:[%s6960 + $0x64] sm:$0xf]
        %v6987 = vld [vmem:[%s6960 + $0x68] sm:$0xf]
        %v6988 = vld [vmem:[%s6960 + $0x6c] sm:$0xf]
        %v6989 = vld [vmem:[%s6960 + $0x70] sm:$0xf]
        %v6990 = vld [vmem:[%s6960 + $0x74] sm:$0xf]
        %v6991 = vld [vmem:[%s6960 + $0x78] sm:$0xf]
        %v6992 = vld [vmem:[%s6960 + $0x7c] sm:$0xf]
        %v6993 = vld [vmem:[%s6960 + $0x80] sm:$0xf]
        %v6994 = vld [vmem:[%s6960 + $0x84] sm:$0xf]
        %v6995 = vld [vmem:[%s6960 + $0x88] sm:$0xf]
        %v6996 = vld [vmem:[%s6960 + $0x8c] sm:$0xf]
        %v6997 = vld [vmem:[%s6960 + $0x90] sm:$0xf]
        %v6998 = vld [vmem:[%s6960 + $0x94] sm:$0xf]
        %v6999 = vld [vmem:[%s6960 + $0x98] sm:$0xf]
        %v7000 = vld [vmem:[%s6960 + $0x9c] sm:$0xf]
        %v7001 = vld [vmem:[%s6960 + $0xa0] sm:$0xf]
        %v7002 = vld [vmem:[%s6960 + $0xa4] sm:$0xf]
        %v7003 = vld [vmem:[%s6960 + $0xa8] sm:$0xf]
        %v7004 = vld [vmem:[%s6960 + $0xac] sm:$0xf]
        %v7005 = vld [vmem:[%s6960 + $0xb0] sm:$0xf]
        %v7006 = vld [vmem:[%s6960 + $0xb4] sm:$0xf]
        %v7007 = vld [vmem:[%s6960 + $0xb8] sm:$0xf]
        %v7008 = vld [vmem:[%s6960 + $0xbc] sm:$0xf]
        %v7009 = vld [vmem:[%s6960 + $0xc0] sm:$0xf]
        %v7010 = vld [vmem:[%s6960 + $0xc4] sm:$0xf]
        %v7011 = vld [vmem:[%s6960 + $0xc8] sm:$0xf]
        %v7012 = vld [vmem:[%s6960 + $0xcc] sm:$0xf]
        %v7013 = vld [vmem:[%s6960 + $0xd0] sm:$0xf]
        %v7014 = vld [vmem:[%s6960 + $0xd4] sm:$0xf]
        %v7015 = vld [vmem:[%s6960 + $0xd8] sm:$0xf]
        %v7016 = vld [vmem:[%s6960 + $0xdc] sm:$0xf]
        %v7017 = vld [vmem:[%s6960 + $0xe0] sm:$0xf]
        %v7018 = vld [vmem:[%s6960 + $0xe4] sm:$0xf]
        %v7019 = vld [vmem:[%s6960 + $0xe8] sm:$0xf]
        %v7020 = vld [vmem:[%s6960 + $0xec] sm:$0xf]
        %v7021 = vld [vmem:[%s6960 + $0xf0] sm:$0xf]
        %v7022 = vld [vmem:[%s6960 + $0xf4] sm:$0xf]
        %v7023 = vld [vmem:[%s6960 + $0xf8] sm:$0xf]
        %v7024 = vld [vmem:[%s6960 + $0xfc] sm:$0xf]
        %v7025 = vld [vmem:[%s6960 + $0x100] sm:$0xf]
        %v7026 = vld [vmem:[%s6960 + $0x104] sm:$0xf]
        %v7027 = vld [vmem:[%s6960 + $0x108] sm:$0xf]
        %v7028 = vld [vmem:[%s6960 + $0x10c] sm:$0xf]
        %v7029 = vld [vmem:[%s6960 + $0x110] sm:$0xf]
        %v7030 = vld [vmem:[%s6960 + $0x114] sm:$0xf]
        %v7031 = vld [vmem:[%s6960 + $0x118] sm:$0xf]
        %v7032 = vld [vmem:[%s6960 + $0x11c] sm:$0xf]
        %v7033 = vld [vmem:[%s6960 + $0x120] sm:$0xf]
        %v7034 = vld [vmem:[%s6960 + $0x124] sm:$0xf]
        %v7035 = vld [vmem:[%s6960 + $0x128] sm:$0xf]
        %v7036 = vld [vmem:[%s6960 + $0x12c] sm:$0xf]
        %v7037 = vld [vmem:[%s6960 + $0x130] sm:$0xf]
        %v7038 = vld [vmem:[%s6960 + $0x134] sm:$0xf]
        %v7039 = vld [vmem:[%s6960 + $0x138] sm:$0xf]
        %v7040 = vld [vmem:[%s6960 + $0x13c] sm:$0xf]
        %v7041 = vld [vmem:[%s6960 + $0x140] sm:$0xf]
        %v7042 = vld [vmem:[%s6960 + $0x144] sm:$0xf]
        %v7043 = vld [vmem:[%s6960 + $0x148] sm:$0xf]
        %v7044 = vld [vmem:[%s6960 + $0x14c] sm:$0xf]
        %v7045 = vld [vmem:[%s6960 + $0x150] sm:$0xf]
        %v7046 = vld [vmem:[%s6960 + $0x154] sm:$0xf]
        %v7047 = vld [vmem:[%s6960 + $0x158] sm:$0xf]
        %v7048 = vld [vmem:[%s6960 + $0x15c] sm:$0xf]
        %v7049 = vld [vmem:[%s6960 + $0x160] sm:$0xf]
        %v7050 = vld [vmem:[%s6960 + $0x164] sm:$0xf]
        %v7051 = vld [vmem:[%s6960 + $0x168] sm:$0xf]
        %v7052 = vld [vmem:[%s6960 + $0x16c] sm:$0xf]
        %v7053 = vld [vmem:[%s6960 + $0x170] sm:$0xf]
        %v7054 = vld [vmem:[%s6960 + $0x174] sm:$0xf]
        %v7055 = vld [vmem:[%s6960 + $0x178] sm:$0xf]
        %v7056 = vld [vmem:[%s6960 + $0x17c] sm:$0xf]
        %v7057 = vld [vmem:[%s6960 + $0x180] sm:$0xf]
        %v7058 = vld [vmem:[%s6960 + $0x184] sm:$0xf]
        %v7059 = vld [vmem:[%s6960 + $0x188] sm:$0xf]
        %v7060 = vld [vmem:[%s6960 + $0x18c] sm:$0x1]
        %v7061 = vrot.slane %v6022, 1
        %v7062 = vrot.slane %v6023, 1
        %v7063 = vrot.slane %v6024, 1
        %v7064 = vrot.slane %v6025, 1
        %v7065 = vrot.slane %v6026, 1
        %v7066 = vrot.slane %v6027, 1
        %v7067 = vrot.slane %v6028, 1
        %v7174 = vunpack.c.l.b16 %v6961
        %v7175 = vunpack.c.l.b16 %v6962
        %v7176 = vunpack.c.l.b16 %v6963
        %v7177 = vunpack.c.l.b16 %v6964
        %v7178 = vunpack.c.l.b16 %v6965
        %v7179 = vunpack.c.l.b16 %v6966
        %v7180 = vunpack.c.l.b16 %v6967
        %v7181 = vunpack.c.l.b16 %v6968
        %v7182 = vunpack.c.l.b16 %v6969
        %v7183 = vunpack.c.l.b16 %v6970
        %v7184 = vunpack.c.l.b16 %v6971
        %v7185 = vunpack.c.l.b16 %v6972
        %v7186 = vunpack.c.l.b16 %v6973
        %v7187 = vunpack.c.l.b16 %v6974
        %v7188 = vunpack.c.l.b16 %v6975
        %v7189 = vunpack.c.l.b16 %v6976
        %v7190 = vunpack.c.l.b16 %v6977
        %v7191 = vunpack.c.l.b16 %v6978
        %v7192 = vunpack.c.l.b16 %v6979
        %v7193 = vunpack.c.l.b16 %v6980
        %v7194 = vunpack.c.l.b16 %v6981
        %v7195 = vunpack.c.l.b16 %v6982
        %v7196 = vunpack.c.l.b16 %v6983
        %v7197 = vunpack.c.l.b16 %v6984
        %v7198 = vunpack.c.l.b16 %v6985
        %v7199 = vunpack.c.l.b16 %v6986
        %v7200 = vunpack.c.l.b16 %v6987
        %v7201 = vunpack.c.l.b16 %v6988
        %v7202 = vunpack.c.l.b16 %v6989
        %v7203 = vunpack.c.l.b16 %v6990
        %v7204 = vunpack.c.l.b16 %v6991
        %v7205 = vunpack.c.l.b16 %v6992
        %v7206 = vunpack.c.l.b16 %v6993
        %v7207 = vunpack.c.l.b16 %v6994
        %v7208 = vunpack.c.l.b16 %v6995
        %v7209 = vunpack.c.l.b16 %v6996
        %v7210 = vunpack.c.l.b16 %v6997
        %v7211 = vunpack.c.l.b16 %v6998
        %v7212 = vunpack.c.l.b16 %v6999
        %v7213 = vunpack.c.l.b16 %v7000
        %v7214 = vunpack.c.l.b16 %v7001
        %v7215 = vunpack.c.l.b16 %v7002
        %v7216 = vunpack.c.l.b16 %v7003
        %v7217 = vunpack.c.l.b16 %v7004
        %v7218 = vunpack.c.l.b16 %v7005
        %v7219 = vunpack.c.l.b16 %v7006
        %v7220 = vunpack.c.l.b16 %v7007
        %v7221 = vunpack.c.l.b16 %v7008
        %v7222 = vunpack.c.l.b16 %v7009
        %v7223 = vunpack.c.l.b16 %v7010
        %v7224 = vunpack.c.l.b16 %v7011
        %v7225 = vunpack.c.l.b16 %v7012
        %v7226 = vunpack.c.l.b16 %v7013
        %v7227 = vunpack.c.l.b16 %v7014
        %v7228 = vunpack.c.l.b16 %v7015
        %v7229 = vunpack.c.l.b16 %v7016
        %v7230 = vunpack.c.l.b16 %v7017
        %v7231 = vunpack.c.l.b16 %v7018
        %v7232 = vunpack.c.l.b16 %v7019
        %v7233 = vunpack.c.l.b16 %v7020
        %v7234 = vunpack.c.l.b16 %v7021
        %v7235 = vunpack.c.l.b16 %v7022
        %v7236 = vunpack.c.l.b16 %v7023
        %v7237 = vunpack.c.l.b16 %v7024
        %v7238 = vunpack.c.l.b16 %v7025
        %v7239 = vunpack.c.l.b16 %v7026
        %v7240 = vunpack.c.l.b16 %v7027
        %v7241 = vunpack.c.l.b16 %v7028
        %v7242 = vunpack.c.l.b16 %v7029
        %v7243 = vunpack.c.l.b16 %v7030
        %v7244 = vunpack.c.l.b16 %v7031
        %v7245 = vunpack.c.l.b16 %v7032
        %v7246 = vunpack.c.l.b16 %v7033
        %v7247 = vunpack.c.l.b16 %v7034
        %v7248 = vunpack.c.l.b16 %v7035
        %v7249 = vunpack.c.l.b16 %v7036
        %v7250 = vunpack.c.l.b16 %v7037
        %v7251 = vunpack.c.l.b16 %v7038
        %v7252 = vunpack.c.l.b16 %v7039
        %v7253 = vunpack.c.l.b16 %v7040
        %v7254 = vunpack.c.l.b16 %v7041
        %v7255 = vunpack.c.l.b16 %v7042
        %v7256 = vunpack.c.l.b16 %v7043
        %v7257 = vunpack.c.l.b16 %v7044
        %v7258 = vunpack.c.l.b16 %v7045
        %v7259 = vunpack.c.l.b16 %v7046
        %v7260 = vunpack.c.l.b16 %v7047
        %v7261 = vunpack.c.l.b16 %v7048
        %v7262 = vunpack.c.l.b16 %v7049
        %v7263 = vunpack.c.l.b16 %v7050
        %v7264 = vunpack.c.l.b16 %v7051
        %v7265 = vunpack.c.l.b16 %v7052
        %v7266 = vunpack.c.l.b16 %v7053
        %v7267 = vunpack.c.l.b16 %v7054
        %v7268 = vunpack.c.l.b16 %v7055
        %v7269 = vunpack.c.l.b16 %v7056
        %v7270 = vunpack.c.l.b16 %v7057
        %v7271 = vunpack.c.l.b16 %v7058
        %v7272 = vunpack.c.l.b16 %v7059
        %v7273 = vunpack.c.l.b16 %v7060
        %v7274 = vpack.c.b16 %v7175, %v7174
        %v7275 = vpack.c.b16 %v7177, %v7176
        %v7276 = vpack.c.b16 %v7179, %v7178
        %v7277 = vpack.c.b16 %v7181, %v7180
        %v7278 = vpack.c.b16 %v7183, %v7182
        %v7279 = vpack.c.b16 %v7185, %v7184
        %v7280 = vpack.c.b16 %v7187, %v7186
        %v7281 = vpack.c.b16 %v7189, %v7188
        %v7282 = vpack.c.b16 %v7191, %v7190
        %v7283 = vpack.c.b16 %v7193, %v7192
        %v7284 = vpack.c.b16 %v7195, %v7194
        %v7285 = vpack.c.b16 %v7197, %v7196
        %v7286 = vpack.c.b16 %v7199, %v7198
        %v7287 = vpack.c.b16 %v7201, %v7200
        %v7288 = vpack.c.b16 %v7203, %v7202
        %v7289 = vpack.c.b16 %v7205, %v7204
        %v7290 = vpack.c.b16 %v7207, %v7206
        %v7291 = vpack.c.b16 %v7209, %v7208
        %v7292 = vpack.c.b16 %v7211, %v7210
        %v7293 = vpack.c.b16 %v7213, %v7212
        %v7294 = vpack.c.b16 %v7215, %v7214
        %v7295 = vpack.c.b16 %v7217, %v7216
        %v7296 = vpack.c.b16 %v7219, %v7218
        %v7297 = vpack.c.b16 %v7221, %v7220
        %v7298 = vpack.c.b16 %v7223, %v7222
        %v7299 = vpack.c.b16 %v7225, %v7224
        %v7300 = vpack.c.b16 %v7227, %v7226
        %v7301 = vpack.c.b16 %v7229, %v7228
        %v7302 = vpack.c.b16 %v7231, %v7230
        %v7303 = vpack.c.b16 %v7233, %v7232
        %v7304 = vpack.c.b16 %v7235, %v7234
        %v7305 = vpack.c.b16 %v7237, %v7236
        %v7306 = vpack.c.b16 %v7239, %v7238
        %v7307 = vpack.c.b16 %v7241, %v7240
        %v7308 = vpack.c.b16 %v7243, %v7242
        %v7309 = vpack.c.b16 %v7245, %v7244
        %v7310 = vpack.c.b16 %v7247, %v7246
        %v7311 = vpack.c.b16 %v7249, %v7248
        %v7312 = vpack.c.b16 %v7251, %v7250
        %v7313 = vpack.c.b16 %v7253, %v7252
        %v7314 = vpack.c.b16 %v7255, %v7254
        %v7315 = vpack.c.b16 %v7257, %v7256
        %v7316 = vpack.c.b16 %v7259, %v7258
        %v7317 = vpack.c.b16 %v7261, %v7260
        %v7318 = vpack.c.b16 %v7263, %v7262
        %v7319 = vpack.c.b16 %v7265, %v7264
        %v7320 = vpack.c.b16 %v7267, %v7266
        %v7321 = vpack.c.b16 %v7269, %v7268
        %v7322 = vpack.c.b16 %v7271, %v7270
        %v7323 = vpack.c.b16 %v7273, %v7272
        %v7374 = vsel %vm6334, %v7067, 0
        %v7377 = vand.u32 %v7323, %v6340
        %7379 = vmatpush.bf16.msra.mxu0 %v7281
        %7380 = vmatpush.bf16.msra.mxu0 %v7280
        %7381 = vmatpush.bf16.msra.mxu0 %v7279
        %7382 = vmatpush.bf16.msra.mxu0 %v7278
        %7383 = vmatpush.bf16.msra.mxu0 %v7277
        %7384 = vmatpush.bf16.msra.mxu0 %v7276
        %7385 = vmatpush.bf16.msra.mxu0 %v7275
        %7386 = vmatpush.bf16.msra.mxu0 %v7274
        %7387 = vmatmul.bf16.gmra.mxu0 %v7061
        %v7388 = vpop.f32.mrf.mxu0
        %v7389 = vadd.f32 0.0, %v7388
        %v7390 = vpop.f32.mrf.mxu0
        %7391 = vdwg.mxu0
        %7392 = vmatpush.bf16.msra.mxu0 %v7289
        %7393 = vmatpush.bf16.msra.mxu0 %v7288
        %7394 = vmatpush.bf16.msra.mxu0 %v7287
        %7395 = vmatpush.bf16.msra.mxu0 %v7286
        %7396 = vmatpush.bf16.msra.mxu0 %v7285
        %7397 = vmatpush.bf16.msra.mxu0 %v7284
        %7398 = vmatpush.bf16.msra.mxu0 %v7283
        %7399 = vmatpush.bf16.msra.mxu0 %v7282
        %7400 = vmatmul.bf16.gmra.mxu0 %v7062
        %v7401 = vpop.f32.mrf.mxu0
        %v7402 = vadd.f32 %v7389, %v7401
        %v7403 = vpop.f32.mrf.mxu0
        %7404 = vdwg.mxu0
        %7405 = vmatpush.bf16.msra.mxu0 %v7297
        %7406 = vmatpush.bf16.msra.mxu0 %v7296
        %7407 = vmatpush.bf16.msra.mxu0 %v7295
        %7408 = vmatpush.bf16.msra.mxu0 %v7294
        %7409 = vmatpush.bf16.msra.mxu0 %v7293
        %7410 = vmatpush.bf16.msra.mxu0 %v7292
        %7411 = vmatpush.bf16.msra.mxu0 %v7291
        %7412 = vmatpush.bf16.msra.mxu0 %v7290
        %7413 = vmatmul.bf16.gmra.mxu0 %v7063
        %v7414 = vpop.f32.mrf.mxu0
        %v7415 = vadd.f32 %v7402, %v7414
        %v7416 = vpop.f32.mrf.mxu0
        %7417 = vdwg.mxu0
        %7418 = vmatpush.bf16.msra.mxu0 %v7305
        %7419 = vmatpush.bf16.msra.mxu0 %v7304
        %7420 = vmatpush.bf16.msra.mxu0 %v7303
        %7421 = vmatpush.bf16.msra.mxu0 %v7302
        %7422 = vmatpush.bf16.msra.mxu0 %v7301
        %7423 = vmatpush.bf16.msra.mxu0 %v7300
        %7424 = vmatpush.bf16.msra.mxu0 %v7299
        %7425 = vmatpush.bf16.msra.mxu0 %v7298
        %7426 = vmatmul.bf16.gmra.mxu0 %v7064
        %v7427 = vpop.f32.mrf.mxu0
        %v7428 = vadd.f32 %v7415, %v7427
        %v7429 = vpop.f32.mrf.mxu0
        %7430 = vdwg.mxu0
        %7431 = vmatpush.bf16.msra.mxu0 %v7313
        %7432 = vmatpush.bf16.msra.mxu0 %v7312
        %7433 = vmatpush.bf16.msra.mxu0 %v7311
        %7434 = vmatpush.bf16.msra.mxu0 %v7310
        %7435 = vmatpush.bf16.msra.mxu0 %v7309
        %7436 = vmatpush.bf16.msra.mxu0 %v7308
        %7437 = vmatpush.bf16.msra.mxu0 %v7307
        %7438 = vmatpush.bf16.msra.mxu0 %v7306
        %7439 = vmatmul.bf16.gmra.mxu0 %v7065
        %v7440 = vpop.f32.mrf.mxu0
        %v7441 = vadd.f32 %v7428, %v7440
        %v7442 = vpop.f32.mrf.mxu0
        %7443 = vdwg.mxu0
        %7444 = vmatpush.bf16.msra.mxu0 %v7321
        %7445 = vmatpush.bf16.msra.mxu0 %v7320
        %7446 = vmatpush.bf16.msra.mxu0 %v7319
        %7447 = vmatpush.bf16.msra.mxu0 %v7318
        %7448 = vmatpush.bf16.msra.mxu0 %v7317
        %7449 = vmatpush.bf16.msra.mxu0 %v7316
        %7450 = vmatpush.bf16.msra.mxu0 %v7315
        %7451 = vmatpush.bf16.msra.mxu0 %v7314
        %7452 = vmatmul.bf16.gmra.mxu0 %v7066
        %v7453 = vpop.f32.mrf.mxu0
        %v7454 = vadd.f32 %v7441, %v7453
        %v7455 = vpop.f32.mrf.mxu0
        %7456 = vdwg.mxu0
        %7457 = vmatpush.bf16.msra.mxu0 0
        %7458 = vmatpush.bf16.msra.mxu0 0
        %7459 = vmatpush.bf16.msra.mxu0 0
        %7460 = vmatpush.bf16.msra.mxu0 0
        %7461 = vmatpush.bf16.msra.mxu0 0
        %7462 = vmatpush.bf16.msra.mxu0 0
        %7463 = vmatpush.bf16.msra.mxu0 %v7377
        %7464 = vmatpush.bf16.msra.mxu0 %v7322
        %7465 = vmatmul.bf16.gmra.mxu0 %v7374
        %v7466 = vpop.f32.mrf.mxu0
        %v7467 = vadd.f32 %v7454, %v7466
        %v7468 = vpop.f32.mrf.mxu0
        %7469 = vdwg.mxu0
        %v7470 = vadd.f32 %v6959, %v7467
        %s7471 = scalar_lea.vmem %s4, 1200
        %v7472 = vld [vmem:[%s7471] sm:$0xf]
        %v7473 = vld [vmem:[%s7471 + $0x4] sm:$0xf]
        %v7474 = vld [vmem:[%s7471 + $0x8] sm:$0xf]
        %v7475 = vld [vmem:[%s7471 + $0xc] sm:$0xf]
        %v7476 = vld [vmem:[%s7471 + $0x10] sm:$0xf]
        %v7477 = vld [vmem:[%s7471 + $0x14] sm:$0xf]
        %v7478 = vld [vmem:[%s7471 + $0x18] sm:$0xf]
        %v7479 = vld [vmem:[%s7471 + $0x1c] sm:$0xf]
        %v7480 = vld [vmem:[%s7471 + $0x20] sm:$0xf]
        %v7481 = vld [vmem:[%s7471 + $0x24] sm:$0xf]
        %v7482 = vld [vmem:[%s7471 + $0x28] sm:$0xf]
        %v7483 = vld [vmem:[%s7471 + $0x2c] sm:$0xf]
        %v7484 = vld [vmem:[%s7471 + $0x30] sm:$0xf]
        %v7485 = vld [vmem:[%s7471 + $0x34] sm:$0xf]
        %v7486 = vld [vmem:[%s7471 + $0x38] sm:$0xf]
        %v7487 = vld [vmem:[%s7471 + $0x3c] sm:$0xf]
        %v7488 = vld [vmem:[%s7471 + $0x40] sm:$0xf]
        %v7489 = vld [vmem:[%s7471 + $0x44] sm:$0xf]
        %v7490 = vld [vmem:[%s7471 + $0x48] sm:$0xf]
        %v7491 = vld [vmem:[%s7471 + $0x4c] sm:$0xf]
        %v7492 = vld [vmem:[%s7471 + $0x50] sm:$0xf]
        %v7493 = vld [vmem:[%s7471 + $0x54] sm:$0xf]
        %v7494 = vld [vmem:[%s7471 + $0x58] sm:$0xf]
        %v7495 = vld [vmem:[%s7471 + $0x5c] sm:$0xf]
        %v7496 = vld [vmem:[%s7471 + $0x60] sm:$0xf]
        %v7497 = vld [vmem:[%s7471 + $0x64] sm:$0xf]
        %v7498 = vld [vmem:[%s7471 + $0x68] sm:$0xf]
        %v7499 = vld [vmem:[%s7471 + $0x6c] sm:$0xf]
        %v7500 = vld [vmem:[%s7471 + $0x70] sm:$0xf]
        %v7501 = vld [vmem:[%s7471 + $0x74] sm:$0xf]
        %v7502 = vld [vmem:[%s7471 + $0x78] sm:$0xf]
        %v7503 = vld [vmem:[%s7471 + $0x7c] sm:$0xf]
        %v7504 = vld [vmem:[%s7471 + $0x80] sm:$0xf]
        %v7505 = vld [vmem:[%s7471 + $0x84] sm:$0xf]
        %v7506 = vld [vmem:[%s7471 + $0x88] sm:$0xf]
        %v7507 = vld [vmem:[%s7471 + $0x8c] sm:$0xf]
        %v7508 = vld [vmem:[%s7471 + $0x90] sm:$0xf]
        %v7509 = vld [vmem:[%s7471 + $0x94] sm:$0xf]
        %v7510 = vld [vmem:[%s7471 + $0x98] sm:$0xf]
        %v7511 = vld [vmem:[%s7471 + $0x9c] sm:$0xf]
        %v7512 = vld [vmem:[%s7471 + $0xa0] sm:$0xf]
        %v7513 = vld [vmem:[%s7471 + $0xa4] sm:$0xf]
        %v7514 = vld [vmem:[%s7471 + $0xa8] sm:$0xf]
        %v7515 = vld [vmem:[%s7471 + $0xac] sm:$0xf]
        %v7516 = vld [vmem:[%s7471 + $0xb0] sm:$0xf]
        %v7517 = vld [vmem:[%s7471 + $0xb4] sm:$0xf]
        %v7518 = vld [vmem:[%s7471 + $0xb8] sm:$0xf]
        %v7519 = vld [vmem:[%s7471 + $0xbc] sm:$0xf]
        %v7520 = vld [vmem:[%s7471 + $0xc0] sm:$0xf]
        %v7521 = vld [vmem:[%s7471 + $0xc4] sm:$0xf]
        %v7522 = vld [vmem:[%s7471 + $0xc8] sm:$0xf]
        %v7523 = vld [vmem:[%s7471 + $0xcc] sm:$0xf]
        %v7524 = vld [vmem:[%s7471 + $0xd0] sm:$0xf]
        %v7525 = vld [vmem:[%s7471 + $0xd4] sm:$0xf]
        %v7526 = vld [vmem:[%s7471 + $0xd8] sm:$0xf]
        %v7527 = vld [vmem:[%s7471 + $0xdc] sm:$0xf]
        %v7528 = vld [vmem:[%s7471 + $0xe0] sm:$0xf]
        %v7529 = vld [vmem:[%s7471 + $0xe4] sm:$0xf]
        %v7530 = vld [vmem:[%s7471 + $0xe8] sm:$0xf]
        %v7531 = vld [vmem:[%s7471 + $0xec] sm:$0xf]
        %v7532 = vld [vmem:[%s7471 + $0xf0] sm:$0xf]
        %v7533 = vld [vmem:[%s7471 + $0xf4] sm:$0xf]
        %v7534 = vld [vmem:[%s7471 + $0xf8] sm:$0xf]
        %v7535 = vld [vmem:[%s7471 + $0xfc] sm:$0xf]
        %v7536 = vld [vmem:[%s7471 + $0x100] sm:$0xf]
        %v7537 = vld [vmem:[%s7471 + $0x104] sm:$0xf]
        %v7538 = vld [vmem:[%s7471 + $0x108] sm:$0xf]
        %v7539 = vld [vmem:[%s7471 + $0x10c] sm:$0xf]
        %v7540 = vld [vmem:[%s7471 + $0x110] sm:$0xf]
        %v7541 = vld [vmem:[%s7471 + $0x114] sm:$0xf]
        %v7542 = vld [vmem:[%s7471 + $0x118] sm:$0xf]
        %v7543 = vld [vmem:[%s7471 + $0x11c] sm:$0xf]
        %v7544 = vld [vmem:[%s7471 + $0x120] sm:$0xf]
        %v7545 = vld [vmem:[%s7471 + $0x124] sm:$0xf]
        %v7546 = vld [vmem:[%s7471 + $0x128] sm:$0xf]
        %v7547 = vld [vmem:[%s7471 + $0x12c] sm:$0xf]
        %v7548 = vld [vmem:[%s7471 + $0x130] sm:$0xf]
        %v7549 = vld [vmem:[%s7471 + $0x134] sm:$0xf]
        %v7550 = vld [vmem:[%s7471 + $0x138] sm:$0xf]
        %v7551 = vld [vmem:[%s7471 + $0x13c] sm:$0xf]
        %v7552 = vld [vmem:[%s7471 + $0x140] sm:$0xf]
        %v7553 = vld [vmem:[%s7471 + $0x144] sm:$0xf]
        %v7554 = vld [vmem:[%s7471 + $0x148] sm:$0xf]
        %v7555 = vld [vmem:[%s7471 + $0x14c] sm:$0xf]
        %v7556 = vld [vmem:[%s7471 + $0x150] sm:$0xf]
        %v7557 = vld [vmem:[%s7471 + $0x154] sm:$0xf]
        %v7558 = vld [vmem:[%s7471 + $0x158] sm:$0xf]
        %v7559 = vld [vmem:[%s7471 + $0x15c] sm:$0xf]
        %v7560 = vld [vmem:[%s7471 + $0x160] sm:$0xf]
        %v7561 = vld [vmem:[%s7471 + $0x164] sm:$0xf]
        %v7562 = vld [vmem:[%s7471 + $0x168] sm:$0xf]
        %v7563 = vld [vmem:[%s7471 + $0x16c] sm:$0xf]
        %v7564 = vld [vmem:[%s7471 + $0x170] sm:$0xf]
        %v7565 = vld [vmem:[%s7471 + $0x174] sm:$0xf]
        %v7566 = vld [vmem:[%s7471 + $0x178] sm:$0xf]
        %v7567 = vld [vmem:[%s7471 + $0x17c] sm:$0xf]
        %v7568 = vld [vmem:[%s7471 + $0x180] sm:$0xf]
        %v7569 = vld [vmem:[%s7471 + $0x184] sm:$0xf]
        %v7570 = vld [vmem:[%s7471 + $0x188] sm:$0xf]
        %v7571 = vld [vmem:[%s7471 + $0x18c] sm:$0x1]
        %v7572 = vrot.slane %v6538, 1
        %v7573 = vrot.slane %v6541, 1
        %v7574 = vrot.slane %v6544, 1
        %v7575 = vrot.slane %v6547, 1
        %v7576 = vrot.slane %v6550, 1
        %v7577 = vrot.slane %v6553, 1
        %v7578 = vrot.slane %v6555, 1
        %v7685 = vunpack.c.l.b16 %v7472
        %v7686 = vunpack.c.l.b16 %v7473
        %v7687 = vunpack.c.l.b16 %v7474
        %v7688 = vunpack.c.l.b16 %v7475
        %v7689 = vunpack.c.l.b16 %v7476
        %v7690 = vunpack.c.l.b16 %v7477
        %v7691 = vunpack.c.l.b16 %v7478
        %v7692 = vunpack.c.l.b16 %v7479
        %v7693 = vunpack.c.l.b16 %v7480
        %v7694 = vunpack.c.l.b16 %v7481
        %v7695 = vunpack.c.l.b16 %v7482
        %v7696 = vunpack.c.l.b16 %v7483
        %v7697 = vunpack.c.l.b16 %v7484
        %v7698 = vunpack.c.l.b16 %v7485
        %v7699 = vunpack.c.l.b16 %v7486
        %v7700 = vunpack.c.l.b16 %v7487
        %v7701 = vunpack.c.l.b16 %v7488
        %v7702 = vunpack.c.l.b16 %v7489
        %v7703 = vunpack.c.l.b16 %v7490
        %v7704 = vunpack.c.l.b16 %v7491
        %v7705 = vunpack.c.l.b16 %v7492
        %v7706 = vunpack.c.l.b16 %v7493
        %v7707 = vunpack.c.l.b16 %v7494
        %v7708 = vunpack.c.l.b16 %v7495
        %v7709 = vunpack.c.l.b16 %v7496
        %v7710 = vunpack.c.l.b16 %v7497
        %v7711 = vunpack.c.l.b16 %v7498
        %v7712 = vunpack.c.l.b16 %v7499
        %v7713 = vunpack.c.l.b16 %v7500
        %v7714 = vunpack.c.l.b16 %v7501
        %v7715 = vunpack.c.l.b16 %v7502
        %v7716 = vunpack.c.l.b16 %v7503
        %v7717 = vunpack.c.l.b16 %v7504
        %v7718 = vunpack.c.l.b16 %v7505
        %v7719 = vunpack.c.l.b16 %v7506
        %v7720 = vunpack.c.l.b16 %v7507
        %v7721 = vunpack.c.l.b16 %v7508
        %v7722 = vunpack.c.l.b16 %v7509
        %v7723 = vunpack.c.l.b16 %v7510
        %v7724 = vunpack.c.l.b16 %v7511
        %v7725 = vunpack.c.l.b16 %v7512
        %v7726 = vunpack.c.l.b16 %v7513
        %v7727 = vunpack.c.l.b16 %v7514
        %v7728 = vunpack.c.l.b16 %v7515
        %v7729 = vunpack.c.l.b16 %v7516
        %v7730 = vunpack.c.l.b16 %v7517
        %v7731 = vunpack.c.l.b16 %v7518
        %v7732 = vunpack.c.l.b16 %v7519
        %v7733 = vunpack.c.l.b16 %v7520
        %v7734 = vunpack.c.l.b16 %v7521
        %v7735 = vunpack.c.l.b16 %v7522
        %v7736 = vunpack.c.l.b16 %v7523
        %v7737 = vunpack.c.l.b16 %v7524
        %v7738 = vunpack.c.l.b16 %v7525
        %v7739 = vunpack.c.l.b16 %v7526
        %v7740 = vunpack.c.l.b16 %v7527
        %v7741 = vunpack.c.l.b16 %v7528
        %v7742 = vunpack.c.l.b16 %v7529
        %v7743 = vunpack.c.l.b16 %v7530
        %v7744 = vunpack.c.l.b16 %v7531
        %v7745 = vunpack.c.l.b16 %v7532
        %v7746 = vunpack.c.l.b16 %v7533
        %v7747 = vunpack.c.l.b16 %v7534
        %v7748 = vunpack.c.l.b16 %v7535
        %v7749 = vunpack.c.l.b16 %v7536
        %v7750 = vunpack.c.l.b16 %v7537
        %v7751 = vunpack.c.l.b16 %v7538
        %v7752 = vunpack.c.l.b16 %v7539
        %v7753 = vunpack.c.l.b16 %v7540
        %v7754 = vunpack.c.l.b16 %v7541
        %v7755 = vunpack.c.l.b16 %v7542
        %v7756 = vunpack.c.l.b16 %v7543
        %v7757 = vunpack.c.l.b16 %v7544
        %v7758 = vunpack.c.l.b16 %v7545
        %v7759 = vunpack.c.l.b16 %v7546
        %v7760 = vunpack.c.l.b16 %v7547
        %v7761 = vunpack.c.l.b16 %v7548
        %v7762 = vunpack.c.l.b16 %v7549
        %v7763 = vunpack.c.l.b16 %v7550
        %v7764 = vunpack.c.l.b16 %v7551
        %v7765 = vunpack.c.l.b16 %v7552
        %v7766 = vunpack.c.l.b16 %v7553
        %v7767 = vunpack.c.l.b16 %v7554
        %v7768 = vunpack.c.l.b16 %v7555
        %v7769 = vunpack.c.l.b16 %v7556
        %v7770 = vunpack.c.l.b16 %v7557
        %v7771 = vunpack.c.l.b16 %v7558
        %v7772 = vunpack.c.l.b16 %v7559
        %v7773 = vunpack.c.l.b16 %v7560
        %v7774 = vunpack.c.l.b16 %v7561
        %v7775 = vunpack.c.l.b16 %v7562
        %v7776 = vunpack.c.l.b16 %v7563
        %v7777 = vunpack.c.l.b16 %v7564
        %v7778 = vunpack.c.l.b16 %v7565
        %v7779 = vunpack.c.l.b16 %v7566
        %v7780 = vunpack.c.l.b16 %v7567
        %v7781 = vunpack.c.l.b16 %v7568
        %v7782 = vunpack.c.l.b16 %v7569
        %v7783 = vunpack.c.l.b16 %v7570
        %v7784 = vunpack.c.l.b16 %v7571
        %v7785 = vpack.c.b16 %v7686, %v7685
        %v7786 = vpack.c.b16 %v7688, %v7687
        %v7787 = vpack.c.b16 %v7690, %v7689
        %v7788 = vpack.c.b16 %v7692, %v7691
        %v7789 = vpack.c.b16 %v7694, %v7693
        %v7790 = vpack.c.b16 %v7696, %v7695
        %v7791 = vpack.c.b16 %v7698, %v7697
        %v7792 = vpack.c.b16 %v7700, %v7699
        %v7793 = vpack.c.b16 %v7702, %v7701
        %v7794 = vpack.c.b16 %v7704, %v7703
        %v7795 = vpack.c.b16 %v7706, %v7705
        %v7796 = vpack.c.b16 %v7708, %v7707
        %v7797 = vpack.c.b16 %v7710, %v7709
        %v7798 = vpack.c.b16 %v7712, %v7711
        %v7799 = vpack.c.b16 %v7714, %v7713
        %v7800 = vpack.c.b16 %v7716, %v7715
        %v7801 = vpack.c.b16 %v7718, %v7717
        %v7802 = vpack.c.b16 %v7720, %v7719
        %v7803 = vpack.c.b16 %v7722, %v7721
        %v7804 = vpack.c.b16 %v7724, %v7723
        %v7805 = vpack.c.b16 %v7726, %v7725
        %v7806 = vpack.c.b16 %v7728, %v7727
        %v7807 = vpack.c.b16 %v7730, %v7729
        %v7808 = vpack.c.b16 %v7732, %v7731
        %v7809 = vpack.c.b16 %v7734, %v7733
        %v7810 = vpack.c.b16 %v7736, %v7735
        %v7811 = vpack.c.b16 %v7738, %v7737
        %v7812 = vpack.c.b16 %v7740, %v7739
        %v7813 = vpack.c.b16 %v7742, %v7741
        %v7814 = vpack.c.b16 %v7744, %v7743
        %v7815 = vpack.c.b16 %v7746, %v7745
        %v7816 = vpack.c.b16 %v7748, %v7747
        %v7817 = vpack.c.b16 %v7750, %v7749
        %v7818 = vpack.c.b16 %v7752, %v7751
        %v7819 = vpack.c.b16 %v7754, %v7753
        %v7820 = vpack.c.b16 %v7756, %v7755
        %v7821 = vpack.c.b16 %v7758, %v7757
        %v7822 = vpack.c.b16 %v7760, %v7759
        %v7823 = vpack.c.b16 %v7762, %v7761
        %v7824 = vpack.c.b16 %v7764, %v7763
        %v7825 = vpack.c.b16 %v7766, %v7765
        %v7826 = vpack.c.b16 %v7768, %v7767
        %v7827 = vpack.c.b16 %v7770, %v7769
        %v7828 = vpack.c.b16 %v7772, %v7771
        %v7829 = vpack.c.b16 %v7774, %v7773
        %v7830 = vpack.c.b16 %v7776, %v7775
        %v7831 = vpack.c.b16 %v7778, %v7777
        %v7832 = vpack.c.b16 %v7780, %v7779
        %v7833 = vpack.c.b16 %v7782, %v7781
        %v7834 = vpack.c.b16 %v7784, %v7783
        %v7885 = vsel %vm6334, %v7578, 0
        %v7888 = vand.u32 %v7834, %v6340
        %7890 = vmatpush.bf16.msra.mxu0 %v7792
        %7891 = vmatpush.bf16.msra.mxu0 %v7791
        %7892 = vmatpush.bf16.msra.mxu0 %v7790
        %7893 = vmatpush.bf16.msra.mxu0 %v7789
        %7894 = vmatpush.bf16.msra.mxu0 %v7788
        %7895 = vmatpush.bf16.msra.mxu0 %v7787
        %7896 = vmatpush.bf16.msra.mxu0 %v7786
        %7897 = vmatpush.bf16.msra.mxu0 %v7785
        %7898 = vmatmul.bf16.gmra.mxu0 %v7572
        %v7899 = vpop.f32.mrf.mxu0
        %v7900 = vadd.f32 0.0, %v7899
        %v7901 = vpop.f32.mrf.mxu0
        %7902 = vdwg.mxu0
        %7903 = vmatpush.bf16.msra.mxu0 %v7800
        %7904 = vmatpush.bf16.msra.mxu0 %v7799
        %7905 = vmatpush.bf16.msra.mxu0 %v7798
        %7906 = vmatpush.bf16.msra.mxu0 %v7797
        %7907 = vmatpush.bf16.msra.mxu0 %v7796
        %7908 = vmatpush.bf16.msra.mxu0 %v7795
        %7909 = vmatpush.bf16.msra.mxu0 %v7794
        %7910 = vmatpush.bf16.msra.mxu0 %v7793
        %7911 = vmatmul.bf16.gmra.mxu0 %v7573
        %v7912 = vpop.f32.mrf.mxu0
        %v7913 = vadd.f32 %v7900, %v7912
        %v7914 = vpop.f32.mrf.mxu0
        %7915 = vdwg.mxu0
        %7916 = vmatpush.bf16.msra.mxu0 %v7808
        %7917 = vmatpush.bf16.msra.mxu0 %v7807
        %7918 = vmatpush.bf16.msra.mxu0 %v7806
        %7919 = vmatpush.bf16.msra.mxu0 %v7805
        %7920 = vmatpush.bf16.msra.mxu0 %v7804
        %7921 = vmatpush.bf16.msra.mxu0 %v7803
        %7922 = vmatpush.bf16.msra.mxu0 %v7802
        %7923 = vmatpush.bf16.msra.mxu0 %v7801
        %7924 = vmatmul.bf16.gmra.mxu0 %v7574
        %v7925 = vpop.f32.mrf.mxu0
        %v7926 = vadd.f32 %v7913, %v7925
        %v7927 = vpop.f32.mrf.mxu0
        %7928 = vdwg.mxu0
        %7929 = vmatpush.bf16.msra.mxu0 %v7816
        %7930 = vmatpush.bf16.msra.mxu0 %v7815
        %7931 = vmatpush.bf16.msra.mxu0 %v7814
        %7932 = vmatpush.bf16.msra.mxu0 %v7813
        %7933 = vmatpush.bf16.msra.mxu0 %v7812
        %7934 = vmatpush.bf16.msra.mxu0 %v7811
        %7935 = vmatpush.bf16.msra.mxu0 %v7810
        %7936 = vmatpush.bf16.msra.mxu0 %v7809
        %7937 = vmatmul.bf16.gmra.mxu0 %v7575
        %v7938 = vpop.f32.mrf.mxu0
        %v7939 = vadd.f32 %v7926, %v7938
        %v7940 = vpop.f32.mrf.mxu0
        %7941 = vdwg.mxu0
        %7942 = vmatpush.bf16.msra.mxu0 %v7824
        %7943 = vmatpush.bf16.msra.mxu0 %v7823
        %7944 = vmatpush.bf16.msra.mxu0 %v7822
        %7945 = vmatpush.bf16.msra.mxu0 %v7821
        %7946 = vmatpush.bf16.msra.mxu0 %v7820
        %7947 = vmatpush.bf16.msra.mxu0 %v7819
        %7948 = vmatpush.bf16.msra.mxu0 %v7818
        %7949 = vmatpush.bf16.msra.mxu0 %v7817
        %7950 = vmatmul.bf16.gmra.mxu0 %v7576
        %v7951 = vpop.f32.mrf.mxu0
        %v7952 = vadd.f32 %v7939, %v7951
        %v7953 = vpop.f32.mrf.mxu0
        %7954 = vdwg.mxu0
        %7955 = vmatpush.bf16.msra.mxu0 %v7832
        %7956 = vmatpush.bf16.msra.mxu0 %v7831
        %7957 = vmatpush.bf16.msra.mxu0 %v7830
        %7958 = vmatpush.bf16.msra.mxu0 %v7829
        %7959 = vmatpush.bf16.msra.mxu0 %v7828
        %7960 = vmatpush.bf16.msra.mxu0 %v7827
        %7961 = vmatpush.bf16.msra.mxu0 %v7826
        %7962 = vmatpush.bf16.msra.mxu0 %v7825
        %7963 = vmatmul.bf16.gmra.mxu0 %v7577
        %v7964 = vpop.f32.mrf.mxu0
        %v7965 = vadd.f32 %v7952, %v7964
        %v7966 = vpop.f32.mrf.mxu0
        %7967 = vdwg.mxu0
        %7968 = vmatpush.bf16.msra.mxu0 0
        %7969 = vmatpush.bf16.msra.mxu0 0
        %7970 = vmatpush.bf16.msra.mxu0 0
        %7971 = vmatpush.bf16.msra.mxu0 0
        %7972 = vmatpush.bf16.msra.mxu0 0
        %7973 = vmatpush.bf16.msra.mxu0 0
        %7974 = vmatpush.bf16.msra.mxu0 %v7888
        %7975 = vmatpush.bf16.msra.mxu0 %v7833
        %7976 = vmatmul.bf16.gmra.mxu0 %v7885
        %v7977 = vpop.f32.mrf.mxu0
        %v7978 = vadd.f32 %v7965, %v7977
        %v7979 = vpop.f32.mrf.mxu0
        %7980 = vdwg.mxu0
        %v7981 = vadd.f32 %v7470, %v7978
        %s7982 = scalar_lea.vmem %s4, 1600
        %v7983 = vld [vmem:[%s7982] sm:$0xf]
        %v7984 = vld [vmem:[%s7982 + $0x4] sm:$0xf]
        %v7985 = vld [vmem:[%s7982 + $0x8] sm:$0xf]
        %v7986 = vld [vmem:[%s7982 + $0xc] sm:$0xf]
        %v7987 = vld [vmem:[%s7982 + $0x10] sm:$0xf]
        %v7988 = vld [vmem:[%s7982 + $0x14] sm:$0xf]
        %v7989 = vld [vmem:[%s7982 + $0x18] sm:$0xf]
        %v7990 = vld [vmem:[%s7982 + $0x1c] sm:$0xf]
        %v7991 = vld [vmem:[%s7982 + $0x20] sm:$0xf]
        %v7992 = vld [vmem:[%s7982 + $0x24] sm:$0xf]
        %v7993 = vld [vmem:[%s7982 + $0x28] sm:$0xf]
        %v7994 = vld [vmem:[%s7982 + $0x2c] sm:$0xf]
        %v7995 = vld [vmem:[%s7982 + $0x30] sm:$0xf]
        %v7996 = vld [vmem:[%s7982 + $0x34] sm:$0xf]
        %v7997 = vld [vmem:[%s7982 + $0x38] sm:$0xf]
        %v7998 = vld [vmem:[%s7982 + $0x3c] sm:$0xf]
        %v7999 = vld [vmem:[%s7982 + $0x40] sm:$0xf]
        %v8000 = vld [vmem:[%s7982 + $0x44] sm:$0xf]
        %v8001 = vld [vmem:[%s7982 + $0x48] sm:$0xf]
        %v8002 = vld [vmem:[%s7982 + $0x4c] sm:$0xf]
        %v8003 = vld [vmem:[%s7982 + $0x50] sm:$0xf]
        %v8004 = vld [vmem:[%s7982 + $0x54] sm:$0xf]
        %v8005 = vld [vmem:[%s7982 + $0x58] sm:$0xf]
        %v8006 = vld [vmem:[%s7982 + $0x5c] sm:$0xf]
        %v8007 = vld [vmem:[%s7982 + $0x60] sm:$0xf]
        %v8008 = vld [vmem:[%s7982 + $0x64] sm:$0xf]
        %v8009 = vld [vmem:[%s7982 + $0x68] sm:$0xf]
        %v8010 = vld [vmem:[%s7982 + $0x6c] sm:$0xf]
        %v8011 = vld [vmem:[%s7982 + $0x70] sm:$0xf]
        %v8012 = vld [vmem:[%s7982 + $0x74] sm:$0xf]
        %v8013 = vld [vmem:[%s7982 + $0x78] sm:$0xf]
        %v8014 = vld [vmem:[%s7982 + $0x7c] sm:$0xf]
        %v8015 = vld [vmem:[%s7982 + $0x80] sm:$0xf]
        %v8016 = vld [vmem:[%s7982 + $0x84] sm:$0xf]
        %v8017 = vld [vmem:[%s7982 + $0x88] sm:$0xf]
        %v8018 = vld [vmem:[%s7982 + $0x8c] sm:$0xf]
        %v8019 = vld [vmem:[%s7982 + $0x90] sm:$0xf]
        %v8020 = vld [vmem:[%s7982 + $0x94] sm:$0xf]
        %v8021 = vld [vmem:[%s7982 + $0x98] sm:$0xf]
        %v8022 = vld [vmem:[%s7982 + $0x9c] sm:$0xf]
        %v8023 = vld [vmem:[%s7982 + $0xa0] sm:$0xf]
        %v8024 = vld [vmem:[%s7982 + $0xa4] sm:$0xf]
        %v8025 = vld [vmem:[%s7982 + $0xa8] sm:$0xf]
        %v8026 = vld [vmem:[%s7982 + $0xac] sm:$0xf]
        %v8027 = vld [vmem:[%s7982 + $0xb0] sm:$0xf]
        %v8028 = vld [vmem:[%s7982 + $0xb4] sm:$0xf]
        %v8029 = vld [vmem:[%s7982 + $0xb8] sm:$0xf]
        %v8030 = vld [vmem:[%s7982 + $0xbc] sm:$0xf]
        %v8031 = vld [vmem:[%s7982 + $0xc0] sm:$0xf]
        %v8032 = vld [vmem:[%s7982 + $0xc4] sm:$0xf]
        %v8033 = vld [vmem:[%s7982 + $0xc8] sm:$0xf]
        %v8034 = vld [vmem:[%s7982 + $0xcc] sm:$0xf]
        %v8035 = vld [vmem:[%s7982 + $0xd0] sm:$0xf]
        %v8036 = vld [vmem:[%s7982 + $0xd4] sm:$0xf]
        %v8037 = vld [vmem:[%s7982 + $0xd8] sm:$0xf]
        %v8038 = vld [vmem:[%s7982 + $0xdc] sm:$0xf]
        %v8039 = vld [vmem:[%s7982 + $0xe0] sm:$0xf]
        %v8040 = vld [vmem:[%s7982 + $0xe4] sm:$0xf]
        %v8041 = vld [vmem:[%s7982 + $0xe8] sm:$0xf]
        %v8042 = vld [vmem:[%s7982 + $0xec] sm:$0xf]
        %v8043 = vld [vmem:[%s7982 + $0xf0] sm:$0xf]
        %v8044 = vld [vmem:[%s7982 + $0xf4] sm:$0xf]
        %v8045 = vld [vmem:[%s7982 + $0xf8] sm:$0xf]
        %v8046 = vld [vmem:[%s7982 + $0xfc] sm:$0xf]
        %v8047 = vld [vmem:[%s7982 + $0x100] sm:$0xf]
        %v8048 = vld [vmem:[%s7982 + $0x104] sm:$0xf]
        %v8049 = vld [vmem:[%s7982 + $0x108] sm:$0xf]
        %v8050 = vld [vmem:[%s7982 + $0x10c] sm:$0xf]
        %v8051 = vld [vmem:[%s7982 + $0x110] sm:$0xf]
        %v8052 = vld [vmem:[%s7982 + $0x114] sm:$0xf]
        %v8053 = vld [vmem:[%s7982 + $0x118] sm:$0xf]
        %v8054 = vld [vmem:[%s7982 + $0x11c] sm:$0xf]
        %v8055 = vld [vmem:[%s7982 + $0x120] sm:$0xf]
        %v8056 = vld [vmem:[%s7982 + $0x124] sm:$0xf]
        %v8057 = vld [vmem:[%s7982 + $0x128] sm:$0xf]
        %v8058 = vld [vmem:[%s7982 + $0x12c] sm:$0xf]
        %v8059 = vld [vmem:[%s7982 + $0x130] sm:$0xf]
        %v8060 = vld [vmem:[%s7982 + $0x134] sm:$0xf]
        %v8061 = vld [vmem:[%s7982 + $0x138] sm:$0xf]
        %v8062 = vld [vmem:[%s7982 + $0x13c] sm:$0xf]
        %v8063 = vld [vmem:[%s7982 + $0x140] sm:$0xf]
        %v8064 = vld [vmem:[%s7982 + $0x144] sm:$0xf]
        %v8065 = vld [vmem:[%s7982 + $0x148] sm:$0xf]
        %v8066 = vld [vmem:[%s7982 + $0x14c] sm:$0xf]
        %v8067 = vld [vmem:[%s7982 + $0x150] sm:$0xf]
        %v8068 = vld [vmem:[%s7982 + $0x154] sm:$0xf]
        %v8069 = vld [vmem:[%s7982 + $0x158] sm:$0xf]
        %v8070 = vld [vmem:[%s7982 + $0x15c] sm:$0xf]
        %v8071 = vld [vmem:[%s7982 + $0x160] sm:$0xf]
        %v8072 = vld [vmem:[%s7982 + $0x164] sm:$0xf]
        %v8073 = vld [vmem:[%s7982 + $0x168] sm:$0xf]
        %v8074 = vld [vmem:[%s7982 + $0x16c] sm:$0xf]
        %v8075 = vld [vmem:[%s7982 + $0x170] sm:$0xf]
        %v8076 = vld [vmem:[%s7982 + $0x174] sm:$0xf]
        %v8077 = vld [vmem:[%s7982 + $0x178] sm:$0xf]
        %v8078 = vld [vmem:[%s7982 + $0x17c] sm:$0xf]
        %v8079 = vld [vmem:[%s7982 + $0x180] sm:$0xf]
        %v8080 = vld [vmem:[%s7982 + $0x184] sm:$0xf]
        %v8081 = vld [vmem:[%s7982 + $0x188] sm:$0xf]
        %v8082 = vld [vmem:[%s7982 + $0x18c] sm:$0x1]
        %v8083 = vrot.slane %v6022, 2
        %v8084 = vrot.slane %v6023, 2
        %v8085 = vrot.slane %v6024, 2
        %v8086 = vrot.slane %v6025, 2
        %v8087 = vrot.slane %v6026, 2
        %v8088 = vrot.slane %v6027, 2
        %v8089 = vrot.slane %v6028, 2
        %v8196 = vunpack.c.l.b16 %v7983
        %v8197 = vunpack.c.l.b16 %v7984
        %v8198 = vunpack.c.l.b16 %v7985
        %v8199 = vunpack.c.l.b16 %v7986
        %v8200 = vunpack.c.l.b16 %v7987
        %v8201 = vunpack.c.l.b16 %v7988
        %v8202 = vunpack.c.l.b16 %v7989
        %v8203 = vunpack.c.l.b16 %v7990
        %v8204 = vunpack.c.l.b16 %v7991
        %v8205 = vunpack.c.l.b16 %v7992
        %v8206 = vunpack.c.l.b16 %v7993
        %v8207 = vunpack.c.l.b16 %v7994
        %v8208 = vunpack.c.l.b16 %v7995
        %v8209 = vunpack.c.l.b16 %v7996
        %v8210 = vunpack.c.l.b16 %v7997
        %v8211 = vunpack.c.l.b16 %v7998
        %v8212 = vunpack.c.l.b16 %v7999
        %v8213 = vunpack.c.l.b16 %v8000
        %v8214 = vunpack.c.l.b16 %v8001
        %v8215 = vunpack.c.l.b16 %v8002
        %v8216 = vunpack.c.l.b16 %v8003
        %v8217 = vunpack.c.l.b16 %v8004
        %v8218 = vunpack.c.l.b16 %v8005
        %v8219 = vunpack.c.l.b16 %v8006
        %v8220 = vunpack.c.l.b16 %v8007
        %v8221 = vunpack.c.l.b16 %v8008
        %v8222 = vunpack.c.l.b16 %v8009
        %v8223 = vunpack.c.l.b16 %v8010
        %v8224 = vunpack.c.l.b16 %v8011
        %v8225 = vunpack.c.l.b16 %v8012
        %v8226 = vunpack.c.l.b16 %v8013
        %v8227 = vunpack.c.l.b16 %v8014
        %v8228 = vunpack.c.l.b16 %v8015
        %v8229 = vunpack.c.l.b16 %v8016
        %v8230 = vunpack.c.l.b16 %v8017
        %v8231 = vunpack.c.l.b16 %v8018
        %v8232 = vunpack.c.l.b16 %v8019
        %v8233 = vunpack.c.l.b16 %v8020
        %v8234 = vunpack.c.l.b16 %v8021
        %v8235 = vunpack.c.l.b16 %v8022
        %v8236 = vunpack.c.l.b16 %v8023
        %v8237 = vunpack.c.l.b16 %v8024
        %v8238 = vunpack.c.l.b16 %v8025
        %v8239 = vunpack.c.l.b16 %v8026
        %v8240 = vunpack.c.l.b16 %v8027
        %v8241 = vunpack.c.l.b16 %v8028
        %v8242 = vunpack.c.l.b16 %v8029
        %v8243 = vunpack.c.l.b16 %v8030
        %v8244 = vunpack.c.l.b16 %v8031
        %v8245 = vunpack.c.l.b16 %v8032
        %v8246 = vunpack.c.l.b16 %v8033
        %v8247 = vunpack.c.l.b16 %v8034
        %v8248 = vunpack.c.l.b16 %v8035
        %v8249 = vunpack.c.l.b16 %v8036
        %v8250 = vunpack.c.l.b16 %v8037
        %v8251 = vunpack.c.l.b16 %v8038
        %v8252 = vunpack.c.l.b16 %v8039
        %v8253 = vunpack.c.l.b16 %v8040
        %v8254 = vunpack.c.l.b16 %v8041
        %v8255 = vunpack.c.l.b16 %v8042
        %v8256 = vunpack.c.l.b16 %v8043
        %v8257 = vunpack.c.l.b16 %v8044
        %v8258 = vunpack.c.l.b16 %v8045
        %v8259 = vunpack.c.l.b16 %v8046
        %v8260 = vunpack.c.l.b16 %v8047
        %v8261 = vunpack.c.l.b16 %v8048
        %v8262 = vunpack.c.l.b16 %v8049
        %v8263 = vunpack.c.l.b16 %v8050
        %v8264 = vunpack.c.l.b16 %v8051
        %v8265 = vunpack.c.l.b16 %v8052
        %v8266 = vunpack.c.l.b16 %v8053
        %v8267 = vunpack.c.l.b16 %v8054
        %v8268 = vunpack.c.l.b16 %v8055
        %v8269 = vunpack.c.l.b16 %v8056
        %v8270 = vunpack.c.l.b16 %v8057
        %v8271 = vunpack.c.l.b16 %v8058
        %v8272 = vunpack.c.l.b16 %v8059
        %v8273 = vunpack.c.l.b16 %v8060
        %v8274 = vunpack.c.l.b16 %v8061
        %v8275 = vunpack.c.l.b16 %v8062
        %v8276 = vunpack.c.l.b16 %v8063
        %v8277 = vunpack.c.l.b16 %v8064
        %v8278 = vunpack.c.l.b16 %v8065
        %v8279 = vunpack.c.l.b16 %v8066
        %v8280 = vunpack.c.l.b16 %v8067
        %v8281 = vunpack.c.l.b16 %v8068
        %v8282 = vunpack.c.l.b16 %v8069
        %v8283 = vunpack.c.l.b16 %v8070
        %v8284 = vunpack.c.l.b16 %v8071
        %v8285 = vunpack.c.l.b16 %v8072
        %v8286 = vunpack.c.l.b16 %v8073
        %v8287 = vunpack.c.l.b16 %v8074
        %v8288 = vunpack.c.l.b16 %v8075
        %v8289 = vunpack.c.l.b16 %v8076
        %v8290 = vunpack.c.l.b16 %v8077
        %v8291 = vunpack.c.l.b16 %v8078
        %v8292 = vunpack.c.l.b16 %v8079
        %v8293 = vunpack.c.l.b16 %v8080
        %v8294 = vunpack.c.l.b16 %v8081
        %v8295 = vunpack.c.l.b16 %v8082
        %v8296 = vpack.c.b16 %v8197, %v8196
        %v8297 = vpack.c.b16 %v8199, %v8198
        %v8298 = vpack.c.b16 %v8201, %v8200
        %v8299 = vpack.c.b16 %v8203, %v8202
        %v8300 = vpack.c.b16 %v8205, %v8204
        %v8301 = vpack.c.b16 %v8207, %v8206
        %v8302 = vpack.c.b16 %v8209, %v8208
        %v8303 = vpack.c.b16 %v8211, %v8210
        %v8304 = vpack.c.b16 %v8213, %v8212
        %v8305 = vpack.c.b16 %v8215, %v8214
        %v8306 = vpack.c.b16 %v8217, %v8216
        %v8307 = vpack.c.b16 %v8219, %v8218
        %v8308 = vpack.c.b16 %v8221, %v8220
        %v8309 = vpack.c.b16 %v8223, %v8222
        %v8310 = vpack.c.b16 %v8225, %v8224
        %v8311 = vpack.c.b16 %v8227, %v8226
        %v8312 = vpack.c.b16 %v8229, %v8228
        %v8313 = vpack.c.b16 %v8231, %v8230
        %v8314 = vpack.c.b16 %v8233, %v8232
        %v8315 = vpack.c.b16 %v8235, %v8234
        %v8316 = vpack.c.b16 %v8237, %v8236
        %v8317 = vpack.c.b16 %v8239, %v8238
        %v8318 = vpack.c.b16 %v8241, %v8240
        %v8319 = vpack.c.b16 %v8243, %v8242
        %v8320 = vpack.c.b16 %v8245, %v8244
        %v8321 = vpack.c.b16 %v8247, %v8246
        %v8322 = vpack.c.b16 %v8249, %v8248
        %v8323 = vpack.c.b16 %v8251, %v8250
        %v8324 = vpack.c.b16 %v8253, %v8252
        %v8325 = vpack.c.b16 %v8255, %v8254
        %v8326 = vpack.c.b16 %v8257, %v8256
        %v8327 = vpack.c.b16 %v8259, %v8258
        %v8328 = vpack.c.b16 %v8261, %v8260
        %v8329 = vpack.c.b16 %v8263, %v8262
        %v8330 = vpack.c.b16 %v8265, %v8264
        %v8331 = vpack.c.b16 %v8267, %v8266
        %v8332 = vpack.c.b16 %v8269, %v8268
        %v8333 = vpack.c.b16 %v8271, %v8270
        %v8334 = vpack.c.b16 %v8273, %v8272
        %v8335 = vpack.c.b16 %v8275, %v8274
        %v8336 = vpack.c.b16 %v8277, %v8276
        %v8337 = vpack.c.b16 %v8279, %v8278
        %v8338 = vpack.c.b16 %v8281, %v8280
        %v8339 = vpack.c.b16 %v8283, %v8282
        %v8340 = vpack.c.b16 %v8285, %v8284
        %v8341 = vpack.c.b16 %v8287, %v8286
        %v8342 = vpack.c.b16 %v8289, %v8288
        %v8343 = vpack.c.b16 %v8291, %v8290
        %v8344 = vpack.c.b16 %v8293, %v8292
        %v8345 = vpack.c.b16 %v8295, %v8294
        %v8396 = vsel %vm6334, %v8089, 0
        %v8399 = vand.u32 %v8345, %v6340
        %8401 = vmatpush.bf16.msra.mxu0 %v8303
        %8402 = vmatpush.bf16.msra.mxu0 %v8302
        %8403 = vmatpush.bf16.msra.mxu0 %v8301
        %8404 = vmatpush.bf16.msra.mxu0 %v8300
        %8405 = vmatpush.bf16.msra.mxu0 %v8299
        %8406 = vmatpush.bf16.msra.mxu0 %v8298
        %8407 = vmatpush.bf16.msra.mxu0 %v8297
        %8408 = vmatpush.bf16.msra.mxu0 %v8296
        %8409 = vmatmul.bf16.gmra.mxu0 %v8083
        %v8410 = vpop.f32.mrf.mxu0
        %v8411 = vadd.f32 0.0, %v8410
        %v8412 = vpop.f32.mrf.mxu0
        %8413 = vdwg.mxu0
        %8414 = vmatpush.bf16.msra.mxu0 %v8311
        %8415 = vmatpush.bf16.msra.mxu0 %v8310
        %8416 = vmatpush.bf16.msra.mxu0 %v8309
        %8417 = vmatpush.bf16.msra.mxu0 %v8308
        %8418 = vmatpush.bf16.msra.mxu0 %v8307
        %8419 = vmatpush.bf16.msra.mxu0 %v8306
        %8420 = vmatpush.bf16.msra.mxu0 %v8305
        %8421 = vmatpush.bf16.msra.mxu0 %v8304
        %8422 = vmatmul.bf16.gmra.mxu0 %v8084
        %v8423 = vpop.f32.mrf.mxu0
        %v8424 = vadd.f32 %v8411, %v8423
        %v8425 = vpop.f32.mrf.mxu0
        %8426 = vdwg.mxu0
        %8427 = vmatpush.bf16.msra.mxu0 %v8319
        %8428 = vmatpush.bf16.msra.mxu0 %v8318
        %8429 = vmatpush.bf16.msra.mxu0 %v8317
        %8430 = vmatpush.bf16.msra.mxu0 %v8316
        %8431 = vmatpush.bf16.msra.mxu0 %v8315
        %8432 = vmatpush.bf16.msra.mxu0 %v8314
        %8433 = vmatpush.bf16.msra.mxu0 %v8313
        %8434 = vmatpush.bf16.msra.mxu0 %v8312
        %8435 = vmatmul.bf16.gmra.mxu0 %v8085
        %v8436 = vpop.f32.mrf.mxu0
        %v8437 = vadd.f32 %v8424, %v8436
        %v8438 = vpop.f32.mrf.mxu0
        %8439 = vdwg.mxu0
        %8440 = vmatpush.bf16.msra.mxu0 %v8327
        %8441 = vmatpush.bf16.msra.mxu0 %v8326
        %8442 = vmatpush.bf16.msra.mxu0 %v8325
        %8443 = vmatpush.bf16.msra.mxu0 %v8324
        %8444 = vmatpush.bf16.msra.mxu0 %v8323
        %8445 = vmatpush.bf16.msra.mxu0 %v8322
        %8446 = vmatpush.bf16.msra.mxu0 %v8321
        %8447 = vmatpush.bf16.msra.mxu0 %v8320
        %8448 = vmatmul.bf16.gmra.mxu0 %v8086
        %v8449 = vpop.f32.mrf.mxu0
        %v8450 = vadd.f32 %v8437, %v8449
        %v8451 = vpop.f32.mrf.mxu0
        %8452 = vdwg.mxu0
        %8453 = vmatpush.bf16.msra.mxu0 %v8335
        %8454 = vmatpush.bf16.msra.mxu0 %v8334
        %8455 = vmatpush.bf16.msra.mxu0 %v8333
        %8456 = vmatpush.bf16.msra.mxu0 %v8332
        %8457 = vmatpush.bf16.msra.mxu0 %v8331
        %8458 = vmatpush.bf16.msra.mxu0 %v8330
        %8459 = vmatpush.bf16.msra.mxu0 %v8329
        %8460 = vmatpush.bf16.msra.mxu0 %v8328
        %8461 = vmatmul.bf16.gmra.mxu0 %v8087
        %v8462 = vpop.f32.mrf.mxu0
        %v8463 = vadd.f32 %v8450, %v8462
        %v8464 = vpop.f32.mrf.mxu0
        %8465 = vdwg.mxu0
        %8466 = vmatpush.bf16.msra.mxu0 %v8343
        %8467 = vmatpush.bf16.msra.mxu0 %v8342
        %8468 = vmatpush.bf16.msra.mxu0 %v8341
        %8469 = vmatpush.bf16.msra.mxu0 %v8340
        %8470 = vmatpush.bf16.msra.mxu0 %v8339
        %8471 = vmatpush.bf16.msra.mxu0 %v8338
        %8472 = vmatpush.bf16.msra.mxu0 %v8337
        %8473 = vmatpush.bf16.msra.mxu0 %v8336
        %8474 = vmatmul.bf16.gmra.mxu0 %v8088
        %v8475 = vpop.f32.mrf.mxu0
        %v8476 = vadd.f32 %v8463, %v8475
        %v8477 = vpop.f32.mrf.mxu0
        %8478 = vdwg.mxu0
        %8479 = vmatpush.bf16.msra.mxu0 0
        %8480 = vmatpush.bf16.msra.mxu0 0
        %8481 = vmatpush.bf16.msra.mxu0 0
        %8482 = vmatpush.bf16.msra.mxu0 0
        %8483 = vmatpush.bf16.msra.mxu0 0
        %8484 = vmatpush.bf16.msra.mxu0 0
        %8485 = vmatpush.bf16.msra.mxu0 %v8399
        %8486 = vmatpush.bf16.msra.mxu0 %v8344
        %8487 = vmatmul.bf16.gmra.mxu0 %v8396
        %v8488 = vpop.f32.mrf.mxu0
        %v8489 = vadd.f32 %v8476, %v8488
        %v8490 = vpop.f32.mrf.mxu0
        %8491 = vdwg.mxu0
        %v8492 = vadd.f32 %v7981, %v8489
        %s8493 = scalar_lea.vmem %s4, 2000
        %v8494 = vld [vmem:[%s8493] sm:$0xf]
        %v8495 = vld [vmem:[%s8493 + $0x4] sm:$0xf]
        %v8496 = vld [vmem:[%s8493 + $0x8] sm:$0xf]
        %v8497 = vld [vmem:[%s8493 + $0xc] sm:$0xf]
        %v8498 = vld [vmem:[%s8493 + $0x10] sm:$0xf]
        %v8499 = vld [vmem:[%s8493 + $0x14] sm:$0xf]
        %v8500 = vld [vmem:[%s8493 + $0x18] sm:$0xf]
        %v8501 = vld [vmem:[%s8493 + $0x1c] sm:$0xf]
        %v8502 = vld [vmem:[%s8493 + $0x20] sm:$0xf]
        %v8503 = vld [vmem:[%s8493 + $0x24] sm:$0xf]
        %v8504 = vld [vmem:[%s8493 + $0x28] sm:$0xf]
        %v8505 = vld [vmem:[%s8493 + $0x2c] sm:$0xf]
        %v8506 = vld [vmem:[%s8493 + $0x30] sm:$0xf]
        %v8507 = vld [vmem:[%s8493 + $0x34] sm:$0xf]
        %v8508 = vld [vmem:[%s8493 + $0x38] sm:$0xf]
        %v8509 = vld [vmem:[%s8493 + $0x3c] sm:$0xf]
        %v8510 = vld [vmem:[%s8493 + $0x40] sm:$0xf]
        %v8511 = vld [vmem:[%s8493 + $0x44] sm:$0xf]
        %v8512 = vld [vmem:[%s8493 + $0x48] sm:$0xf]
        %v8513 = vld [vmem:[%s8493 + $0x4c] sm:$0xf]
        %v8514 = vld [vmem:[%s8493 + $0x50] sm:$0xf]
        %v8515 = vld [vmem:[%s8493 + $0x54] sm:$0xf]
        %v8516 = vld [vmem:[%s8493 + $0x58] sm:$0xf]
        %v8517 = vld [vmem:[%s8493 + $0x5c] sm:$0xf]
        %v8518 = vld [vmem:[%s8493 + $0x60] sm:$0xf]
        %v8519 = vld [vmem:[%s8493 + $0x64] sm:$0xf]
        %v8520 = vld [vmem:[%s8493 + $0x68] sm:$0xf]
        %v8521 = vld [vmem:[%s8493 + $0x6c] sm:$0xf]
        %v8522 = vld [vmem:[%s8493 + $0x70] sm:$0xf]
        %v8523 = vld [vmem:[%s8493 + $0x74] sm:$0xf]
        %v8524 = vld [vmem:[%s8493 + $0x78] sm:$0xf]
        %v8525 = vld [vmem:[%s8493 + $0x7c] sm:$0xf]
        %v8526 = vld [vmem:[%s8493 + $0x80] sm:$0xf]
        %v8527 = vld [vmem:[%s8493 + $0x84] sm:$0xf]
        %v8528 = vld [vmem:[%s8493 + $0x88] sm:$0xf]
        %v8529 = vld [vmem:[%s8493 + $0x8c] sm:$0xf]
        %v8530 = vld [vmem:[%s8493 + $0x90] sm:$0xf]
        %v8531 = vld [vmem:[%s8493 + $0x94] sm:$0xf]
        %v8532 = vld [vmem:[%s8493 + $0x98] sm:$0xf]
        %v8533 = vld [vmem:[%s8493 + $0x9c] sm:$0xf]
        %v8534 = vld [vmem:[%s8493 + $0xa0] sm:$0xf]
        %v8535 = vld [vmem:[%s8493 + $0xa4] sm:$0xf]
        %v8536 = vld [vmem:[%s8493 + $0xa8] sm:$0xf]
        %v8537 = vld [vmem:[%s8493 + $0xac] sm:$0xf]
        %v8538 = vld [vmem:[%s8493 + $0xb0] sm:$0xf]
        %v8539 = vld [vmem:[%s8493 + $0xb4] sm:$0xf]
        %v8540 = vld [vmem:[%s8493 + $0xb8] sm:$0xf]
        %v8541 = vld [vmem:[%s8493 + $0xbc] sm:$0xf]
        %v8542 = vld [vmem:[%s8493 + $0xc0] sm:$0xf]
        %v8543 = vld [vmem:[%s8493 + $0xc4] sm:$0xf]
        %v8544 = vld [vmem:[%s8493 + $0xc8] sm:$0xf]
        %v8545 = vld [vmem:[%s8493 + $0xcc] sm:$0xf]
        %v8546 = vld [vmem:[%s8493 + $0xd0] sm:$0xf]
        %v8547 = vld [vmem:[%s8493 + $0xd4] sm:$0xf]
        %v8548 = vld [vmem:[%s8493 + $0xd8] sm:$0xf]
        %v8549 = vld [vmem:[%s8493 + $0xdc] sm:$0xf]
        %v8550 = vld [vmem:[%s8493 + $0xe0] sm:$0xf]
        %v8551 = vld [vmem:[%s8493 + $0xe4] sm:$0xf]
        %v8552 = vld [vmem:[%s8493 + $0xe8] sm:$0xf]
        %v8553 = vld [vmem:[%s8493 + $0xec] sm:$0xf]
        %v8554 = vld [vmem:[%s8493 + $0xf0] sm:$0xf]
        %v8555 = vld [vmem:[%s8493 + $0xf4] sm:$0xf]
        %v8556 = vld [vmem:[%s8493 + $0xf8] sm:$0xf]
        %v8557 = vld [vmem:[%s8493 + $0xfc] sm:$0xf]
        %v8558 = vld [vmem:[%s8493 + $0x100] sm:$0xf]
        %v8559 = vld [vmem:[%s8493 + $0x104] sm:$0xf]
        %v8560 = vld [vmem:[%s8493 + $0x108] sm:$0xf]
        %v8561 = vld [vmem:[%s8493 + $0x10c] sm:$0xf]
        %v8562 = vld [vmem:[%s8493 + $0x110] sm:$0xf]
        %v8563 = vld [vmem:[%s8493 + $0x114] sm:$0xf]
        %v8564 = vld [vmem:[%s8493 + $0x118] sm:$0xf]
        %v8565 = vld [vmem:[%s8493 + $0x11c] sm:$0xf]
        %v8566 = vld [vmem:[%s8493 + $0x120] sm:$0xf]
        %v8567 = vld [vmem:[%s8493 + $0x124] sm:$0xf]
        %v8568 = vld [vmem:[%s8493 + $0x128] sm:$0xf]
        %v8569 = vld [vmem:[%s8493 + $0x12c] sm:$0xf]
        %v8570 = vld [vmem:[%s8493 + $0x130] sm:$0xf]
        %v8571 = vld [vmem:[%s8493 + $0x134] sm:$0xf]
        %v8572 = vld [vmem:[%s8493 + $0x138] sm:$0xf]
        %v8573 = vld [vmem:[%s8493 + $0x13c] sm:$0xf]
        %v8574 = vld [vmem:[%s8493 + $0x140] sm:$0xf]
        %v8575 = vld [vmem:[%s8493 + $0x144] sm:$0xf]
        %v8576 = vld [vmem:[%s8493 + $0x148] sm:$0xf]
        %v8577 = vld [vmem:[%s8493 + $0x14c] sm:$0xf]
        %v8578 = vld [vmem:[%s8493 + $0x150] sm:$0xf]
        %v8579 = vld [vmem:[%s8493 + $0x154] sm:$0xf]
        %v8580 = vld [vmem:[%s8493 + $0x158] sm:$0xf]
        %v8581 = vld [vmem:[%s8493 + $0x15c] sm:$0xf]
        %v8582 = vld [vmem:[%s8493 + $0x160] sm:$0xf]
        %v8583 = vld [vmem:[%s8493 + $0x164] sm:$0xf]
        %v8584 = vld [vmem:[%s8493 + $0x168] sm:$0xf]
        %v8585 = vld [vmem:[%s8493 + $0x16c] sm:$0xf]
        %v8586 = vld [vmem:[%s8493 + $0x170] sm:$0xf]
        %v8587 = vld [vmem:[%s8493 + $0x174] sm:$0xf]
        %v8588 = vld [vmem:[%s8493 + $0x178] sm:$0xf]
        %v8589 = vld [vmem:[%s8493 + $0x17c] sm:$0xf]
        %v8590 = vld [vmem:[%s8493 + $0x180] sm:$0xf]
        %v8591 = vld [vmem:[%s8493 + $0x184] sm:$0xf]
        %v8592 = vld [vmem:[%s8493 + $0x188] sm:$0xf]
        %v8593 = vld [vmem:[%s8493 + $0x18c] sm:$0x1]
        %v8594 = vrot.slane %v6538, 2
        %v8595 = vrot.slane %v6541, 2
        %v8596 = vrot.slane %v6544, 2
        %v8597 = vrot.slane %v6547, 2
        %v8598 = vrot.slane %v6550, 2
        %v8599 = vrot.slane %v6553, 2
        %v8600 = vrot.slane %v6555, 2
        %v8707 = vunpack.c.l.b16 %v8494
        %v8708 = vunpack.c.l.b16 %v8495
        %v8709 = vunpack.c.l.b16 %v8496
        %v8710 = vunpack.c.l.b16 %v8497
        %v8711 = vunpack.c.l.b16 %v8498
        %v8712 = vunpack.c.l.b16 %v8499
        %v8713 = vunpack.c.l.b16 %v8500
        %v8714 = vunpack.c.l.b16 %v8501
        %v8715 = vunpack.c.l.b16 %v8502
        %v8716 = vunpack.c.l.b16 %v8503
        %v8717 = vunpack.c.l.b16 %v8504
        %v8718 = vunpack.c.l.b16 %v8505
        %v8719 = vunpack.c.l.b16 %v8506
        %v8720 = vunpack.c.l.b16 %v8507
        %v8721 = vunpack.c.l.b16 %v8508
        %v8722 = vunpack.c.l.b16 %v8509
        %v8723 = vunpack.c.l.b16 %v8510
        %v8724 = vunpack.c.l.b16 %v8511
        %v8725 = vunpack.c.l.b16 %v8512
        %v8726 = vunpack.c.l.b16 %v8513
        %v8727 = vunpack.c.l.b16 %v8514
        %v8728 = vunpack.c.l.b16 %v8515
        %v8729 = vunpack.c.l.b16 %v8516
        %v8730 = vunpack.c.l.b16 %v8517
        %v8731 = vunpack.c.l.b16 %v8518
        %v8732 = vunpack.c.l.b16 %v8519
        %v8733 = vunpack.c.l.b16 %v8520
        %v8734 = vunpack.c.l.b16 %v8521
        %v8735 = vunpack.c.l.b16 %v8522
        %v8736 = vunpack.c.l.b16 %v8523
        %v8737 = vunpack.c.l.b16 %v8524
        %v8738 = vunpack.c.l.b16 %v8525
        %v8739 = vunpack.c.l.b16 %v8526
        %v8740 = vunpack.c.l.b16 %v8527
        %v8741 = vunpack.c.l.b16 %v8528
        %v8742 = vunpack.c.l.b16 %v8529
        %v8743 = vunpack.c.l.b16 %v8530
        %v8744 = vunpack.c.l.b16 %v8531
        %v8745 = vunpack.c.l.b16 %v8532
        %v8746 = vunpack.c.l.b16 %v8533
        %v8747 = vunpack.c.l.b16 %v8534
        %v8748 = vunpack.c.l.b16 %v8535
        %v8749 = vunpack.c.l.b16 %v8536
        %v8750 = vunpack.c.l.b16 %v8537
        %v8751 = vunpack.c.l.b16 %v8538
        %v8752 = vunpack.c.l.b16 %v8539
        %v8753 = vunpack.c.l.b16 %v8540
        %v8754 = vunpack.c.l.b16 %v8541
        %v8755 = vunpack.c.l.b16 %v8542
        %v8756 = vunpack.c.l.b16 %v8543
        %v8757 = vunpack.c.l.b16 %v8544
        %v8758 = vunpack.c.l.b16 %v8545
        %v8759 = vunpack.c.l.b16 %v8546
        %v8760 = vunpack.c.l.b16 %v8547
        %v8761 = vunpack.c.l.b16 %v8548
        %v8762 = vunpack.c.l.b16 %v8549
        %v8763 = vunpack.c.l.b16 %v8550
        %v8764 = vunpack.c.l.b16 %v8551
        %v8765 = vunpack.c.l.b16 %v8552
        %v8766 = vunpack.c.l.b16 %v8553
        %v8767 = vunpack.c.l.b16 %v8554
        %v8768 = vunpack.c.l.b16 %v8555
        %v8769 = vunpack.c.l.b16 %v8556
        %v8770 = vunpack.c.l.b16 %v8557
        %v8771 = vunpack.c.l.b16 %v8558
        %v8772 = vunpack.c.l.b16 %v8559
        %v8773 = vunpack.c.l.b16 %v8560
        %v8774 = vunpack.c.l.b16 %v8561
        %v8775 = vunpack.c.l.b16 %v8562
        %v8776 = vunpack.c.l.b16 %v8563
        %v8777 = vunpack.c.l.b16 %v8564
        %v8778 = vunpack.c.l.b16 %v8565
        %v8779 = vunpack.c.l.b16 %v8566
        %v8780 = vunpack.c.l.b16 %v8567
        %v8781 = vunpack.c.l.b16 %v8568
        %v8782 = vunpack.c.l.b16 %v8569
        %v8783 = vunpack.c.l.b16 %v8570
        %v8784 = vunpack.c.l.b16 %v8571
        %v8785 = vunpack.c.l.b16 %v8572
        %v8786 = vunpack.c.l.b16 %v8573
        %v8787 = vunpack.c.l.b16 %v8574
        %v8788 = vunpack.c.l.b16 %v8575
        %v8789 = vunpack.c.l.b16 %v8576
        %v8790 = vunpack.c.l.b16 %v8577
        %v8791 = vunpack.c.l.b16 %v8578
        %v8792 = vunpack.c.l.b16 %v8579
        %v8793 = vunpack.c.l.b16 %v8580
        %v8794 = vunpack.c.l.b16 %v8581
        %v8795 = vunpack.c.l.b16 %v8582
        %v8796 = vunpack.c.l.b16 %v8583
        %v8797 = vunpack.c.l.b16 %v8584
        %v8798 = vunpack.c.l.b16 %v8585
        %v8799 = vunpack.c.l.b16 %v8586
        %v8800 = vunpack.c.l.b16 %v8587
        %v8801 = vunpack.c.l.b16 %v8588
        %v8802 = vunpack.c.l.b16 %v8589
        %v8803 = vunpack.c.l.b16 %v8590
        %v8804 = vunpack.c.l.b16 %v8591
        %v8805 = vunpack.c.l.b16 %v8592
        %v8806 = vunpack.c.l.b16 %v8593
        %v8807 = vpack.c.b16 %v8708, %v8707
        %v8808 = vpack.c.b16 %v8710, %v8709
        %v8809 = vpack.c.b16 %v8712, %v8711
        %v8810 = vpack.c.b16 %v8714, %v8713
        %v8811 = vpack.c.b16 %v8716, %v8715
        %v8812 = vpack.c.b16 %v8718, %v8717
        %v8813 = vpack.c.b16 %v8720, %v8719
        %v8814 = vpack.c.b16 %v8722, %v8721
        %v8815 = vpack.c.b16 %v8724, %v8723
        %v8816 = vpack.c.b16 %v8726, %v8725
        %v8817 = vpack.c.b16 %v8728, %v8727
        %v8818 = vpack.c.b16 %v8730, %v8729
        %v8819 = vpack.c.b16 %v8732, %v8731
        %v8820 = vpack.c.b16 %v8734, %v8733
        %v8821 = vpack.c.b16 %v8736, %v8735
        %v8822 = vpack.c.b16 %v8738, %v8737
        %v8823 = vpack.c.b16 %v8740, %v8739
        %v8824 = vpack.c.b16 %v8742, %v8741
        %v8825 = vpack.c.b16 %v8744, %v8743
        %v8826 = vpack.c.b16 %v8746, %v8745
        %v8827 = vpack.c.b16 %v8748, %v8747
        %v8828 = vpack.c.b16 %v8750, %v8749
        %v8829 = vpack.c.b16 %v8752, %v8751
        %v8830 = vpack.c.b16 %v8754, %v8753
        %v8831 = vpack.c.b16 %v8756, %v8755
        %v8832 = vpack.c.b16 %v8758, %v8757
        %v8833 = vpack.c.b16 %v8760, %v8759
        %v8834 = vpack.c.b16 %v8762, %v8761
        %v8835 = vpack.c.b16 %v8764, %v8763
        %v8836 = vpack.c.b16 %v8766, %v8765
        %v8837 = vpack.c.b16 %v8768, %v8767
        %v8838 = vpack.c.b16 %v8770, %v8769
        %v8839 = vpack.c.b16 %v8772, %v8771
        %v8840 = vpack.c.b16 %v8774, %v8773
        %v8841 = vpack.c.b16 %v8776, %v8775
        %v8842 = vpack.c.b16 %v8778, %v8777
        %v8843 = vpack.c.b16 %v8780, %v8779
        %v8844 = vpack.c.b16 %v8782, %v8781
        %v8845 = vpack.c.b16 %v8784, %v8783
        %v8846 = vpack.c.b16 %v8786, %v8785
        %v8847 = vpack.c.b16 %v8788, %v8787
        %v8848 = vpack.c.b16 %v8790, %v8789
        %v8849 = vpack.c.b16 %v8792, %v8791
        %v8850 = vpack.c.b16 %v8794, %v8793
        %v8851 = vpack.c.b16 %v8796, %v8795
        %v8852 = vpack.c.b16 %v8798, %v8797
        %v8853 = vpack.c.b16 %v8800, %v8799
        %v8854 = vpack.c.b16 %v8802, %v8801
        %v8855 = vpack.c.b16 %v8804, %v8803
        %v8856 = vpack.c.b16 %v8806, %v8805
        %v8907 = vsel %vm6334, %v8600, 0
        %v8910 = vand.u32 %v8856, %v6340
        %8912 = vmatpush.bf16.msra.mxu0 %v8814
        %8913 = vmatpush.bf16.msra.mxu0 %v8813
        %8914 = vmatpush.bf16.msra.mxu0 %v8812
        %8915 = vmatpush.bf16.msra.mxu0 %v8811
        %8916 = vmatpush.bf16.msra.mxu0 %v8810
        %8917 = vmatpush.bf16.msra.mxu0 %v8809
        %8918 = vmatpush.bf16.msra.mxu0 %v8808
        %8919 = vmatpush.bf16.msra.mxu0 %v8807
        %8920 = vmatmul.bf16.gmra.mxu0 %v8594
        %v8921 = vpop.f32.mrf.mxu0
        %v8922 = vadd.f32 0.0, %v8921
        %v8923 = vpop.f32.mrf.mxu0
        %8924 = vdwg.mxu0
        %8925 = vmatpush.bf16.msra.mxu0 %v8822
        %8926 = vmatpush.bf16.msra.mxu0 %v8821
        %8927 = vmatpush.bf16.msra.mxu0 %v8820
        %8928 = vmatpush.bf16.msra.mxu0 %v8819
        %8929 = vmatpush.bf16.msra.mxu0 %v8818
        %8930 = vmatpush.bf16.msra.mxu0 %v8817
        %8931 = vmatpush.bf16.msra.mxu0 %v8816
        %8932 = vmatpush.bf16.msra.mxu0 %v8815
        %8933 = vmatmul.bf16.gmra.mxu0 %v8595
        %v8934 = vpop.f32.mrf.mxu0
        %v8935 = vadd.f32 %v8922, %v8934
        %v8936 = vpop.f32.mrf.mxu0
        %8937 = vdwg.mxu0
        %8938 = vmatpush.bf16.msra.mxu0 %v8830
        %8939 = vmatpush.bf16.msra.mxu0 %v8829
        %8940 = vmatpush.bf16.msra.mxu0 %v8828
        %8941 = vmatpush.bf16.msra.mxu0 %v8827
        %8942 = vmatpush.bf16.msra.mxu0 %v8826
        %8943 = vmatpush.bf16.msra.mxu0 %v8825
        %8944 = vmatpush.bf16.msra.mxu0 %v8824
        %8945 = vmatpush.bf16.msra.mxu0 %v8823
        %8946 = vmatmul.bf16.gmra.mxu0 %v8596
        %v8947 = vpop.f32.mrf.mxu0
        %v8948 = vadd.f32 %v8935, %v8947
        %v8949 = vpop.f32.mrf.mxu0
        %8950 = vdwg.mxu0
        %8951 = vmatpush.bf16.msra.mxu0 %v8838
        %8952 = vmatpush.bf16.msra.mxu0 %v8837
        %8953 = vmatpush.bf16.msra.mxu0 %v8836
        %8954 = vmatpush.bf16.msra.mxu0 %v8835
        %8955 = vmatpush.bf16.msra.mxu0 %v8834
        %8956 = vmatpush.bf16.msra.mxu0 %v8833
        %8957 = vmatpush.bf16.msra.mxu0 %v8832
        %8958 = vmatpush.bf16.msra.mxu0 %v8831
        %8959 = vmatmul.bf16.gmra.mxu0 %v8597
        %v8960 = vpop.f32.mrf.mxu0
        %v8961 = vadd.f32 %v8948, %v8960
        %v8962 = vpop.f32.mrf.mxu0
        %8963 = vdwg.mxu0
        %8964 = vmatpush.bf16.msra.mxu0 %v8846
        %8965 = vmatpush.bf16.msra.mxu0 %v8845
        %8966 = vmatpush.bf16.msra.mxu0 %v8844
        %8967 = vmatpush.bf16.msra.mxu0 %v8843
        %8968 = vmatpush.bf16.msra.mxu0 %v8842
        %8969 = vmatpush.bf16.msra.mxu0 %v8841
        %8970 = vmatpush.bf16.msra.mxu0 %v8840
        %8971 = vmatpush.bf16.msra.mxu0 %v8839
        %8972 = vmatmul.bf16.gmra.mxu0 %v8598
        %v8973 = vpop.f32.mrf.mxu0
        %v8974 = vadd.f32 %v8961, %v8973
        %v8975 = vpop.f32.mrf.mxu0
        %8976 = vdwg.mxu0
        %8977 = vmatpush.bf16.msra.mxu0 %v8854
        %8978 = vmatpush.bf16.msra.mxu0 %v8853
        %8979 = vmatpush.bf16.msra.mxu0 %v8852
        %8980 = vmatpush.bf16.msra.mxu0 %v8851
        %8981 = vmatpush.bf16.msra.mxu0 %v8850
        %8982 = vmatpush.bf16.msra.mxu0 %v8849
        %8983 = vmatpush.bf16.msra.mxu0 %v8848
        %8984 = vmatpush.bf16.msra.mxu0 %v8847
        %8985 = vmatmul.bf16.gmra.mxu0 %v8599
        %v8986 = vpop.f32.mrf.mxu0
        %v8987 = vadd.f32 %v8974, %v8986
        %v8988 = vpop.f32.mrf.mxu0
        %8989 = vdwg.mxu0
        %8990 = vmatpush.bf16.msra.mxu0 0
        %8991 = vmatpush.bf16.msra.mxu0 0
        %8992 = vmatpush.bf16.msra.mxu0 0
        %8993 = vmatpush.bf16.msra.mxu0 0
        %8994 = vmatpush.bf16.msra.mxu0 0
        %8995 = vmatpush.bf16.msra.mxu0 0
        %8996 = vmatpush.bf16.msra.mxu0 %v8910
        %8997 = vmatpush.bf16.msra.mxu0 %v8855
        %8998 = vmatmul.bf16.gmra.mxu0 %v8907
        %v8999 = vpop.f32.mrf.mxu0
        %v9000 = vadd.f32 %v8987, %v8999
        %v9001 = vpop.f32.mrf.mxu0
        %9002 = vdwg.mxu0
        %v9003 = vadd.f32 %v8492, %v9000
        %s9004 = scalar_lea.vmem %s4, 2400
        %v9005 = vld [vmem:[%s9004] sm:$0xf]
        %v9006 = vld [vmem:[%s9004 + $0x4] sm:$0xf]
        %v9007 = vld [vmem:[%s9004 + $0x8] sm:$0xf]
        %v9008 = vld [vmem:[%s9004 + $0xc] sm:$0xf]
        %v9009 = vld [vmem:[%s9004 + $0x10] sm:$0xf]
        %v9010 = vld [vmem:[%s9004 + $0x14] sm:$0xf]
        %v9011 = vld [vmem:[%s9004 + $0x18] sm:$0xf]
        %v9012 = vld [vmem:[%s9004 + $0x1c] sm:$0xf]
        %v9013 = vld [vmem:[%s9004 + $0x20] sm:$0xf]
        %v9014 = vld [vmem:[%s9004 + $0x24] sm:$0xf]
        %v9015 = vld [vmem:[%s9004 + $0x28] sm:$0xf]
        %v9016 = vld [vmem:[%s9004 + $0x2c] sm:$0xf]
        %v9017 = vld [vmem:[%s9004 + $0x30] sm:$0xf]
        %v9018 = vld [vmem:[%s9004 + $0x34] sm:$0xf]
        %v9019 = vld [vmem:[%s9004 + $0x38] sm:$0xf]
        %v9020 = vld [vmem:[%s9004 + $0x3c] sm:$0xf]
        %v9021 = vld [vmem:[%s9004 + $0x40] sm:$0xf]
        %v9022 = vld [vmem:[%s9004 + $0x44] sm:$0xf]
        %v9023 = vld [vmem:[%s9004 + $0x48] sm:$0xf]
        %v9024 = vld [vmem:[%s9004 + $0x4c] sm:$0xf]
        %v9025 = vld [vmem:[%s9004 + $0x50] sm:$0xf]
        %v9026 = vld [vmem:[%s9004 + $0x54] sm:$0xf]
        %v9027 = vld [vmem:[%s9004 + $0x58] sm:$0xf]
        %v9028 = vld [vmem:[%s9004 + $0x5c] sm:$0xf]
        %v9029 = vld [vmem:[%s9004 + $0x60] sm:$0xf]
        %v9030 = vld [vmem:[%s9004 + $0x64] sm:$0xf]
        %v9031 = vld [vmem:[%s9004 + $0x68] sm:$0xf]
        %v9032 = vld [vmem:[%s9004 + $0x6c] sm:$0xf]
        %v9033 = vld [vmem:[%s9004 + $0x70] sm:$0xf]
        %v9034 = vld [vmem:[%s9004 + $0x74] sm:$0xf]
        %v9035 = vld [vmem:[%s9004 + $0x78] sm:$0xf]
        %v9036 = vld [vmem:[%s9004 + $0x7c] sm:$0xf]
        %v9037 = vld [vmem:[%s9004 + $0x80] sm:$0xf]
        %v9038 = vld [vmem:[%s9004 + $0x84] sm:$0xf]
        %v9039 = vld [vmem:[%s9004 + $0x88] sm:$0xf]
        %v9040 = vld [vmem:[%s9004 + $0x8c] sm:$0xf]
        %v9041 = vld [vmem:[%s9004 + $0x90] sm:$0xf]
        %v9042 = vld [vmem:[%s9004 + $0x94] sm:$0xf]
        %v9043 = vld [vmem:[%s9004 + $0x98] sm:$0xf]
        %v9044 = vld [vmem:[%s9004 + $0x9c] sm:$0xf]
        %v9045 = vld [vmem:[%s9004 + $0xa0] sm:$0xf]
        %v9046 = vld [vmem:[%s9004 + $0xa4] sm:$0xf]
        %v9047 = vld [vmem:[%s9004 + $0xa8] sm:$0xf]
        %v9048 = vld [vmem:[%s9004 + $0xac] sm:$0xf]
        %v9049 = vld [vmem:[%s9004 + $0xb0] sm:$0xf]
        %v9050 = vld [vmem:[%s9004 + $0xb4] sm:$0xf]
        %v9051 = vld [vmem:[%s9004 + $0xb8] sm:$0xf]
        %v9052 = vld [vmem:[%s9004 + $0xbc] sm:$0xf]
        %v9053 = vld [vmem:[%s9004 + $0xc0] sm:$0xf]
        %v9054 = vld [vmem:[%s9004 + $0xc4] sm:$0xf]
        %v9055 = vld [vmem:[%s9004 + $0xc8] sm:$0xf]
        %v9056 = vld [vmem:[%s9004 + $0xcc] sm:$0xf]
        %v9057 = vld [vmem:[%s9004 + $0xd0] sm:$0xf]
        %v9058 = vld [vmem:[%s9004 + $0xd4] sm:$0xf]
        %v9059 = vld [vmem:[%s9004 + $0xd8] sm:$0xf]
        %v9060 = vld [vmem:[%s9004 + $0xdc] sm:$0xf]
        %v9061 = vld [vmem:[%s9004 + $0xe0] sm:$0xf]
        %v9062 = vld [vmem:[%s9004 + $0xe4] sm:$0xf]
        %v9063 = vld [vmem:[%s9004 + $0xe8] sm:$0xf]
        %v9064 = vld [vmem:[%s9004 + $0xec] sm:$0xf]
        %v9065 = vld [vmem:[%s9004 + $0xf0] sm:$0xf]
        %v9066 = vld [vmem:[%s9004 + $0xf4] sm:$0xf]
        %v9067 = vld [vmem:[%s9004 + $0xf8] sm:$0xf]
        %v9068 = vld [vmem:[%s9004 + $0xfc] sm:$0xf]
        %v9069 = vld [vmem:[%s9004 + $0x100] sm:$0xf]
        %v9070 = vld [vmem:[%s9004 + $0x104] sm:$0xf]
        %v9071 = vld [vmem:[%s9004 + $0x108] sm:$0xf]
        %v9072 = vld [vmem:[%s9004 + $0x10c] sm:$0xf]
        %v9073 = vld [vmem:[%s9004 + $0x110] sm:$0xf]
        %v9074 = vld [vmem:[%s9004 + $0x114] sm:$0xf]
        %v9075 = vld [vmem:[%s9004 + $0x118] sm:$0xf]
        %v9076 = vld [vmem:[%s9004 + $0x11c] sm:$0xf]
        %v9077 = vld [vmem:[%s9004 + $0x120] sm:$0xf]
        %v9078 = vld [vmem:[%s9004 + $0x124] sm:$0xf]
        %v9079 = vld [vmem:[%s9004 + $0x128] sm:$0xf]
        %v9080 = vld [vmem:[%s9004 + $0x12c] sm:$0xf]
        %v9081 = vld [vmem:[%s9004 + $0x130] sm:$0xf]
        %v9082 = vld [vmem:[%s9004 + $0x134] sm:$0xf]
        %v9083 = vld [vmem:[%s9004 + $0x138] sm:$0xf]
        %v9084 = vld [vmem:[%s9004 + $0x13c] sm:$0xf]
        %v9085 = vld [vmem:[%s9004 + $0x140] sm:$0xf]
        %v9086 = vld [vmem:[%s9004 + $0x144] sm:$0xf]
        %v9087 = vld [vmem:[%s9004 + $0x148] sm:$0xf]
        %v9088 = vld [vmem:[%s9004 + $0x14c] sm:$0xf]
        %v9089 = vld [vmem:[%s9004 + $0x150] sm:$0xf]
        %v9090 = vld [vmem:[%s9004 + $0x154] sm:$0xf]
        %v9091 = vld [vmem:[%s9004 + $0x158] sm:$0xf]
        %v9092 = vld [vmem:[%s9004 + $0x15c] sm:$0xf]
        %v9093 = vld [vmem:[%s9004 + $0x160] sm:$0xf]
        %v9094 = vld [vmem:[%s9004 + $0x164] sm:$0xf]
        %v9095 = vld [vmem:[%s9004 + $0x168] sm:$0xf]
        %v9096 = vld [vmem:[%s9004 + $0x16c] sm:$0xf]
        %v9097 = vld [vmem:[%s9004 + $0x170] sm:$0xf]
        %v9098 = vld [vmem:[%s9004 + $0x174] sm:$0xf]
        %v9099 = vld [vmem:[%s9004 + $0x178] sm:$0xf]
        %v9100 = vld [vmem:[%s9004 + $0x17c] sm:$0xf]
        %v9101 = vld [vmem:[%s9004 + $0x180] sm:$0xf]
        %v9102 = vld [vmem:[%s9004 + $0x184] sm:$0xf]
        %v9103 = vld [vmem:[%s9004 + $0x188] sm:$0xf]
        %v9104 = vld [vmem:[%s9004 + $0x18c] sm:$0x1]
        %v9105 = vrot.slane %v6022, 3
        %v9106 = vrot.slane %v6023, 3
        %v9107 = vrot.slane %v6024, 3
        %v9108 = vrot.slane %v6025, 3
        %v9109 = vrot.slane %v6026, 3
        %v9110 = vrot.slane %v6027, 3
        %v9111 = vrot.slane %v6028, 3
        %v9218 = vunpack.c.l.b16 %v9005
        %v9219 = vunpack.c.l.b16 %v9006
        %v9220 = vunpack.c.l.b16 %v9007
        %v9221 = vunpack.c.l.b16 %v9008
        %v9222 = vunpack.c.l.b16 %v9009
        %v9223 = vunpack.c.l.b16 %v9010
        %v9224 = vunpack.c.l.b16 %v9011
        %v9225 = vunpack.c.l.b16 %v9012
        %v9226 = vunpack.c.l.b16 %v9013
        %v9227 = vunpack.c.l.b16 %v9014
        %v9228 = vunpack.c.l.b16 %v9015
        %v9229 = vunpack.c.l.b16 %v9016
        %v9230 = vunpack.c.l.b16 %v9017
        %v9231 = vunpack.c.l.b16 %v9018
        %v9232 = vunpack.c.l.b16 %v9019
        %v9233 = vunpack.c.l.b16 %v9020
        %v9234 = vunpack.c.l.b16 %v9021
        %v9235 = vunpack.c.l.b16 %v9022
        %v9236 = vunpack.c.l.b16 %v9023
        %v9237 = vunpack.c.l.b16 %v9024
        %v9238 = vunpack.c.l.b16 %v9025
        %v9239 = vunpack.c.l.b16 %v9026
        %v9240 = vunpack.c.l.b16 %v9027
        %v9241 = vunpack.c.l.b16 %v9028
        %v9242 = vunpack.c.l.b16 %v9029
        %v9243 = vunpack.c.l.b16 %v9030
        %v9244 = vunpack.c.l.b16 %v9031
        %v9245 = vunpack.c.l.b16 %v9032
        %v9246 = vunpack.c.l.b16 %v9033
        %v9247 = vunpack.c.l.b16 %v9034
        %v9248 = vunpack.c.l.b16 %v9035
        %v9249 = vunpack.c.l.b16 %v9036
        %v9250 = vunpack.c.l.b16 %v9037
        %v9251 = vunpack.c.l.b16 %v9038
        %v9252 = vunpack.c.l.b16 %v9039
        %v9253 = vunpack.c.l.b16 %v9040
        %v9254 = vunpack.c.l.b16 %v9041
        %v9255 = vunpack.c.l.b16 %v9042
        %v9256 = vunpack.c.l.b16 %v9043
        %v9257 = vunpack.c.l.b16 %v9044
        %v9258 = vunpack.c.l.b16 %v9045
        %v9259 = vunpack.c.l.b16 %v9046
        %v9260 = vunpack.c.l.b16 %v9047
        %v9261 = vunpack.c.l.b16 %v9048
        %v9262 = vunpack.c.l.b16 %v9049
        %v9263 = vunpack.c.l.b16 %v9050
        %v9264 = vunpack.c.l.b16 %v9051
        %v9265 = vunpack.c.l.b16 %v9052
        %v9266 = vunpack.c.l.b16 %v9053
        %v9267 = vunpack.c.l.b16 %v9054
        %v9268 = vunpack.c.l.b16 %v9055
        %v9269 = vunpack.c.l.b16 %v9056
        %v9270 = vunpack.c.l.b16 %v9057
        %v9271 = vunpack.c.l.b16 %v9058
        %v9272 = vunpack.c.l.b16 %v9059
        %v9273 = vunpack.c.l.b16 %v9060
        %v9274 = vunpack.c.l.b16 %v9061
        %v9275 = vunpack.c.l.b16 %v9062
        %v9276 = vunpack.c.l.b16 %v9063
        %v9277 = vunpack.c.l.b16 %v9064
        %v9278 = vunpack.c.l.b16 %v9065
        %v9279 = vunpack.c.l.b16 %v9066
        %v9280 = vunpack.c.l.b16 %v9067
        %v9281 = vunpack.c.l.b16 %v9068
        %v9282 = vunpack.c.l.b16 %v9069
        %v9283 = vunpack.c.l.b16 %v9070
        %v9284 = vunpack.c.l.b16 %v9071
        %v9285 = vunpack.c.l.b16 %v9072
        %v9286 = vunpack.c.l.b16 %v9073
        %v9287 = vunpack.c.l.b16 %v9074
        %v9288 = vunpack.c.l.b16 %v9075
        %v9289 = vunpack.c.l.b16 %v9076
        %v9290 = vunpack.c.l.b16 %v9077
        %v9291 = vunpack.c.l.b16 %v9078
        %v9292 = vunpack.c.l.b16 %v9079
        %v9293 = vunpack.c.l.b16 %v9080
        %v9294 = vunpack.c.l.b16 %v9081
        %v9295 = vunpack.c.l.b16 %v9082
        %v9296 = vunpack.c.l.b16 %v9083
        %v9297 = vunpack.c.l.b16 %v9084
        %v9298 = vunpack.c.l.b16 %v9085
        %v9299 = vunpack.c.l.b16 %v9086
        %v9300 = vunpack.c.l.b16 %v9087
        %v9301 = vunpack.c.l.b16 %v9088
        %v9302 = vunpack.c.l.b16 %v9089
        %v9303 = vunpack.c.l.b16 %v9090
        %v9304 = vunpack.c.l.b16 %v9091
        %v9305 = vunpack.c.l.b16 %v9092
        %v9306 = vunpack.c.l.b16 %v9093
        %v9307 = vunpack.c.l.b16 %v9094
        %v9308 = vunpack.c.l.b16 %v9095
        %v9309 = vunpack.c.l.b16 %v9096
        %v9310 = vunpack.c.l.b16 %v9097
        %v9311 = vunpack.c.l.b16 %v9098
        %v9312 = vunpack.c.l.b16 %v9099
        %v9313 = vunpack.c.l.b16 %v9100
        %v9314 = vunpack.c.l.b16 %v9101
        %v9315 = vunpack.c.l.b16 %v9102
        %v9316 = vunpack.c.l.b16 %v9103
        %v9317 = vunpack.c.l.b16 %v9104
        %v9318 = vpack.c.b16 %v9219, %v9218
        %v9319 = vpack.c.b16 %v9221, %v9220
        %v9320 = vpack.c.b16 %v9223, %v9222
        %v9321 = vpack.c.b16 %v9225, %v9224
        %v9322 = vpack.c.b16 %v9227, %v9226
        %v9323 = vpack.c.b16 %v9229, %v9228
        %v9324 = vpack.c.b16 %v9231, %v9230
        %v9325 = vpack.c.b16 %v9233, %v9232
        %v9326 = vpack.c.b16 %v9235, %v9234
        %v9327 = vpack.c.b16 %v9237, %v9236
        %v9328 = vpack.c.b16 %v9239, %v9238
        %v9329 = vpack.c.b16 %v9241, %v9240
        %v9330 = vpack.c.b16 %v9243, %v9242
        %v9331 = vpack.c.b16 %v9245, %v9244
        %v9332 = vpack.c.b16 %v9247, %v9246
        %v9333 = vpack.c.b16 %v9249, %v9248
        %v9334 = vpack.c.b16 %v9251, %v9250
        %v9335 = vpack.c.b16 %v9253, %v9252
        %v9336 = vpack.c.b16 %v9255, %v9254
        %v9337 = vpack.c.b16 %v9257, %v9256
        %v9338 = vpack.c.b16 %v9259, %v9258
        %v9339 = vpack.c.b16 %v9261, %v9260
        %v9340 = vpack.c.b16 %v9263, %v9262
        %v9341 = vpack.c.b16 %v9265, %v9264
        %v9342 = vpack.c.b16 %v9267, %v9266
        %v9343 = vpack.c.b16 %v9269, %v9268
        %v9344 = vpack.c.b16 %v9271, %v9270
        %v9345 = vpack.c.b16 %v9273, %v9272
        %v9346 = vpack.c.b16 %v9275, %v9274
        %v9347 = vpack.c.b16 %v9277, %v9276
        %v9348 = vpack.c.b16 %v9279, %v9278
        %v9349 = vpack.c.b16 %v9281, %v9280
        %v9350 = vpack.c.b16 %v9283, %v9282
        %v9351 = vpack.c.b16 %v9285, %v9284
        %v9352 = vpack.c.b16 %v9287, %v9286
        %v9353 = vpack.c.b16 %v9289, %v9288
        %v9354 = vpack.c.b16 %v9291, %v9290
        %v9355 = vpack.c.b16 %v9293, %v9292
        %v9356 = vpack.c.b16 %v9295, %v9294
        %v9357 = vpack.c.b16 %v9297, %v9296
        %v9358 = vpack.c.b16 %v9299, %v9298
        %v9359 = vpack.c.b16 %v9301, %v9300
        %v9360 = vpack.c.b16 %v9303, %v9302
        %v9361 = vpack.c.b16 %v9305, %v9304
        %v9362 = vpack.c.b16 %v9307, %v9306
        %v9363 = vpack.c.b16 %v9309, %v9308
        %v9364 = vpack.c.b16 %v9311, %v9310
        %v9365 = vpack.c.b16 %v9313, %v9312
        %v9366 = vpack.c.b16 %v9315, %v9314
        %v9367 = vpack.c.b16 %v9317, %v9316
        %v9418 = vsel %vm6334, %v9111, 0
        %v9421 = vand.u32 %v9367, %v6340
        %9423 = vmatpush.bf16.msra.mxu0 %v9325
        %9424 = vmatpush.bf16.msra.mxu0 %v9324
        %9425 = vmatpush.bf16.msra.mxu0 %v9323
        %9426 = vmatpush.bf16.msra.mxu0 %v9322
        %9427 = vmatpush.bf16.msra.mxu0 %v9321
        %9428 = vmatpush.bf16.msra.mxu0 %v9320
        %9429 = vmatpush.bf16.msra.mxu0 %v9319
        %9430 = vmatpush.bf16.msra.mxu0 %v9318
        %9431 = vmatmul.bf16.gmra.mxu0 %v9105
        %v9432 = vpop.f32.mrf.mxu0
        %v9433 = vadd.f32 0.0, %v9432
        %v9434 = vpop.f32.mrf.mxu0
        %9435 = vdwg.mxu0
        %9436 = vmatpush.bf16.msra.mxu0 %v9333
        %9437 = vmatpush.bf16.msra.mxu0 %v9332
        %9438 = vmatpush.bf16.msra.mxu0 %v9331
        %9439 = vmatpush.bf16.msra.mxu0 %v9330
        %9440 = vmatpush.bf16.msra.mxu0 %v9329
        %9441 = vmatpush.bf16.msra.mxu0 %v9328
        %9442 = vmatpush.bf16.msra.mxu0 %v9327
        %9443 = vmatpush.bf16.msra.mxu0 %v9326
        %9444 = vmatmul.bf16.gmra.mxu0 %v9106
        %v9445 = vpop.f32.mrf.mxu0
        %v9446 = vadd.f32 %v9433, %v9445
        %v9447 = vpop.f32.mrf.mxu0
        %9448 = vdwg.mxu0
        %9449 = vmatpush.bf16.msra.mxu0 %v9341
        %9450 = vmatpush.bf16.msra.mxu0 %v9340
        %9451 = vmatpush.bf16.msra.mxu0 %v9339
        %9452 = vmatpush.bf16.msra.mxu0 %v9338
        %9453 = vmatpush.bf16.msra.mxu0 %v9337
        %9454 = vmatpush.bf16.msra.mxu0 %v9336
        %9455 = vmatpush.bf16.msra.mxu0 %v9335
        %9456 = vmatpush.bf16.msra.mxu0 %v9334
        %9457 = vmatmul.bf16.gmra.mxu0 %v9107
        %v9458 = vpop.f32.mrf.mxu0
        %v9459 = vadd.f32 %v9446, %v9458
        %v9460 = vpop.f32.mrf.mxu0
        %9461 = vdwg.mxu0
        %9462 = vmatpush.bf16.msra.mxu0 %v9349
        %9463 = vmatpush.bf16.msra.mxu0 %v9348
        %9464 = vmatpush.bf16.msra.mxu0 %v9347
        %9465 = vmatpush.bf16.msra.mxu0 %v9346
        %9466 = vmatpush.bf16.msra.mxu0 %v9345
        %9467 = vmatpush.bf16.msra.mxu0 %v9344
        %9468 = vmatpush.bf16.msra.mxu0 %v9343
        %9469 = vmatpush.bf16.msra.mxu0 %v9342
        %9470 = vmatmul.bf16.gmra.mxu0 %v9108
        %v9471 = vpop.f32.mrf.mxu0
        %v9472 = vadd.f32 %v9459, %v9471
        %v9473 = vpop.f32.mrf.mxu0
        %9474 = vdwg.mxu0
        %9475 = vmatpush.bf16.msra.mxu0 %v9357
        %9476 = vmatpush.bf16.msra.mxu0 %v9356
        %9477 = vmatpush.bf16.msra.mxu0 %v9355
        %9478 = vmatpush.bf16.msra.mxu0 %v9354
        %9479 = vmatpush.bf16.msra.mxu0 %v9353
        %9480 = vmatpush.bf16.msra.mxu0 %v9352
        %9481 = vmatpush.bf16.msra.mxu0 %v9351
        %9482 = vmatpush.bf16.msra.mxu0 %v9350
        %9483 = vmatmul.bf16.gmra.mxu0 %v9109
        %v9484 = vpop.f32.mrf.mxu0
        %v9485 = vadd.f32 %v9472, %v9484
        %v9486 = vpop.f32.mrf.mxu0
        %9487 = vdwg.mxu0
        %9488 = vmatpush.bf16.msra.mxu0 %v9365
        %9489 = vmatpush.bf16.msra.mxu0 %v9364
        %9490 = vmatpush.bf16.msra.mxu0 %v9363
        %9491 = vmatpush.bf16.msra.mxu0 %v9362
        %9492 = vmatpush.bf16.msra.mxu0 %v9361
        %9493 = vmatpush.bf16.msra.mxu0 %v9360
        %9494 = vmatpush.bf16.msra.mxu0 %v9359
        %9495 = vmatpush.bf16.msra.mxu0 %v9358
        %9496 = vmatmul.bf16.gmra.mxu0 %v9110
        %v9497 = vpop.f32.mrf.mxu0
        %v9498 = vadd.f32 %v9485, %v9497
        %v9499 = vpop.f32.mrf.mxu0
        %9500 = vdwg.mxu0
        %9501 = vmatpush.bf16.msra.mxu0 0
        %9502 = vmatpush.bf16.msra.mxu0 0
        %9503 = vmatpush.bf16.msra.mxu0 0
        %9504 = vmatpush.bf16.msra.mxu0 0
        %9505 = vmatpush.bf16.msra.mxu0 0
        %9506 = vmatpush.bf16.msra.mxu0 0
        %9507 = vmatpush.bf16.msra.mxu0 %v9421
        %9508 = vmatpush.bf16.msra.mxu0 %v9366
        %9509 = vmatmul.bf16.gmra.mxu0 %v9418
        %v9510 = vpop.f32.mrf.mxu0
        %v9511 = vadd.f32 %v9498, %v9510
        %v9512 = vpop.f32.mrf.mxu0
        %9513 = vdwg.mxu0
        %v9514 = vadd.f32 %v9003, %v9511
        %s9515 = scalar_lea.vmem %s4, 2800
        %v9516 = vld [vmem:[%s9515] sm:$0xf]
        %v9517 = vld [vmem:[%s9515 + $0x4] sm:$0xf]
        %v9518 = vld [vmem:[%s9515 + $0x8] sm:$0xf]
        %v9519 = vld [vmem:[%s9515 + $0xc] sm:$0xf]
        %v9520 = vld [vmem:[%s9515 + $0x10] sm:$0xf]
        %v9521 = vld [vmem:[%s9515 + $0x14] sm:$0xf]
        %v9522 = vld [vmem:[%s9515 + $0x18] sm:$0xf]
        %v9523 = vld [vmem:[%s9515 + $0x1c] sm:$0xf]
        %v9524 = vld [vmem:[%s9515 + $0x20] sm:$0xf]
        %v9525 = vld [vmem:[%s9515 + $0x24] sm:$0xf]
        %v9526 = vld [vmem:[%s9515 + $0x28] sm:$0xf]
        %v9527 = vld [vmem:[%s9515 + $0x2c] sm:$0xf]
        %v9528 = vld [vmem:[%s9515 + $0x30] sm:$0xf]
        %v9529 = vld [vmem:[%s9515 + $0x34] sm:$0xf]
        %v9530 = vld [vmem:[%s9515 + $0x38] sm:$0xf]
        %v9531 = vld [vmem:[%s9515 + $0x3c] sm:$0xf]
        %v9532 = vld [vmem:[%s9515 + $0x40] sm:$0xf]
        %v9533 = vld [vmem:[%s9515 + $0x44] sm:$0xf]
        %v9534 = vld [vmem:[%s9515 + $0x48] sm:$0xf]
        %v9535 = vld [vmem:[%s9515 + $0x4c] sm:$0xf]
        %v9536 = vld [vmem:[%s9515 + $0x50] sm:$0xf]
        %v9537 = vld [vmem:[%s9515 + $0x54] sm:$0xf]
        %v9538 = vld [vmem:[%s9515 + $0x58] sm:$0xf]
        %v9539 = vld [vmem:[%s9515 + $0x5c] sm:$0xf]
        %v9540 = vld [vmem:[%s9515 + $0x60] sm:$0xf]
        %v9541 = vld [vmem:[%s9515 + $0x64] sm:$0xf]
        %v9542 = vld [vmem:[%s9515 + $0x68] sm:$0xf]
        %v9543 = vld [vmem:[%s9515 + $0x6c] sm:$0xf]
        %v9544 = vld [vmem:[%s9515 + $0x70] sm:$0xf]
        %v9545 = vld [vmem:[%s9515 + $0x74] sm:$0xf]
        %v9546 = vld [vmem:[%s9515 + $0x78] sm:$0xf]
        %v9547 = vld [vmem:[%s9515 + $0x7c] sm:$0xf]
        %v9548 = vld [vmem:[%s9515 + $0x80] sm:$0xf]
        %v9549 = vld [vmem:[%s9515 + $0x84] sm:$0xf]
        %v9550 = vld [vmem:[%s9515 + $0x88] sm:$0xf]
        %v9551 = vld [vmem:[%s9515 + $0x8c] sm:$0xf]
        %v9552 = vld [vmem:[%s9515 + $0x90] sm:$0xf]
        %v9553 = vld [vmem:[%s9515 + $0x94] sm:$0xf]
        %v9554 = vld [vmem:[%s9515 + $0x98] sm:$0xf]
        %v9555 = vld [vmem:[%s9515 + $0x9c] sm:$0xf]
        %v9556 = vld [vmem:[%s9515 + $0xa0] sm:$0xf]
        %v9557 = vld [vmem:[%s9515 + $0xa4] sm:$0xf]
        %v9558 = vld [vmem:[%s9515 + $0xa8] sm:$0xf]
        %v9559 = vld [vmem:[%s9515 + $0xac] sm:$0xf]
        %v9560 = vld [vmem:[%s9515 + $0xb0] sm:$0xf]
        %v9561 = vld [vmem:[%s9515 + $0xb4] sm:$0xf]
        %v9562 = vld [vmem:[%s9515 + $0xb8] sm:$0xf]
        %v9563 = vld [vmem:[%s9515 + $0xbc] sm:$0xf]
        %v9564 = vld [vmem:[%s9515 + $0xc0] sm:$0xf]
        %v9565 = vld [vmem:[%s9515 + $0xc4] sm:$0xf]
        %v9566 = vld [vmem:[%s9515 + $0xc8] sm:$0xf]
        %v9567 = vld [vmem:[%s9515 + $0xcc] sm:$0xf]
        %v9568 = vld [vmem:[%s9515 + $0xd0] sm:$0xf]
        %v9569 = vld [vmem:[%s9515 + $0xd4] sm:$0xf]
        %v9570 = vld [vmem:[%s9515 + $0xd8] sm:$0xf]
        %v9571 = vld [vmem:[%s9515 + $0xdc] sm:$0xf]
        %v9572 = vld [vmem:[%s9515 + $0xe0] sm:$0xf]
        %v9573 = vld [vmem:[%s9515 + $0xe4] sm:$0xf]
        %v9574 = vld [vmem:[%s9515 + $0xe8] sm:$0xf]
        %v9575 = vld [vmem:[%s9515 + $0xec] sm:$0xf]
        %v9576 = vld [vmem:[%s9515 + $0xf0] sm:$0xf]
        %v9577 = vld [vmem:[%s9515 + $0xf4] sm:$0xf]
        %v9578 = vld [vmem:[%s9515 + $0xf8] sm:$0xf]
        %v9579 = vld [vmem:[%s9515 + $0xfc] sm:$0xf]
        %v9580 = vld [vmem:[%s9515 + $0x100] sm:$0xf]
        %v9581 = vld [vmem:[%s9515 + $0x104] sm:$0xf]
        %v9582 = vld [vmem:[%s9515 + $0x108] sm:$0xf]
        %v9583 = vld [vmem:[%s9515 + $0x10c] sm:$0xf]
        %v9584 = vld [vmem:[%s9515 + $0x110] sm:$0xf]
        %v9585 = vld [vmem:[%s9515 + $0x114] sm:$0xf]
        %v9586 = vld [vmem:[%s9515 + $0x118] sm:$0xf]
        %v9587 = vld [vmem:[%s9515 + $0x11c] sm:$0xf]
        %v9588 = vld [vmem:[%s9515 + $0x120] sm:$0xf]
        %v9589 = vld [vmem:[%s9515 + $0x124] sm:$0xf]
        %v9590 = vld [vmem:[%s9515 + $0x128] sm:$0xf]
        %v9591 = vld [vmem:[%s9515 + $0x12c] sm:$0xf]
        %v9592 = vld [vmem:[%s9515 + $0x130] sm:$0xf]
        %v9593 = vld [vmem:[%s9515 + $0x134] sm:$0xf]
        %v9594 = vld [vmem:[%s9515 + $0x138] sm:$0xf]
        %v9595 = vld [vmem:[%s9515 + $0x13c] sm:$0xf]
        %v9596 = vld [vmem:[%s9515 + $0x140] sm:$0xf]
        %v9597 = vld [vmem:[%s9515 + $0x144] sm:$0xf]
        %v9598 = vld [vmem:[%s9515 + $0x148] sm:$0xf]
        %v9599 = vld [vmem:[%s9515 + $0x14c] sm:$0xf]
        %v9600 = vld [vmem:[%s9515 + $0x150] sm:$0xf]
        %v9601 = vld [vmem:[%s9515 + $0x154] sm:$0xf]
        %v9602 = vld [vmem:[%s9515 + $0x158] sm:$0xf]
        %v9603 = vld [vmem:[%s9515 + $0x15c] sm:$0xf]
        %v9604 = vld [vmem:[%s9515 + $0x160] sm:$0xf]
        %v9605 = vld [vmem:[%s9515 + $0x164] sm:$0xf]
        %v9606 = vld [vmem:[%s9515 + $0x168] sm:$0xf]
        %v9607 = vld [vmem:[%s9515 + $0x16c] sm:$0xf]
        %v9608 = vld [vmem:[%s9515 + $0x170] sm:$0xf]
        %v9609 = vld [vmem:[%s9515 + $0x174] sm:$0xf]
        %v9610 = vld [vmem:[%s9515 + $0x178] sm:$0xf]
        %v9611 = vld [vmem:[%s9515 + $0x17c] sm:$0xf]
        %v9612 = vld [vmem:[%s9515 + $0x180] sm:$0xf]
        %v9613 = vld [vmem:[%s9515 + $0x184] sm:$0xf]
        %v9614 = vld [vmem:[%s9515 + $0x188] sm:$0xf]
        %v9615 = vld [vmem:[%s9515 + $0x18c] sm:$0x1]
        %v9616 = vrot.slane %v6538, 3
        %v9617 = vrot.slane %v6541, 3
        %v9618 = vrot.slane %v6544, 3
        %v9619 = vrot.slane %v6547, 3
        %v9620 = vrot.slane %v6550, 3
        %v9621 = vrot.slane %v6553, 3
        %v9622 = vrot.slane %v6555, 3
        %v9729 = vunpack.c.l.b16 %v9516
        %v9730 = vunpack.c.l.b16 %v9517
        %v9731 = vunpack.c.l.b16 %v9518
        %v9732 = vunpack.c.l.b16 %v9519
        %v9733 = vunpack.c.l.b16 %v9520
        %v9734 = vunpack.c.l.b16 %v9521
        %v9735 = vunpack.c.l.b16 %v9522
        %v9736 = vunpack.c.l.b16 %v9523
        %v9737 = vunpack.c.l.b16 %v9524
        %v9738 = vunpack.c.l.b16 %v9525
        %v9739 = vunpack.c.l.b16 %v9526
        %v9740 = vunpack.c.l.b16 %v9527
        %v9741 = vunpack.c.l.b16 %v9528
        %v9742 = vunpack.c.l.b16 %v9529
        %v9743 = vunpack.c.l.b16 %v9530
        %v9744 = vunpack.c.l.b16 %v9531
        %v9745 = vunpack.c.l.b16 %v9532
        %v9746 = vunpack.c.l.b16 %v9533
        %v9747 = vunpack.c.l.b16 %v9534
        %v9748 = vunpack.c.l.b16 %v9535
        %v9749 = vunpack.c.l.b16 %v9536
        %v9750 = vunpack.c.l.b16 %v9537
        %v9751 = vunpack.c.l.b16 %v9538
        %v9752 = vunpack.c.l.b16 %v9539
        %v9753 = vunpack.c.l.b16 %v9540
        %v9754 = vunpack.c.l.b16 %v9541
        %v9755 = vunpack.c.l.b16 %v9542
        %v9756 = vunpack.c.l.b16 %v9543
        %v9757 = vunpack.c.l.b16 %v9544
        %v9758 = vunpack.c.l.b16 %v9545
        %v9759 = vunpack.c.l.b16 %v9546
        %v9760 = vunpack.c.l.b16 %v9547
        %v9761 = vunpack.c.l.b16 %v9548
        %v9762 = vunpack.c.l.b16 %v9549
        %v9763 = vunpack.c.l.b16 %v9550
        %v9764 = vunpack.c.l.b16 %v9551
        %v9765 = vunpack.c.l.b16 %v9552
        %v9766 = vunpack.c.l.b16 %v9553
        %v9767 = vunpack.c.l.b16 %v9554
        %v9768 = vunpack.c.l.b16 %v9555
        %v9769 = vunpack.c.l.b16 %v9556
        %v9770 = vunpack.c.l.b16 %v9557
        %v9771 = vunpack.c.l.b16 %v9558
        %v9772 = vunpack.c.l.b16 %v9559
        %v9773 = vunpack.c.l.b16 %v9560
        %v9774 = vunpack.c.l.b16 %v9561
        %v9775 = vunpack.c.l.b16 %v9562
        %v9776 = vunpack.c.l.b16 %v9563
        %v9777 = vunpack.c.l.b16 %v9564
        %v9778 = vunpack.c.l.b16 %v9565
        %v9779 = vunpack.c.l.b16 %v9566
        %v9780 = vunpack.c.l.b16 %v9567
        %v9781 = vunpack.c.l.b16 %v9568
        %v9782 = vunpack.c.l.b16 %v9569
        %v9783 = vunpack.c.l.b16 %v9570
        %v9784 = vunpack.c.l.b16 %v9571
        %v9785 = vunpack.c.l.b16 %v9572
        %v9786 = vunpack.c.l.b16 %v9573
        %v9787 = vunpack.c.l.b16 %v9574
        %v9788 = vunpack.c.l.b16 %v9575
        %v9789 = vunpack.c.l.b16 %v9576
        %v9790 = vunpack.c.l.b16 %v9577
        %v9791 = vunpack.c.l.b16 %v9578
        %v9792 = vunpack.c.l.b16 %v9579
        %v9793 = vunpack.c.l.b16 %v9580
        %v9794 = vunpack.c.l.b16 %v9581
        %v9795 = vunpack.c.l.b16 %v9582
        %v9796 = vunpack.c.l.b16 %v9583
        %v9797 = vunpack.c.l.b16 %v9584
        %v9798 = vunpack.c.l.b16 %v9585
        %v9799 = vunpack.c.l.b16 %v9586
        %v9800 = vunpack.c.l.b16 %v9587
        %v9801 = vunpack.c.l.b16 %v9588
        %v9802 = vunpack.c.l.b16 %v9589
        %v9803 = vunpack.c.l.b16 %v9590
        %v9804 = vunpack.c.l.b16 %v9591
        %v9805 = vunpack.c.l.b16 %v9592
        %v9806 = vunpack.c.l.b16 %v9593
        %v9807 = vunpack.c.l.b16 %v9594
        %v9808 = vunpack.c.l.b16 %v9595
        %v9809 = vunpack.c.l.b16 %v9596
        %v9810 = vunpack.c.l.b16 %v9597
        %v9811 = vunpack.c.l.b16 %v9598
        %v9812 = vunpack.c.l.b16 %v9599
        %v9813 = vunpack.c.l.b16 %v9600
        %v9814 = vunpack.c.l.b16 %v9601
        %v9815 = vunpack.c.l.b16 %v9602
        %v9816 = vunpack.c.l.b16 %v9603
        %v9817 = vunpack.c.l.b16 %v9604
        %v9818 = vunpack.c.l.b16 %v9605
        %v9819 = vunpack.c.l.b16 %v9606
        %v9820 = vunpack.c.l.b16 %v9607
        %v9821 = vunpack.c.l.b16 %v9608
        %v9822 = vunpack.c.l.b16 %v9609
        %v9823 = vunpack.c.l.b16 %v9610
        %v9824 = vunpack.c.l.b16 %v9611
        %v9825 = vunpack.c.l.b16 %v9612
        %v9826 = vunpack.c.l.b16 %v9613
        %v9827 = vunpack.c.l.b16 %v9614
        %v9828 = vunpack.c.l.b16 %v9615
        %v9829 = vpack.c.b16 %v9730, %v9729
        %v9830 = vpack.c.b16 %v9732, %v9731
        %v9831 = vpack.c.b16 %v9734, %v9733
        %v9832 = vpack.c.b16 %v9736, %v9735
        %v9833 = vpack.c.b16 %v9738, %v9737
        %v9834 = vpack.c.b16 %v9740, %v9739
        %v9835 = vpack.c.b16 %v9742, %v9741
        %v9836 = vpack.c.b16 %v9744, %v9743
        %v9837 = vpack.c.b16 %v9746, %v9745
        %v9838 = vpack.c.b16 %v9748, %v9747
        %v9839 = vpack.c.b16 %v9750, %v9749
        %v9840 = vpack.c.b16 %v9752, %v9751
        %v9841 = vpack.c.b16 %v9754, %v9753
        %v9842 = vpack.c.b16 %v9756, %v9755
        %v9843 = vpack.c.b16 %v9758, %v9757
        %v9844 = vpack.c.b16 %v9760, %v9759
        %v9845 = vpack.c.b16 %v9762, %v9761
        %v9846 = vpack.c.b16 %v9764, %v9763
        %v9847 = vpack.c.b16 %v9766, %v9765
        %v9848 = vpack.c.b16 %v9768, %v9767
        %v9849 = vpack.c.b16 %v9770, %v9769
        %v9850 = vpack.c.b16 %v9772, %v9771
        %v9851 = vpack.c.b16 %v9774, %v9773
        %v9852 = vpack.c.b16 %v9776, %v9775
        %v9853 = vpack.c.b16 %v9778, %v9777
        %v9854 = vpack.c.b16 %v9780, %v9779
        %v9855 = vpack.c.b16 %v9782, %v9781
        %v9856 = vpack.c.b16 %v9784, %v9783
        %v9857 = vpack.c.b16 %v9786, %v9785
        %v9858 = vpack.c.b16 %v9788, %v9787
        %v9859 = vpack.c.b16 %v9790, %v9789
        %v9860 = vpack.c.b16 %v9792, %v9791
        %v9861 = vpack.c.b16 %v9794, %v9793
        %v9862 = vpack.c.b16 %v9796, %v9795
        %v9863 = vpack.c.b16 %v9798, %v9797
        %v9864 = vpack.c.b16 %v9800, %v9799
        %v9865 = vpack.c.b16 %v9802, %v9801
        %v9866 = vpack.c.b16 %v9804, %v9803
        %v9867 = vpack.c.b16 %v9806, %v9805
        %v9868 = vpack.c.b16 %v9808, %v9807
        %v9869 = vpack.c.b16 %v9810, %v9809
        %v9870 = vpack.c.b16 %v9812, %v9811
        %v9871 = vpack.c.b16 %v9814, %v9813
        %v9872 = vpack.c.b16 %v9816, %v9815
        %v9873 = vpack.c.b16 %v9818, %v9817
        %v9874 = vpack.c.b16 %v9820, %v9819
        %v9875 = vpack.c.b16 %v9822, %v9821
        %v9876 = vpack.c.b16 %v9824, %v9823
        %v9877 = vpack.c.b16 %v9826, %v9825
        %v9878 = vpack.c.b16 %v9828, %v9827
        %v9929 = vsel %vm6334, %v9622, 0
        %v9932 = vand.u32 %v9878, %v6340
        %9934 = vmatpush.bf16.msra.mxu0 %v9836
        %9935 = vmatpush.bf16.msra.mxu0 %v9835
        %9936 = vmatpush.bf16.msra.mxu0 %v9834
        %9937 = vmatpush.bf16.msra.mxu0 %v9833
        %9938 = vmatpush.bf16.msra.mxu0 %v9832
        %9939 = vmatpush.bf16.msra.mxu0 %v9831
        %9940 = vmatpush.bf16.msra.mxu0 %v9830
        %9941 = vmatpush.bf16.msra.mxu0 %v9829
        %9942 = vmatmul.bf16.gmra.mxu0 %v9616
        %v9943 = vpop.f32.mrf.mxu0
        %v9944 = vadd.f32 0.0, %v9943
        %v9945 = vpop.f32.mrf.mxu0
        %9946 = vdwg.mxu0
        %9947 = vmatpush.bf16.msra.mxu0 %v9844
        %9948 = vmatpush.bf16.msra.mxu0 %v9843
        %9949 = vmatpush.bf16.msra.mxu0 %v9842
        %9950 = vmatpush.bf16.msra.mxu0 %v9841
        %9951 = vmatpush.bf16.msra.mxu0 %v9840
        %9952 = vmatpush.bf16.msra.mxu0 %v9839
        %9953 = vmatpush.bf16.msra.mxu0 %v9838
        %9954 = vmatpush.bf16.msra.mxu0 %v9837
        %9955 = vmatmul.bf16.gmra.mxu0 %v9617
        %v9956 = vpop.f32.mrf.mxu0
        %v9957 = vadd.f32 %v9944, %v9956
        %v9958 = vpop.f32.mrf.mxu0
        %9959 = vdwg.mxu0
        %9960 = vmatpush.bf16.msra.mxu0 %v9852
        %9961 = vmatpush.bf16.msra.mxu0 %v9851
        %9962 = vmatpush.bf16.msra.mxu0 %v9850
        %9963 = vmatpush.bf16.msra.mxu0 %v9849
        %9964 = vmatpush.bf16.msra.mxu0 %v9848
        %9965 = vmatpush.bf16.msra.mxu0 %v9847
        %9966 = vmatpush.bf16.msra.mxu0 %v9846
        %9967 = vmatpush.bf16.msra.mxu0 %v9845
        %9968 = vmatmul.bf16.gmra.mxu0 %v9618
        %v9969 = vpop.f32.mrf.mxu0
        %v9970 = vadd.f32 %v9957, %v9969
        %v9971 = vpop.f32.mrf.mxu0
        %9972 = vdwg.mxu0
        %9973 = vmatpush.bf16.msra.mxu0 %v9860
        %9974 = vmatpush.bf16.msra.mxu0 %v9859
        %9975 = vmatpush.bf16.msra.mxu0 %v9858
        %9976 = vmatpush.bf16.msra.mxu0 %v9857
        %9977 = vmatpush.bf16.msra.mxu0 %v9856
        %9978 = vmatpush.bf16.msra.mxu0 %v9855
        %9979 = vmatpush.bf16.msra.mxu0 %v9854
        %9980 = vmatpush.bf16.msra.mxu0 %v9853
        %9981 = vmatmul.bf16.gmra.mxu0 %v9619
        %v9982 = vpop.f32.mrf.mxu0
        %v9983 = vadd.f32 %v9970, %v9982
        %v9984 = vpop.f32.mrf.mxu0
        %9985 = vdwg.mxu0
        %9986 = vmatpush.bf16.msra.mxu0 %v9868
        %9987 = vmatpush.bf16.msra.mxu0 %v9867
        %9988 = vmatpush.bf16.msra.mxu0 %v9866
        %9989 = vmatpush.bf16.msra.mxu0 %v9865
        %9990 = vmatpush.bf16.msra.mxu0 %v9864
        %9991 = vmatpush.bf16.msra.mxu0 %v9863
        %9992 = vmatpush.bf16.msra.mxu0 %v9862
        %9993 = vmatpush.bf16.msra.mxu0 %v9861
        %9994 = vmatmul.bf16.gmra.mxu0 %v9620
        %v9995 = vpop.f32.mrf.mxu0
        %v9996 = vadd.f32 %v9983, %v9995
        %v9997 = vpop.f32.mrf.mxu0
        %9998 = vdwg.mxu0
        %9999 = vmatpush.bf16.msra.mxu0 %v9876
        %10000 = vmatpush.bf16.msra.mxu0 %v9875
        %10001 = vmatpush.bf16.msra.mxu0 %v9874
        %10002 = vmatpush.bf16.msra.mxu0 %v9873
        %10003 = vmatpush.bf16.msra.mxu0 %v9872
        %10004 = vmatpush.bf16.msra.mxu0 %v9871
        %10005 = vmatpush.bf16.msra.mxu0 %v9870
        %10006 = vmatpush.bf16.msra.mxu0 %v9869
        %10007 = vmatmul.bf16.gmra.mxu0 %v9621
        %v10008 = vpop.f32.mrf.mxu0
        %v10009 = vadd.f32 %v9996, %v10008
        %v10010 = vpop.f32.mrf.mxu0
        %10011 = vdwg.mxu0
        %10012 = vmatpush.bf16.msra.mxu0 0
        %10013 = vmatpush.bf16.msra.mxu0 0
        %10014 = vmatpush.bf16.msra.mxu0 0
        %10015 = vmatpush.bf16.msra.mxu0 0
        %10016 = vmatpush.bf16.msra.mxu0 0
        %10017 = vmatpush.bf16.msra.mxu0 0
        %10018 = vmatpush.bf16.msra.mxu0 %v9932
        %10019 = vmatpush.bf16.msra.mxu0 %v9877
        %10020 = vmatmul.bf16.gmra.mxu0 %v9929
        %v10021 = vpop.f32.mrf.mxu0
        %v10022 = vadd.f32 %v10009, %v10021
        %v10023 = vpop.f32.mrf.mxu0
        %10024 = vdwg.mxu0
        %v10025 = vadd.f32 %v9514, %v10022
        %vm10026 = vcmask 122880
        %v10027 = vsel %vm10026, %v10025, 0.0
        %10028 = vadd.xlane.f32.xlu0 %v10027
        %v10029 = vpop.xlane.xlu0 %10028
        %v10030 = vrcp.pop 16.0
        %v10031 = vmul.f32 16.0, %v10030
        %v10032 = vsub.f32 1.0, %v10031
        %v10033 = vmul.f32 %v10030, %v10032
        %v10034 = vadd.f32 %v10030, %v10033
        %vm10035 = vweird.f32 %v10030
        %v10036 = vsel %vm10035, %v10030, %v10034
        %v10037 = vmul.f32 %v10029, %v10036
        %v10038 = vsub.f32 %v10025, %v10037
        %v10039 = vmul.f32 %v10038, %v10038
        %v10040 = vsel %vm10026, %v10039, 0.0
        %10041 = vadd.xlane.f32.xlu0 %v10040
        %v10042 = vpop.xlane.xlu0 %10041
        %v10043 = vmul.f32 %v10042, %v10036
        %v10044 = vadd.f32 %v10043, 1e-05
        %v10045 = vrsqrt.pop %v10044
        %v10046 = vmul.f32 %v10045, %v10044
        %v10047 = vmul.f32 %v10046, %v10045
        %v10048 = vmul.f32 0.5, %v10047
        %v10049 = vsub.f32 1.5, %v10048
        %v10050 = vmul.f32 %v10045, %v10049
        %vm10051 = vweird.f32 %v10044
        %vm10052 = vweird.f32 %v10045
        %vm10053 = vmor %vm10051, %vm10052
        %v10054 = vsel %vm10053, %v10045, %v10050
        %v10055 = vmul.f32 %v10038, %v10054
        %v10056 = vld [vmem:[%s6] sm:$0x1]
        %v10057 = vmul.f32 %v10055, %v10056
        %v10058 = vld [vmem:[%s7] sm:$0x1]
        %v10059 = vadd.f32 %v10057, %v10058
        %10060 = vst.msk [vmem:[%s297] sm:$0x1] %vm10026, %v10059
        %s10061 = sand.u32 %s203, 1
        %s10062 = scalar_lea.sflag [#allocation3], %s10061
        %s10063 = sand.u32 %s203, 1
        %s10064 = scalar_lea.vmem [#allocation2], %s10063
        // Predicated region
        $region53: #{pixel_encoder_forward.1} parent=51 // pred_check
          %p10065 = pneg %p213
        $region54: #{pixel_encoder_forward.1} parent=51 // pred_check_branch
          %10067 = sbr.rel (%p10065) target = $region56
        $region55: #{pixel_encoder_forward.1} parent=51 // pred_region
          %10069 = vsyncadd %s10062, 0
          %s10070 = scalar_lea.hbm %s8, %s22
          %s10072 = sshll.u32 %s10064, 4
          %s10073 = int_to_ptr.vmem [resolvable:$true] %s10072
          %s10074 = sshll.u32 %s10070, 4
          %s10075 = int_to_ptr.hbm [resolvable:$true] %s10074
          %10077 = dma.vmem_to_hbm [thread:$0]  %s10073, 16, %s10075, %s10062
        $region56: #{pixel_encoder_forward.1} parent=51 // pred_fallthru
          _
      $region52: #{pixel_encoder_forward.1} parent=5 // pred_fallthru
        _
      %p10078 = scmp.le.s32.totalorder 2, %s17
      // Predicated region
      $region57: #{pixel_encoder_forward.1} parent=5 // pred_check
        %p10079 = pneg %p10078
      $region58: #{pixel_encoder_forward.1} parent=5 // pred_check_branch
        %10081 = sbr.rel (%p10079) target = $region60
      $region59: #{pixel_encoder_forward.1} parent=5 // pred_region
        %s10082 = ssub.s32 %s17, 2
        // Predicated region
        $region61: #{pixel_encoder_forward.1} parent=59 // pred_check
          %p10083 = pneg %p219
        $region62: #{pixel_encoder_forward.1} parent=59 // pred_check_branch
          %10085 = sbr.rel (%p10083) target = $region64
        $region63: #{pixel_encoder_forward.1} parent=59 // pred_region
          %s10086 = sand.u32 %s204, 1
          %s10087 = scalar_lea.sflag [#allocation3], %s10086
          %s10088 = sand.u32 %s204, 1
          %s10089 = scalar_lea.vmem [#allocation2], %s10088
          %10091 = dma.done %s10087, 16
        $region64: #{pixel_encoder_forward.1} parent=59 // pred_fallthru
          _
      $region60: #{pixel_encoder_forward.1} parent=5 // pred_fallthru
        _
    $region6: #{pixel_encoder_forward.1} parent=1 // loop_footer
      %s21 = sadd.s32 1, %s17
    $region7: #{pixel_encoder_forward.1} parent=1 // loop_footer_branch
      %16 = sbr.rel target = $region3
    $region8: #{pixel_encoder_forward.1} parent=1 // loop_exit
      _
    %10092 = vsyncpa [#allocation3], 1
    %s10093 = scalar_lea.sflag [#allocation3], 1
    %10094 = vsyncpa %s10093, 1

</llo_original>
